<compile_context>
chip_gen: v6e
topology: v6e:2x2x1
jax: 0.10.0
libtpu: 0.0.40
codegen_flags: <defaults>
</compile_context>

<pallas_src>
import math
import functools

import jax
import jax.numpy as jnp
from jax import lax
from jax.experimental import pallas as pl
from jax.experimental.pallas import tpu as pltpu

HIDDEN = 128            # per-direction LSTM hidden size
NUM_LAYERS = 2
BIDIR_DIM = 2 * HIDDEN  # 256
LN_EPS = 1e-5
VMEM_LIMIT = 48 * 1024 * 1024   # explicit scoped-VMEM cap (safe on v5e/v6e/v7x)


# ---------------------------------------------------------------------------
# tiling helpers
# ---------------------------------------------------------------------------
def _row_tiling(n, cap=512):
    """(row_tile, padded_rows) for a GEMM over n independent rows.

    Prefers a multiple-of-16 divisor of n in [128, cap]; otherwise pads n up to a
    multiple of 256 so we never fall back to tiny (8-row) tiles or a full-N tile.
    """
    if n <= cap:
        return n, n
    for d in range(cap - cap % 16, 127, -16):
        if n % d == 0:
            return d, n
    t = 256
    return t, ((n + t - 1) // t) * t


def _col_tiling(v, cap=2048):
    """(vocab_tile, padded_vocab): multiple-of-128 tiles, pad when needed."""
    vp = ((v + 127) // 128) * 128
    if vp <= cap:
        return vp, vp
    for d in range(cap, 511, -128):
        if vp % d == 0:
            return d, vp
    vp = ((v + 1023) // 1024) * 1024
    return 1024, vp


def _time_tile(t, b):
    """Largest divisor of t fitting a ~20 MiB VMEM budget for the recurrence chunk."""
    budget = 20 * 1024 * 1024
    # per time step: gx f32 (B,4H) x2 buffers + out bf16 (B,H) x2 buffers
    per_step = (4 * 4 * HIDDEN + 2 * HIDDEN) * 2 * max(b, 8)
    cap = max(1, min(128, budget // per_step))
    for d in range(min(t, cap), 0, -1):
        if t % d == 0:
            return d
    return 1


# ---------------------------------------------------------------------------
# Input-projection GEMM: gates_x = x @ W_ih + (b_ih + b_hh) for all timesteps,
# both directions fused into one (in_dim, 8H) weight.
# ---------------------------------------------------------------------------
def _proj_single_kernel(x_ref, w_ref, b_ref, o_ref):
    o_ref[...] = (jnp.dot(x_ref[...].astype(jnp.bfloat16), w_ref[...],
                          preferred_element_type=jnp.float32) + b_ref[...])


def _proj_bidir_kernel(xf_ref, xb_ref, w_ref, b_ref, o_ref):
    # K=256 GEMM: concat the two 128-wide bf16 halves in VMEM (fills the MXU K dim).
    x = jnp.concatenate([xf_ref[...], xb_ref[...]], axis=-1)          # (tn, 2H) bf16
    o_ref[...] = (jnp.dot(x, w_ref[...], preferred_element_type=jnp.float32)
                  + b_ref[...])


def input_projection_single(x, w, b):
    """x: (N, D) f32; w: (D, 8H) bf16; b: (1, 8H) f32 -> (N, 8H) f32."""
    N, D = x.shape
    G = w.shape[1]
    tn, Np = _row_tiling(N)
    if Np != N:
        x = jnp.pad(x, ((0, Np - N), (0, 0)))
    out = pl.pallas_call(
        _proj_single_kernel,
        out_shape=jax.ShapeDtypeStruct((Np, G), jnp.float32),
        grid_spec=pltpu.PrefetchScalarGridSpec(
            num_scalar_prefetch=0,
            grid=(Np // tn,),
            in_specs=[pl.BlockSpec((tn, D), lambda i: (i, 0)),
                      pl.BlockSpec((D, G), lambda i: (0, 0)),
                      pl.BlockSpec((1, G), lambda i: (0, 0))],
            out_specs=pl.BlockSpec((tn, G), lambda i: (i, 0)),
        ),
        compiler_params=pltpu.CompilerParams(
            dimension_semantics=("parallel",),
            vmem_limit_bytes=VMEM_LIMIT),
    )(x, w, b)
    return out[:N] if Np != N else out


def input_projection_bidir(hs, w, b):
    """hs: (2, N, H) bf16 stacked [h_fwd, h_bwd]; w: (2H, 8H) bf16 -> (N, 8H) f32."""
    _, N, H = hs.shape
    G = w.shape[1]
    tn, Np = _row_tiling(N)
    if Np != N:
        hs = jnp.pad(hs, ((0, 0), (0, Np - N), (0, 0)))
    out = pl.pallas_call(
        _proj_bidir_kernel,
        out_shape=jax.ShapeDtypeStruct((Np, G), jnp.float32),
        grid_spec=pltpu.PrefetchScalarGridSpec(
            num_scalar_prefetch=0,
            grid=(Np // tn,),
            in_specs=[pl.BlockSpec((None, tn, H), lambda i: (0, i, 0)),
                      pl.BlockSpec((None, tn, H), lambda i: (1, i, 0)),
                      pl.BlockSpec((2 * H, G), lambda i: (0, 0)),
                      pl.BlockSpec((1, G), lambda i: (0, 0))],
            out_specs=pl.BlockSpec((tn, G), lambda i: (i, 0)),
        ),
        compiler_params=pltpu.CompilerParams(
            dimension_semantics=("parallel",),
            vmem_limit_bytes=VMEM_LIMIT),
    )(hs, hs, w, b)
    return out[:N] if Np != N else out


# ---------------------------------------------------------------------------
# Bidirectional LSTM recurrence with a parallel "direction" grid axis.
# gx (T, B, 8H) holds precomputed x@W_ih+b as [fwd 4H | bwd 4H]; each (d, c) grid
# step loads only its direction's 4H lane-half of chunk c (time-reversed chunks and
# lane selection are free in the index_map).  Only h @ W_hh remains serial.
# ---------------------------------------------------------------------------
def _bilstm_kernel(gx_ref, whh_ref, o_ref, h_sc, c_sc, *, tc):
    H = HIDDEN
    d = pl.program_id(0)        # 0 = forward, 1 = backward
    c = pl.program_id(1)

    @pl.when(c == 0)
    def _():
        h_sc[...] = jnp.zeros_like(h_sc)
        c_sc[...] = jnp.zeros_like(c_sc)

    whh = whh_ref[...]          # (H, 4H) bf16, VMEM-resident for the whole chunk walk

    def step(s, carry):
        h_prev, c_prev = carry
        t = s + d * (tc - 1 - 2 * s)     # fwd: s, bwd: tc-1-s (in-chunk reversal)
        g = (jnp.dot(h_prev.astype(jnp.bfloat16), whh,
                     preferred_element_type=jnp.float32) + gx_ref[t])   # (B, 4H) f32
        # PyTorch gate order: input, forget, cell(g), output; slices lane-aligned at 128.
        i_g = jax.nn.sigmoid(g[:, 0 * H:1 * H])
        f_g = jax.nn.sigmoid(g[:, 1 * H:2 * H])
        g_g = jnp.tanh(g[:, 2 * H:3 * H])
        o_g = jax.nn.sigmoid(g[:, 3 * H:4 * H])
        c_new = f_g * c_prev + i_g * g_g
        h_new = o_g * jnp.tanh(c_new)
        o_ref[t] = h_new.astype(o_ref.dtype)
        return (h_new, c_new)

    h, cst = lax.fori_loop(0, tc, step, (h_sc[...], c_sc[...]),
                           unroll=min(tc, 8))
    h_sc[...] = h
    c_sc[...] = cst


def bilstm_layer(gx, whh):
    """gx: (T, B, 8H) f32 precomputed gates_x; whh: (2, H, 4H) bf16.

    Returns stacked hidden states (2, T, B, H) bf16 ([h_fwd, h_bwd])."""
    T, B, _ = gx.shape
    H = HIDDEN
    tc = _time_tile(T, B)
    nc = T // tc
    kern = functools.partial(_bilstm_kernel, tc=tc)

    return pl.pallas_call(
        kern,
        out_shape=jax.ShapeDtypeStruct((2, T, B, H), jnp.bfloat16),
        grid_spec=pltpu.PrefetchScalarGridSpec(
            num_scalar_prefetch=0,
            grid=(2, nc),
            in_specs=[
                # chunk c (fwd) / chunk nc-1-c (bwd); lane-half d of the 8H gate axis
                pl.BlockSpec((tc, B, 4 * H),
                             lambda d, c: (c + d * (nc - 1 - 2 * c), 0, d)),
                # W_hh for direction d, resident across the whole chunk walk
                pl.BlockSpec((None, H, 4 * H), lambda d, c: (d, 0, 0)),
            ],
            out_specs=pl.BlockSpec(
                (None, tc, B, H),
                lambda d, c: (d, c + d * (nc - 1 - 2 * c), 0, 0)),
            scratch_shapes=[pltpu.VMEM((B, H), jnp.float32),   # h state
                            pltpu.VMEM((B, H), jnp.float32)],  # c state
        ),
        compiler_params=pltpu.CompilerParams(
            # direction axis parallel (2 TCs on v7x), time recurrence sequential
            dimension_semantics=("parallel", "arbitrary"),
            vmem_limit_bytes=VMEM_LIMIT),
    )(gx, whh)


# ---------------------------------------------------------------------------
# Head: LayerNorm(256) -> GELU(erf) -> Dropout(identity/eval) -> Linear(256, V)
# Works on the stacked (2, N, H) halves (LayerNorm stats over the virtual concat),
# one K=256 GEMM against an unsplit (256, Vt) weight, vocab axis tiled.
# ---------------------------------------------------------------------------
def _head_kernel(xf_ref, xb_ref, gamma_ref, beta_ref, w_ref, b_ref, o_ref):
    H = HIDDEN
    C = float(2 * H)
    xf = xf_ref[...].astype(jnp.float32)
    xb = xb_ref[...].astype(jnp.float32)

    mu = (jnp.sum(xf, axis=-1, keepdims=True)
          + jnp.sum(xb, axis=-1, keepdims=True)) / C
    df = xf - mu
    db = xb - mu
    var = (jnp.sum(df * df, axis=-1, keepdims=True)
           + jnp.sum(db * db, axis=-1, keepdims=True)) / C
    inv = lax.rsqrt(var + LN_EPS)

    yf = df * inv * gamma_ref[:, :H] + beta_ref[:, :H]
    yb = db * inv * gamma_ref[:, H:] + beta_ref[:, H:]

    inv_sqrt2 = 1.0 / math.sqrt(2.0)
    gf = 0.5 * yf * (1.0 + lax.erf(yf * inv_sqrt2))      # exact-erf GELU
    gb = 0.5 * yb * (1.0 + lax.erf(yb * inv_sqrt2))
    # Dropout(p=0.15): eval-mode identity.

    g = jnp.concatenate([gf, gb], axis=-1).astype(jnp.bfloat16)   # (tn, 2H)
    o_ref[...] = (jnp.dot(g, w_ref[...], preferred_element_type=jnp.float32)
                  + b_ref[...])


def head(hs, gamma, beta, wdec, b_dec):
    """hs: (2, N, H) bf16; wdec: (2H, V) bf16.  Returns logits (N, V) f32."""
    _, N, H = hs.shape
    V = wdec.shape[1]
    tn, Np = _row_tiling(N)
    vt, Vp = _col_tiling(V)
    if Np != N:
        hs = jnp.pad(hs, ((0, 0), (0, Np - N), (0, 0)))
    if Vp != V:
        wdec = jnp.pad(wdec, ((0, 0), (0, Vp - V)))
        b_dec = jnp.pad(b_dec, ((0, 0), (0, Vp - V)))

    out = pl.pallas_call(
        _head_kernel,
        out_shape=jax.ShapeDtypeStruct((Np, Vp), jnp.float32),
        grid_spec=pltpu.PrefetchScalarGridSpec(
            num_scalar_prefetch=0,
            grid=(Np // tn, Vp // vt),
            in_specs=[
                pl.BlockSpec((None, tn, H), lambda i, j: (0, i, 0)),   # h_fwd rows
                pl.BlockSpec((None, tn, H), lambda i, j: (1, i, 0)),   # h_bwd rows
                pl.BlockSpec((1, 2 * H), lambda i, j: (0, 0)),         # LN gamma
                pl.BlockSpec((1, 2 * H), lambda i, j: (0, 0)),         # LN beta
                pl.BlockSpec((2 * H, vt), lambda i, j: (0, j)),        # decoder W tile
                pl.BlockSpec((1, vt), lambda i, j: (0, j)),            # decoder bias tile
            ],
            out_specs=pl.BlockSpec((tn, vt), lambda i, j: (i, j)),
        ),
        compiler_params=pltpu.CompilerParams(
            dimension_semantics=("parallel", "parallel"),
            vmem_limit_bytes=VMEM_LIMIT),
    )(hs, hs, gamma, beta, wdec, b_dec)

    if Np != N or Vp != V:
        out = out[:N, :V]
    return out


# ---------------------------------------------------------------------------
# Parameter init (mirrors the PyTorch module's init; weights stored pre-transposed
# for x @ W, direction-fused, and stacked for the kernels above)
# ---------------------------------------------------------------------------
def xavier_uniform(key, fan_in, fan_out, shape):
    limit = math.sqrt(6.0 / (fan_in + fan_out))
    return jax.random.uniform(key, shape, jnp.float32, -limit, limit)


def init_params(key, input_dim, vocab_size):
    H = HIDDEN
    layers = []
    in_dim = input_dim
    for _layer in range(NUM_LAYERS):
        key, kf1, kf2, kb1, kb2, kbf, kbb = jax.random.split(key, 7)
        # NOTE: stored as (in_dim, 4H)/(H, 4H) for x @ W (transpose of PyTorch layout).
        w_ih_f = xavier_uniform(kf1, in_dim, 4 * H, (in_dim, 4 * H))
        w_hh_f = xavier_uniform(kf2, H, 4 * H, (H, 4 * H))
        w_ih_b = xavier_uniform(kb1, in_dim, 4 * H, (in_dim, 4 * H))
        w_hh_b = xavier_uniform(kb2, H, 4 * H, (H, 4 * H))
        # PyTorch default LSTM bias init U(-1/sqrt(H), 1/sqrt(H)); folded b = b_ih + b_hh.
        s = 1.0 / math.sqrt(H)
        b_f = jax.random.uniform(kbf, (2, 4 * H), jnp.float32, -s, s).sum(0)
        b_b = jax.random.uniform(kbb, (2, 4 * H), jnp.float32, -s, s).sum(0)

        layers.append({
            "w_proj": jnp.concatenate([w_ih_f, w_ih_b], axis=1).astype(jnp.bfloat16),  # (in, 8H)
            "b_proj": jnp.concatenate([b_f, b_b]).reshape(1, 8 * H),                   # (1, 8H)
            "whh": jnp.stack([w_hh_f, w_hh_b]).astype(jnp.bfloat16),                   # (2, H, 4H)
        })
        in_dim = 2 * H

    params = {"lstm": layers}
    # LayerNorm affine (gamma=1, beta=0)
    params["gamma"] = jnp.ones((1, BIDIR_DIM), jnp.float32)
    params["beta"] = jnp.zeros((1, BIDIR_DIM), jnp.float32)
    # decoder Linear(256, V): xavier weight (stored unsplit, pre-transposed), bias = 0.01
    key, kd = jax.random.split(key)
    w_dec = xavier_uniform(kd, BIDIR_DIM, vocab_size, (BIDIR_DIM, vocab_size))
    params["wdec"] = w_dec.astype(jnp.bfloat16)                 # (2H, V)
    params["b_dec"] = jnp.full((1, vocab_size), 0.01, jnp.float32)
    return params


# ---------------------------------------------------------------------------
# Forward pass
# ---------------------------------------------------------------------------
@jax.jit
def layer_decoder_forward(x, params):
    """x: (B, T, input_dim) f32 -> logits (B, T, vocab_size) f32."""
    B, T, D = x.shape
    H = HIDDEN
    # pad batch to >=8 sublanes (padded rows are independent and sliced off at the end)
    Bp = max(8, ((B + 7) // 8) * 8)
    if Bp != B:
        x = jnp.pad(x, ((0, Bp - B), (0, 0), (0, 0)))

    # single boundary transpose to time-major; everything below stays (T, Bp, .)
    xt = jnp.transpose(x, (1, 0, 2))
    N = T * Bp

    # layer 0
    lp = params["lstm"][0]
    gx = input_projection_single(xt.reshape(N, D), lp["w_proj"], lp["b_proj"])   # (N, 8H)
    hs = bilstm_layer(gx.reshape(T, Bp, 8 * H), lp["whh"])                       # (2,T,Bp,H) bf16

    # layers 1..
    for lp in params["lstm"][1:]:
        gx = input_projection_bidir(hs.reshape(2, N, H), lp["w_proj"], lp["b_proj"])
        hs = bilstm_layer(gx.reshape(T, Bp, 8 * H), lp["whh"])

    logits = head(hs.reshape(2, N, H), params["gamma"], params["beta"],
                  params["wdec"], params["b_dec"])                               # (N, V)
    V = logits.shape[1]
    # TODO(synk): fuse this transpose into the head out_spec (batch-major output blocks).
    logits = logits.reshape(T, Bp, V).transpose(1, 0, 2)
    return logits[:B]


if __name__ == "__main__":
    B, T, INPUT_DIM, VOCAB = 2, 8, 32, 384

    key = jax.random.PRNGKey(0)
    key, kx = jax.random.split(key)
    x = jax.random.normal(kx, (B, T, INPUT_DIM), jnp.float32)

    params = init_params(key, INPUT_DIM, VOCAB)

    out = layer_decoder_forward(x, params)
    jax.block_until_ready(out)

    assert out.shape == (B, T, VOCAB), out.shape
    assert bool(jnp.all(jnp.isfinite(out)))
    print("KERNEL_OK")
</pallas_src>

<mosaic_0001>
module attributes {stable_mosaic.version = 11 : i64} {
  func.func @_bilstm_kernel(%arg0: i32, %arg1: i32, %arg2: memref<8x8x512xf32, #tpu.memory_space<vmem>>, %arg3: memref<1x128x512xbf16, #tpu.memory_space<vmem>>, %arg4: memref<1x8x8x128xbf16, #tpu.memory_space<vmem>>, %arg5: memref<8x128xf32, #tpu.memory_space<vmem>>, %arg6: memref<8x128xf32, #tpu.memory_space<vmem>>) attributes {dimension_semantics = [#tpu.dimension_semantics<parallel>, #tpu.dimension_semantics<arbitrary>], iteration_bounds = array<i64: 2, 1>, scalar_prefetch = 0 : i64, scratch_operands = 2 : i64, tpu.core_type = #tpu.core_type<tc>, window_params = [{transform_indices = @transform_0, window_bounds = array<i64: 8, 8, 512>}, {transform_indices = @transform_1, window_bounds = array<i64: 1, 128, 512>}, {transform_indices = @transform_2, window_bounds = array<i64: 1, 8, 8, 128>}]} {
    %c0_i32 = arith.constant 0 : i32
    %0 = arith.cmpi eq, %arg1, %c0_i32 : i32
    %1 = arith.extui %0 : i1 to i32
    %c0_i32_0 = arith.constant 0 : i32
    %2 = arith.cmpi ne, %1, %c0_i32_0 : i32
    scf.if %2 {
      %cst_99 = arith.constant 0.000000e+00 : f32
      %329 = vector.broadcast %cst_99 : f32 to vector<8x128xf32>
      %c0_100 = arith.constant 0 : index
      %c0_101 = arith.constant 0 : index
      %330 = vector.load %arg5[%c0_100, %c0_101] : memref<8x128xf32, #tpu.memory_space<vmem>>, vector<8x128xf32>
      tpu.vector_store %arg5[%c0_100, %c0_101], %329 {strides = array<i32>} : memref<8x128xf32, #tpu.memory_space<vmem>>, vector<8x128xf32>,
      %cst_102 = arith.constant 0.000000e+00 : f32
      %331 = vector.broadcast %cst_102 : f32 to vector<8x128xf32>
      %c0_103 = arith.constant 0 : index
      %c0_104 = arith.constant 0 : index
      %332 = vector.load %arg6[%c0_103, %c0_104] : memref<8x128xf32, #tpu.memory_space<vmem>>, vector<8x128xf32>
      tpu.vector_store %arg6[%c0_103, %c0_104], %331 {strides = array<i32>} : memref<8x128xf32, #tpu.memory_space<vmem>>, vector<8x128xf32>,
    } else {
    }
    %c0 = arith.constant 0 : index
    %c0_1 = arith.constant 0 : index
    %c0_2 = arith.constant 0 : index
    %3 = vector.load %arg3[%c0, %c0_1, %c0_2] : memref<1x128x512xbf16, #tpu.memory_space<vmem>>, vector<1x128x512xbf16>
    %4 = vector.shape_cast %3 : vector<1x128x512xbf16> to vector<128x512xbf16>
    %c0_3 = arith.constant 0 : index
    %c0_4 = arith.constant 0 : index
    %5 = vector.load %arg5[%c0_3, %c0_4] : memref<8x128xf32, #tpu.memory_space<vmem>>, vector<8x128xf32>
    %c0_5 = arith.constant 0 : index
    %c0_6 = arith.constant 0 : index
    %6 = vector.load %arg6[%c0_5, %c0_6] : memref<8x128xf32, #tpu.memory_space<vmem>>, vector<8x128xf32>
    %c0_i32_7 = arith.constant 0 : i32
    %c2_i32 = arith.constant 2 : i32
    %7 = arith.muli %c2_i32, %c0_i32_7 : i32
    %c7_i32 = arith.constant 7 : i32
    %8 = arith.subi %c7_i32, %7 : i32
    %9 = arith.muli %arg0, %8 : i32
    %10 = arith.addi %c0_i32_7, %9 : i32
    %11 = arith.truncf %5 : vector<8x128xf32> to vector<8x128xbf16>
    %cst = arith.constant dense<0.000000e+00> : vector<8x512xf32>
    %12 = tpu.matmul %11, %4, %cst {dimension_numbers = #tpu.dot_dimension_numbers<[1], [0], [0], [1], [0, 0, 1, 1], [], []>} : vector<8x128xbf16>, vector<128x512xbf16>, vector<8x512xf32> -> vector<8x512xf32>
    %13 = arith.index_cast %10 : i32 to index
    %c0_8 = arith.constant 0 : index
    %c0_9 = arith.constant 0 : index
    %14 = vector.load %arg2[%13, %c0_8, %c0_9] : memref<8x8x512xf32, #tpu.memory_space<vmem>>, vector<1x8x512xf32>
    %15 = vector.shape_cast %14 : vector<1x8x512xf32> to vector<8x512xf32>
    %16 = arith.addf %12, %15 : vector<8x512xf32>
    %17 = vector.extract_strided_slice %16 {offsets = [0, 0], sizes = [8, 128], strides = [1, 1]} : vector<8x512xf32> to vector<8x128xf32>
    %18 = arith.negf %17 : vector<8x128xf32>
    %19 = math.exp %18 : vector<8x128xf32>
    %cst_10 = arith.constant 1.000000e+00 : f32
    %20 = vector.broadcast %cst_10 : f32 to vector<8x128xf32>
    %21 = arith.addf %20, %19 : vector<8x128xf32>
    %22 = arith.divf %20, %21 : vector<8x128xf32>
    %23 = vector.extract_strided_slice %16 {offsets = [0, 128], sizes = [8, 128], strides = [1, 1]} : vector<8x512xf32> to vector<8x128xf32>
    %24 = arith.negf %23 : vector<8x128xf32>
    %25 = math.exp %24 : vector<8x128xf32>
    %cst_11 = arith.constant 1.000000e+00 : f32
    %26 = vector.broadcast %cst_11 : f32 to vector<8x128xf32>
    %27 = arith.addf %26, %25 : vector<8x128xf32>
    %28 = arith.divf %26, %27 : vector<8x128xf32>
    %29 = vector.extract_strided_slice %16 {offsets = [0, 256], sizes = [8, 128], strides = [1, 1]} : vector<8x512xf32> to vector<8x128xf32>
    %30 = math.tanh %29 : vector<8x128xf32>
    %31 = vector.extract_strided_slice %16 {offsets = [0, 384], sizes = [8, 128], strides = [1, 1]} : vector<8x512xf32> to vector<8x128xf32>
    %32 = arith.negf %31 : vector<8x128xf32>
    %33 = math.exp %32 : vector<8x128xf32>
    %cst_12 = arith.constant 1.000000e+00 : f32
    %34 = vector.broadcast %cst_12 : f32 to vector<8x128xf32>
    %35 = arith.addf %34, %33 : vector<8x128xf32>
    %36 = arith.divf %34, %35 : vector<8x128xf32>
    %37 = arith.mulf %28, %6 : vector<8x128xf32>
    %38 = arith.mulf %22, %30 : vector<8x128xf32>
    %39 = arith.addf %37, %38 : vector<8x128xf32>
    %40 = math.tanh %39 : vector<8x128xf32>
    %41 = arith.mulf %36, %40 : vector<8x128xf32>
    %42 = arith.truncf %41 : vector<8x128xf32> to vector<8x128xbf16>
    %c0_13 = arith.constant 0 : index
    %43 = arith.index_cast %10 : i32 to index
    %c0_14 = arith.constant 0 : index
    %c0_15 = arith.constant 0 : index
    %44 = vector.load %arg4[%c0_13, %43, %c0_14, %c0_15] : memref<1x8x8x128xbf16, #tpu.memory_space<vmem>>, vector<1x1x8x128xbf16>
    %45 = vector.shape_cast %44 : vector<1x1x8x128xbf16> to vector<8x128xbf16>
    %46 = vector.shape_cast %42 : vector<8x128xbf16> to vector<1x1x8x128xbf16>
    tpu.vector_store %arg4[%c0_13, %43, %c0_14, %c0_15], %46 {strides = array<i32>} : memref<1x8x8x128xbf16, #tpu.memory_space<vmem>>, vector<1x1x8x128xbf16>,
    %c1_i32 = arith.constant 1 : i32
    %c2_i32_16 = arith.constant 2 : i32
    %47 = arith.muli %c2_i32_16, %c1_i32 : i32
    %c7_i32_17 = arith.constant 7 : i32
    %48 = arith.subi %c7_i32_17, %47 : i32
    %49 = arith.muli %arg0, %48 : i32
    %50 = arith.addi %c1_i32, %49 : i32
    %51 = arith.truncf %41 : vector<8x128xf32> to vector<8x128xbf16>
    %cst_18 = arith.constant dense<0.000000e+00> : vector<8x512xf32>
    %52 = tpu.matmul %51, %4, %cst_18 {dimension_numbers = #tpu.dot_dimension_numbers<[1], [0], [0], [1], [0, 0, 1, 1], [], []>} : vector<8x128xbf16>, vector<128x512xbf16>, vector<8x512xf32> -> vector<8x512xf32>
    %53 = arith.index_cast %50 : i32 to index
    %c0_19 = arith.constant 0 : index
    %c0_20 = arith.constant 0 : index
    %54 = vector.load %arg2[%53, %c0_19, %c0_20] : memref<8x8x512xf32, #tpu.memory_space<vmem>>, vector<1x8x512xf32>
    %55 = vector.shape_cast %54 : vector<1x8x512xf32> to vector<8x512xf32>
    %56 = arith.addf %52, %55 : vector<8x512xf32>
    %57 = vector.extract_strided_slice %56 {offsets = [0, 0], sizes = [8, 128], strides = [1, 1]} : vector<8x512xf32> to vector<8x128xf32>
    %58 = arith.negf %57 : vector<8x128xf32>
    %59 = math.exp %58 : vector<8x128xf32>
    %cst_21 = arith.constant 1.000000e+00 : f32
    %60 = vector.broadcast %cst_21 : f32 to vector<8x128xf32>
    %61 = arith.addf %60, %59 : vector<8x128xf32>
    %62 = arith.divf %60, %61 : vector<8x128xf32>
    %63 = vector.extract_strided_slice %56 {offsets = [0, 128], sizes = [8, 128], strides = [1, 1]} : vector<8x512xf32> to vector<8x128xf32>
    %64 = arith.negf %63 : vector<8x128xf32>
    %65 = math.exp %64 : vector<8x128xf32>
    %cst_22 = arith.constant 1.000000e+00 : f32
    %66 = vector.broadcast %cst_22 : f32 to vector<8x128xf32>
    %67 = arith.addf %66, %65 : vector<8x128xf32>
    %68 = arith.divf %66, %67 : vector<8x128xf32>
    %69 = vector.extract_strided_slice %56 {offsets = [0, 256], sizes = [8, 128], strides = [1, 1]} : vector<8x512xf32> to vector<8x128xf32>
    %70 = math.tanh %69 : vector<8x128xf32>
    %71 = vector.extract_strided_slice %56 {offsets = [0, 384], sizes = [8, 128], strides = [1, 1]} : vector<8x512xf32> to vector<8x128xf32>
    %72 = arith.negf %71 : vector<8x128xf32>
    %73 = math.exp %72 : vector<8x128xf32>
    %cst_23 = arith.constant 1.000000e+00 : f32
    %74 = vector.broadcast %cst_23 : f32 to vector<8x128xf32>
    %75 = arith.addf %74, %73 : vector<8x128xf32>
    %76 = arith.divf %74, %75 : vector<8x128xf32>
    %77 = arith.mulf %68, %39 : vector<8x128xf32>
    %78 = arith.mulf %62, %70 : vector<8x128xf32>
    %79 = arith.addf %77, %78 : vector<8x128xf32>
    %80 = math.tanh %79 : vector<8x128xf32>
    %81 = arith.mulf %76, %80 : vector<8x128xf32>
    %82 = arith.truncf %81 : vector<8x128xf32> to vector<8x128xbf16>
    %c0_24 = arith.constant 0 : index
    %83 = arith.index_cast %50 : i32 to index
    %c0_25 = arith.constant 0 : index
    %c0_26 = arith.constant 0 : index
    %84 = vector.load %arg4[%c0_24, %83, %c0_25, %c0_26] : memref<1x8x8x128xbf16, #tpu.memory_space<vmem>>, vector<1x1x8x128xbf16>
    %85 = vector.shape_cast %84 : vector<1x1x8x128xbf16> to vector<8x128xbf16>
    %86 = vector.shape_cast %82 : vector<8x128xbf16> to vector<1x1x8x128xbf16>
    tpu.vector_store %arg4[%c0_24, %83, %c0_25, %c0_26], %86 {strides = array<i32>} : memref<1x8x8x128xbf16, #tpu.memory_space<vmem>>, vector<1x1x8x128xbf16>,
    %c2_i32_27 = arith.constant 2 : i32
    %c2_i32_28 = arith.constant 2 : i32
    %87 = arith.muli %c2_i32_28, %c2_i32_27 : i32
    %c7_i32_29 = arith.constant 7 : i32
    %88 = arith.subi %c7_i32_29, %87 : i32
    %89 = arith.muli %arg0, %88 : i32
    %90 = arith.addi %c2_i32_27, %89 : i32
    %91 = arith.truncf %81 : vector<8x128xf32> to vector<8x128xbf16>
    %cst_30 = arith.constant dense<0.000000e+00> : vector<8x512xf32>
    %92 = tpu.matmul %91, %4, %cst_30 {dimension_numbers = #tpu.dot_dimension_numbers<[1], [0], [0], [1], [0, 0, 1, 1], [], []>} : vector<8x128xbf16>, vector<128x512xbf16>, vector<8x512xf32> -> vector<8x512xf32>
    %93 = arith.index_cast %90 : i32 to index
    %c0_31 = arith.constant 0 : index
    %c0_32 = arith.constant 0 : index
    %94 = vector.load %arg2[%93, %c0_31, %c0_32] : memref<8x8x512xf32, #tpu.memory_space<vmem>>, vector<1x8x512xf32>
    %95 = vector.shape_cast %94 : vector<1x8x512xf32> to vector<8x512xf32>
    %96 = arith.addf %92, %95 : vector<8x512xf32>
    %97 = vector.extract_strided_slice %96 {offsets = [0, 0], sizes = [8, 128], strides = [1, 1]} : vector<8x512xf32> to vector<8x128xf32>
    %98 = arith.negf %97 : vector<8x128xf32>
    %99 = math.exp %98 : vector<8x128xf32>
    %cst_33 = arith.constant 1.000000e+00 : f32
    %100 = vector.broadcast %cst_33 : f32 to vector<8x128xf32>
    %101 = arith.addf %100, %99 : vector<8x128xf32>
    %102 = arith.divf %100, %101 : vector<8x128xf32>
    %103 = vector.extract_strided_slice %96 {offsets = [0, 128], sizes = [8, 128], strides = [1, 1]} : vector<8x512xf32> to vector<8x128xf32>
    %104 = arith.negf %103 : vector<8x128xf32>
    %105 = math.exp %104 : vector<8x128xf32>
    %cst_34 = arith.constant 1.000000e+00 : f32
    %106 = vector.broadcast %cst_34 : f32 to vector<8x128xf32>
    %107 = arith.addf %106, %105 : vector<8x128xf32>
    %108 = arith.divf %106, %107 : vector<8x128xf32>
    %109 = vector.extract_strided_slice %96 {offsets = [0, 256], sizes = [8, 128], strides = [1, 1]} : vector<8x512xf32> to vector<8x128xf32>
    %110 = math.tanh %109 : vector<8x128xf32>
    %111 = vector.extract_strided_slice %96 {offsets = [0, 384], sizes = [8, 128], strides = [1, 1]} : vector<8x512xf32> to vector<8x128xf32>
    %112 = arith.negf %111 : vector<8x128xf32>
    %113 = math.exp %112 : vector<8x128xf32>
    %cst_35 = arith.constant 1.000000e+00 : f32
    %114 = vector.broadcast %cst_35 : f32 to vector<8x128xf32>
    %115 = arith.addf %114, %113 : vector<8x128xf32>
    %116 = arith.divf %114, %115 : vector<8x128xf32>
    %117 = arith.mulf %108, %79 : vector<8x128xf32>
    %118 = arith.mulf %102, %110 : vector<8x128xf32>
    %119 = arith.addf %117, %118 : vector<8x128xf32>
    %120 = math.tanh %119 : vector<8x128xf32>
    %121 = arith.mulf %116, %120 : vector<8x128xf32>
    %122 = arith.truncf %121 : vector<8x128xf32> to vector<8x128xbf16>
    %c0_36 = arith.constant 0 : index
    %123 = arith.index_cast %90 : i32 to index
    %c0_37 = arith.constant 0 : index
    %c0_38 = arith.constant 0 : index
    %124 = vector.load %arg4[%c0_36, %123, %c0_37, %c0_38] : memref<1x8x8x128xbf16, #tpu.memory_space<vmem>>, vector<1x1x8x128xbf16>
    %125 = vector.shape_cast %124 : vector<1x1x8x128xbf16> to vector<8x128xbf16>
    %126 = vector.shape_cast %122 : vector<8x128xbf16> to vector<1x1x8x128xbf16>
    tpu.vector_store %arg4[%c0_36, %123, %c0_37, %c0_38], %126 {strides = array<i32>} : memref<1x8x8x128xbf16, #tpu.memory_space<vmem>>, vector<1x1x8x128xbf16>,
    %c3_i32 = arith.constant 3 : i32
    %c2_i32_39 = arith.constant 2 : i32
    %127 = arith.muli %c2_i32_39, %c3_i32 : i32
    %c7_i32_40 = arith.constant 7 : i32
    %128 = arith.subi %c7_i32_40, %127 : i32
    %129 = arith.muli %arg0, %128 : i32
    %130 = arith.addi %c3_i32, %129 : i32
    %131 = arith.truncf %121 : vector<8x128xf32> to vector<8x128xbf16>
    %cst_41 = arith.constant dense<0.000000e+00> : vector<8x512xf32>
    %132 = tpu.matmul %131, %4, %cst_41 {dimension_numbers = #tpu.dot_dimension_numbers<[1], [0], [0], [1], [0, 0, 1, 1], [], []>} : vector<8x128xbf16>, vector<128x512xbf16>, vector<8x512xf32> -> vector<8x512xf32>
    %133 = arith.index_cast %130 : i32 to index
    %c0_42 = arith.constant 0 : index
    %c0_43 = arith.constant 0 : index
    %134 = vector.load %arg2[%133, %c0_42, %c0_43] : memref<8x8x512xf32, #tpu.memory_space<vmem>>, vector<1x8x512xf32>
    %135 = vector.shape_cast %134 : vector<1x8x512xf32> to vector<8x512xf32>
    %136 = arith.addf %132, %135 : vector<8x512xf32>
    %137 = vector.extract_strided_slice %136 {offsets = [0, 0], sizes = [8, 128], strides = [1, 1]} : vector<8x512xf32> to vector<8x128xf32>
    %138 = arith.negf %137 : vector<8x128xf32>
    %139 = math.exp %138 : vector<8x128xf32>
    %cst_44 = arith.constant 1.000000e+00 : f32
    %140 = vector.broadcast %cst_44 : f32 to vector<8x128xf32>
    %141 = arith.addf %140, %139 : vector<8x128xf32>
    %142 = arith.divf %140, %141 : vector<8x128xf32>
    %143 = vector.extract_strided_slice %136 {offsets = [0, 128], sizes = [8, 128], strides = [1, 1]} : vector<8x512xf32> to vector<8x128xf32>
    %144 = arith.negf %143 : vector<8x128xf32>
    %145 = math.exp %144 : vector<8x128xf32>
    %cst_45 = arith.constant 1.000000e+00 : f32
    %146 = vector.broadcast %cst_45 : f32 to vector<8x128xf32>
    %147 = arith.addf %146, %145 : vector<8x128xf32>
    %148 = arith.divf %146, %147 : vector<8x128xf32>
    %149 = vector.extract_strided_slice %136 {offsets = [0, 256], sizes = [8, 128], strides = [1, 1]} : vector<8x512xf32> to vector<8x128xf32>
    %150 = math.tanh %149 : vector<8x128xf32>
    %151 = vector.extract_strided_slice %136 {offsets = [0, 384], sizes = [8, 128], strides = [1, 1]} : vector<8x512xf32> to vector<8x128xf32>
    %152 = arith.negf %151 : vector<8x128xf32>
    %153 = math.exp %152 : vector<8x128xf32>
    %cst_46 = arith.constant 1.000000e+00 : f32
    %154 = vector.broadcast %cst_46 : f32 to vector<8x128xf32>
    %155 = arith.addf %154, %153 : vector<8x128xf32>
    %156 = arith.divf %154, %155 : vector<8x128xf32>
    %157 = arith.mulf %148, %119 : vector<8x128xf32>
    %158 = arith.mulf %142, %150 : vector<8x128xf32>
    %159 = arith.addf %157, %158 : vector<8x128xf32>
    %160 = math.tanh %159 : vector<8x128xf32>
    %161 = arith.mulf %156, %160 : vector<8x128xf32>
    %162 = arith.truncf %161 : vector<8x128xf32> to vector<8x128xbf16>
    %c0_47 = arith.constant 0 : index
    %163 = arith.index_cast %130 : i32 to index
    %c0_48 = arith.constant 0 : index
    %c0_49 = arith.constant 0 : index
    %164 = vector.load %arg4[%c0_47, %163, %c0_48, %c0_49] : memref<1x8x8x128xbf16, #tpu.memory_space<vmem>>, vector<1x1x8x128xbf16>
    %165 = vector.shape_cast %164 : vector<1x1x8x128xbf16> to vector<8x128xbf16>
    %166 = vector.shape_cast %162 : vector<8x128xbf16> to vector<1x1x8x128xbf16>
    tpu.vector_store %arg4[%c0_47, %163, %c0_48, %c0_49], %166 {strides = array<i32>} : memref<1x8x8x128xbf16, #tpu.memory_space<vmem>>, vector<1x1x8x128xbf16>,
    %c4_i32 = arith.constant 4 : i32
    %c2_i32_50 = arith.constant 2 : i32
    %167 = arith.muli %c2_i32_50, %c4_i32 : i32
    %c7_i32_51 = arith.constant 7 : i32
    %168 = arith.subi %c7_i32_51, %167 : i32
    %169 = arith.muli %arg0, %168 : i32
    %170 = arith.addi %c4_i32, %169 : i32
    %171 = arith.truncf %161 : vector<8x128xf32> to vector<8x128xbf16>
    %cst_52 = arith.constant dense<0.000000e+00> : vector<8x512xf32>
    %172 = tpu.matmul %171, %4, %cst_52 {dimension_numbers = #tpu.dot_dimension_numbers<[1], [0], [0], [1], [0, 0, 1, 1], [], []>} : vector<8x128xbf16>, vector<128x512xbf16>, vector<8x512xf32> -> vector<8x512xf32>
    %173 = arith.index_cast %170 : i32 to index
    %c0_53 = arith.constant 0 : index
    %c0_54 = arith.constant 0 : index
    %174 = vector.load %arg2[%173, %c0_53, %c0_54] : memref<8x8x512xf32, #tpu.memory_space<vmem>>, vector<1x8x512xf32>
    %175 = vector.shape_cast %174 : vector<1x8x512xf32> to vector<8x512xf32>
    %176 = arith.addf %172, %175 : vector<8x512xf32>
    %177 = vector.extract_strided_slice %176 {offsets = [0, 0], sizes = [8, 128], strides = [1, 1]} : vector<8x512xf32> to vector<8x128xf32>
    %178 = arith.negf %177 : vector<8x128xf32>
    %179 = math.exp %178 : vector<8x128xf32>
    %cst_55 = arith.constant 1.000000e+00 : f32
    %180 = vector.broadcast %cst_55 : f32 to vector<8x128xf32>
    %181 = arith.addf %180, %179 : vector<8x128xf32>
    %182 = arith.divf %180, %181 : vector<8x128xf32>
    %183 = vector.extract_strided_slice %176 {offsets = [0, 128], sizes = [8, 128], strides = [1, 1]} : vector<8x512xf32> to vector<8x128xf32>
    %184 = arith.negf %183 : vector<8x128xf32>
    %185 = math.exp %184 : vector<8x128xf32>
    %cst_56 = arith.constant 1.000000e+00 : f32
    %186 = vector.broadcast %cst_56 : f32 to vector<8x128xf32>
    %187 = arith.addf %186, %185 : vector<8x128xf32>
    %188 = arith.divf %186, %187 : vector<8x128xf32>
    %189 = vector.extract_strided_slice %176 {offsets = [0, 256], sizes = [8, 128], strides = [1, 1]} : vector<8x512xf32> to vector<8x128xf32>
    %190 = math.tanh %189 : vector<8x128xf32>
    %191 = vector.extract_strided_slice %176 {offsets = [0, 384], sizes = [8, 128], strides = [1, 1]} : vector<8x512xf32> to vector<8x128xf32>
    %192 = arith.negf %191 : vector<8x128xf32>
    %193 = math.exp %192 : vector<8x128xf32>
    %cst_57 = arith.constant 1.000000e+00 : f32
    %194 = vector.broadcast %cst_57 : f32 to vector<8x128xf32>
    %195 = arith.addf %194, %193 : vector<8x128xf32>
    %196 = arith.divf %194, %195 : vector<8x128xf32>
    %197 = arith.mulf %188, %159 : vector<8x128xf32>
    %198 = arith.mulf %182, %190 : vector<8x128xf32>
    %199 = arith.addf %197, %198 : vector<8x128xf32>
    %200 = math.tanh %199 : vector<8x128xf32>
    %201 = arith.mulf %196, %200 : vector<8x128xf32>
    %202 = arith.truncf %201 : vector<8x128xf32> to vector<8x128xbf16>
    %c0_58 = arith.constant 0 : index
    %203 = arith.index_cast %170 : i32 to index
    %c0_59 = arith.constant 0 : index
    %c0_60 = arith.constant 0 : index
    %204 = vector.load %arg4[%c0_58, %203, %c0_59, %c0_60] : memref<1x8x8x128xbf16, #tpu.memory_space<vmem>>, vector<1x1x8x128xbf16>
    %205 = vector.shape_cast %204 : vector<1x1x8x128xbf16> to vector<8x128xbf16>
    %206 = vector.shape_cast %202 : vector<8x128xbf16> to vector<1x1x8x128xbf16>
    tpu.vector_store %arg4[%c0_58, %203, %c0_59, %c0_60], %206 {strides = array<i32>} : memref<1x8x8x128xbf16, #tpu.memory_space<vmem>>, vector<1x1x8x128xbf16>,
    %c5_i32 = arith.constant 5 : i32
    %c2_i32_61 = arith.constant 2 : i32
    %207 = arith.muli %c2_i32_61, %c5_i32 : i32
    %c7_i32_62 = arith.constant 7 : i32
    %208 = arith.subi %c7_i32_62, %207 : i32
    %209 = arith.muli %arg0, %208 : i32
    %210 = arith.addi %c5_i32, %209 : i32
    %211 = arith.truncf %201 : vector<8x128xf32> to vector<8x128xbf16>
    %cst_63 = arith.constant dense<0.000000e+00> : vector<8x512xf32>
    %212 = tpu.matmul %211, %4, %cst_63 {dimension_numbers = #tpu.dot_dimension_numbers<[1], [0], [0], [1], [0, 0, 1, 1], [], []>} : vector<8x128xbf16>, vector<128x512xbf16>, vector<8x512xf32> -> vector<8x512xf32>
    %213 = arith.index_cast %210 : i32 to index
    %c0_64 = arith.constant 0 : index
    %c0_65 = arith.constant 0 : index
    %214 = vector.load %arg2[%213, %c0_64, %c0_65] : memref<8x8x512xf32, #tpu.memory_space<vmem>>, vector<1x8x512xf32>
    %215 = vector.shape_cast %214 : vector<1x8x512xf32> to vector<8x512xf32>
    %216 = arith.addf %212, %215 : vector<8x512xf32>
    %217 = vector.extract_strided_slice %216 {offsets = [0, 0], sizes = [8, 128], strides = [1, 1]} : vector<8x512xf32> to vector<8x128xf32>
    %218 = arith.negf %217 : vector<8x128xf32>
    %219 = math.exp %218 : vector<8x128xf32>
    %cst_66 = arith.constant 1.000000e+00 : f32
    %220 = vector.broadcast %cst_66 : f32 to vector<8x128xf32>
    %221 = arith.addf %220, %219 : vector<8x128xf32>
    %222 = arith.divf %220, %221 : vector<8x128xf32>
    %223 = vector.extract_strided_slice %216 {offsets = [0, 128], sizes = [8, 128], strides = [1, 1]} : vector<8x512xf32> to vector<8x128xf32>
    %224 = arith.negf %223 : vector<8x128xf32>
    %225 = math.exp %224 : vector<8x128xf32>
    %cst_67 = arith.constant 1.000000e+00 : f32
    %226 = vector.broadcast %cst_67 : f32 to vector<8x128xf32>
    %227 = arith.addf %226, %225 : vector<8x128xf32>
    %228 = arith.divf %226, %227 : vector<8x128xf32>
    %229 = vector.extract_strided_slice %216 {offsets = [0, 256], sizes = [8, 128], strides = [1, 1]} : vector<8x512xf32> to vector<8x128xf32>
    %230 = math.tanh %229 : vector<8x128xf32>
    %231 = vector.extract_strided_slice %216 {offsets = [0, 384], sizes = [8, 128], strides = [1, 1]} : vector<8x512xf32> to vector<8x128xf32>
    %232 = arith.negf %231 : vector<8x128xf32>
    %233 = math.exp %232 : vector<8x128xf32>
    %cst_68 = arith.constant 1.000000e+00 : f32
    %234 = vector.broadcast %cst_68 : f32 to vector<8x128xf32>
    %235 = arith.addf %234, %233 : vector<8x128xf32>
    %236 = arith.divf %234, %235 : vector<8x128xf32>
    %237 = arith.mulf %228, %199 : vector<8x128xf32>
    %238 = arith.mulf %222, %230 : vector<8x128xf32>
    %239 = arith.addf %237, %238 : vector<8x128xf32>
    %240 = math.tanh %239 : vector<8x128xf32>
    %241 = arith.mulf %236, %240 : vector<8x128xf32>
    %242 = arith.truncf %241 : vector<8x128xf32> to vector<8x128xbf16>
    %c0_69 = arith.constant 0 : index
    %243 = arith.index_cast %210 : i32 to index
    %c0_70 = arith.constant 0 : index
    %c0_71 = arith.constant 0 : index
    %244 = vector.load %arg4[%c0_69, %243, %c0_70, %c0_71] : memref<1x8x8x128xbf16, #tpu.memory_space<vmem>>, vector<1x1x8x128xbf16>
    %245 = vector.shape_cast %244 : vector<1x1x8x128xbf16> to vector<8x128xbf16>
    %246 = vector.shape_cast %242 : vector<8x128xbf16> to vector<1x1x8x128xbf16>
    tpu.vector_store %arg4[%c0_69, %243, %c0_70, %c0_71], %246 {strides = array<i32>} : memref<1x8x8x128xbf16, #tpu.memory_space<vmem>>, vector<1x1x8x128xbf16>,
    %c6_i32 = arith.constant 6 : i32
    %c2_i32_72 = arith.constant 2 : i32
    %247 = arith.muli %c2_i32_72, %c6_i32 : i32
    %c7_i32_73 = arith.constant 7 : i32
    %248 = arith.subi %c7_i32_73, %247 : i32
    %249 = arith.muli %arg0, %248 : i32
    %250 = arith.addi %c6_i32, %249 : i32
    %251 = arith.truncf %241 : vector<8x128xf32> to vector<8x128xbf16>
    %cst_74 = arith.constant dense<0.000000e+00> : vector<8x512xf32>
    %252 = tpu.matmul %251, %4, %cst_74 {dimension_numbers = #tpu.dot_dimension_numbers<[1], [0], [0], [1], [0, 0, 1, 1], [], []>} : vector<8x128xbf16>, vector<128x512xbf16>, vector<8x512xf32> -> vector<8x512xf32>
    %253 = arith.index_cast %250 : i32 to index
    %c0_75 = arith.constant 0 : index
    %c0_76 = arith.constant 0 : index
    %254 = vector.load %arg2[%253, %c0_75, %c0_76] : memref<8x8x512xf32, #tpu.memory_space<vmem>>, vector<1x8x512xf32>
    %255 = vector.shape_cast %254 : vector<1x8x512xf32> to vector<8x512xf32>
    %256 = arith.addf %252, %255 : vector<8x512xf32>
    %257 = vector.extract_strided_slice %256 {offsets = [0, 0], sizes = [8, 128], strides = [1, 1]} : vector<8x512xf32> to vector<8x128xf32>
    %258 = arith.negf %257 : vector<8x128xf32>
    %259 = math.exp %258 : vector<8x128xf32>
    %cst_77 = arith.constant 1.000000e+00 : f32
    %260 = vector.broadcast %cst_77 : f32 to vector<8x128xf32>
    %261 = arith.addf %260, %259 : vector<8x128xf32>
    %262 = arith.divf %260, %261 : vector<8x128xf32>
    %263 = vector.extract_strided_slice %256 {offsets = [0, 128], sizes = [8, 128], strides = [1, 1]} : vector<8x512xf32> to vector<8x128xf32>
    %264 = arith.negf %263 : vector<8x128xf32>
    %265 = math.exp %264 : vector<8x128xf32>
    %cst_78 = arith.constant 1.000000e+00 : f32
    %266 = vector.broadcast %cst_78 : f32 to vector<8x128xf32>
    %267 = arith.addf %266, %265 : vector<8x128xf32>
    %268 = arith.divf %266, %267 : vector<8x128xf32>
    %269 = vector.extract_strided_slice %256 {offsets = [0, 256], sizes = [8, 128], strides = [1, 1]} : vector<8x512xf32> to vector<8x128xf32>
    %270 = math.tanh %269 : vector<8x128xf32>
    %271 = vector.extract_strided_slice %256 {offsets = [0, 384], sizes = [8, 128], strides = [1, 1]} : vector<8x512xf32> to vector<8x128xf32>
    %272 = arith.negf %271 : vector<8x128xf32>
    %273 = math.exp %272 : vector<8x128xf32>
    %cst_79 = arith.constant 1.000000e+00 : f32
    %274 = vector.broadcast %cst_79 : f32 to vector<8x128xf32>
    %275 = arith.addf %274, %273 : vector<8x128xf32>
    %276 = arith.divf %274, %275 : vector<8x128xf32>
    %277 = arith.mulf %268, %239 : vector<8x128xf32>
    %278 = arith.mulf %262, %270 : vector<8x128xf32>
    %279 = arith.addf %277, %278 : vector<8x128xf32>
    %280 = math.tanh %279 : vector<8x128xf32>
    %281 = arith.mulf %276, %280 : vector<8x128xf32>
    %282 = arith.truncf %281 : vector<8x128xf32> to vector<8x128xbf16>
    %c0_80 = arith.constant 0 : index
    %283 = arith.index_cast %250 : i32 to index
    %c0_81 = arith.constant 0 : index
    %c0_82 = arith.constant 0 : index
    %284 = vector.load %arg4[%c0_80, %283, %c0_81, %c0_82] : memref<1x8x8x128xbf16, #tpu.memory_space<vmem>>, vector<1x1x8x128xbf16>
    %285 = vector.shape_cast %284 : vector<1x1x8x128xbf16> to vector<8x128xbf16>
    %286 = vector.shape_cast %282 : vector<8x128xbf16> to vector<1x1x8x128xbf16>
    tpu.vector_store %arg4[%c0_80, %283, %c0_81, %c0_82], %286 {strides = array<i32>} : memref<1x8x8x128xbf16, #tpu.memory_space<vmem>>, vector<1x1x8x128xbf16>,
    %c7_i32_83 = arith.constant 7 : i32
    %c2_i32_84 = arith.constant 2 : i32
    %287 = arith.muli %c2_i32_84, %c7_i32_83 : i32
    %c7_i32_85 = arith.constant 7 : i32
    %288 = arith.subi %c7_i32_85, %287 : i32
    %289 = arith.muli %arg0, %288 : i32
    %290 = arith.addi %c7_i32_83, %289 : i32
    %291 = arith.truncf %281 : vector<8x128xf32> to vector<8x128xbf16>
    %cst_86 = arith.constant dense<0.000000e+00> : vector<8x512xf32>
    %292 = tpu.matmul %291, %4, %cst_86 {dimension_numbers = #tpu.dot_dimension_numbers<[1], [0], [0], [1], [0, 0, 1, 1], [], []>} : vector<8x128xbf16>, vector<128x512xbf16>, vector<8x512xf32> -> vector<8x512xf32>
    %293 = arith.index_cast %290 : i32 to index
    %c0_87 = arith.constant 0 : index
    %c0_88 = arith.constant 0 : index
    %294 = vector.load %arg2[%293, %c0_87, %c0_88] : memref<8x8x512xf32, #tpu.memory_space<vmem>>, vector<1x8x512xf32>
    %295 = vector.shape_cast %294 : vector<1x8x512xf32> to vector<8x512xf32>
    %296 = arith.addf %292, %295 : vector<8x512xf32>
    %297 = vector.extract_strided_slice %296 {offsets = [0, 0], sizes = [8, 128], strides = [1, 1]} : vector<8x512xf32> to vector<8x128xf32>
    %298 = arith.negf %297 : vector<8x128xf32>
    %299 = math.exp %298 : vector<8x128xf32>
    %cst_89 = arith.constant 1.000000e+00 : f32
    %300 = vector.broadcast %cst_89 : f32 to vector<8x128xf32>
    %301 = arith.addf %300, %299 : vector<8x128xf32>
    %302 = arith.divf %300, %301 : vector<8x128xf32>
    %303 = vector.extract_strided_slice %296 {offsets = [0, 128], sizes = [8, 128], strides = [1, 1]} : vector<8x512xf32> to vector<8x128xf32>
    %304 = arith.negf %303 : vector<8x128xf32>
    %305 = math.exp %304 : vector<8x128xf32>
    %cst_90 = arith.constant 1.000000e+00 : f32
    %306 = vector.broadcast %cst_90 : f32 to vector<8x128xf32>
    %307 = arith.addf %306, %305 : vector<8x128xf32>
    %308 = arith.divf %306, %307 : vector<8x128xf32>
    %309 = vector.extract_strided_slice %296 {offsets = [0, 256], sizes = [8, 128], strides = [1, 1]} : vector<8x512xf32> to vector<8x128xf32>
    %310 = math.tanh %309 : vector<8x128xf32>
    %311 = vector.extract_strided_slice %296 {offsets = [0, 384], sizes = [8, 128], strides = [1, 1]} : vector<8x512xf32> to vector<8x128xf32>
    %312 = arith.negf %311 : vector<8x128xf32>
    %313 = math.exp %312 : vector<8x128xf32>
    %cst_91 = arith.constant 1.000000e+00 : f32
    %314 = vector.broadcast %cst_91 : f32 to vector<8x128xf32>
    %315 = arith.addf %314, %313 : vector<8x128xf32>
    %316 = arith.divf %314, %315 : vector<8x128xf32>
    %317 = arith.mulf %308, %279 : vector<8x128xf32>
    %318 = arith.mulf %302, %310 : vector<8x128xf32>
    %319 = arith.addf %317, %318 : vector<8x128xf32>
    %320 = math.tanh %319 : vector<8x128xf32>
    %321 = arith.mulf %316, %320 : vector<8x128xf32>
    %322 = arith.truncf %321 : vector<8x128xf32> to vector<8x128xbf16>
    %c0_92 = arith.constant 0 : index
    %323 = arith.index_cast %290 : i32 to index
    %c0_93 = arith.constant 0 : index
    %c0_94 = arith.constant 0 : index
    %324 = vector.load %arg4[%c0_92, %323, %c0_93, %c0_94] : memref<1x8x8x128xbf16, #tpu.memory_space<vmem>>, vector<1x1x8x128xbf16>
    %325 = vector.shape_cast %324 : vector<1x1x8x128xbf16> to vector<8x128xbf16>
    %326 = vector.shape_cast %322 : vector<8x128xbf16> to vector<1x1x8x128xbf16>
    tpu.vector_store %arg4[%c0_92, %323, %c0_93, %c0_94], %326 {strides = array<i32>} : memref<1x8x8x128xbf16, #tpu.memory_space<vmem>>, vector<1x1x8x128xbf16>,
    %c8_i32 = arith.constant 8 : i32
    %c0_95 = arith.constant 0 : index
    %c0_96 = arith.constant 0 : index
    %327 = vector.load %arg5[%c0_95, %c0_96] : memref<8x128xf32, #tpu.memory_space<vmem>>, vector<8x128xf32>
    tpu.vector_store %arg5[%c0_95, %c0_96], %321 {strides = array<i32>} : memref<8x128xf32, #tpu.memory_space<vmem>>, vector<8x128xf32>,
    %c0_97 = arith.constant 0 : index
    %c0_98 = arith.constant 0 : index
    %328 = vector.load %arg6[%c0_97, %c0_98] : memref<8x128xf32, #tpu.memory_space<vmem>>, vector<8x128xf32>
    tpu.vector_store %arg6[%c0_97, %c0_98], %319 {strides = array<i32>} : memref<8x128xf32, #tpu.memory_space<vmem>>, vector<8x128xf32>,
    return
  }
  func.func @transform_0(%arg0: i32, %arg1: i32) -> (i32, i32, i32) {
    %c2_i32 = arith.constant 2 : i32
    %0 = arith.muli %c2_i32, %arg1 : i32
    %c0_i32 = arith.constant 0 : i32
    %1 = arith.subi %c0_i32, %0 : i32
    %2 = arith.muli %arg0, %1 : i32
    %3 = arith.addi %arg1, %2 : i32
    %c0_i32_0 = arith.constant 0 : i32
    %c0_i32_1 = arith.constant 0 : i32
    return %3, %c0_i32_0, %arg0 : i32, i32, i32
  }
  func.func @transform_1(%arg0: i32, %arg1: i32) -> (i32, i32, i32) {
    %c0_i32 = arith.constant 0 : i32
    %c0_i32_0 = arith.constant 0 : i32
    %c0_i32_1 = arith.constant 0 : i32
    return %arg0, %c0_i32, %c0_i32_0 : i32, i32, i32
  }
  func.func @transform_2(%arg0: i32, %arg1: i32) -> (i32, i32, i32, i32) {
    %c2_i32 = arith.constant 2 : i32
    %0 = arith.muli %c2_i32, %arg1 : i32
    %c0_i32 = arith.constant 0 : i32
    %1 = arith.subi %c0_i32, %0 : i32
    %2 = arith.muli %arg0, %1 : i32
    %3 = arith.addi %arg1, %2 : i32
    %c0_i32_0 = arith.constant 0 : i32
    %c0_i32_1 = arith.constant 0 : i32
    %c0_i32_2 = arith.constant 0 : i32
    return %arg0, %3, %c0_i32_0, %c0_i32_1 : i32, i32, i32, i32
  }
}

module attributes {stable_mosaic.version = 11 : i64} {
  func.func @_proj_single_kernel(%arg0: i32, %arg1: memref<64x32xf32, #tpu.memory_space<vmem>>, %arg2: memref<32x1024xbf16, #tpu.memory_space<vmem>>, %arg3: memref<1x1024xf32, #tpu.memory_space<vmem>>, %arg4: memref<64x1024xf32, #tpu.memory_space<vmem>>) attributes {dimension_semantics = [#tpu.dimension_semantics<parallel>], iteration_bounds = array<i64: 1>, scalar_prefetch = 0 : i64, scratch_operands = 0 : i64, tpu.core_type = #tpu.core_type<tc>, window_params = [{transform_indices = @transform_0, window_bounds = array<i64: 64, 32>}, {pipeline_mode = #tpu.pipeline_mode<synchronous>, transform_indices = @transform_1, window_bounds = array<i64: 32, 1024>}, {pipeline_mode = #tpu.pipeline_mode<synchronous>, transform_indices = @transform_2, window_bounds = array<i64: 1, 1024>}, {transform_indices = @transform_3, window_bounds = array<i64: 64, 1024>}]} {
    %c0 = arith.constant 0 : index
    %c0_0 = arith.constant 0 : index
    %0 = vector.load %arg1[%c0, %c0_0] : memref<64x32xf32, #tpu.memory_space<vmem>>, vector<64x32xf32>
    %1 = arith.truncf %0 : vector<64x32xf32> to vector<64x32xbf16>
    %c0_1 = arith.constant 0 : index
    %c0_2 = arith.constant 0 : index
    %2 = vector.load %arg2[%c0_1, %c0_2] : memref<32x1024xbf16, #tpu.memory_space<vmem>>, vector<32x1024xbf16>
    %cst = arith.constant dense<0.000000e+00> : vector<64x1024xf32>
    %3 = tpu.matmul %1, %2, %cst {dimension_numbers = #tpu.dot_dimension_numbers<[1], [0], [0], [1], [0, 0, 1, 1], [], []>} : vector<64x32xbf16>, vector<32x1024xbf16>, vector<64x1024xf32> -> vector<64x1024xf32>
    %c0_3 = arith.constant 0 : index
    %c0_4 = arith.constant 0 : index
    %4 = vector.load %arg3[%c0_3, %c0_4] : memref<1x1024xf32, #tpu.memory_space<vmem>>, vector<1x1024xf32>
    %5 = vector.broadcast %4 : vector<1x1024xf32> to vector<64x1024xf32>
    %6 = arith.addf %3, %5 : vector<64x1024xf32>
    %c0_5 = arith.constant 0 : index
    %c0_6 = arith.constant 0 : index
    %7 = vector.load %arg4[%c0_5, %c0_6] : memref<64x1024xf32, #tpu.memory_space<vmem>>, vector<64x1024xf32>
    tpu.vector_store %arg4[%c0_5, %c0_6], %6 {strides = array<i32>} : memref<64x1024xf32, #tpu.memory_space<vmem>>, vector<64x1024xf32>,
    return
  }
  func.func @transform_0(%arg0: i32) -> (i32, i32) {
    %c0_i32 = arith.constant 0 : i32
    %c0_i32_0 = arith.constant 0 : i32
    return %arg0, %c0_i32 : i32, i32
  }
  func.func @transform_1(%arg0: i32) -> (i32, i32) {
    %c0_i32 = arith.constant 0 : i32
    %c0_i32_0 = arith.constant 0 : i32
    %c0_i32_1 = arith.constant 0 : i32
    return %c0_i32, %c0_i32_0 : i32, i32
  }
  func.func @transform_2(%arg0: i32) -> (i32, i32) {
    %c0_i32 = arith.constant 0 : i32
    %c0_i32_0 = arith.constant 0 : i32
    %c0_i32_1 = arith.constant 0 : i32
    return %c0_i32, %c0_i32_0 : i32, i32
  }
  func.func @transform_3(%arg0: i32) -> (i32, i32) {
    %c0_i32 = arith.constant 0 : i32
    %c0_i32_0 = arith.constant 0 : i32
    return %arg0, %c0_i32 : i32, i32
  }
}

module attributes {stable_mosaic.version = 11 : i64} {
  func.func @_proj_bidir_kernel(%arg0: i32, %arg1: memref<1x64x128xbf16, #tpu.memory_space<vmem>>, %arg2: memref<1x64x128xbf16, #tpu.memory_space<vmem>>, %arg3: memref<256x1024xbf16, #tpu.memory_space<vmem>>, %arg4: memref<1x1024xf32, #tpu.memory_space<vmem>>, %arg5: memref<64x1024xf32, #tpu.memory_space<vmem>>) attributes {dimension_semantics = [#tpu.dimension_semantics<parallel>], iteration_bounds = array<i64: 1>, scalar_prefetch = 0 : i64, scratch_operands = 0 : i64, tpu.core_type = #tpu.core_type<tc>, window_params = [{transform_indices = @transform_0, window_bounds = array<i64: 1, 64, 128>}, {transform_indices = @transform_1, window_bounds = array<i64: 1, 64, 128>}, {pipeline_mode = #tpu.pipeline_mode<synchronous>, transform_indices = @transform_2, window_bounds = array<i64: 256, 1024>}, {pipeline_mode = #tpu.pipeline_mode<synchronous>, transform_indices = @transform_3, window_bounds = array<i64: 1, 1024>}, {transform_indices = @transform_4, window_bounds = array<i64: 64, 1024>}]} {
    %c0 = arith.constant 0 : index
    %c0_0 = arith.constant 0 : index
    %c0_1 = arith.constant 0 : index
    %0 = vector.load %arg1[%c0, %c0_0, %c0_1] : memref<1x64x128xbf16, #tpu.memory_space<vmem>>, vector<1x64x128xbf16>
    %1 = vector.shape_cast %0 : vector<1x64x128xbf16> to vector<64x128xbf16>
    %c0_2 = arith.constant 0 : index
    %c0_3 = arith.constant 0 : index
    %c0_4 = arith.constant 0 : index
    %2 = vector.load %arg2[%c0_2, %c0_3, %c0_4] : memref<1x64x128xbf16, #tpu.memory_space<vmem>>, vector<1x64x128xbf16>
    %3 = vector.shape_cast %2 : vector<1x64x128xbf16> to vector<64x128xbf16>
    %4 = tpu.concatenate %1, %3 in 1 : vector<64x128xbf16>, vector<64x128xbf16> -> vector<64x256xbf16>
    %c0_5 = arith.constant 0 : index
    %c0_6 = arith.constant 0 : index
    %5 = vector.load %arg3[%c0_5, %c0_6] : memref<256x1024xbf16, #tpu.memory_space<vmem>>, vector<256x1024xbf16>
    %cst = arith.constant dense<0.000000e+00> : vector<64x1024xf32>
    %6 = tpu.matmul %4, %5, %cst {dimension_numbers = #tpu.dot_dimension_numbers<[1], [0], [0], [1], [0, 0, 1, 1], [], []>} : vector<64x256xbf16>, vector<256x1024xbf16>, vector<64x1024xf32> -> vector<64x1024xf32>
    %c0_7 = arith.constant 0 : index
    %c0_8 = arith.constant 0 : index
    %7 = vector.load %arg4[%c0_7, %c0_8] : memref<1x1024xf32, #tpu.memory_space<vmem>>, vector<1x1024xf32>
    %8 = vector.broadcast %7 : vector<1x1024xf32> to vector<64x1024xf32>
    %9 = arith.addf %6, %8 : vector<64x1024xf32>
    %c0_9 = arith.constant 0 : index
    %c0_10 = arith.constant 0 : index
    %10 = vector.load %arg5[%c0_9, %c0_10] : memref<64x1024xf32, #tpu.memory_space<vmem>>, vector<64x1024xf32>
    tpu.vector_store %arg5[%c0_9, %c0_10], %9 {strides = array<i32>} : memref<64x1024xf32, #tpu.memory_space<vmem>>, vector<64x1024xf32>,
    return
  }
  func.func @transform_0(%arg0: i32) -> (i32, i32, i32) {
    %c0_i32 = arith.constant 0 : i32
    %c0_i32_0 = arith.constant 0 : i32
    %c0_i32_1 = arith.constant 0 : i32
    return %c0_i32, %arg0, %c0_i32_0 : i32, i32, i32
  }
  func.func @transform_1(%arg0: i32) -> (i32, i32, i32) {
    %c1_i32 = arith.constant 1 : i32
    %c0_i32 = arith.constant 0 : i32
    %c0_i32_0 = arith.constant 0 : i32
    return %c1_i32, %arg0, %c0_i32 : i32, i32, i32
  }
  func.func @transform_2(%arg0: i32) -> (i32, i32) {
    %c0_i32 = arith.constant 0 : i32
    %c0_i32_0 = arith.constant 0 : i32
    %c0_i32_1 = arith.constant 0 : i32
    return %c0_i32, %c0_i32_0 : i32, i32
  }
  func.func @transform_3(%arg0: i32) -> (i32, i32) {
    %c0_i32 = arith.constant 0 : i32
    %c0_i32_0 = arith.constant 0 : i32
    %c0_i32_1 = arith.constant 0 : i32
    return %c0_i32, %c0_i32_0 : i32, i32
  }
  func.func @transform_4(%arg0: i32) -> (i32, i32) {
    %c0_i32 = arith.constant 0 : i32
    %c0_i32_0 = arith.constant 0 : i32
    return %arg0, %c0_i32 : i32, i32
  }
}

module attributes {stable_mosaic.version = 11 : i64} {
  func.func @_bilstm_kernel(%arg0: i32, %arg1: i32, %arg2: memref<8x8x512xf32, #tpu.memory_space<vmem>>, %arg3: memref<1x128x512xbf16, #tpu.memory_space<vmem>>, %arg4: memref<1x8x8x128xbf16, #tpu.memory_space<vmem>>, %arg5: memref<8x128xf32, #tpu.memory_space<vmem>>, %arg6: memref<8x128xf32, #tpu.memory_space<vmem>>) attributes {dimension_semantics = [#tpu.dimension_semantics<parallel>, #tpu.dimension_semantics<arbitrary>], iteration_bounds = array<i64: 2, 1>, scalar_prefetch = 0 : i64, scratch_operands = 2 : i64, tpu.core_type = #tpu.core_type<tc>, window_params = [{transform_indices = @transform_0, window_bounds = array<i64: 8, 8, 512>}, {transform_indices = @transform_1, window_bounds = array<i64: 1, 128, 512>}, {transform_indices = @transform_2, window_bounds = array<i64: 1, 8, 8, 128>}]} {
    %c0_i32 = arith.constant 0 : i32
    %0 = arith.cmpi eq, %arg1, %c0_i32 : i32
    %1 = arith.extui %0 : i1 to i32
    %c0_i32_0 = arith.constant 0 : i32
    %2 = arith.cmpi ne, %1, %c0_i32_0 : i32
    scf.if %2 {
      %cst_99 = arith.constant 0.000000e+00 : f32
      %329 = vector.broadcast %cst_99 : f32 to vector<8x128xf32>
      %c0_100 = arith.constant 0 : index
      %c0_101 = arith.constant 0 : index
      %330 = vector.load %arg5[%c0_100, %c0_101] : memref<8x128xf32, #tpu.memory_space<vmem>>, vector<8x128xf32>
      tpu.vector_store %arg5[%c0_100, %c0_101], %329 {strides = array<i32>} : memref<8x128xf32, #tpu.memory_space<vmem>>, vector<8x128xf32>,
      %cst_102 = arith.constant 0.000000e+00 : f32
      %331 = vector.broadcast %cst_102 : f32 to vector<8x128xf32>
      %c0_103 = arith.constant 0 : index
      %c0_104 = arith.constant 0 : index
      %332 = vector.load %arg6[%c0_103, %c0_104] : memref<8x128xf32, #tpu.memory_space<vmem>>, vector<8x128xf32>
      tpu.vector_store %arg6[%c0_103, %c0_104], %331 {strides = array<i32>} : memref<8x128xf32, #tpu.memory_space<vmem>>, vector<8x128xf32>,
    } else {
    }
    %c0 = arith.constant 0 : index
    %c0_1 = arith.constant 0 : index
    %c0_2 = arith.constant 0 : index
    %3 = vector.load %arg3[%c0, %c0_1, %c0_2] : memref<1x128x512xbf16, #tpu.memory_space<vmem>>, vector<1x128x512xbf16>
    %4 = vector.shape_cast %3 : vector<1x128x512xbf16> to vector<128x512xbf16>
    %c0_3 = arith.constant 0 : index
    %c0_4 = arith.constant 0 : index
    %5 = vector.load %arg5[%c0_3, %c0_4] : memref<8x128xf32, #tpu.memory_space<vmem>>, vector<8x128xf32>
    %c0_5 = arith.constant 0 : index
    %c0_6 = arith.constant 0 : index
    %6 = vector.load %arg6[%c0_5, %c0_6] : memref<8x128xf32, #tpu.memory_space<vmem>>, vector<8x128xf32>
    %c0_i32_7 = arith.constant 0 : i32
    %c2_i32 = arith.constant 2 : i32
    %7 = arith.muli %c2_i32, %c0_i32_7 : i32
    %c7_i32 = arith.constant 7 : i32
    %8 = arith.subi %c7_i32, %7 : i32
    %9 = arith.muli %arg0, %8 : i32
    %10 = arith.addi %c0_i32_7, %9 : i32
    %11 = arith.truncf %5 : vector<8x128xf32> to vector<8x128xbf16>
    %cst = arith.constant dense<0.000000e+00> : vector<8x512xf32>
    %12 = tpu.matmul %11, %4, %cst {dimension_numbers = #tpu.dot_dimension_numbers<[1], [0], [0], [1], [0, 0, 1, 1], [], []>} : vector<8x128xbf16>, vector<128x512xbf16>, vector<8x512xf32> -> vector<8x512xf32>
    %13 = arith.index_cast %10 : i32 to index
    %c0_8 = arith.constant 0 : index
    %c0_9 = arith.constant 0 : index
    %14 = vector.load %arg2[%13, %c0_8, %c0_9] : memref<8x8x512xf32, #tpu.memory_space<vmem>>, vector<1x8x512xf32>
    %15 = vector.shape_cast %14 : vector<1x8x512xf32> to vector<8x512xf32>
    %16 = arith.addf %12, %15 : vector<8x512xf32>
    %17 = vector.extract_strided_slice %16 {offsets = [0, 0], sizes = [8, 128], strides = [1, 1]} : vector<8x512xf32> to vector<8x128xf32>
    %18 = arith.negf %17 : vector<8x128xf32>
    %19 = math.exp %18 : vector<8x128xf32>
    %cst_10 = arith.constant 1.000000e+00 : f32
    %20 = vector.broadcast %cst_10 : f32 to vector<8x128xf32>
    %21 = arith.addf %20, %19 : vector<8x128xf32>
    %22 = arith.divf %20, %21 : vector<8x128xf32>
    %23 = vector.extract_strided_slice %16 {offsets = [0, 128], sizes = [8, 128], strides = [1, 1]} : vector<8x512xf32> to vector<8x128xf32>
    %24 = arith.negf %23 : vector<8x128xf32>
    %25 = math.exp %24 : vector<8x128xf32>
    %cst_11 = arith.constant 1.000000e+00 : f32
    %26 = vector.broadcast %cst_11 : f32 to vector<8x128xf32>
    %27 = arith.addf %26, %25 : vector<8x128xf32>
    %28 = arith.divf %26, %27 : vector<8x128xf32>
    %29 = vector.extract_strided_slice %16 {offsets = [0, 256], sizes = [8, 128], strides = [1, 1]} : vector<8x512xf32> to vector<8x128xf32>
    %30 = math.tanh %29 : vector<8x128xf32>
    %31 = vector.extract_strided_slice %16 {offsets = [0, 384], sizes = [8, 128], strides = [1, 1]} : vector<8x512xf32> to vector<8x128xf32>
    %32 = arith.negf %31 : vector<8x128xf32>
    %33 = math.exp %32 : vector<8x128xf32>
    %cst_12 = arith.constant 1.000000e+00 : f32
    %34 = vector.broadcast %cst_12 : f32 to vector<8x128xf32>
    %35 = arith.addf %34, %33 : vector<8x128xf32>
    %36 = arith.divf %34, %35 : vector<8x128xf32>
    %37 = arith.mulf %28, %6 : vector<8x128xf32>
    %38 = arith.mulf %22, %30 : vector<8x128xf32>
    %39 = arith.addf %37, %38 : vector<8x128xf32>
    %40 = math.tanh %39 : vector<8x128xf32>
    %41 = arith.mulf %36, %40 : vector<8x128xf32>
    %42 = arith.truncf %41 : vector<8x128xf32> to vector<8x128xbf16>
    %c0_13 = arith.constant 0 : index
    %43 = arith.index_cast %10 : i32 to index
    %c0_14 = arith.constant 0 : index
    %c0_15 = arith.constant 0 : index
    %44 = vector.load %arg4[%c0_13, %43, %c0_14, %c0_15] : memref<1x8x8x128xbf16, #tpu.memory_space<vmem>>, vector<1x1x8x128xbf16>
    %45 = vector.shape_cast %44 : vector<1x1x8x128xbf16> to vector<8x128xbf16>
    %46 = vector.shape_cast %42 : vector<8x128xbf16> to vector<1x1x8x128xbf16>
    tpu.vector_store %arg4[%c0_13, %43, %c0_14, %c0_15], %46 {strides = array<i32>} : memref<1x8x8x128xbf16, #tpu.memory_space<vmem>>, vector<1x1x8x128xbf16>,
    %c1_i32 = arith.constant 1 : i32
    %c2_i32_16 = arith.constant 2 : i32
    %47 = arith.muli %c2_i32_16, %c1_i32 : i32
    %c7_i32_17 = arith.constant 7 : i32
    %48 = arith.subi %c7_i32_17, %47 : i32
    %49 = arith.muli %arg0, %48 : i32
    %50 = arith.addi %c1_i32, %49 : i32
    %51 = arith.truncf %41 : vector<8x128xf32> to vector<8x128xbf16>
    %cst_18 = arith.constant dense<0.000000e+00> : vector<8x512xf32>
    %52 = tpu.matmul %51, %4, %cst_18 {dimension_numbers = #tpu.dot_dimension_numbers<[1], [0], [0], [1], [0, 0, 1, 1], [], []>} : vector<8x128xbf16>, vector<128x512xbf16>, vector<8x512xf32> -> vector<8x512xf32>
    %53 = arith.index_cast %50 : i32 to index
    %c0_19 = arith.constant 0 : index
    %c0_20 = arith.constant 0 : index
    %54 = vector.load %arg2[%53, %c0_19, %c0_20] : memref<8x8x512xf32, #tpu.memory_space<vmem>>, vector<1x8x512xf32>
    %55 = vector.shape_cast %54 : vector<1x8x512xf32> to vector<8x512xf32>
    %56 = arith.addf %52, %55 : vector<8x512xf32>
    %57 = vector.extract_strided_slice %56 {offsets = [0, 0], sizes = [8, 128], strides = [1, 1]} : vector<8x512xf32> to vector<8x128xf32>
    %58 = arith.negf %57 : vector<8x128xf32>
    %59 = math.exp %58 : vector<8x128xf32>
    %cst_21 = arith.constant 1.000000e+00 : f32
    %60 = vector.broadcast %cst_21 : f32 to vector<8x128xf32>
    %61 = arith.addf %60, %59 : vector<8x128xf32>
    %62 = arith.divf %60, %61 : vector<8x128xf32>
    %63 = vector.extract_strided_slice %56 {offsets = [0, 128], sizes = [8, 128], strides = [1, 1]} : vector<8x512xf32> to vector<8x128xf32>
    %64 = arith.negf %63 : vector<8x128xf32>
    %65 = math.exp %64 : vector<8x128xf32>
    %cst_22 = arith.constant 1.000000e+00 : f32
    %66 = vector.broadcast %cst_22 : f32 to vector<8x128xf32>
    %67 = arith.addf %66, %65 : vector<8x128xf32>
    %68 = arith.divf %66, %67 : vector<8x128xf32>
    %69 = vector.extract_strided_slice %56 {offsets = [0, 256], sizes = [8, 128], strides = [1, 1]} : vector<8x512xf32> to vector<8x128xf32>
    %70 = math.tanh %69 : vector<8x128xf32>
    %71 = vector.extract_strided_slice %56 {offsets = [0, 384], sizes = [8, 128], strides = [1, 1]} : vector<8x512xf32> to vector<8x128xf32>
    %72 = arith.negf %71 : vector<8x128xf32>
    %73 = math.exp %72 : vector<8x128xf32>
    %cst_23 = arith.constant 1.000000e+00 : f32
    %74 = vector.broadcast %cst_23 : f32 to vector<8x128xf32>
    %75 = arith.addf %74, %73 : vector<8x128xf32>
    %76 = arith.divf %74, %75 : vector<8x128xf32>
    %77 = arith.mulf %68, %39 : vector<8x128xf32>
    %78 = arith.mulf %62, %70 : vector<8x128xf32>
    %79 = arith.addf %77, %78 : vector<8x128xf32>
    %80 = math.tanh %79 : vector<8x128xf32>
    %81 = arith.mulf %76, %80 : vector<8x128xf32>
    %82 = arith.truncf %81 : vector<8x128xf32> to vector<8x128xbf16>
    %c0_24 = arith.constant 0 : index
    %83 = arith.index_cast %50 : i32 to index
    %c0_25 = arith.constant 0 : index
    %c0_26 = arith.constant 0 : index
    %84 = vector.load %arg4[%c0_24, %83, %c0_25, %c0_26] : memref<1x8x8x128xbf16, #tpu.memory_space<vmem>>, vector<1x1x8x128xbf16>
    %85 = vector.shape_cast %84 : vector<1x1x8x128xbf16> to vector<8x128xbf16>
    %86 = vector.shape_cast %82 : vector<8x128xbf16> to vector<1x1x8x128xbf16>
    tpu.vector_store %arg4[%c0_24, %83, %c0_25, %c0_26], %86 {strides = array<i32>} : memref<1x8x8x128xbf16, #tpu.memory_space<vmem>>, vector<1x1x8x128xbf16>,
    %c2_i32_27 = arith.constant 2 : i32
    %c2_i32_28 = arith.constant 2 : i32
    %87 = arith.muli %c2_i32_28, %c2_i32_27 : i32
    %c7_i32_29 = arith.constant 7 : i32
    %88 = arith.subi %c7_i32_29, %87 : i32
    %89 = arith.muli %arg0, %88 : i32
    %90 = arith.addi %c2_i32_27, %89 : i32
    %91 = arith.truncf %81 : vector<8x128xf32> to vector<8x128xbf16>
    %cst_30 = arith.constant dense<0.000000e+00> : vector<8x512xf32>
    %92 = tpu.matmul %91, %4, %cst_30 {dimension_numbers = #tpu.dot_dimension_numbers<[1], [0], [0], [1], [0, 0, 1, 1], [], []>} : vector<8x128xbf16>, vector<128x512xbf16>, vector<8x512xf32> -> vector<8x512xf32>
    %93 = arith.index_cast %90 : i32 to index
    %c0_31 = arith.constant 0 : index
    %c0_32 = arith.constant 0 : index
    %94 = vector.load %arg2[%93, %c0_31, %c0_32] : memref<8x8x512xf32, #tpu.memory_space<vmem>>, vector<1x8x512xf32>
    %95 = vector.shape_cast %94 : vector<1x8x512xf32> to vector<8x512xf32>
    %96 = arith.addf %92, %95 : vector<8x512xf32>
    %97 = vector.extract_strided_slice %96 {offsets = [0, 0], sizes = [8, 128], strides = [1, 1]} : vector<8x512xf32> to vector<8x128xf32>
    %98 = arith.negf %97 : vector<8x128xf32>
    %99 = math.exp %98 : vector<8x128xf32>
    %cst_33 = arith.constant 1.000000e+00 : f32
    %100 = vector.broadcast %cst_33 : f32 to vector<8x128xf32>
    %101 = arith.addf %100, %99 : vector<8x128xf32>
    %102 = arith.divf %100, %101 : vector<8x128xf32>
    %103 = vector.extract_strided_slice %96 {offsets = [0, 128], sizes = [8, 128], strides = [1, 1]} : vector<8x512xf32> to vector<8x128xf32>
    %104 = arith.negf %103 : vector<8x128xf32>
    %105 = math.exp %104 : vector<8x128xf32>
    %cst_34 = arith.constant 1.000000e+00 : f32
    %106 = vector.broadcast %cst_34 : f32 to vector<8x128xf32>
    %107 = arith.addf %106, %105 : vector<8x128xf32>
    %108 = arith.divf %106, %107 : vector<8x128xf32>
    %109 = vector.extract_strided_slice %96 {offsets = [0, 256], sizes = [8, 128], strides = [1, 1]} : vector<8x512xf32> to vector<8x128xf32>
    %110 = math.tanh %109 : vector<8x128xf32>
    %111 = vector.extract_strided_slice %96 {offsets = [0, 384], sizes = [8, 128], strides = [1, 1]} : vector<8x512xf32> to vector<8x128xf32>
    %112 = arith.negf %111 : vector<8x128xf32>
    %113 = math.exp %112 : vector<8x128xf32>
    %cst_35 = arith.constant 1.000000e+00 : f32
    %114 = vector.broadcast %cst_35 : f32 to vector<8x128xf32>
    %115 = arith.addf %114, %113 : vector<8x128xf32>
    %116 = arith.divf %114, %115 : vector<8x128xf32>
    %117 = arith.mulf %108, %79 : vector<8x128xf32>
    %118 = arith.mulf %102, %110 : vector<8x128xf32>
    %119 = arith.addf %117, %118 : vector<8x128xf32>
    %120 = math.tanh %119 : vector<8x128xf32>
    %121 = arith.mulf %116, %120 : vector<8x128xf32>
    %122 = arith.truncf %121 : vector<8x128xf32> to vector<8x128xbf16>
    %c0_36 = arith.constant 0 : index
    %123 = arith.index_cast %90 : i32 to index
    %c0_37 = arith.constant 0 : index
    %c0_38 = arith.constant 0 : index
    %124 = vector.load %arg4[%c0_36, %123, %c0_37, %c0_38] : memref<1x8x8x128xbf16, #tpu.memory_space<vmem>>, vector<1x1x8x128xbf16>
    %125 = vector.shape_cast %124 : vector<1x1x8x128xbf16> to vector<8x128xbf16>
    %126 = vector.shape_cast %122 : vector<8x128xbf16> to vector<1x1x8x128xbf16>
    tpu.vector_store %arg4[%c0_36, %123, %c0_37, %c0_38], %126 {strides = array<i32>} : memref<1x8x8x128xbf16, #tpu.memory_space<vmem>>, vector<1x1x8x128xbf16>,
    %c3_i32 = arith.constant 3 : i32
    %c2_i32_39 = arith.constant 2 : i32
    %127 = arith.muli %c2_i32_39, %c3_i32 : i32
    %c7_i32_40 = arith.constant 7 : i32
    %128 = arith.subi %c7_i32_40, %127 : i32
    %129 = arith.muli %arg0, %128 : i32
    %130 = arith.addi %c3_i32, %129 : i32
    %131 = arith.truncf %121 : vector<8x128xf32> to vector<8x128xbf16>
    %cst_41 = arith.constant dense<0.000000e+00> : vector<8x512xf32>
    %132 = tpu.matmul %131, %4, %cst_41 {dimension_numbers = #tpu.dot_dimension_numbers<[1], [0], [0], [1], [0, 0, 1, 1], [], []>} : vector<8x128xbf16>, vector<128x512xbf16>, vector<8x512xf32> -> vector<8x512xf32>
    %133 = arith.index_cast %130 : i32 to index
    %c0_42 = arith.constant 0 : index
    %c0_43 = arith.constant 0 : index
    %134 = vector.load %arg2[%133, %c0_42, %c0_43] : memref<8x8x512xf32, #tpu.memory_space<vmem>>, vector<1x8x512xf32>
    %135 = vector.shape_cast %134 : vector<1x8x512xf32> to vector<8x512xf32>
    %136 = arith.addf %132, %135 : vector<8x512xf32>
    %137 = vector.extract_strided_slice %136 {offsets = [0, 0], sizes = [8, 128], strides = [1, 1]} : vector<8x512xf32> to vector<8x128xf32>
    %138 = arith.negf %137 : vector<8x128xf32>
    %139 = math.exp %138 : vector<8x128xf32>
    %cst_44 = arith.constant 1.000000e+00 : f32
    %140 = vector.broadcast %cst_44 : f32 to vector<8x128xf32>
    %141 = arith.addf %140, %139 : vector<8x128xf32>
    %142 = arith.divf %140, %141 : vector<8x128xf32>
    %143 = vector.extract_strided_slice %136 {offsets = [0, 128], sizes = [8, 128], strides = [1, 1]} : vector<8x512xf32> to vector<8x128xf32>
    %144 = arith.negf %143 : vector<8x128xf32>
    %145 = math.exp %144 : vector<8x128xf32>
    %cst_45 = arith.constant 1.000000e+00 : f32
    %146 = vector.broadcast %cst_45 : f32 to vector<8x128xf32>
    %147 = arith.addf %146, %145 : vector<8x128xf32>
    %148 = arith.divf %146, %147 : vector<8x128xf32>
    %149 = vector.extract_strided_slice %136 {offsets = [0, 256], sizes = [8, 128], strides = [1, 1]} : vector<8x512xf32> to vector<8x128xf32>
    %150 = math.tanh %149 : vector<8x128xf32>
    %151 = vector.extract_strided_slice %136 {offsets = [0, 384], sizes = [8, 128], strides = [1, 1]} : vector<8x512xf32> to vector<8x128xf32>
    %152 = arith.negf %151 : vector<8x128xf32>
    %153 = math.exp %152 : vector<8x128xf32>
    %cst_46 = arith.constant 1.000000e+00 : f32
    %154 = vector.broadcast %cst_46 : f32 to vector<8x128xf32>
    %155 = arith.addf %154, %153 : vector<8x128xf32>
    %156 = arith.divf %154, %155 : vector<8x128xf32>
    %157 = arith.mulf %148, %119 : vector<8x128xf32>
    %158 = arith.mulf %142, %150 : vector<8x128xf32>
    %159 = arith.addf %157, %158 : vector<8x128xf32>
    %160 = math.tanh %159 : vector<8x128xf32>
    %161 = arith.mulf %156, %160 : vector<8x128xf32>
    %162 = arith.truncf %161 : vector<8x128xf32> to vector<8x128xbf16>
    %c0_47 = arith.constant 0 : index
    %163 = arith.index_cast %130 : i32 to index
    %c0_48 = arith.constant 0 : index
    %c0_49 = arith.constant 0 : index
    %164 = vector.load %arg4[%c0_47, %163, %c0_48, %c0_49] : memref<1x8x8x128xbf16, #tpu.memory_space<vmem>>, vector<1x1x8x128xbf16>
    %165 = vector.shape_cast %164 : vector<1x1x8x128xbf16> to vector<8x128xbf16>
    %166 = vector.shape_cast %162 : vector<8x128xbf16> to vector<1x1x8x128xbf16>
    tpu.vector_store %arg4[%c0_47, %163, %c0_48, %c0_49], %166 {strides = array<i32>} : memref<1x8x8x128xbf16, #tpu.memory_space<vmem>>, vector<1x1x8x128xbf16>,
    %c4_i32 = arith.constant 4 : i32
    %c2_i32_50 = arith.constant 2 : i32
    %167 = arith.muli %c2_i32_50, %c4_i32 : i32
    %c7_i32_51 = arith.constant 7 : i32
    %168 = arith.subi %c7_i32_51, %167 : i32
    %169 = arith.muli %arg0, %168 : i32
    %170 = arith.addi %c4_i32, %169 : i32
    %171 = arith.truncf %161 : vector<8x128xf32> to vector<8x128xbf16>
    %cst_52 = arith.constant dense<0.000000e+00> : vector<8x512xf32>
    %172 = tpu.matmul %171, %4, %cst_52 {dimension_numbers = #tpu.dot_dimension_numbers<[1], [0], [0], [1], [0, 0, 1, 1], [], []>} : vector<8x128xbf16>, vector<128x512xbf16>, vector<8x512xf32> -> vector<8x512xf32>
    %173 = arith.index_cast %170 : i32 to index
    %c0_53 = arith.constant 0 : index
    %c0_54 = arith.constant 0 : index
    %174 = vector.load %arg2[%173, %c0_53, %c0_54] : memref<8x8x512xf32, #tpu.memory_space<vmem>>, vector<1x8x512xf32>
    %175 = vector.shape_cast %174 : vector<1x8x512xf32> to vector<8x512xf32>
    %176 = arith.addf %172, %175 : vector<8x512xf32>
    %177 = vector.extract_strided_slice %176 {offsets = [0, 0], sizes = [8, 128], strides = [1, 1]} : vector<8x512xf32> to vector<8x128xf32>
    %178 = arith.negf %177 : vector<8x128xf32>
    %179 = math.exp %178 : vector<8x128xf32>
    %cst_55 = arith.constant 1.000000e+00 : f32
    %180 = vector.broadcast %cst_55 : f32 to vector<8x128xf32>
    %181 = arith.addf %180, %179 : vector<8x128xf32>
    %182 = arith.divf %180, %181 : vector<8x128xf32>
    %183 = vector.extract_strided_slice %176 {offsets = [0, 128], sizes = [8, 128], strides = [1, 1]} : vector<8x512xf32> to vector<8x128xf32>
    %184 = arith.negf %183 : vector<8x128xf32>
    %185 = math.exp %184 : vector<8x128xf32>
    %cst_56 = arith.constant 1.000000e+00 : f32
    %186 = vector.broadcast %cst_56 : f32 to vector<8x128xf32>
    %187 = arith.addf %186, %185 : vector<8x128xf32>
    %188 = arith.divf %186, %187 : vector<8x128xf32>
    %189 = vector.extract_strided_slice %176 {offsets = [0, 256], sizes = [8, 128], strides = [1, 1]} : vector<8x512xf32> to vector<8x128xf32>
    %190 = math.tanh %189 : vector<8x128xf32>
    %191 = vector.extract_strided_slice %176 {offsets = [0, 384], sizes = [8, 128], strides = [1, 1]} : vector<8x512xf32> to vector<8x128xf32>
    %192 = arith.negf %191 : vector<8x128xf32>
    %193 = math.exp %192 : vector<8x128xf32>
    %cst_57 = arith.constant 1.000000e+00 : f32
    %194 = vector.broadcast %cst_57 : f32 to vector<8x128xf32>
    %195 = arith.addf %194, %193 : vector<8x128xf32>
    %196 = arith.divf %194, %195 : vector<8x128xf32>
    %197 = arith.mulf %188, %159 : vector<8x128xf32>
    %198 = arith.mulf %182, %190 : vector<8x128xf32>
    %199 = arith.addf %197, %198 : vector<8x128xf32>
    %200 = math.tanh %199 : vector<8x128xf32>
    %201 = arith.mulf %196, %200 : vector<8x128xf32>
    %202 = arith.truncf %201 : vector<8x128xf32> to vector<8x128xbf16>
    %c0_58 = arith.constant 0 : index
    %203 = arith.index_cast %170 : i32 to index
    %c0_59 = arith.constant 0 : index
    %c0_60 = arith.constant 0 : index
    %204 = vector.load %arg4[%c0_58, %203, %c0_59, %c0_60] : memref<1x8x8x128xbf16, #tpu.memory_space<vmem>>, vector<1x1x8x128xbf16>
    %205 = vector.shape_cast %204 : vector<1x1x8x128xbf16> to vector<8x128xbf16>
    %206 = vector.shape_cast %202 : vector<8x128xbf16> to vector<1x1x8x128xbf16>
    tpu.vector_store %arg4[%c0_58, %203, %c0_59, %c0_60], %206 {strides = array<i32>} : memref<1x8x8x128xbf16, #tpu.memory_space<vmem>>, vector<1x1x8x128xbf16>,
    %c5_i32 = arith.constant 5 : i32
    %c2_i32_61 = arith.constant 2 : i32
    %207 = arith.muli %c2_i32_61, %c5_i32 : i32
    %c7_i32_62 = arith.constant 7 : i32
    %208 = arith.subi %c7_i32_62, %207 : i32
    %209 = arith.muli %arg0, %208 : i32
    %210 = arith.addi %c5_i32, %209 : i32
    %211 = arith.truncf %201 : vector<8x128xf32> to vector<8x128xbf16>
    %cst_63 = arith.constant dense<0.000000e+00> : vector<8x512xf32>
    %212 = tpu.matmul %211, %4, %cst_63 {dimension_numbers = #tpu.dot_dimension_numbers<[1], [0], [0], [1], [0, 0, 1, 1], [], []>} : vector<8x128xbf16>, vector<128x512xbf16>, vector<8x512xf32> -> vector<8x512xf32>
    %213 = arith.index_cast %210 : i32 to index
    %c0_64 = arith.constant 0 : index
    %c0_65 = arith.constant 0 : index
    %214 = vector.load %arg2[%213, %c0_64, %c0_65] : memref<8x8x512xf32, #tpu.memory_space<vmem>>, vector<1x8x512xf32>
    %215 = vector.shape_cast %214 : vector<1x8x512xf32> to vector<8x512xf32>
    %216 = arith.addf %212, %215 : vector<8x512xf32>
    %217 = vector.extract_strided_slice %216 {offsets = [0, 0], sizes = [8, 128], strides = [1, 1]} : vector<8x512xf32> to vector<8x128xf32>
    %218 = arith.negf %217 : vector<8x128xf32>
    %219 = math.exp %218 : vector<8x128xf32>
    %cst_66 = arith.constant 1.000000e+00 : f32
    %220 = vector.broadcast %cst_66 : f32 to vector<8x128xf32>
    %221 = arith.addf %220, %219 : vector<8x128xf32>
    %222 = arith.divf %220, %221 : vector<8x128xf32>
    %223 = vector.extract_strided_slice %216 {offsets = [0, 128], sizes = [8, 128], strides = [1, 1]} : vector<8x512xf32> to vector<8x128xf32>
    %224 = arith.negf %223 : vector<8x128xf32>
    %225 = math.exp %224 : vector<8x128xf32>
    %cst_67 = arith.constant 1.000000e+00 : f32
    %226 = vector.broadcast %cst_67 : f32 to vector<8x128xf32>
    %227 = arith.addf %226, %225 : vector<8x128xf32>
    %228 = arith.divf %226, %227 : vector<8x128xf32>
    %229 = vector.extract_strided_slice %216 {offsets = [0, 256], sizes = [8, 128], strides = [1, 1]} : vector<8x512xf32> to vector<8x128xf32>
    %230 = math.tanh %229 : vector<8x128xf32>
    %231 = vector.extract_strided_slice %216 {offsets = [0, 384], sizes = [8, 128], strides = [1, 1]} : vector<8x512xf32> to vector<8x128xf32>
    %232 = arith.negf %231 : vector<8x128xf32>
    %233 = math.exp %232 : vector<8x128xf32>
    %cst_68 = arith.constant 1.000000e+00 : f32
    %234 = vector.broadcast %cst_68 : f32 to vector<8x128xf32>
    %235 = arith.addf %234, %233 : vector<8x128xf32>
    %236 = arith.divf %234, %235 : vector<8x128xf32>
    %237 = arith.mulf %228, %199 : vector<8x128xf32>
    %238 = arith.mulf %222, %230 : vector<8x128xf32>
    %239 = arith.addf %237, %238 : vector<8x128xf32>
    %240 = math.tanh %239 : vector<8x128xf32>
    %241 = arith.mulf %236, %240 : vector<8x128xf32>
    %242 = arith.truncf %241 : vector<8x128xf32> to vector<8x128xbf16>
    %c0_69 = arith.constant 0 : index
    %243 = arith.index_cast %210 : i32 to index
    %c0_70 = arith.constant 0 : index
    %c0_71 = arith.constant 0 : index
    %244 = vector.load %arg4[%c0_69, %243, %c0_70, %c0_71] : memref<1x8x8x128xbf16, #tpu.memory_space<vmem>>, vector<1x1x8x128xbf16>
    %245 = vector.shape_cast %244 : vector<1x1x8x128xbf16> to vector<8x128xbf16>
    %246 = vector.shape_cast %242 : vector<8x128xbf16> to vector<1x1x8x128xbf16>
    tpu.vector_store %arg4[%c0_69, %243, %c0_70, %c0_71], %246 {strides = array<i32>} : memref<1x8x8x128xbf16, #tpu.memory_space<vmem>>, vector<1x1x8x128xbf16>,
    %c6_i32 = arith.constant 6 : i32
    %c2_i32_72 = arith.constant 2 : i32
    %247 = arith.muli %c2_i32_72, %c6_i32 : i32
    %c7_i32_73 = arith.constant 7 : i32
    %248 = arith.subi %c7_i32_73, %247 : i32
    %249 = arith.muli %arg0, %248 : i32
    %250 = arith.addi %c6_i32, %249 : i32
    %251 = arith.truncf %241 : vector<8x128xf32> to vector<8x128xbf16>
    %cst_74 = arith.constant dense<0.000000e+00> : vector<8x512xf32>
    %252 = tpu.matmul %251, %4, %cst_74 {dimension_numbers = #tpu.dot_dimension_numbers<[1], [0], [0], [1], [0, 0, 1, 1], [], []>} : vector<8x128xbf16>, vector<128x512xbf16>, vector<8x512xf32> -> vector<8x512xf32>
    %253 = arith.index_cast %250 : i32 to index
    %c0_75 = arith.constant 0 : index
    %c0_76 = arith.constant 0 : index
    %254 = vector.load %arg2[%253, %c0_75, %c0_76] : memref<8x8x512xf32, #tpu.memory_space<vmem>>, vector<1x8x512xf32>
    %255 = vector.shape_cast %254 : vector<1x8x512xf32> to vector<8x512xf32>
    %256 = arith.addf %252, %255 : vector<8x512xf32>
    %257 = vector.extract_strided_slice %256 {offsets = [0, 0], sizes = [8, 128], strides = [1, 1]} : vector<8x512xf32> to vector<8x128xf32>
    %258 = arith.negf %257 : vector<8x128xf32>
    %259 = math.exp %258 : vector<8x128xf32>
    %cst_77 = arith.constant 1.000000e+00 : f32
    %260 = vector.broadcast %cst_77 : f32 to vector<8x128xf32>
    %261 = arith.addf %260, %259 : vector<8x128xf32>
    %262 = arith.divf %260, %261 : vector<8x128xf32>
    %263 = vector.extract_strided_slice %256 {offsets = [0, 128], sizes = [8, 128], strides = [1, 1]} : vector<8x512xf32> to vector<8x128xf32>
    %264 = arith.negf %263 : vector<8x128xf32>
    %265 = math.exp %264 : vector<8x128xf32>
    %cst_78 = arith.constant 1.000000e+00 : f32
    %266 = vector.broadcast %cst_78 : f32 to vector<8x128xf32>
    %267 = arith.addf %266, %265 : vector<8x128xf32>
    %268 = arith.divf %266, %267 : vector<8x128xf32>
    %269 = vector.extract_strided_slice %256 {offsets = [0, 256], sizes = [8, 128], strides = [1, 1]} : vector<8x512xf32> to vector<8x128xf32>
    %270 = math.tanh %269 : vector<8x128xf32>
    %271 = vector.extract_strided_slice %256 {offsets = [0, 384], sizes = [8, 128], strides = [1, 1]} : vector<8x512xf32> to vector<8x128xf32>
    %272 = arith.negf %271 : vector<8x128xf32>
    %273 = math.exp %272 : vector<8x128xf32>
    %cst_79 = arith.constant 1.000000e+00 : f32
    %274 = vector.broadcast %cst_79 : f32 to vector<8x128xf32>
    %275 = arith.addf %274, %273 : vector<8x128xf32>
    %276 = arith.divf %274, %275 : vector<8x128xf32>
    %277 = arith.mulf %268, %239 : vector<8x128xf32>
    %278 = arith.mulf %262, %270 : vector<8x128xf32>
    %279 = arith.addf %277, %278 : vector<8x128xf32>
    %280 = math.tanh %279 : vector<8x128xf32>
    %281 = arith.mulf %276, %280 : vector<8x128xf32>
    %282 = arith.truncf %281 : vector<8x128xf32> to vector<8x128xbf16>
    %c0_80 = arith.constant 0 : index
    %283 = arith.index_cast %250 : i32 to index
    %c0_81 = arith.constant 0 : index
    %c0_82 = arith.constant 0 : index
    %284 = vector.load %arg4[%c0_80, %283, %c0_81, %c0_82] : memref<1x8x8x128xbf16, #tpu.memory_space<vmem>>, vector<1x1x8x128xbf16>
    %285 = vector.shape_cast %284 : vector<1x1x8x128xbf16> to vector<8x128xbf16>
    %286 = vector.shape_cast %282 : vector<8x128xbf16> to vector<1x1x8x128xbf16>
    tpu.vector_store %arg4[%c0_80, %283, %c0_81, %c0_82], %286 {strides = array<i32>} : memref<1x8x8x128xbf16, #tpu.memory_space<vmem>>, vector<1x1x8x128xbf16>,
    %c7_i32_83 = arith.constant 7 : i32
    %c2_i32_84 = arith.constant 2 : i32
    %287 = arith.muli %c2_i32_84, %c7_i32_83 : i32
    %c7_i32_85 = arith.constant 7 : i32
    %288 = arith.subi %c7_i32_85, %287 : i32
    %289 = arith.muli %arg0, %288 : i32
    %290 = arith.addi %c7_i32_83, %289 : i32
    %291 = arith.truncf %281 : vector<8x128xf32> to vector<8x128xbf16>
    %cst_86 = arith.constant dense<0.000000e+00> : vector<8x512xf32>
    %292 = tpu.matmul %291, %4, %cst_86 {dimension_numbers = #tpu.dot_dimension_numbers<[1], [0], [0], [1], [0, 0, 1, 1], [], []>} : vector<8x128xbf16>, vector<128x512xbf16>, vector<8x512xf32> -> vector<8x512xf32>
    %293 = arith.index_cast %290 : i32 to index
    %c0_87 = arith.constant 0 : index
    %c0_88 = arith.constant 0 : index
    %294 = vector.load %arg2[%293, %c0_87, %c0_88] : memref<8x8x512xf32, #tpu.memory_space<vmem>>, vector<1x8x512xf32>
    %295 = vector.shape_cast %294 : vector<1x8x512xf32> to vector<8x512xf32>
    %296 = arith.addf %292, %295 : vector<8x512xf32>
    %297 = vector.extract_strided_slice %296 {offsets = [0, 0], sizes = [8, 128], strides = [1, 1]} : vector<8x512xf32> to vector<8x128xf32>
    %298 = arith.negf %297 : vector<8x128xf32>
    %299 = math.exp %298 : vector<8x128xf32>
    %cst_89 = arith.constant 1.000000e+00 : f32
    %300 = vector.broadcast %cst_89 : f32 to vector<8x128xf32>
    %301 = arith.addf %300, %299 : vector<8x128xf32>
    %302 = arith.divf %300, %301 : vector<8x128xf32>
    %303 = vector.extract_strided_slice %296 {offsets = [0, 128], sizes = [8, 128], strides = [1, 1]} : vector<8x512xf32> to vector<8x128xf32>
    %304 = arith.negf %303 : vector<8x128xf32>
    %305 = math.exp %304 : vector<8x128xf32>
    %cst_90 = arith.constant 1.000000e+00 : f32
    %306 = vector.broadcast %cst_90 : f32 to vector<8x128xf32>
    %307 = arith.addf %306, %305 : vector<8x128xf32>
    %308 = arith.divf %306, %307 : vector<8x128xf32>
    %309 = vector.extract_strided_slice %296 {offsets = [0, 256], sizes = [8, 128], strides = [1, 1]} : vector<8x512xf32> to vector<8x128xf32>
    %310 = math.tanh %309 : vector<8x128xf32>
    %311 = vector.extract_strided_slice %296 {offsets = [0, 384], sizes = [8, 128], strides = [1, 1]} : vector<8x512xf32> to vector<8x128xf32>
    %312 = arith.negf %311 : vector<8x128xf32>
    %313 = math.exp %312 : vector<8x128xf32>
    %cst_91 = arith.constant 1.000000e+00 : f32
    %314 = vector.broadcast %cst_91 : f32 to vector<8x128xf32>
    %315 = arith.addf %314, %313 : vector<8x128xf32>
    %316 = arith.divf %314, %315 : vector<8x128xf32>
    %317 = arith.mulf %308, %279 : vector<8x128xf32>
    %318 = arith.mulf %302, %310 : vector<8x128xf32>
    %319 = arith.addf %317, %318 : vector<8x128xf32>
    %320 = math.tanh %319 : vector<8x128xf32>
    %321 = arith.mulf %316, %320 : vector<8x128xf32>
    %322 = arith.truncf %321 : vector<8x128xf32> to vector<8x128xbf16>
    %c0_92 = arith.constant 0 : index
    %323 = arith.index_cast %290 : i32 to index
    %c0_93 = arith.constant 0 : index
    %c0_94 = arith.constant 0 : index
    %324 = vector.load %arg4[%c0_92, %323, %c0_93, %c0_94] : memref<1x8x8x128xbf16, #tpu.memory_space<vmem>>, vector<1x1x8x128xbf16>
    %325 = vector.shape_cast %324 : vector<1x1x8x128xbf16> to vector<8x128xbf16>
    %326 = vector.shape_cast %322 : vector<8x128xbf16> to vector<1x1x8x128xbf16>
    tpu.vector_store %arg4[%c0_92, %323, %c0_93, %c0_94], %326 {strides = array<i32>} : memref<1x8x8x128xbf16, #tpu.memory_space<vmem>>, vector<1x1x8x128xbf16>,
    %c8_i32 = arith.constant 8 : i32
    %c0_95 = arith.constant 0 : index
    %c0_96 = arith.constant 0 : index
    %327 = vector.load %arg5[%c0_95, %c0_96] : memref<8x128xf32, #tpu.memory_space<vmem>>, vector<8x128xf32>
    tpu.vector_store %arg5[%c0_95, %c0_96], %321 {strides = array<i32>} : memref<8x128xf32, #tpu.memory_space<vmem>>, vector<8x128xf32>,
    %c0_97 = arith.constant 0 : index
    %c0_98 = arith.constant 0 : index
    %328 = vector.load %arg6[%c0_97, %c0_98] : memref<8x128xf32, #tpu.memory_space<vmem>>, vector<8x128xf32>
    tpu.vector_store %arg6[%c0_97, %c0_98], %319 {strides = array<i32>} : memref<8x128xf32, #tpu.memory_space<vmem>>, vector<8x128xf32>,
    return
  }
  func.func @transform_0(%arg0: i32, %arg1: i32) -> (i32, i32, i32) {
    %c2_i32 = arith.constant 2 : i32
    %0 = arith.muli %c2_i32, %arg1 : i32
    %c0_i32 = arith.constant 0 : i32
    %1 = arith.subi %c0_i32, %0 : i32
    %2 = arith.muli %arg0, %1 : i32
    %3 = arith.addi %arg1, %2 : i32
    %c0_i32_0 = arith.constant 0 : i32
    %c0_i32_1 = arith.constant 0 : i32
    return %3, %c0_i32_0, %arg0 : i32, i32, i32
  }
  func.func @transform_1(%arg0: i32, %arg1: i32) -> (i32, i32, i32) {
    %c0_i32 = arith.constant 0 : i32
    %c0_i32_0 = arith.constant 0 : i32
    %c0_i32_1 = arith.constant 0 : i32
    return %arg0, %c0_i32, %c0_i32_0 : i32, i32, i32
  }
  func.func @transform_2(%arg0: i32, %arg1: i32) -> (i32, i32, i32, i32) {
    %c2_i32 = arith.constant 2 : i32
    %0 = arith.muli %c2_i32, %arg1 : i32
    %c0_i32 = arith.constant 0 : i32
    %1 = arith.subi %c0_i32, %0 : i32
    %2 = arith.muli %arg0, %1 : i32
    %3 = arith.addi %arg1, %2 : i32
    %c0_i32_0 = arith.constant 0 : i32
    %c0_i32_1 = arith.constant 0 : i32
    %c0_i32_2 = arith.constant 0 : i32
    return %arg0, %3, %c0_i32_0, %c0_i32_1 : i32, i32, i32, i32
  }
}

module attributes {stable_mosaic.version = 11 : i64} {
  func.func @_head_kernel(%arg0: i32, %arg1: i32, %arg2: memref<1x64x128xbf16, #tpu.memory_space<vmem>>, %arg3: memref<1x64x128xbf16, #tpu.memory_space<vmem>>, %arg4: memref<1x256xf32, #tpu.memory_space<vmem>>, %arg5: memref<1x256xf32, #tpu.memory_space<vmem>>, %arg6: memref<256x384xbf16, #tpu.memory_space<vmem>>, %arg7: memref<1x384xf32, #tpu.memory_space<vmem>>, %arg8: memref<64x384xf32, #tpu.memory_space<vmem>>) attributes {dimension_semantics = [#tpu.dimension_semantics<parallel>, #tpu.dimension_semantics<parallel>], iteration_bounds = array<i64: 1, 1>, scalar_prefetch = 0 : i64, scratch_operands = 0 : i64, tpu.core_type = #tpu.core_type<tc>, window_params = [{transform_indices = @transform_0, window_bounds = array<i64: 1, 64, 128>}, {transform_indices = @transform_1, window_bounds = array<i64: 1, 64, 128>}, {pipeline_mode = #tpu.pipeline_mode<synchronous>, transform_indices = @transform_2, window_bounds = array<i64: 1, 256>}, {pipeline_mode = #tpu.pipeline_mode<synchronous>, transform_indices = @transform_3, window_bounds = array<i64: 1, 256>}, {transform_indices = @transform_4, window_bounds = array<i64: 256, 384>}, {transform_indices = @transform_5, window_bounds = array<i64: 1, 384>}, {transform_indices = @transform_6, window_bounds = array<i64: 64, 384>}]} {
    %c0 = arith.constant 0 : index
    %c0_0 = arith.constant 0 : index
    %c0_1 = arith.constant 0 : index
    %0 = vector.load %arg2[%c0, %c0_0, %c0_1] : memref<1x64x128xbf16, #tpu.memory_space<vmem>>, vector<1x64x128xbf16>
    %1 = vector.shape_cast %0 : vector<1x64x128xbf16> to vector<64x128xbf16>
    %2 = arith.extf %1 : vector<64x128xbf16> to vector<64x128xf32>
    %c0_2 = arith.constant 0 : index
    %c0_3 = arith.constant 0 : index
    %c0_4 = arith.constant 0 : index
    %3 = vector.load %arg3[%c0_2, %c0_3, %c0_4] : memref<1x64x128xbf16, #tpu.memory_space<vmem>>, vector<1x64x128xbf16>
    %4 = vector.shape_cast %3 : vector<1x64x128xbf16> to vector<64x128xbf16>
    %5 = arith.extf %4 : vector<64x128xbf16> to vector<64x128xf32>
    %cst = arith.constant dense<0.000000e+00> : vector<64xf32>
    %6 = vector.multi_reduction <add>, %2, %cst [1] : vector<64x128xf32> to vector<64xf32>
    %7 = vector.shape_cast %6 : vector<64xf32> to vector<64x1xf32>
    %cst_5 = arith.constant dense<0.000000e+00> : vector<64xf32>
    %8 = vector.multi_reduction <add>, %5, %cst_5 [1] : vector<64x128xf32> to vector<64xf32>
    %9 = vector.shape_cast %8 : vector<64xf32> to vector<64x1xf32>
    %10 = arith.addf %7, %9 : vector<64x1xf32>
    %cst_6 = arith.constant 2.560000e+02 : f32
    %11 = vector.broadcast %cst_6 : f32 to vector<64x1xf32>
    %12 = arith.divf %10, %11 : vector<64x1xf32>
    %13 = vector.broadcast %12 : vector<64x1xf32> to vector<64x128xf32>
    %14 = arith.subf %2, %13 : vector<64x128xf32>
    %15 = vector.broadcast %12 : vector<64x1xf32> to vector<64x128xf32>
    %16 = arith.subf %5, %15 : vector<64x128xf32>
    %17 = arith.mulf %14, %14 : vector<64x128xf32>
    %cst_7 = arith.constant dense<0.000000e+00> : vector<64xf32>
    %18 = vector.multi_reduction <add>, %17, %cst_7 [1] : vector<64x128xf32> to vector<64xf32>
    %19 = vector.shape_cast %18 : vector<64xf32> to vector<64x1xf32>
    %20 = arith.mulf %16, %16 : vector<64x128xf32>
    %cst_8 = arith.constant dense<0.000000e+00> : vector<64xf32>
    %21 = vector.multi_reduction <add>, %20, %cst_8 [1] : vector<64x128xf32> to vector<64xf32>
    %22 = vector.shape_cast %21 : vector<64xf32> to vector<64x1xf32>
    %23 = arith.addf %19, %22 : vector<64x1xf32>
    %cst_9 = arith.constant 2.560000e+02 : f32
    %24 = vector.broadcast %cst_9 : f32 to vector<64x1xf32>
    %25 = arith.divf %23, %24 : vector<64x1xf32>
    %cst_10 = arith.constant 9.99999974E-6 : f32
    %26 = vector.broadcast %cst_10 : f32 to vector<64x1xf32>
    %27 = arith.addf %25, %26 : vector<64x1xf32>
    %28 = math.rsqrt %27 : vector<64x1xf32>
    %29 = vector.broadcast %28 : vector<64x1xf32> to vector<64x128xf32>
    %30 = arith.mulf %14, %29 : vector<64x128xf32>
    %c0_11 = arith.constant 0 : index
    %c0_12 = arith.constant 0 : index
    %31 = vector.load %arg4[%c0_11, %c0_12] : memref<1x256xf32, #tpu.memory_space<vmem>>, vector<1x128xf32>
    %32 = vector.broadcast %31 : vector<1x128xf32> to vector<64x128xf32>
    %33 = arith.mulf %30, %32 : vector<64x128xf32>
    %c0_13 = arith.constant 0 : index
    %c0_14 = arith.constant 0 : index
    %34 = vector.load %arg5[%c0_13, %c0_14] : memref<1x256xf32, #tpu.memory_space<vmem>>, vector<1x128xf32>
    %35 = vector.broadcast %34 : vector<1x128xf32> to vector<64x128xf32>
    %36 = arith.addf %33, %35 : vector<64x128xf32>
    %37 = vector.broadcast %28 : vector<64x1xf32> to vector<64x128xf32>
    %38 = arith.mulf %16, %37 : vector<64x128xf32>
    %c0_15 = arith.constant 0 : index
    %c128 = arith.constant 128 : index
    %39 = vector.load %arg4[%c0_15, %c128] : memref<1x256xf32, #tpu.memory_space<vmem>>, vector<1x128xf32>
    %40 = vector.broadcast %39 : vector<1x128xf32> to vector<64x128xf32>
    %41 = arith.mulf %38, %40 : vector<64x128xf32>
    %c0_16 = arith.constant 0 : index
    %c128_17 = arith.constant 128 : index
    %42 = vector.load %arg5[%c0_16, %c128_17] : memref<1x256xf32, #tpu.memory_space<vmem>>, vector<1x128xf32>
    %43 = vector.broadcast %42 : vector<1x128xf32> to vector<64x128xf32>
    %44 = arith.addf %41, %43 : vector<64x128xf32>
    %cst_18 = arith.constant 5.000000e-01 : f32
    %45 = vector.broadcast %cst_18 : f32 to vector<64x128xf32>
    %46 = arith.mulf %45, %36 : vector<64x128xf32>
    %cst_19 = arith.constant 0.707106769 : f32
    %47 = vector.broadcast %cst_19 : f32 to vector<64x128xf32>
    %48 = arith.mulf %36, %47 : vector<64x128xf32>
    %49 = math.erf %48 : vector<64x128xf32>
    %cst_20 = arith.constant 1.000000e+00 : f32
    %50 = vector.broadcast %cst_20 : f32 to vector<64x128xf32>
    %51 = arith.addf %50, %49 : vector<64x128xf32>
    %52 = arith.mulf %46, %51 : vector<64x128xf32>
    %cst_21 = arith.constant 5.000000e-01 : f32
    %53 = vector.broadcast %cst_21 : f32 to vector<64x128xf32>
    %54 = arith.mulf %53, %44 : vector<64x128xf32>
    %cst_22 = arith.constant 0.707106769 : f32
    %55 = vector.broadcast %cst_22 : f32 to vector<64x128xf32>
    %56 = arith.mulf %44, %55 : vector<64x128xf32>
    %57 = math.erf %56 : vector<64x128xf32>
    %cst_23 = arith.constant 1.000000e+00 : f32
    %58 = vector.broadcast %cst_23 : f32 to vector<64x128xf32>
    %59 = arith.addf %58, %57 : vector<64x128xf32>
    %60 = arith.mulf %54, %59 : vector<64x128xf32>
    %61 = tpu.concatenate %52, %60 in 1 : vector<64x128xf32>, vector<64x128xf32> -> vector<64x256xf32>
    %62 = arith.truncf %61 : vector<64x256xf32> to vector<64x256xbf16>
    %c0_24 = arith.constant 0 : index
    %c0_25 = arith.constant 0 : index
    %63 = vector.load %arg6[%c0_24, %c0_25] : memref<256x384xbf16, #tpu.memory_space<vmem>>, vector<256x384xbf16>
    %cst_26 = arith.constant dense<0.000000e+00> : vector<64x384xf32>
    %64 = tpu.matmul %62, %63, %cst_26 {dimension_numbers = #tpu.dot_dimension_numbers<[1], [0], [0], [1], [0, 0, 1, 1], [], []>} : vector<64x256xbf16>, vector<256x384xbf16>, vector<64x384xf32> -> vector<64x384xf32>
    %c0_27 = arith.constant 0 : index
    %c0_28 = arith.constant 0 : index
    %65 = vector.load %arg7[%c0_27, %c0_28] : memref<1x384xf32, #tpu.memory_space<vmem>>, vector<1x384xf32>
    %66 = vector.broadcast %65 : vector<1x384xf32> to vector<64x384xf32>
    %67 = arith.addf %64, %66 : vector<64x384xf32>
    %c0_29 = arith.constant 0 : index
    %c0_30 = arith.constant 0 : index
    %68 = vector.load %arg8[%c0_29, %c0_30] : memref<64x384xf32, #tpu.memory_space<vmem>>, vector<64x384xf32>
    tpu.vector_store %arg8[%c0_29, %c0_30], %67 {strides = array<i32>} : memref<64x384xf32, #tpu.memory_space<vmem>>, vector<64x384xf32>,
    return
  }
  func.func @transform_0(%arg0: i32, %arg1: i32) -> (i32, i32, i32) {
    %c0_i32 = arith.constant 0 : i32
    %c0_i32_0 = arith.constant 0 : i32
    %c0_i32_1 = arith.constant 0 : i32
    return %c0_i32, %arg0, %c0_i32_0 : i32, i32, i32
  }
  func.func @transform_1(%arg0: i32, %arg1: i32) -> (i32, i32, i32) {
    %c1_i32 = arith.constant 1 : i32
    %c0_i32 = arith.constant 0 : i32
    %c0_i32_0 = arith.constant 0 : i32
    return %c1_i32, %arg0, %c0_i32 : i32, i32, i32
  }
  func.func @transform_2(%arg0: i32, %arg1: i32) -> (i32, i32) {
    %c0_i32 = arith.constant 0 : i32
    %c0_i32_0 = arith.constant 0 : i32
    %c0_i32_1 = arith.constant 0 : i32
    return %c0_i32, %c0_i32_0 : i32, i32
  }
  func.func @transform_3(%arg0: i32, %arg1: i32) -> (i32, i32) {
    %c0_i32 = arith.constant 0 : i32
    %c0_i32_0 = arith.constant 0 : i32
    %c0_i32_1 = arith.constant 0 : i32
    return %c0_i32, %c0_i32_0 : i32, i32
  }
  func.func @transform_4(%arg0: i32, %arg1: i32) -> (i32, i32) {
    %c0_i32 = arith.constant 0 : i32
    %c0_i32_0 = arith.constant 0 : i32
    return %c0_i32, %arg1 : i32, i32
  }
  func.func @transform_5(%arg0: i32, %arg1: i32) -> (i32, i32) {
    %c0_i32 = arith.constant 0 : i32
    %c0_i32_0 = arith.constant 0 : i32
    return %c0_i32, %arg1 : i32, i32
  }
  func.func @transform_6(%arg0: i32, %arg1: i32) -> (i32, i32) {
    %c0_i32 = arith.constant 0 : i32
    return %arg0, %arg1 : i32, i32
  }
}

</mosaic_0001>

<llo_original>
// kernel: layer_decoder_forward.5
$region0: #{layer_decoder_forward.5}
  #allocation0 [shape = 'u32[]', space=smem, size = 0x4, offset = 0x4, fixed_abs, tag = 'smem constant byte address 0x4 - core index']
  #allocation1 [shape = 'u32[144,128]{1,0:T(1,128)}', space=vmem, size = 0x12000, scoped, tag = 'internal scratch']
  %s0 = inlined_call_operand.vmem [shape: f32[64,32], index: 0, kind: input, shape index: {}]
  %s1 = inlined_call_operand.hbm [shape: bf16[32,1024], index: 1, kind: input, shape index: {}]
  %s2 = inlined_call_operand.hbm [shape: f32[1,1024], index: 2, kind: input, shape index: {}]
  %s3 = inlined_call_operand.vmem [shape: f32[64,1024], index: 3, kind: output, shape index: {}]
  %s4 = sld [smem:[#allocation0]]
  $region30: #{layer_decoder_forward.5} parent=0
    _
  %s6 = ssub.s32 1, %s4
  %s7 = scalar_select 0, %s6, %s4
  $region1: #{layer_decoder_forward.5} parent=0
    #allocation2 [shape = 'u8[65536]{0}', space=vmem, size = 0x10000, scoped, tag = 'input window, operand 1, single buffered']
    #allocation3 [shape = 's32[1]{0}', space=sflag, size = 0x4, scoped, tag = 'scoped memory for layer_decoder_forward.5']
    #allocation4 [shape = 'u8[4096]{0}', space=vmem, size = 0x1000, scoped, tag = 'input window, operand 2, single buffered']
    #allocation5 [shape = 's32[1]{0}', space=sflag, size = 0x4, scoped, tag = 'scoped memory for layer_decoder_forward.5']
    %8 = vsyncpa [#allocation3], 0
    %9 = vsyncpa [#allocation5], 0
    // Predicated region
    $region2: #{layer_decoder_forward.5} parent=1 // pred_check
      _
    $region3: #{layer_decoder_forward.5} parent=1 // pred_check_branch
      %11 = sbr.rel (0) target = $region5
    $region4: #{layer_decoder_forward.5} parent=1 // pred_region
      _
    $region5: #{layer_decoder_forward.5} parent=1 // pred_fallthru
      _
    // Predicated region
    $region6: #{layer_decoder_forward.5} parent=1 // pred_check
      _
    $region7: #{layer_decoder_forward.5} parent=1 // pred_check_branch
      %13 = sbr.rel (0) target = $region9
    $region8: #{layer_decoder_forward.5} parent=1 // pred_region
      %s15 = ssub.s32 2048, 2048
      %16 = vsyncadd [#allocation3], %s15
      %s17 = sshll.u32 [#allocation2], 4
      %s18 = int_to_ptr.vmem [resolvable:$true] %s17
      %23 = dma.hbm_to_vmem [thread:$0]  %s1, 2048, %s18, [#allocation3], 512, 512, 32
    $region9: #{layer_decoder_forward.5} parent=1 // pred_fallthru
      _
    // Predicated region
    $region10: #{layer_decoder_forward.5} parent=1 // pred_check
      _
    $region11: #{layer_decoder_forward.5} parent=1 // pred_check_branch
      %25 = sbr.rel (0) target = $region13
    $region12: #{layer_decoder_forward.5} parent=1 // pred_region
      %s27 = ssub.s32 128, 128
      %28 = vsyncadd [#allocation5], %s27
      %s30 = sshll.u32 [#allocation4], 4
      %s31 = int_to_ptr.vmem [resolvable:$true] %s30
      %33 = dma.hbm_to_vmem [thread:$0]  %s2, 128, %s31, [#allocation5]
    $region13: #{layer_decoder_forward.5} parent=1 // pred_fallthru
      _
    // Predicated region
    $region14: #{layer_decoder_forward.5} parent=1 // pred_check
      _
    $region15: #{layer_decoder_forward.5} parent=1 // pred_check_branch
      %35 = sbr.rel (0) target = $region17
    $region16: #{layer_decoder_forward.5} parent=1 // pred_region
      %36 = dma.done [#allocation3], 2048
    $region17: #{layer_decoder_forward.5} parent=1 // pred_fallthru
      _
    // Predicated region
    $region18: #{layer_decoder_forward.5} parent=1 // pred_check
      _
    $region19: #{layer_decoder_forward.5} parent=1 // pred_check_branch
      %38 = sbr.rel (0) target = $region21
    $region20: #{layer_decoder_forward.5} parent=1 // pred_region
      %39 = dma.done [#allocation5], 128
    $region21: #{layer_decoder_forward.5} parent=1 // pred_fallthru
      _
    %v41 = vld [vmem:[%s0] sm:$0xff]
    %v42 = vld [vmem:[%s0 + $0x8] sm:$0xff]
    %v43 = vld [vmem:[%s0 + $0x10] sm:$0xff]
    %v44 = vld [vmem:[%s0 + $0x18] sm:$0xff]
    %v45 = vld [vmem:[%s0 + $0x20] sm:$0xff]
    %v46 = vld [vmem:[%s0 + $0x28] sm:$0xff]
    %v47 = vld [vmem:[%s0 + $0x30] sm:$0xff]
    %v48 = vld [vmem:[%s0 + $0x38] sm:$0xff]
    %v49 = vpack.c.bf16 %v42, %v41
    %v50 = vpack.c.bf16 %v44, %v43
    %v51 = vpack.c.bf16 %v46, %v45
    %v52 = vpack.c.bf16 %v48, %v47
    %v53 = vld [vmem:[#allocation2] sm:$0xff]
    %v54 = vld [vmem:[#allocation2 + $0x8] sm:$0xff]
    %v55 = vld [vmem:[#allocation2 + $0x10] sm:$0xff]
    %v56 = vld [vmem:[#allocation2 + $0x18] sm:$0xff]
    %v57 = vld [vmem:[#allocation2 + $0x20] sm:$0xff]
    %v58 = vld [vmem:[#allocation2 + $0x28] sm:$0xff]
    %v59 = vld [vmem:[#allocation2 + $0x30] sm:$0xff]
    %v60 = vld [vmem:[#allocation2 + $0x38] sm:$0xff]
    %v61 = vld [vmem:[#allocation2 + $0x40] sm:$0xff]
    %v62 = vld [vmem:[#allocation2 + $0x48] sm:$0xff]
    %v63 = vld [vmem:[#allocation2 + $0x50] sm:$0xff]
    %v64 = vld [vmem:[#allocation2 + $0x58] sm:$0xff]
    %v65 = vld [vmem:[#allocation2 + $0x60] sm:$0xff]
    %v66 = vld [vmem:[#allocation2 + $0x68] sm:$0xff]
    %v67 = vld [vmem:[#allocation2 + $0x70] sm:$0xff]
    %v68 = vld [vmem:[#allocation2 + $0x78] sm:$0xff]
    %v69 = vld [vmem:[#allocation4] sm:$0xff]
    %v71 = vlaneseq
    %v72 = vshrl.u32 %v71, 7
    %v73 = vsub.s32 0, %v72
    %v74 = vrot.slane %v69, %v73
    %v75 = vlaneseq
    %v76 = vshrl.u32 %v75, 7
    %v77 = vsub.s32 1, %v76
    %v78 = vrot.slane %v69, %v77
    %v79 = vlaneseq
    %v80 = vshrl.u32 %v79, 7
    %v81 = vsub.s32 2, %v80
    %v82 = vrot.slane %v69, %v81
    %v83 = vlaneseq
    %v84 = vshrl.u32 %v83, 7
    %v85 = vsub.s32 3, %v84
    %v86 = vrot.slane %v69, %v85
    %v87 = vlaneseq
    %v88 = vshrl.u32 %v87, 7
    %v89 = vsub.s32 4, %v88
    %v90 = vrot.slane %v69, %v89
    %v91 = vlaneseq
    %v92 = vshrl.u32 %v91, 7
    %v93 = vsub.s32 5, %v92
    %v94 = vrot.slane %v69, %v93
    %v95 = vlaneseq
    %v96 = vshrl.u32 %v95, 7
    %v97 = vsub.s32 6, %v96
    %v98 = vrot.slane %v69, %v97
    %v99 = vlaneseq
    %v100 = vshrl.u32 %v99, 7
    %v101 = vsub.s32 7, %v100
    %v102 = vrot.slane %v69, %v101
    %v127 = vunpack.c.l.b16 %v53
    %v128 = vunpack.c.h.b16 %v53
    %v129 = vunpack.c.l.b16 %v54
    %v130 = vunpack.c.h.b16 %v54
    %v131 = vunpack.c.l.b16 %v55
    %v132 = vunpack.c.h.b16 %v55
    %v133 = vunpack.c.l.b16 %v56
    %v134 = vunpack.c.h.b16 %v56
    %v135 = vunpack.c.l.b16 %v57
    %v136 = vunpack.c.h.b16 %v57
    %v137 = vunpack.c.l.b16 %v58
    %v138 = vunpack.c.h.b16 %v58
    %v139 = vunpack.c.l.b16 %v59
    %v140 = vunpack.c.h.b16 %v59
    %v141 = vunpack.c.l.b16 %v60
    %v142 = vunpack.c.h.b16 %v60
    %v143 = vunpack.c.l.b16 %v61
    %v144 = vunpack.c.h.b16 %v61
    %v145 = vunpack.c.l.b16 %v62
    %v146 = vunpack.c.h.b16 %v62
    %v147 = vunpack.c.l.b16 %v63
    %v148 = vunpack.c.h.b16 %v63
    %v149 = vunpack.c.l.b16 %v64
    %v150 = vunpack.c.h.b16 %v64
    %v151 = vunpack.c.l.b16 %v65
    %v152 = vunpack.c.h.b16 %v65
    %v153 = vunpack.c.l.b16 %v66
    %v154 = vunpack.c.h.b16 %v66
    %v155 = vunpack.c.l.b16 %v67
    %v156 = vunpack.c.h.b16 %v67
    %v157 = vunpack.c.l.b16 %v68
    %v158 = vunpack.c.h.b16 %v68
    %v159 = vpack.c.b16 %v135, %v127
    %v160 = vpack.c.b16 %v136, %v128
    %v161 = vpack.c.b16 %v137, %v129
    %v162 = vpack.c.b16 %v138, %v130
    %v163 = vpack.c.b16 %v139, %v131
    %v164 = vpack.c.b16 %v140, %v132
    %v165 = vpack.c.b16 %v141, %v133
    %v166 = vpack.c.b16 %v142, %v134
    %v167 = vpack.c.b16 %v151, %v143
    %v168 = vpack.c.b16 %v152, %v144
    %v169 = vpack.c.b16 %v153, %v145
    %v170 = vpack.c.b16 %v154, %v146
    %v171 = vpack.c.b16 %v155, %v147
    %v172 = vpack.c.b16 %v156, %v148
    %v173 = vpack.c.b16 %v157, %v149
    %v174 = vpack.c.b16 %v158, %v150
    %vm191 = vcmask 261120
    %v193 = vsel %vm191, %v49, 0
    %v196 = vsel %vm191, %v50, 0
    %v199 = vsel %vm191, %v51, 0
    %v202 = vsel %vm191, %v52, 0
    %204 = vmatprep.subr.bf16.mxu0 0
    %205 = vmatpush1.bf16.msra.mxu0 0
    %206 = vmatprep.subr.bf16.mxu0 0
    %207 = vmatpush1.bf16.msra.mxu0 0
    %208 = vmatprep.subr.bf16.mxu0 0
    %209 = vmatpush1.bf16.msra.mxu0 0
    %210 = vmatprep.subr.bf16.mxu0 0
    %211 = vmatpush1.bf16.msra.mxu0 0
    %212 = vmatprep.subr.bf16.mxu0 0
    %213 = vmatpush1.bf16.msra.mxu0 0
    %214 = vmatprep.subr.bf16.mxu0 0
    %215 = vmatpush1.bf16.msra.mxu0 0
    %216 = vmatprep.subr.bf16.mxu0 %v168
    %217 = vmatpush1.bf16.msra.mxu0 %v167
    %218 = vmatprep.subr.bf16.mxu0 %v160
    %219 = vmatpush1.bf16.msra.mxu0 %v159
    %220 = vmatprep.subr.bf16.mxu0 0
    %221 = vmatpush2.bf16.msra.mxu0 0
    %222 = vmatprep.subr.bf16.mxu0 0
    %223 = vmatpush2.bf16.msra.mxu0 0
    %224 = vmatprep.subr.bf16.mxu0 0
    %225 = vmatpush2.bf16.msra.mxu0 0
    %226 = vmatprep.subr.bf16.mxu0 0
    %227 = vmatpush2.bf16.msra.mxu0 0
    %228 = vmatprep.subr.bf16.mxu0 0
    %229 = vmatpush2.bf16.msra.mxu0 0
    %230 = vmatprep.subr.bf16.mxu0 0
    %231 = vmatpush2.bf16.msra.mxu0 0
    %232 = vmatprep.subr.bf16.mxu0 0
    %233 = vmatpush2.bf16.msra.mxu0 0
    %234 = vmatprep.subr.bf16.mxu0 0
    %235 = vmatpush2.bf16.msra.mxu0 0
    %236 = vmatprep.mubr.bf16.mxu0 0
    %237 = vmatmul.mubr.bf16.gmra.mxu0 %v193
    %v238 = vpop.f32.mrf.mxu0
    %v239 = vadd.f32 %v74, %v238
    %v240 = vpop.f32.mrf.mxu0
    %v241 = vadd.f32 %v78, %v240
    %v242 = vpop.f32.mrf.mxu0
    %v243 = vadd.f32 %v74, %v242
    %v244 = vpop.f32.mrf.mxu0
    %v245 = vadd.f32 %v78, %v244
    %246 = vmatprep.mubr.bf16.mxu0 0
    %247 = vmatmul.mubr.bf16.gmra.mxu0 %v196
    %v248 = vpop.f32.mrf.mxu0
    %v249 = vadd.f32 %v74, %v248
    %v250 = vpop.f32.mrf.mxu0
    %v251 = vadd.f32 %v78, %v250
    %v252 = vpop.f32.mrf.mxu0
    %v253 = vadd.f32 %v74, %v252
    %v254 = vpop.f32.mrf.mxu0
    %v255 = vadd.f32 %v78, %v254
    %256 = vmatprep.mubr.bf16.mxu0 0
    %257 = vmatmul.mubr.bf16.gmra.mxu0 %v199
    %v258 = vpop.f32.mrf.mxu0
    %v259 = vadd.f32 %v74, %v258
    %v260 = vpop.f32.mrf.mxu0
    %v261 = vadd.f32 %v78, %v260
    %v262 = vpop.f32.mrf.mxu0
    %v263 = vadd.f32 %v74, %v262
    %v264 = vpop.f32.mrf.mxu0
    %v265 = vadd.f32 %v78, %v264
    %266 = vmatprep.mubr.bf16.mxu0 0
    %267 = vmatmul.mubr.bf16.gmra.mxu0 %v202
    %v268 = vpop.f32.mrf.mxu0
    %v269 = vadd.f32 %v74, %v268
    %v270 = vpop.f32.mrf.mxu0
    %v271 = vadd.f32 %v78, %v270
    %v272 = vpop.f32.mrf.mxu0
    %v273 = vadd.f32 %v74, %v272
    %v274 = vpop.f32.mrf.mxu0
    %v275 = vadd.f32 %v78, %v274
    %276 = vdwg.mxu0
    %277 = vmatprep.subr.bf16.mxu0 0
    %278 = vmatpush1.bf16.msra.mxu0 0
    %279 = vmatprep.subr.bf16.mxu0 0
    %280 = vmatpush1.bf16.msra.mxu0 0
    %281 = vmatprep.subr.bf16.mxu0 0
    %282 = vmatpush1.bf16.msra.mxu0 0
    %283 = vmatprep.subr.bf16.mxu0 0
    %284 = vmatpush1.bf16.msra.mxu0 0
    %285 = vmatprep.subr.bf16.mxu0 0
    %286 = vmatpush1.bf16.msra.mxu0 0
    %287 = vmatprep.subr.bf16.mxu0 0
    %288 = vmatpush1.bf16.msra.mxu0 0
    %289 = vmatprep.subr.bf16.mxu0 %v170
    %290 = vmatpush1.bf16.msra.mxu0 %v169
    %291 = vmatprep.subr.bf16.mxu0 %v162
    %292 = vmatpush1.bf16.msra.mxu0 %v161
    %293 = vmatprep.subr.bf16.mxu0 0
    %294 = vmatpush2.bf16.msra.mxu0 0
    %295 = vmatprep.subr.bf16.mxu0 0
    %296 = vmatpush2.bf16.msra.mxu0 0
    %297 = vmatprep.subr.bf16.mxu0 0
    %298 = vmatpush2.bf16.msra.mxu0 0
    %299 = vmatprep.subr.bf16.mxu0 0
    %300 = vmatpush2.bf16.msra.mxu0 0
    %301 = vmatprep.subr.bf16.mxu0 0
    %302 = vmatpush2.bf16.msra.mxu0 0
    %303 = vmatprep.subr.bf16.mxu0 0
    %304 = vmatpush2.bf16.msra.mxu0 0
    %305 = vmatprep.subr.bf16.mxu0 0
    %306 = vmatpush2.bf16.msra.mxu0 0
    %307 = vmatprep.subr.bf16.mxu0 0
    %308 = vmatpush2.bf16.msra.mxu0 0
    %309 = vmatprep.mubr.bf16.mxu0 0
    %310 = vmatmul.mubr.bf16.gmra.mxu0 %v193
    %v311 = vpop.f32.mrf.mxu0
    %v312 = vadd.f32 %v82, %v311
    %v313 = vpop.f32.mrf.mxu0
    %v314 = vadd.f32 %v86, %v313
    %v315 = vpop.f32.mrf.mxu0
    %v316 = vadd.f32 %v82, %v315
    %v317 = vpop.f32.mrf.mxu0
    %v318 = vadd.f32 %v86, %v317
    %319 = vmatprep.mubr.bf16.mxu0 0
    %320 = vmatmul.mubr.bf16.gmra.mxu0 %v196
    %v321 = vpop.f32.mrf.mxu0
    %v322 = vadd.f32 %v82, %v321
    %v323 = vpop.f32.mrf.mxu0
    %v324 = vadd.f32 %v86, %v323
    %v325 = vpop.f32.mrf.mxu0
    %v326 = vadd.f32 %v82, %v325
    %v327 = vpop.f32.mrf.mxu0
    %v328 = vadd.f32 %v86, %v327
    %329 = vmatprep.mubr.bf16.mxu0 0
    %330 = vmatmul.mubr.bf16.gmra.mxu0 %v199
    %v331 = vpop.f32.mrf.mxu0
    %v332 = vadd.f32 %v82, %v331
    %v333 = vpop.f32.mrf.mxu0
    %v334 = vadd.f32 %v86, %v333
    %v335 = vpop.f32.mrf.mxu0
    %v336 = vadd.f32 %v82, %v335
    %v337 = vpop.f32.mrf.mxu0
    %v338 = vadd.f32 %v86, %v337
    %339 = vmatprep.mubr.bf16.mxu0 0
    %340 = vmatmul.mubr.bf16.gmra.mxu0 %v202
    %v341 = vpop.f32.mrf.mxu0
    %v342 = vadd.f32 %v82, %v341
    %v343 = vpop.f32.mrf.mxu0
    %v344 = vadd.f32 %v86, %v343
    %v345 = vpop.f32.mrf.mxu0
    %v346 = vadd.f32 %v82, %v345
    %v347 = vpop.f32.mrf.mxu0
    %v348 = vadd.f32 %v86, %v347
    %349 = vdwg.mxu0
    %350 = vmatprep.subr.bf16.mxu0 0
    %351 = vmatpush1.bf16.msra.mxu0 0
    %352 = vmatprep.subr.bf16.mxu0 0
    %353 = vmatpush1.bf16.msra.mxu0 0
    %354 = vmatprep.subr.bf16.mxu0 0
    %355 = vmatpush1.bf16.msra.mxu0 0
    %356 = vmatprep.subr.bf16.mxu0 0
    %357 = vmatpush1.bf16.msra.mxu0 0
    %358 = vmatprep.subr.bf16.mxu0 0
    %359 = vmatpush1.bf16.msra.mxu0 0
    %360 = vmatprep.subr.bf16.mxu0 0
    %361 = vmatpush1.bf16.msra.mxu0 0
    %362 = vmatprep.subr.bf16.mxu0 %v172
    %363 = vmatpush1.bf16.msra.mxu0 %v171
    %364 = vmatprep.subr.bf16.mxu0 %v164
    %365 = vmatpush1.bf16.msra.mxu0 %v163
    %366 = vmatprep.subr.bf16.mxu0 0
    %367 = vmatpush2.bf16.msra.mxu0 0
    %368 = vmatprep.subr.bf16.mxu0 0
    %369 = vmatpush2.bf16.msra.mxu0 0
    %370 = vmatprep.subr.bf16.mxu0 0
    %371 = vmatpush2.bf16.msra.mxu0 0
    %372 = vmatprep.subr.bf16.mxu0 0
    %373 = vmatpush2.bf16.msra.mxu0 0
    %374 = vmatprep.subr.bf16.mxu0 0
    %375 = vmatpush2.bf16.msra.mxu0 0
    %376 = vmatprep.subr.bf16.mxu0 0
    %377 = vmatpush2.bf16.msra.mxu0 0
    %378 = vmatprep.subr.bf16.mxu0 0
    %379 = vmatpush2.bf16.msra.mxu0 0
    %380 = vmatprep.subr.bf16.mxu0 0
    %381 = vmatpush2.bf16.msra.mxu0 0
    %382 = vmatprep.mubr.bf16.mxu0 0
    %383 = vmatmul.mubr.bf16.gmra.mxu0 %v193
    %v384 = vpop.f32.mrf.mxu0
    %v385 = vadd.f32 %v90, %v384
    %v386 = vpop.f32.mrf.mxu0
    %v387 = vadd.f32 %v94, %v386
    %v388 = vpop.f32.mrf.mxu0
    %v389 = vadd.f32 %v90, %v388
    %v390 = vpop.f32.mrf.mxu0
    %v391 = vadd.f32 %v94, %v390
    %392 = vmatprep.mubr.bf16.mxu0 0
    %393 = vmatmul.mubr.bf16.gmra.mxu0 %v196
    %v394 = vpop.f32.mrf.mxu0
    %v395 = vadd.f32 %v90, %v394
    %v396 = vpop.f32.mrf.mxu0
    %v397 = vadd.f32 %v94, %v396
    %v398 = vpop.f32.mrf.mxu0
    %v399 = vadd.f32 %v90, %v398
    %v400 = vpop.f32.mrf.mxu0
    %v401 = vadd.f32 %v94, %v400
    %402 = vmatprep.mubr.bf16.mxu0 0
    %403 = vmatmul.mubr.bf16.gmra.mxu0 %v199
    %v404 = vpop.f32.mrf.mxu0
    %v405 = vadd.f32 %v90, %v404
    %v406 = vpop.f32.mrf.mxu0
    %v407 = vadd.f32 %v94, %v406
    %v408 = vpop.f32.mrf.mxu0
    %v409 = vadd.f32 %v90, %v408
    %v410 = vpop.f32.mrf.mxu0
    %v411 = vadd.f32 %v94, %v410
    %412 = vmatprep.mubr.bf16.mxu0 0
    %413 = vmatmul.mubr.bf16.gmra.mxu0 %v202
    %v414 = vpop.f32.mrf.mxu0
    %v415 = vadd.f32 %v90, %v414
    %v416 = vpop.f32.mrf.mxu0
    %v417 = vadd.f32 %v94, %v416
    %v418 = vpop.f32.mrf.mxu0
    %v419 = vadd.f32 %v90, %v418
    %v420 = vpop.f32.mrf.mxu0
    %v421 = vadd.f32 %v94, %v420
    %422 = vdwg.mxu0
    %423 = vmatprep.subr.bf16.mxu0 0
    %424 = vmatpush1.bf16.msra.mxu0 0
    %425 = vmatprep.subr.bf16.mxu0 0
    %426 = vmatpush1.bf16.msra.mxu0 0
    %427 = vmatprep.subr.bf16.mxu0 0
    %428 = vmatpush1.bf16.msra.mxu0 0
    %429 = vmatprep.subr.bf16.mxu0 0
    %430 = vmatpush1.bf16.msra.mxu0 0
    %431 = vmatprep.subr.bf16.mxu0 0
    %432 = vmatpush1.bf16.msra.mxu0 0
    %433 = vmatprep.subr.bf16.mxu0 0
    %434 = vmatpush1.bf16.msra.mxu0 0
    %435 = vmatprep.subr.bf16.mxu0 %v174
    %436 = vmatpush1.bf16.msra.mxu0 %v173
    %437 = vmatprep.subr.bf16.mxu0 %v166
    %438 = vmatpush1.bf16.msra.mxu0 %v165
    %439 = vmatprep.subr.bf16.mxu0 0
    %440 = vmatpush2.bf16.msra.mxu0 0
    %441 = vmatprep.subr.bf16.mxu0 0
    %442 = vmatpush2.bf16.msra.mxu0 0
    %443 = vmatprep.subr.bf16.mxu0 0
    %444 = vmatpush2.bf16.msra.mxu0 0
    %445 = vmatprep.subr.bf16.mxu0 0
    %446 = vmatpush2.bf16.msra.mxu0 0
    %447 = vmatprep.subr.bf16.mxu0 0
    %448 = vmatpush2.bf16.msra.mxu0 0
    %449 = vmatprep.subr.bf16.mxu0 0
    %450 = vmatpush2.bf16.msra.mxu0 0
    %451 = vmatprep.subr.bf16.mxu0 0
    %452 = vmatpush2.bf16.msra.mxu0 0
    %453 = vmatprep.subr.bf16.mxu0 0
    %454 = vmatpush2.bf16.msra.mxu0 0
    %455 = vmatprep.mubr.bf16.mxu0 0
    %456 = vmatmul.mubr.bf16.gmra.mxu0 %v193
    %v457 = vpop.f32.mrf.mxu0
    %v458 = vadd.f32 %v98, %v457
    %v459 = vpop.f32.mrf.mxu0
    %v460 = vadd.f32 %v102, %v459
    %v461 = vpop.f32.mrf.mxu0
    %v462 = vadd.f32 %v98, %v461
    %v463 = vpop.f32.mrf.mxu0
    %v464 = vadd.f32 %v102, %v463
    %465 = vmatprep.mubr.bf16.mxu0 0
    %466 = vmatmul.mubr.bf16.gmra.mxu0 %v196
    %v467 = vpop.f32.mrf.mxu0
    %v468 = vadd.f32 %v98, %v467
    %v469 = vpop.f32.mrf.mxu0
    %v470 = vadd.f32 %v102, %v469
    %v471 = vpop.f32.mrf.mxu0
    %v472 = vadd.f32 %v98, %v471
    %v473 = vpop.f32.mrf.mxu0
    %v474 = vadd.f32 %v102, %v473
    %475 = vmatprep.mubr.bf16.mxu0 0
    %476 = vmatmul.mubr.bf16.gmra.mxu0 %v199
    %v477 = vpop.f32.mrf.mxu0
    %v478 = vadd.f32 %v98, %v477
    %v479 = vpop.f32.mrf.mxu0
    %v480 = vadd.f32 %v102, %v479
    %v481 = vpop.f32.mrf.mxu0
    %v482 = vadd.f32 %v98, %v481
    %v483 = vpop.f32.mrf.mxu0
    %v484 = vadd.f32 %v102, %v483
    %485 = vmatprep.mubr.bf16.mxu0 0
    %486 = vmatmul.mubr.bf16.gmra.mxu0 %v202
    %v487 = vpop.f32.mrf.mxu0
    %v488 = vadd.f32 %v98, %v487
    %v489 = vpop.f32.mrf.mxu0
    %v490 = vadd.f32 %v102, %v489
    %v491 = vpop.f32.mrf.mxu0
    %v492 = vadd.f32 %v98, %v491
    %v493 = vpop.f32.mrf.mxu0
    %v494 = vadd.f32 %v102, %v493
    %495 = vdwg.mxu0
    %496 = vst [vmem:[%s3] sm:$0xff] %v239
    %497 = vst [vmem:[%s3 + $0x8] sm:$0xff] %v241
    %498 = vst [vmem:[%s3 + $0x10] sm:$0xff] %v312
    %499 = vst [vmem:[%s3 + $0x18] sm:$0xff] %v314
    %500 = vst [vmem:[%s3 + $0x20] sm:$0xff] %v385
    %501 = vst [vmem:[%s3 + $0x28] sm:$0xff] %v387
    %502 = vst [vmem:[%s3 + $0x30] sm:$0xff] %v458
    %503 = vst [vmem:[%s3 + $0x38] sm:$0xff] %v460
    %504 = vst [vmem:[%s3 + $0x40] sm:$0xff] %v243
    %505 = vst [vmem:[%s3 + $0x48] sm:$0xff] %v245
    %506 = vst [vmem:[%s3 + $0x50] sm:$0xff] %v316
    %507 = vst [vmem:[%s3 + $0x58] sm:$0xff] %v318
    %508 = vst [vmem:[%s3 + $0x60] sm:$0xff] %v389
    %509 = vst [vmem:[%s3 + $0x68] sm:$0xff] %v391
    %510 = vst [vmem:[%s3 + $0x70] sm:$0xff] %v462
    %511 = vst [vmem:[%s3 + $0x78] sm:$0xff] %v464
    %512 = vst [vmem:[%s3 + $0x80] sm:$0xff] %v249
    %513 = vst [vmem:[%s3 + $0x88] sm:$0xff] %v251
    %514 = vst [vmem:[%s3 + $0x90] sm:$0xff] %v322
    %515 = vst [vmem:[%s3 + $0x98] sm:$0xff] %v324
    %516 = vst [vmem:[%s3 + $0xa0] sm:$0xff] %v395
    %517 = vst [vmem:[%s3 + $0xa8] sm:$0xff] %v397
    %518 = vst [vmem:[%s3 + $0xb0] sm:$0xff] %v468
    %519 = vst [vmem:[%s3 + $0xb8] sm:$0xff] %v470
    %520 = vst [vmem:[%s3 + $0xc0] sm:$0xff] %v253
    %521 = vst [vmem:[%s3 + $0xc8] sm:$0xff] %v255
    %522 = vst [vmem:[%s3 + $0xd0] sm:$0xff] %v326
    %523 = vst [vmem:[%s3 + $0xd8] sm:$0xff] %v328
    %524 = vst [vmem:[%s3 + $0xe0] sm:$0xff] %v399
    %525 = vst [vmem:[%s3 + $0xe8] sm:$0xff] %v401
    %526 = vst [vmem:[%s3 + $0xf0] sm:$0xff] %v472
    %527 = vst [vmem:[%s3 + $0xf8] sm:$0xff] %v474
    %528 = vst [vmem:[%s3 + $0x100] sm:$0xff] %v259
    %529 = vst [vmem:[%s3 + $0x108] sm:$0xff] %v261
    %530 = vst [vmem:[%s3 + $0x110] sm:$0xff] %v332
    %531 = vst [vmem:[%s3 + $0x118] sm:$0xff] %v334
    %532 = vst [vmem:[%s3 + $0x120] sm:$0xff] %v405
    %533 = vst [vmem:[%s3 + $0x128] sm:$0xff] %v407
    %534 = vst [vmem:[%s3 + $0x130] sm:$0xff] %v478
    %535 = vst [vmem:[%s3 + $0x138] sm:$0xff] %v480
    %536 = vst [vmem:[%s3 + $0x140] sm:$0xff] %v263
    %537 = vst [vmem:[%s3 + $0x148] sm:$0xff] %v265
    %538 = vst [vmem:[%s3 + $0x150] sm:$0xff] %v336
    %539 = vst [vmem:[%s3 + $0x158] sm:$0xff] %v338
    %540 = vst [vmem:[%s3 + $0x160] sm:$0xff] %v409
    %541 = vst [vmem:[%s3 + $0x168] sm:$0xff] %v411
    %542 = vst [vmem:[%s3 + $0x170] sm:$0xff] %v482
    %543 = vst [vmem:[%s3 + $0x178] sm:$0xff] %v484
    %544 = vst [vmem:[%s3 + $0x180] sm:$0xff] %v269
    %545 = vst [vmem:[%s3 + $0x188] sm:$0xff] %v271
    %546 = vst [vmem:[%s3 + $0x190] sm:$0xff] %v342
    %547 = vst [vmem:[%s3 + $0x198] sm:$0xff] %v344
    %548 = vst [vmem:[%s3 + $0x1a0] sm:$0xff] %v415
    %549 = vst [vmem:[%s3 + $0x1a8] sm:$0xff] %v417
    %550 = vst [vmem:[%s3 + $0x1b0] sm:$0xff] %v488
    %551 = vst [vmem:[%s3 + $0x1b8] sm:$0xff] %v490
    %552 = vst [vmem:[%s3 + $0x1c0] sm:$0xff] %v273
    %553 = vst [vmem:[%s3 + $0x1c8] sm:$0xff] %v275
    %554 = vst [vmem:[%s3 + $0x1d0] sm:$0xff] %v346
    %555 = vst [vmem:[%s3 + $0x1d8] sm:$0xff] %v348
    %556 = vst [vmem:[%s3 + $0x1e0] sm:$0xff] %v419
    %557 = vst [vmem:[%s3 + $0x1e8] sm:$0xff] %v421
    %558 = vst [vmem:[%s3 + $0x1f0] sm:$0xff] %v492
    %559 = vst [vmem:[%s3 + $0x1f8] sm:$0xff] %v494
    // Predicated region
    $region22: #{layer_decoder_forward.5} parent=1 // pred_check
      _
    $region23: #{layer_decoder_forward.5} parent=1 // pred_check_branch
      %561 = sbr.rel (0) target = $region25
    $region24: #{layer_decoder_forward.5} parent=1 // pred_region
      _
    $region25: #{layer_decoder_forward.5} parent=1 // pred_fallthru
      _
    // Predicated region
    $region26: #{layer_decoder_forward.5} parent=1 // pred_check
      _
    $region27: #{layer_decoder_forward.5} parent=1 // pred_check_branch
      %563 = sbr.rel (0) target = $region29
    $region28: #{layer_decoder_forward.5} parent=1 // pred_region
      _
    $region29: #{layer_decoder_forward.5} parent=1 // pred_fallthru
      _
    %564 = vsyncpa [#allocation3], 1
    %565 = vsyncpa [#allocation5], 1

// kernel: layer_decoder_forward.6
$region0: #{layer_decoder_forward.6}
  #allocation0 [shape = 'u32[]', space=smem, size = 0x4, offset = 0x4, fixed_abs, tag = 'smem constant byte address 0x4 - core index']
  #allocation1 [shape = 'u32[144,128]{1,0:T(1,128)}', space=vmem, size = 0x12000, scoped, tag = 'internal scratch']
  #allocation2 [shape = 'f32[8,128]{1,0:T(8,128)}', space=vmem, size = 0x1000, scoped, tag = 'scratch operand']
  #allocation3 [shape = 'f32[8,128]{1,0:T(8,128)}', space=vmem, size = 0x1000, scoped, tag = 'scratch operand']
  %s0 = inlined_call_operand.vmem [shape: f32[8,8,1024], index: 0, kind: input, shape index: {}]
  %s1 = inlined_call_operand.hbm [shape: bf16[2,128,512], index: 1, kind: input, shape index: {}]
  %s2 = inlined_call_operand.vmem [shape: bf16[2,8,8,128], index: 2, kind: output, shape index: {}]
  %s3 = sld [smem:[#allocation0]]
  $region72: #{layer_decoder_forward.6} parent=0
    _
  %s5 = ssub.s32 1, %s3
  %s6 = scalar_select 0, %s5, %s3
  $region1: #{layer_decoder_forward.6} parent=0
    #allocation4 [shape = 'u8[262144]{0}', space=vmem, size = 0x40000, scoped, tag = 'input window, operand 0']
    #allocation5 [shape = 'u8[262144]{0}', space=vmem, size = 0x40000, scoped, tag = 'input window, operand 1']
    #allocation6 [shape = 's32[2]{0}', space=sflag, size = 0x8, scoped, tag = 'scoped memory for layer_decoder_forward.6']
    %7 = vsyncpa [#allocation6], 0
    %s8 = scalar_lea.sflag [#allocation6], 1
    %9 = vsyncpa %s8, 0
    loop: start=0, step=1, limit=4
    $region2: #{layer_decoder_forward.6} parent=1 // loop_pre_header
      _
    $region3: #{layer_decoder_forward.6} parent=1 // loop_header
      %s11 = sphi 0, %s15
      %p12 = scmp.ge.s32.totalorder %s11, 4
      %s18 = sphi 0, %s30
      %s19 = sphi 0, %s26
      %s20 = sphi 0, %s18
      %s21 = sphi 0, %s19
      %s22 = sphi 0, %s20
      %s23 = sphi 0, %s21
      %s43 = sphi 0, %s45
      %s46 = sphi 0, %s43
      %s47 = sphi 0, %s46
      %s63 = sphi 0, %s47
      %s69 = sphi 0, %s71
      %s72 = sphi 0, %s69
      %s73 = sphi 0, %s72
      %s89 = sphi 0, %s73
      %s105 = sphi 0, %s107
      %s108 = sphi 0, %s105
      %s109 = sphi 0, %s108
      %s125 = sphi 0, %s109
    $region4: #{layer_decoder_forward.6} parent=1 // loop_header_branch
      %14 = sbr.rel (%p12) target = $region8
    $region5: #{layer_decoder_forward.6} parent=1 // loop_body
      %s16 = ssub.s32 %s11, 1
      %s17 = ssub.s32 %s11, 2
      %s24 = sadd.s32 1, %s19
      %p25 = scmp.ge.s32.totalorder %s24, 1
      %s26 = scalar_select %p25, 0, %s24
      %s27 = sadd.s32 1, %s18
      %s28 = scalar_select %p25, %s27, %s18
      %p29 = scmp.ge.s32.totalorder %s28, 2
      %s30 = scalar_select %p29, 0, %s28
      %s31 = smul.u32 %s19, 2
      %s32 = ssub.s32 0, %s31
      %s33 = smul.u32 %s18, %s32
      %s34 = sadd.s32 %s19, %s33
      %s35 = smul.u32 %s26, 2
      %s36 = ssub.s32 0, %s35
      %s37 = smul.u32 %s30, %s36
      %s38 = sadd.s32 %s26, %s37
      %s39 = ssub.s32 %s34, %s38
      %s40 = ssub.s32 %s18, %s30
      %s41 = sor.u32 %s39, %s40
      %p42 = scmp.eq.s32.totalorder %s41, 0
      %s44 = sadd.s32 %s43, 1
      %s45 = scalar_select %p42, %s43, %s44
      %p48 = pneg %p42
      %p49 = scmp.eq.s32.totalorder %s11, 1
      %p50 = por %p48, %p49
      %p51 = scmp.ne.s32.totalorder %s43, %s46
      %p52 = scmp.eq.s32.totalorder %s11, 0
      %p53 = por %p51, %p52
      %p54 = scmp.ne.s32.totalorder %s43, %s46
      %p55 = scmp.eq.s32.totalorder %s16, 1
      %p56 = por %p54, %p55
      %p57 = scmp.ne.s32.totalorder %s46, %s47
      %p58 = scmp.eq.s32.totalorder %s16, 0
      %p59 = por %p57, %p58
      %p60 = scmp.ne.s32.totalorder %s46, %s47
      %p61 = scmp.eq.s32.totalorder %s17, 1
      %p62 = por %p60, %p61
      %p64 = scmp.ne.s32.totalorder %s47, %s63
      %p65 = scmp.eq.s32.totalorder %s17, 0
      %p66 = por %p64, %p65
      %s67 = ssub.s32 %s18, %s30
      %p68 = scmp.eq.s32.totalorder %s67, 0
      %s70 = sadd.s32 %s69, 1
      %s71 = scalar_select %p68, %s69, %s70
      %p74 = pneg %p68
      %p75 = scmp.eq.s32.totalorder %s11, 1
      %p76 = por %p74, %p75
      %p77 = scmp.ne.s32.totalorder %s69, %s72
      %p78 = scmp.eq.s32.totalorder %s11, 0
      %p79 = por %p77, %p78
      %p80 = scmp.ne.s32.totalorder %s69, %s72
      %p81 = scmp.eq.s32.totalorder %s16, 1
      %p82 = por %p80, %p81
      %p83 = scmp.ne.s32.totalorder %s72, %s73
      %p84 = scmp.eq.s32.totalorder %s16, 0
      %p85 = por %p83, %p84
      %p86 = scmp.ne.s32.totalorder %s72, %s73
      %p87 = scmp.eq.s32.totalorder %s17, 1
      %p88 = por %p86, %p87
      %p90 = scmp.ne.s32.totalorder %s73, %s89
      %p91 = scmp.eq.s32.totalorder %s17, 0
      %p92 = por %p90, %p91
      %s93 = smul.u32 %s19, 2
      %s94 = ssub.s32 0, %s93
      %s95 = smul.u32 %s18, %s94
      %s96 = sadd.s32 %s19, %s95
      %s97 = smul.u32 %s26, 2
      %s98 = ssub.s32 0, %s97
      %s99 = smul.u32 %s30, %s98
      %s100 = sadd.s32 %s26, %s99
      %s101 = ssub.s32 %s18, %s30
      %s102 = ssub.s32 %s96, %s100
      %s103 = sor.u32 %s101, %s102
      %p104 = scmp.eq.s32.totalorder %s103, 0
      %s106 = sadd.s32 %s105, 1
      %s107 = scalar_select %p104, %s105, %s106
      %p110 = pneg %p104
      %p111 = scmp.eq.s32.totalorder %s11, 1
      %p112 = por %p110, %p111
      %p113 = scmp.ne.s32.totalorder %s105, %s108
      %p114 = scmp.eq.s32.totalorder %s11, 0
      %p115 = por %p113, %p114
      %p116 = scmp.ne.s32.totalorder %s105, %s108
      %p117 = scmp.eq.s32.totalorder %s16, 1
      %p118 = por %p116, %p117
      %p119 = scmp.ne.s32.totalorder %s108, %s109
      %p120 = scmp.eq.s32.totalorder %s16, 0
      %p121 = por %p119, %p120
      %p122 = scmp.ne.s32.totalorder %s108, %s109
      %p123 = scmp.eq.s32.totalorder %s17, 1
      %p124 = por %p122, %p123
      %p126 = scmp.ne.s32.totalorder %s109, %s125
      %p127 = scmp.eq.s32.totalorder %s17, 0
      %p128 = por %p126, %p127
      %p129 = scmp.le.s32.totalorder 1, %s11
      %p130 = scmp.lt.s32.totalorder %s11, 3
      %p131 = pnand %p129, %p130
      %p132 = pneg %p131
      // Predicated region
      $region9: #{layer_decoder_forward.6} parent=5 // pred_check
        _
      $region10: #{layer_decoder_forward.6} parent=5 // pred_check_branch
        %134 = sbr.rel (%p131) target = $region12
      $region11: #{layer_decoder_forward.6} parent=5 // pred_region
        %s135 = ssub.s32 %s11, 1
      $region12: #{layer_decoder_forward.6} parent=5 // pred_fallthru
        _
      %p136 = scmp.lt.s32.totalorder %s11, 2
      // Predicated region
      $region13: #{layer_decoder_forward.6} parent=5 // pred_check
        %p137 = pneg %p136
      $region14: #{layer_decoder_forward.6} parent=5 // pred_check_branch
        %139 = sbr.rel (%p137) target = $region16
      $region15: #{layer_decoder_forward.6} parent=5 // pred_region
        // Predicated region
        $region17: #{layer_decoder_forward.6} parent=15 // pred_check
          %p140 = pneg %p53
        $region18: #{layer_decoder_forward.6} parent=15 // pred_check_branch
          %142 = sbr.rel (%p140) target = $region20
        $region19: #{layer_decoder_forward.6} parent=15 // pred_region
          %s143 = sand.u32 %s43, 1
          %s144 = sand.u32 %s43, 1
          %s145 = smul.addr %s144, 256
          %s146 = scalar_lea.vmem [#allocation4], %s145
          %s147 = smul.u32 %s19, 2
          %s148 = ssub.s32 0, %s147
          %s149 = smul.u32 %s18, %s148
          %s150 = sadd.s32 %s19, %s149
          %s151 = smul.u32 8, %s150
          %s152 = smul.u32 4, %s18
          %s153 = smul.addr %s151, 8
          %s154 = sadd.s32 %s152, %s153
          %s155 = smul.addr %s154, 8
          %s156 = scalar_lea.vmem %s0, %s155
          // Predicated region
          $region21: #{layer_decoder_forward.6} parent=19 // pred_check
            _
          $region22: #{layer_decoder_forward.6} parent=19 // pred_check_branch
            %158 = sbr.rel (0) target = $region24
          $region23: #{layer_decoder_forward.6} parent=19 // pred_region
            // Predicated region
            $region25: #{layer_decoder_forward.6} parent=23 // pred_check
              _
            $region26: #{layer_decoder_forward.6} parent=23 // pred_check_branch
              %160 = sbr.rel (0) target = $region28
            $region27: #{layer_decoder_forward.6} parent=23 // pred_region
              loop: start=0, step=1, limit=1
              $region29: #{layer_decoder_forward.6} parent=27 // loop_pre_header
                _
              $region30: #{layer_decoder_forward.6} parent=27 // loop_header
                %s162 = sphi 0, %s166
                %p163 = scmp.ge.s32.totalorder %s162, 1
                %s167 = sphi %s156, %s156
                %s168 = sphi %s146, %s146
              $region31: #{layer_decoder_forward.6} parent=27 // loop_header_branch
                %165 = sbr.rel (%p163) target = $region35
              $region32: #{layer_decoder_forward.6} parent=27 // loop_body
                %v169 = vld [vmem:[%s167] sm:$0xff]
                %170 = vst [vmem:[%s168] sm:$0xff] %v169
                %v171 = vld [vmem:[%s167 + $0x8] sm:$0xff]
                %172 = vst [vmem:[%s168 + $0x8] sm:$0xff] %v171
                %v173 = vld [vmem:[%s167 + $0x10] sm:$0xff]
                %174 = vst [vmem:[%s168 + $0x10] sm:$0xff] %v173
                %v175 = vld [vmem:[%s167 + $0x18] sm:$0xff]
                %176 = vst [vmem:[%s168 + $0x18] sm:$0xff] %v175
                %v177 = vld [vmem:[%s167 + $0x40] sm:$0xff]
                %178 = vst [vmem:[%s168 + $0x20] sm:$0xff] %v177
                %v179 = vld [vmem:[%s167 + $0x48] sm:$0xff]
                %180 = vst [vmem:[%s168 + $0x28] sm:$0xff] %v179
                %v181 = vld [vmem:[%s167 + $0x50] sm:$0xff]
                %182 = vst [vmem:[%s168 + $0x30] sm:$0xff] %v181
                %v183 = vld [vmem:[%s167 + $0x58] sm:$0xff]
                %184 = vst [vmem:[%s168 + $0x38] sm:$0xff] %v183
                %v185 = vld [vmem:[%s167 + $0x80] sm:$0xff]
                %186 = vst [vmem:[%s168 + $0x40] sm:$0xff] %v185
                %v187 = vld [vmem:[%s167 + $0x88] sm:$0xff]
                %188 = vst [vmem:[%s168 + $0x48] sm:$0xff] %v187
                %v189 = vld [vmem:[%s167 + $0x90] sm:$0xff]
                %190 = vst [vmem:[%s168 + $0x50] sm:$0xff] %v189
                %v191 = vld [vmem:[%s167 + $0x98] sm:$0xff]
                %192 = vst [vmem:[%s168 + $0x58] sm:$0xff] %v191
                %v193 = vld [vmem:[%s167 + $0xc0] sm:$0xff]
                %194 = vst [vmem:[%s168 + $0x60] sm:$0xff] %v193
                %v195 = vld [vmem:[%s167 + $0xc8] sm:$0xff]
                %196 = vst [vmem:[%s168 + $0x68] sm:$0xff] %v195
                %v197 = vld [vmem:[%s167 + $0xd0] sm:$0xff]
                %198 = vst [vmem:[%s168 + $0x70] sm:$0xff] %v197
                %v199 = vld [vmem:[%s167 + $0xd8] sm:$0xff]
                %200 = vst [vmem:[%s168 + $0x78] sm:$0xff] %v199
                %v201 = vld [vmem:[%s167 + $0x100] sm:$0xff]
                %202 = vst [vmem:[%s168 + $0x80] sm:$0xff] %v201
                %v203 = vld [vmem:[%s167 + $0x108] sm:$0xff]
                %204 = vst [vmem:[%s168 + $0x88] sm:$0xff] %v203
                %v205 = vld [vmem:[%s167 + $0x110] sm:$0xff]
                %206 = vst [vmem:[%s168 + $0x90] sm:$0xff] %v205
                %v207 = vld [vmem:[%s167 + $0x118] sm:$0xff]
                %208 = vst [vmem:[%s168 + $0x98] sm:$0xff] %v207
                %v209 = vld [vmem:[%s167 + $0x140] sm:$0xff]
                %210 = vst [vmem:[%s168 + $0xa0] sm:$0xff] %v209
                %v211 = vld [vmem:[%s167 + $0x148] sm:$0xff]
                %212 = vst [vmem:[%s168 + $0xa8] sm:$0xff] %v211
                %v213 = vld [vmem:[%s167 + $0x150] sm:$0xff]
                %214 = vst [vmem:[%s168 + $0xb0] sm:$0xff] %v213
                %v215 = vld [vmem:[%s167 + $0x158] sm:$0xff]
                %216 = vst [vmem:[%s168 + $0xb8] sm:$0xff] %v215
                %v217 = vld [vmem:[%s167 + $0x180] sm:$0xff]
                %218 = vst [vmem:[%s168 + $0xc0] sm:$0xff] %v217
                %v219 = vld [vmem:[%s167 + $0x188] sm:$0xff]
                %220 = vst [vmem:[%s168 + $0xc8] sm:$0xff] %v219
                %v221 = vld [vmem:[%s167 + $0x190] sm:$0xff]
                %222 = vst [vmem:[%s168 + $0xd0] sm:$0xff] %v221
                %v223 = vld [vmem:[%s167 + $0x198] sm:$0xff]
                %224 = vst [vmem:[%s168 + $0xd8] sm:$0xff] %v223
                %v225 = vld [vmem:[%s167 + $0x1c0] sm:$0xff]
                %226 = vst [vmem:[%s168 + $0xe0] sm:$0xff] %v225
                %v227 = vld [vmem:[%s167 + $0x1c8] sm:$0xff]
                %228 = vst [vmem:[%s168 + $0xe8] sm:$0xff] %v227
                %v229 = vld [vmem:[%s167 + $0x1d0] sm:$0xff]
                %230 = vst [vmem:[%s168 + $0xf0] sm:$0xff] %v229
                %v231 = vld [vmem:[%s167 + $0x1d8] sm:$0xff]
                %232 = vst [vmem:[%s168 + $0xf8] sm:$0xff] %v231
              $region33: #{layer_decoder_forward.6} parent=27 // loop_footer
                %s166 = sadd.s32 1, %s162
              $region34: #{layer_decoder_forward.6} parent=27 // loop_footer_branch
                %161 = sbr.rel target = $region30
              $region35: #{layer_decoder_forward.6} parent=27 // loop_exit
                _
            $region28: #{layer_decoder_forward.6} parent=23 // pred_fallthru
              _
            // Predicated region
            $region36: #{layer_decoder_forward.6} parent=23 // pred_check
              _
            $region37: #{layer_decoder_forward.6} parent=23 // pred_check_branch
              %234 = sbr.rel target = $region39
            $region38: #{layer_decoder_forward.6} parent=23 // pred_region
              _
            $region39: #{layer_decoder_forward.6} parent=23 // pred_fallthru
              _
          $region24: #{layer_decoder_forward.6} parent=19 // pred_fallthru
            _
          %235 = vnop
        $region20: #{layer_decoder_forward.6} parent=15 // pred_fallthru
          _
        // Predicated region
        $region40: #{layer_decoder_forward.6} parent=15 // pred_check
          %p236 = pneg %p79
        $region41: #{layer_decoder_forward.6} parent=15 // pred_check_branch
          %238 = sbr.rel (%p236) target = $region43
        $region42: #{layer_decoder_forward.6} parent=15 // pred_region
          %s239 = sand.u32 %s69, 1
          %s240 = scalar_lea.sflag [#allocation6], %s239
          %s241 = sand.u32 %s69, 1
          %s242 = smul.addr %s241, 256
          %s243 = scalar_lea.vmem [#allocation5], %s242
          %s245 = ssub.s32 4096, 4096
          %246 = vsyncadd %s240, %s245
          %s247 = smul.addr %s18, 64
          %s248 = smul.addr %s247, 64
          %s249 = scalar_lea.hbm %s1, %s248
          %s250 = sshll.u32 %s243, 4
          %s251 = int_to_ptr.vmem [resolvable:$true] %s250
          %256 = dma.hbm_to_vmem [thread:$0]  %s249, 4096, %s251, %s240, 256, 256, 16
        $region43: #{layer_decoder_forward.6} parent=15 // pred_fallthru
          _
      $region16: #{layer_decoder_forward.6} parent=5 // pred_fallthru
        _
      %p257 = scmp.le.s32.totalorder 1, %s11
      %p258 = scmp.lt.s32.totalorder %s11, 3
      %p259 = pnand %p257, %p258
      %p260 = pneg %p259
      // Predicated region
      $region44: #{layer_decoder_forward.6} parent=5 // pred_check
        _
      $region45: #{layer_decoder_forward.6} parent=5 // pred_check_branch
        %262 = sbr.rel (%p259) target = $region47
      $region46: #{layer_decoder_forward.6} parent=5 // pred_region
        %s263 = ssub.s32 %s11, 1
        %s264 = sand.u32 %s46, 1
        %s265 = sand.u32 %s46, 1
        %s266 = smul.addr %s265, 256
        %s267 = scalar_lea.vmem [#allocation4], %s266
        // Predicated region
        $region48: #{layer_decoder_forward.6} parent=46 // pred_check
          %p268 = pneg %p59
        $region49: #{layer_decoder_forward.6} parent=46 // pred_check_branch
          %270 = sbr.rel (%p268) target = $region51
        $region50: #{layer_decoder_forward.6} parent=46 // pred_region
          _
        $region51: #{layer_decoder_forward.6} parent=46 // pred_fallthru
          _
        %s271 = sand.u32 %s72, 1
        %s272 = scalar_lea.sflag [#allocation6], %s271
        %s273 = sand.u32 %s72, 1
        %s274 = smul.addr %s273, 256
        %s275 = scalar_lea.vmem [#allocation5], %s274
        // Predicated region
        $region52: #{layer_decoder_forward.6} parent=46 // pred_check
          %p276 = pneg %p85
        $region53: #{layer_decoder_forward.6} parent=46 // pred_check_branch
          %278 = sbr.rel (%p276) target = $region55
        $region54: #{layer_decoder_forward.6} parent=46 // pred_region
          %279 = dma.done %s272, 4096
        $region55: #{layer_decoder_forward.6} parent=46 // pred_fallthru
          _
        %s280 = sand.u32 %s46, 1
        %s281 = sand.u32 %s46, 1
        %s282 = smul.addr %s281, 256
        %s283 = scalar_lea.vmem [#allocation4], %s282
        %p284 = pneg %p59
        %p285 = pneg %p56
        %s286 = sand.u32 %s72, 1
        %s287 = scalar_lea.sflag [#allocation6], %s286
        %s288 = sand.u32 %s72, 1
        %s289 = smul.addr %s288, 256
        %s290 = scalar_lea.vmem [#allocation5], %s289
        %p291 = pneg %p85
        %p292 = pneg %p82
        %p293 = pneg %p121
        %p294 = pneg %p118
        %s295 = smul.u32 %s21, 2
        %s296 = ssub.s32 0, %s295
        %s297 = smul.u32 %s20, %s296
        %s298 = sadd.s32 %s21, %s297
        %s299 = smul.u32 8, %s298
        %p300 = scmp.lt.s32.totalorder %s20, 1
        %s301 = scalar_select %p300, %s20, 1
        %p302 = scmp.lt.s32.totalorder %s299, 7
        %s303 = scalar_select %p302, %s299, 7
        %s304 = smul.addr %s301, 8
        %s305 = sadd.s32 %s303, %s304
        %s306 = smul.addr %s305, 4
        %s307 = scalar_lea.vmem %s2, %s306
        %s308 = smul.u32 %s21, 2
        %s309 = ssub.s32 0, %s308
        %s310 = smul.u32 %s20, %s309
        %s311 = sadd.s32 %s21, %s310
        %s312 = smul.u32 8, %s311
        %s313 = smul.u32 4, %s20
        %s314 = smul.u32 %s21, 2
        %s315 = ssub.s32 0, %s314
        %s316 = smul.u32 %s20, %s315
        %s317 = sadd.s32 %s21, %s316
        %s318 = smul.u32 8, %s317
        %p319 = scmp.lt.s32.totalorder %s20, 1
        %s320 = scalar_select %p319, %s20, 1
        %p321 = scmp.lt.s32.totalorder %s318, 7
        %s322 = scalar_select %p321, %s318, 7
        %s323 = smul.addr %s320, 8
        %s324 = sadd.s32 %s322, %s323
        %s325 = smul.addr %s324, 4
        %s326 = scalar_lea.vmem %s2, %s325
        %s327 = smul.u32 %s21, 2
        %s328 = ssub.s32 0, %s327
        %s329 = smul.u32 %s20, %s328
        %s330 = sadd.s32 %s21, %s329
        %s331 = smul.u32 8, %s330
        %p333 = scmp.eq.s32.totalorder %s21, 0
        // Predicated region
        $region56: #{layer_decoder_forward.6} parent=46 // pred_check
          %p334 = pneg %p333
        $region57: #{layer_decoder_forward.6} parent=46 // pred_check_branch
          %336 = sbr.rel (%p334) target = $region59
        $region58: #{layer_decoder_forward.6} parent=46 // pred_region
          %337 = vst [vmem:[#allocation2] sm:$0xff] 0.0
          %338 = vst [vmem:[#allocation3] sm:$0xff] 0.0
        $region59: #{layer_decoder_forward.6} parent=46 // pred_fallthru
          _
        %v339 = vld [vmem:[%s275] sm:$0xff]
        %v340 = vld [vmem:[%s275 + $0x8] sm:$0xff]
        %v341 = vld [vmem:[%s275 + $0x10] sm:$0xff]
        %v342 = vld [vmem:[%s275 + $0x18] sm:$0xff]
        %v343 = vld [vmem:[%s275 + $0x20] sm:$0xff]
        %v344 = vld [vmem:[%s275 + $0x28] sm:$0xff]
        %v345 = vld [vmem:[%s275 + $0x30] sm:$0xff]
        %v346 = vld [vmem:[%s275 + $0x38] sm:$0xff]
        %v347 = vld [vmem:[%s275 + $0x40] sm:$0xff]
        %v348 = vld [vmem:[%s275 + $0x48] sm:$0xff]
        %v349 = vld [vmem:[%s275 + $0x50] sm:$0xff]
        %v350 = vld [vmem:[%s275 + $0x58] sm:$0xff]
        %v351 = vld [vmem:[%s275 + $0x60] sm:$0xff]
        %v352 = vld [vmem:[%s275 + $0x68] sm:$0xff]
        %v353 = vld [vmem:[%s275 + $0x70] sm:$0xff]
        %v354 = vld [vmem:[%s275 + $0x78] sm:$0xff]
        %v355 = vld [vmem:[%s275 + $0x80] sm:$0xff]
        %v356 = vld [vmem:[%s275 + $0x88] sm:$0xff]
        %v357 = vld [vmem:[%s275 + $0x90] sm:$0xff]
        %v358 = vld [vmem:[%s275 + $0x98] sm:$0xff]
        %v359 = vld [vmem:[%s275 + $0xa0] sm:$0xff]
        %v360 = vld [vmem:[%s275 + $0xa8] sm:$0xff]
        %v361 = vld [vmem:[%s275 + $0xb0] sm:$0xff]
        %v362 = vld [vmem:[%s275 + $0xb8] sm:$0xff]
        %v363 = vld [vmem:[%s275 + $0xc0] sm:$0xff]
        %v364 = vld [vmem:[%s275 + $0xc8] sm:$0xff]
        %v365 = vld [vmem:[%s275 + $0xd0] sm:$0xff]
        %v366 = vld [vmem:[%s275 + $0xd8] sm:$0xff]
        %v367 = vld [vmem:[%s275 + $0xe0] sm:$0xff]
        %v368 = vld [vmem:[%s275 + $0xe8] sm:$0xff]
        %v369 = vld [vmem:[%s275 + $0xf0] sm:$0xff]
        %v370 = vld [vmem:[%s275 + $0xf8] sm:$0xff]
        %v371 = vld [vmem:[#allocation2] sm:$0xff]
        %v372 = vld [vmem:[#allocation3] sm:$0xff]
        %s373 = smul.u32 %s20, 7
        %v374 = vpack.c.bf16 %v371, %v371
        %s375 = smul.u32 %s373, 4
        %s376 = smul.addr %s375, 8
        %s377 = scalar_lea.vmem %s267, %s376 [#allocation4]
        %v378 = vld [vmem:[%s377] sm:$0xff]
        %v379 = vld [vmem:[%s377 + $0x8] sm:$0xff]
        %v380 = vld [vmem:[%s377 + $0x10] sm:$0xff]
        %v381 = vld [vmem:[%s377 + $0x18] sm:$0xff]
        %v414 = vunpack.c.l.b16 %v339
        %v415 = vunpack.c.h.b16 %v339
        %v416 = vunpack.c.l.b16 %v340
        %v417 = vunpack.c.h.b16 %v340
        %v418 = vunpack.c.l.b16 %v341
        %v419 = vunpack.c.h.b16 %v341
        %v420 = vunpack.c.l.b16 %v342
        %v421 = vunpack.c.h.b16 %v342
        %v422 = vunpack.c.l.b16 %v343
        %v423 = vunpack.c.h.b16 %v343
        %v424 = vunpack.c.l.b16 %v344
        %v425 = vunpack.c.h.b16 %v344
        %v426 = vunpack.c.l.b16 %v345
        %v427 = vunpack.c.h.b16 %v345
        %v428 = vunpack.c.l.b16 %v346
        %v429 = vunpack.c.h.b16 %v346
        %v430 = vunpack.c.l.b16 %v347
        %v431 = vunpack.c.h.b16 %v347
        %v432 = vunpack.c.l.b16 %v348
        %v433 = vunpack.c.h.b16 %v348
        %v434 = vunpack.c.l.b16 %v349
        %v435 = vunpack.c.h.b16 %v349
        %v436 = vunpack.c.l.b16 %v350
        %v437 = vunpack.c.h.b16 %v350
        %v438 = vunpack.c.l.b16 %v351
        %v439 = vunpack.c.h.b16 %v351
        %v440 = vunpack.c.l.b16 %v352
        %v441 = vunpack.c.h.b16 %v352
        %v442 = vunpack.c.l.b16 %v353
        %v443 = vunpack.c.h.b16 %v353
        %v444 = vunpack.c.l.b16 %v354
        %v445 = vunpack.c.h.b16 %v354
        %v446 = vunpack.c.l.b16 %v355
        %v447 = vunpack.c.h.b16 %v355
        %v448 = vunpack.c.l.b16 %v356
        %v449 = vunpack.c.h.b16 %v356
        %v450 = vunpack.c.l.b16 %v357
        %v451 = vunpack.c.h.b16 %v357
        %v452 = vunpack.c.l.b16 %v358
        %v453 = vunpack.c.h.b16 %v358
        %v454 = vunpack.c.l.b16 %v359
        %v455 = vunpack.c.h.b16 %v359
        %v456 = vunpack.c.l.b16 %v360
        %v457 = vunpack.c.h.b16 %v360
        %v458 = vunpack.c.l.b16 %v361
        %v459 = vunpack.c.h.b16 %v361
        %v460 = vunpack.c.l.b16 %v362
        %v461 = vunpack.c.h.b16 %v362
        %v462 = vunpack.c.l.b16 %v363
        %v463 = vunpack.c.h.b16 %v363
        %v464 = vunpack.c.l.b16 %v364
        %v465 = vunpack.c.h.b16 %v364
        %v466 = vunpack.c.l.b16 %v365
        %v467 = vunpack.c.h.b16 %v365
        %v468 = vunpack.c.l.b16 %v366
        %v469 = vunpack.c.h.b16 %v366
        %v470 = vunpack.c.l.b16 %v367
        %v471 = vunpack.c.h.b16 %v367
        %v472 = vunpack.c.l.b16 %v368
        %v473 = vunpack.c.h.b16 %v368
        %v474 = vunpack.c.l.b16 %v369
        %v475 = vunpack.c.h.b16 %v369
        %v476 = vunpack.c.l.b16 %v370
        %v477 = vunpack.c.h.b16 %v370
        %v478 = vpack.c.b16 %v418, %v414
        %v479 = vpack.c.b16 %v419, %v415
        %v480 = vpack.c.b16 %v420, %v416
        %v481 = vpack.c.b16 %v421, %v417
        %v482 = vpack.c.b16 %v426, %v422
        %v483 = vpack.c.b16 %v427, %v423
        %v484 = vpack.c.b16 %v428, %v424
        %v485 = vpack.c.b16 %v429, %v425
        %v486 = vpack.c.b16 %v434, %v430
        %v487 = vpack.c.b16 %v435, %v431
        %v488 = vpack.c.b16 %v436, %v432
        %v489 = vpack.c.b16 %v437, %v433
        %v490 = vpack.c.b16 %v442, %v438
        %v491 = vpack.c.b16 %v443, %v439
        %v492 = vpack.c.b16 %v444, %v440
        %v493 = vpack.c.b16 %v445, %v441
        %v494 = vpack.c.b16 %v450, %v446
        %v495 = vpack.c.b16 %v451, %v447
        %v496 = vpack.c.b16 %v452, %v448
        %v497 = vpack.c.b16 %v453, %v449
        %v498 = vpack.c.b16 %v458, %v454
        %v499 = vpack.c.b16 %v459, %v455
        %v500 = vpack.c.b16 %v460, %v456
        %v501 = vpack.c.b16 %v461, %v457
        %v502 = vpack.c.b16 %v466, %v462
        %v503 = vpack.c.b16 %v467, %v463
        %v504 = vpack.c.b16 %v468, %v464
        %v505 = vpack.c.b16 %v469, %v465
        %v506 = vpack.c.b16 %v474, %v470
        %v507 = vpack.c.b16 %v475, %v471
        %v508 = vpack.c.b16 %v476, %v472
        %v509 = vpack.c.b16 %v477, %v473
        %542 = vmatprep.subr.bf16.mxu0 %v507
        %543 = vmatpush1.bf16.msra.mxu0 %v506
        %544 = vmatprep.subr.bf16.mxu0 %v503
        %545 = vmatpush1.bf16.msra.mxu0 %v502
        %546 = vmatprep.subr.bf16.mxu0 %v499
        %547 = vmatpush1.bf16.msra.mxu0 %v498
        %548 = vmatprep.subr.bf16.mxu0 %v495
        %549 = vmatpush1.bf16.msra.mxu0 %v494
        %550 = vmatprep.subr.bf16.mxu0 %v491
        %551 = vmatpush1.bf16.msra.mxu0 %v490
        %552 = vmatprep.subr.bf16.mxu0 %v487
        %553 = vmatpush1.bf16.msra.mxu0 %v486
        %554 = vmatprep.subr.bf16.mxu0 %v483
        %555 = vmatpush1.bf16.msra.mxu0 %v482
        %556 = vmatprep.subr.bf16.mxu0 %v479
        %557 = vmatpush1.bf16.msra.mxu0 %v478
        %558 = vmatprep.subr.bf16.mxu0 0
        %559 = vmatpush2.bf16.msra.mxu0 0
        %560 = vmatprep.subr.bf16.mxu0 0
        %561 = vmatpush2.bf16.msra.mxu0 0
        %562 = vmatprep.subr.bf16.mxu0 0
        %563 = vmatpush2.bf16.msra.mxu0 0
        %564 = vmatprep.subr.bf16.mxu0 0
        %565 = vmatpush2.bf16.msra.mxu0 0
        %566 = vmatprep.subr.bf16.mxu0 0
        %567 = vmatpush2.bf16.msra.mxu0 0
        %568 = vmatprep.subr.bf16.mxu0 0
        %569 = vmatpush2.bf16.msra.mxu0 0
        %570 = vmatprep.subr.bf16.mxu0 0
        %571 = vmatpush2.bf16.msra.mxu0 0
        %572 = vmatprep.subr.bf16.mxu0 0
        %573 = vmatpush2.bf16.msra.mxu0 0
        %574 = vmatprep.mubr.bf16.mxu0 0
        %575 = vmatmul.mubr.bf16.gmra.mxu0 %v374
        %v576 = vpop.f32.mrf.mxu0
        %v577 = vadd.f32 %v378, %v576
        %v578 = vpop.f32.mrf.mxu0
        %v579 = vadd.f32 %v379, %v578
        %v580 = vpop.f32.mrf.mxu0
        %v581 = vpop.f32.mrf.mxu0
        %582 = vdwg.mxu0
        %583 = vmatprep.subr.bf16.mxu0 %v509
        %584 = vmatpush1.bf16.msra.mxu0 %v508
        %585 = vmatprep.subr.bf16.mxu0 %v505
        %586 = vmatpush1.bf16.msra.mxu0 %v504
        %587 = vmatprep.subr.bf16.mxu0 %v501
        %588 = vmatpush1.bf16.msra.mxu0 %v500
        %589 = vmatprep.subr.bf16.mxu0 %v497
        %590 = vmatpush1.bf16.msra.mxu0 %v496
        %591 = vmatprep.subr.bf16.mxu0 %v493
        %592 = vmatpush1.bf16.msra.mxu0 %v492
        %593 = vmatprep.subr.bf16.mxu0 %v489
        %594 = vmatpush1.bf16.msra.mxu0 %v488
        %595 = vmatprep.subr.bf16.mxu0 %v485
        %596 = vmatpush1.bf16.msra.mxu0 %v484
        %597 = vmatprep.subr.bf16.mxu0 %v481
        %598 = vmatpush1.bf16.msra.mxu0 %v480
        %599 = vmatprep.subr.bf16.mxu0 0
        %600 = vmatpush2.bf16.msra.mxu0 0
        %601 = vmatprep.subr.bf16.mxu0 0
        %602 = vmatpush2.bf16.msra.mxu0 0
        %603 = vmatprep.subr.bf16.mxu0 0
        %604 = vmatpush2.bf16.msra.mxu0 0
        %605 = vmatprep.subr.bf16.mxu0 0
        %606 = vmatpush2.bf16.msra.mxu0 0
        %607 = vmatprep.subr.bf16.mxu0 0
        %608 = vmatpush2.bf16.msra.mxu0 0
        %609 = vmatprep.subr.bf16.mxu0 0
        %610 = vmatpush2.bf16.msra.mxu0 0
        %611 = vmatprep.subr.bf16.mxu0 0
        %612 = vmatpush2.bf16.msra.mxu0 0
        %613 = vmatprep.subr.bf16.mxu0 0
        %614 = vmatpush2.bf16.msra.mxu0 0
        %615 = vmatprep.mubr.bf16.mxu0 0
        %616 = vmatmul.mubr.bf16.gmra.mxu0 %v374
        %v617 = vpop.f32.mrf.mxu0
        %v618 = vadd.f32 %v380, %v617
        %v619 = vpop.f32.mrf.mxu0
        %v620 = vadd.f32 %v381, %v619
        %v621 = vpop.f32.mrf.mxu0
        %v622 = vpop.f32.mrf.mxu0
        %623 = vdwg.mxu0
        %v624 = vxor.u32 %v577, 2147483648
        %v625 = vmul.f32 %v624, 1.442695
        %v626 = vpow.pop %v625
        %v627 = vadd.f32 %v626, 1.0
        %v628 = vrcp.pop %v627
        %v629 = vmul.f32 1.0, %v628
        %v630 = vxor.u32 %v579, 2147483648
        %v631 = vmul.f32 %v630, 1.442695
        %v632 = vpow.pop %v631
        %v633 = vadd.f32 %v632, 1.0
        %v634 = vrcp.pop %v633
        %v635 = vmul.f32 1.0, %v634
        %v636 = vtanh.pop %v618
        %v637 = vxor.u32 %v620, 2147483648
        %v638 = vmul.f32 %v637, 1.442695
        %v639 = vpow.pop %v638
        %v640 = vadd.f32 %v639, 1.0
        %v641 = vrcp.pop %v640
        %v642 = vmul.f32 1.0, %v641
        %v643 = vmul.f32 %v635, %v372
        %v644 = vmul.f32 %v629, %v636
        %v645 = vadd.f32 %v643, %v644
        %v646 = vtanh.pop %v645
        %v647 = vmul.f32 %v642, %v646
        %v648 = vpack.c.bf16 %v647, %v647
        %s649 = smul.addr %s373, 4
        %s650 = scalar_lea.vmem %s326, %s649
        %651 = vst [vmem:[%s650] sm:$0xf] %v648
        %s652 = smul.u32 %s20, 5
        %s653 = sadd.s32 %s652, 1
        %s654 = smul.u32 %s653, 4
        %s655 = smul.addr %s654, 8
        %s656 = scalar_lea.vmem %s267, %s655 [#allocation4]
        %v657 = vld [vmem:[%s656] sm:$0xff]
        %v658 = vld [vmem:[%s656 + $0x8] sm:$0xff]
        %v659 = vld [vmem:[%s656 + $0x10] sm:$0xff]
        %v660 = vld [vmem:[%s656 + $0x18] sm:$0xff]
        %661 = vmatprep.subr.bf16.mxu0 %v507
        %662 = vmatpush1.bf16.msra.mxu0 %v506
        %663 = vmatprep.subr.bf16.mxu0 %v503
        %664 = vmatpush1.bf16.msra.mxu0 %v502
        %665 = vmatprep.subr.bf16.mxu0 %v499
        %666 = vmatpush1.bf16.msra.mxu0 %v498
        %667 = vmatprep.subr.bf16.mxu0 %v495
        %668 = vmatpush1.bf16.msra.mxu0 %v494
        %669 = vmatprep.subr.bf16.mxu0 %v491
        %670 = vmatpush1.bf16.msra.mxu0 %v490
        %671 = vmatprep.subr.bf16.mxu0 %v487
        %672 = vmatpush1.bf16.msra.mxu0 %v486
        %673 = vmatprep.subr.bf16.mxu0 %v483
        %674 = vmatpush1.bf16.msra.mxu0 %v482
        %675 = vmatprep.subr.bf16.mxu0 %v479
        %676 = vmatpush1.bf16.msra.mxu0 %v478
        %677 = vmatprep.subr.bf16.mxu0 0
        %678 = vmatpush2.bf16.msra.mxu0 0
        %679 = vmatprep.subr.bf16.mxu0 0
        %680 = vmatpush2.bf16.msra.mxu0 0
        %681 = vmatprep.subr.bf16.mxu0 0
        %682 = vmatpush2.bf16.msra.mxu0 0
        %683 = vmatprep.subr.bf16.mxu0 0
        %684 = vmatpush2.bf16.msra.mxu0 0
        %685 = vmatprep.subr.bf16.mxu0 0
        %686 = vmatpush2.bf16.msra.mxu0 0
        %687 = vmatprep.subr.bf16.mxu0 0
        %688 = vmatpush2.bf16.msra.mxu0 0
        %689 = vmatprep.subr.bf16.mxu0 0
        %690 = vmatpush2.bf16.msra.mxu0 0
        %691 = vmatprep.subr.bf16.mxu0 0
        %692 = vmatpush2.bf16.msra.mxu0 0
        %693 = vmatprep.mubr.bf16.mxu0 0
        %694 = vmatmul.mubr.bf16.gmra.mxu0 %v648
        %v695 = vpop.f32.mrf.mxu0
        %v696 = vadd.f32 %v657, %v695
        %v697 = vpop.f32.mrf.mxu0
        %v698 = vadd.f32 %v658, %v697
        %v699 = vpop.f32.mrf.mxu0
        %v700 = vpop.f32.mrf.mxu0
        %701 = vdwg.mxu0
        %702 = vmatprep.subr.bf16.mxu0 %v509
        %703 = vmatpush1.bf16.msra.mxu0 %v508
        %704 = vmatprep.subr.bf16.mxu0 %v505
        %705 = vmatpush1.bf16.msra.mxu0 %v504
        %706 = vmatprep.subr.bf16.mxu0 %v501
        %707 = vmatpush1.bf16.msra.mxu0 %v500
        %708 = vmatprep.subr.bf16.mxu0 %v497
        %709 = vmatpush1.bf16.msra.mxu0 %v496
        %710 = vmatprep.subr.bf16.mxu0 %v493
        %711 = vmatpush1.bf16.msra.mxu0 %v492
        %712 = vmatprep.subr.bf16.mxu0 %v489
        %713 = vmatpush1.bf16.msra.mxu0 %v488
        %714 = vmatprep.subr.bf16.mxu0 %v485
        %715 = vmatpush1.bf16.msra.mxu0 %v484
        %716 = vmatprep.subr.bf16.mxu0 %v481
        %717 = vmatpush1.bf16.msra.mxu0 %v480
        %718 = vmatprep.subr.bf16.mxu0 0
        %719 = vmatpush2.bf16.msra.mxu0 0
        %720 = vmatprep.subr.bf16.mxu0 0
        %721 = vmatpush2.bf16.msra.mxu0 0
        %722 = vmatprep.subr.bf16.mxu0 0
        %723 = vmatpush2.bf16.msra.mxu0 0
        %724 = vmatprep.subr.bf16.mxu0 0
        %725 = vmatpush2.bf16.msra.mxu0 0
        %726 = vmatprep.subr.bf16.mxu0 0
        %727 = vmatpush2.bf16.msra.mxu0 0
        %728 = vmatprep.subr.bf16.mxu0 0
        %729 = vmatpush2.bf16.msra.mxu0 0
        %730 = vmatprep.subr.bf16.mxu0 0
        %731 = vmatpush2.bf16.msra.mxu0 0
        %732 = vmatprep.subr.bf16.mxu0 0
        %733 = vmatpush2.bf16.msra.mxu0 0
        %734 = vmatprep.mubr.bf16.mxu0 0
        %735 = vmatmul.mubr.bf16.gmra.mxu0 %v648
        %v736 = vpop.f32.mrf.mxu0
        %v737 = vadd.f32 %v659, %v736
        %v738 = vpop.f32.mrf.mxu0
        %v739 = vadd.f32 %v660, %v738
        %v740 = vpop.f32.mrf.mxu0
        %v741 = vpop.f32.mrf.mxu0
        %742 = vdwg.mxu0
        %v743 = vxor.u32 %v696, 2147483648
        %v744 = vmul.f32 %v743, 1.442695
        %v745 = vpow.pop %v744
        %v746 = vadd.f32 %v745, 1.0
        %v747 = vrcp.pop %v746
        %v748 = vmul.f32 1.0, %v747
        %v749 = vxor.u32 %v698, 2147483648
        %v750 = vmul.f32 %v749, 1.442695
        %v751 = vpow.pop %v750
        %v752 = vadd.f32 %v751, 1.0
        %v753 = vrcp.pop %v752
        %v754 = vmul.f32 1.0, %v753
        %v755 = vtanh.pop %v737
        %v756 = vxor.u32 %v739, 2147483648
        %v757 = vmul.f32 %v756, 1.442695
        %v758 = vpow.pop %v757
        %v759 = vadd.f32 %v758, 1.0
        %v760 = vrcp.pop %v759
        %v761 = vmul.f32 1.0, %v760
        %v762 = vmul.f32 %v754, %v645
        %v763 = vmul.f32 %v748, %v755
        %v764 = vadd.f32 %v762, %v763
        %v765 = vtanh.pop %v764
        %v766 = vmul.f32 %v761, %v765
        %v767 = vpack.c.bf16 %v766, %v766
        %s768 = smul.addr %s653, 4
        %s769 = scalar_lea.vmem %s326, %s768
        %770 = vst [vmem:[%s769] sm:$0xf] %v767
        %s771 = smul.u32 %s20, 3
        %s772 = sadd.s32 %s771, 2
        %s773 = smul.u32 %s772, 4
        %s774 = smul.addr %s773, 8
        %s775 = scalar_lea.vmem %s267, %s774 [#allocation4]
        %v776 = vld [vmem:[%s775] sm:$0xff]
        %v777 = vld [vmem:[%s775 + $0x8] sm:$0xff]
        %v778 = vld [vmem:[%s775 + $0x10] sm:$0xff]
        %v779 = vld [vmem:[%s775 + $0x18] sm:$0xff]
        %780 = vmatprep.subr.bf16.mxu0 %v507
        %781 = vmatpush1.bf16.msra.mxu0 %v506
        %782 = vmatprep.subr.bf16.mxu0 %v503
        %783 = vmatpush1.bf16.msra.mxu0 %v502
        %784 = vmatprep.subr.bf16.mxu0 %v499
        %785 = vmatpush1.bf16.msra.mxu0 %v498
        %786 = vmatprep.subr.bf16.mxu0 %v495
        %787 = vmatpush1.bf16.msra.mxu0 %v494
        %788 = vmatprep.subr.bf16.mxu0 %v491
        %789 = vmatpush1.bf16.msra.mxu0 %v490
        %790 = vmatprep.subr.bf16.mxu0 %v487
        %791 = vmatpush1.bf16.msra.mxu0 %v486
        %792 = vmatprep.subr.bf16.mxu0 %v483
        %793 = vmatpush1.bf16.msra.mxu0 %v482
        %794 = vmatprep.subr.bf16.mxu0 %v479
        %795 = vmatpush1.bf16.msra.mxu0 %v478
        %796 = vmatprep.subr.bf16.mxu0 0
        %797 = vmatpush2.bf16.msra.mxu0 0
        %798 = vmatprep.subr.bf16.mxu0 0
        %799 = vmatpush2.bf16.msra.mxu0 0
        %800 = vmatprep.subr.bf16.mxu0 0
        %801 = vmatpush2.bf16.msra.mxu0 0
        %802 = vmatprep.subr.bf16.mxu0 0
        %803 = vmatpush2.bf16.msra.mxu0 0
        %804 = vmatprep.subr.bf16.mxu0 0
        %805 = vmatpush2.bf16.msra.mxu0 0
        %806 = vmatprep.subr.bf16.mxu0 0
        %807 = vmatpush2.bf16.msra.mxu0 0
        %808 = vmatprep.subr.bf16.mxu0 0
        %809 = vmatpush2.bf16.msra.mxu0 0
        %810 = vmatprep.subr.bf16.mxu0 0
        %811 = vmatpush2.bf16.msra.mxu0 0
        %812 = vmatprep.mubr.bf16.mxu0 0
        %813 = vmatmul.mubr.bf16.gmra.mxu0 %v767
        %v814 = vpop.f32.mrf.mxu0
        %v815 = vadd.f32 %v776, %v814
        %v816 = vpop.f32.mrf.mxu0
        %v817 = vadd.f32 %v777, %v816
        %v818 = vpop.f32.mrf.mxu0
        %v819 = vpop.f32.mrf.mxu0
        %820 = vdwg.mxu0
        %821 = vmatprep.subr.bf16.mxu0 %v509
        %822 = vmatpush1.bf16.msra.mxu0 %v508
        %823 = vmatprep.subr.bf16.mxu0 %v505
        %824 = vmatpush1.bf16.msra.mxu0 %v504
        %825 = vmatprep.subr.bf16.mxu0 %v501
        %826 = vmatpush1.bf16.msra.mxu0 %v500
        %827 = vmatprep.subr.bf16.mxu0 %v497
        %828 = vmatpush1.bf16.msra.mxu0 %v496
        %829 = vmatprep.subr.bf16.mxu0 %v493
        %830 = vmatpush1.bf16.msra.mxu0 %v492
        %831 = vmatprep.subr.bf16.mxu0 %v489
        %832 = vmatpush1.bf16.msra.mxu0 %v488
        %833 = vmatprep.subr.bf16.mxu0 %v485
        %834 = vmatpush1.bf16.msra.mxu0 %v484
        %835 = vmatprep.subr.bf16.mxu0 %v481
        %836 = vmatpush1.bf16.msra.mxu0 %v480
        %837 = vmatprep.subr.bf16.mxu0 0
        %838 = vmatpush2.bf16.msra.mxu0 0
        %839 = vmatprep.subr.bf16.mxu0 0
        %840 = vmatpush2.bf16.msra.mxu0 0
        %841 = vmatprep.subr.bf16.mxu0 0
        %842 = vmatpush2.bf16.msra.mxu0 0
        %843 = vmatprep.subr.bf16.mxu0 0
        %844 = vmatpush2.bf16.msra.mxu0 0
        %845 = vmatprep.subr.bf16.mxu0 0
        %846 = vmatpush2.bf16.msra.mxu0 0
        %847 = vmatprep.subr.bf16.mxu0 0
        %848 = vmatpush2.bf16.msra.mxu0 0
        %849 = vmatprep.subr.bf16.mxu0 0
        %850 = vmatpush2.bf16.msra.mxu0 0
        %851 = vmatprep.subr.bf16.mxu0 0
        %852 = vmatpush2.bf16.msra.mxu0 0
        %853 = vmatprep.mubr.bf16.mxu0 0
        %854 = vmatmul.mubr.bf16.gmra.mxu0 %v767
        %v855 = vpop.f32.mrf.mxu0
        %v856 = vadd.f32 %v778, %v855
        %v857 = vpop.f32.mrf.mxu0
        %v858 = vadd.f32 %v779, %v857
        %v859 = vpop.f32.mrf.mxu0
        %v860 = vpop.f32.mrf.mxu0
        %861 = vdwg.mxu0
        %v862 = vxor.u32 %v815, 2147483648
        %v863 = vmul.f32 %v862, 1.442695
        %v864 = vpow.pop %v863
        %v865 = vadd.f32 %v864, 1.0
        %v866 = vrcp.pop %v865
        %v867 = vmul.f32 1.0, %v866
        %v868 = vxor.u32 %v817, 2147483648
        %v869 = vmul.f32 %v868, 1.442695
        %v870 = vpow.pop %v869
        %v871 = vadd.f32 %v870, 1.0
        %v872 = vrcp.pop %v871
        %v873 = vmul.f32 1.0, %v872
        %v874 = vtanh.pop %v856
        %v875 = vxor.u32 %v858, 2147483648
        %v876 = vmul.f32 %v875, 1.442695
        %v877 = vpow.pop %v876
        %v878 = vadd.f32 %v877, 1.0
        %v879 = vrcp.pop %v878
        %v880 = vmul.f32 1.0, %v879
        %v881 = vmul.f32 %v873, %v764
        %v882 = vmul.f32 %v867, %v874
        %v883 = vadd.f32 %v881, %v882
        %v884 = vtanh.pop %v883
        %v885 = vmul.f32 %v880, %v884
        %v886 = vpack.c.bf16 %v885, %v885
        %s887 = smul.addr %s772, 4
        %s888 = scalar_lea.vmem %s326, %s887
        %889 = vst [vmem:[%s888] sm:$0xf] %v886
        %s890 = sadd.s32 %s20, 3
        %s891 = smul.u32 %s890, 4
        %s892 = smul.addr %s891, 8
        %s893 = scalar_lea.vmem %s267, %s892 [#allocation4]
        %v894 = vld [vmem:[%s893] sm:$0xff]
        %v895 = vld [vmem:[%s893 + $0x8] sm:$0xff]
        %v896 = vld [vmem:[%s893 + $0x10] sm:$0xff]
        %v897 = vld [vmem:[%s893 + $0x18] sm:$0xff]
        %898 = vmatprep.subr.bf16.mxu0 %v507
        %899 = vmatpush1.bf16.msra.mxu0 %v506
        %900 = vmatprep.subr.bf16.mxu0 %v503
        %901 = vmatpush1.bf16.msra.mxu0 %v502
        %902 = vmatprep.subr.bf16.mxu0 %v499
        %903 = vmatpush1.bf16.msra.mxu0 %v498
        %904 = vmatprep.subr.bf16.mxu0 %v495
        %905 = vmatpush1.bf16.msra.mxu0 %v494
        %906 = vmatprep.subr.bf16.mxu0 %v491
        %907 = vmatpush1.bf16.msra.mxu0 %v490
        %908 = vmatprep.subr.bf16.mxu0 %v487
        %909 = vmatpush1.bf16.msra.mxu0 %v486
        %910 = vmatprep.subr.bf16.mxu0 %v483
        %911 = vmatpush1.bf16.msra.mxu0 %v482
        %912 = vmatprep.subr.bf16.mxu0 %v479
        %913 = vmatpush1.bf16.msra.mxu0 %v478
        %914 = vmatprep.subr.bf16.mxu0 0
        %915 = vmatpush2.bf16.msra.mxu0 0
        %916 = vmatprep.subr.bf16.mxu0 0
        %917 = vmatpush2.bf16.msra.mxu0 0
        %918 = vmatprep.subr.bf16.mxu0 0
        %919 = vmatpush2.bf16.msra.mxu0 0
        %920 = vmatprep.subr.bf16.mxu0 0
        %921 = vmatpush2.bf16.msra.mxu0 0
        %922 = vmatprep.subr.bf16.mxu0 0
        %923 = vmatpush2.bf16.msra.mxu0 0
        %924 = vmatprep.subr.bf16.mxu0 0
        %925 = vmatpush2.bf16.msra.mxu0 0
        %926 = vmatprep.subr.bf16.mxu0 0
        %927 = vmatpush2.bf16.msra.mxu0 0
        %928 = vmatprep.subr.bf16.mxu0 0
        %929 = vmatpush2.bf16.msra.mxu0 0
        %930 = vmatprep.mubr.bf16.mxu0 0
        %931 = vmatmul.mubr.bf16.gmra.mxu0 %v886
        %v932 = vpop.f32.mrf.mxu0
        %v933 = vadd.f32 %v894, %v932
        %v934 = vpop.f32.mrf.mxu0
        %v935 = vadd.f32 %v895, %v934
        %v936 = vpop.f32.mrf.mxu0
        %v937 = vpop.f32.mrf.mxu0
        %938 = vdwg.mxu0
        %939 = vmatprep.subr.bf16.mxu0 %v509
        %940 = vmatpush1.bf16.msra.mxu0 %v508
        %941 = vmatprep.subr.bf16.mxu0 %v505
        %942 = vmatpush1.bf16.msra.mxu0 %v504
        %943 = vmatprep.subr.bf16.mxu0 %v501
        %944 = vmatpush1.bf16.msra.mxu0 %v500
        %945 = vmatprep.subr.bf16.mxu0 %v497
        %946 = vmatpush1.bf16.msra.mxu0 %v496
        %947 = vmatprep.subr.bf16.mxu0 %v493
        %948 = vmatpush1.bf16.msra.mxu0 %v492
        %949 = vmatprep.subr.bf16.mxu0 %v489
        %950 = vmatpush1.bf16.msra.mxu0 %v488
        %951 = vmatprep.subr.bf16.mxu0 %v485
        %952 = vmatpush1.bf16.msra.mxu0 %v484
        %953 = vmatprep.subr.bf16.mxu0 %v481
        %954 = vmatpush1.bf16.msra.mxu0 %v480
        %955 = vmatprep.subr.bf16.mxu0 0
        %956 = vmatpush2.bf16.msra.mxu0 0
        %957 = vmatprep.subr.bf16.mxu0 0
        %958 = vmatpush2.bf16.msra.mxu0 0
        %959 = vmatprep.subr.bf16.mxu0 0
        %960 = vmatpush2.bf16.msra.mxu0 0
        %961 = vmatprep.subr.bf16.mxu0 0
        %962 = vmatpush2.bf16.msra.mxu0 0
        %963 = vmatprep.subr.bf16.mxu0 0
        %964 = vmatpush2.bf16.msra.mxu0 0
        %965 = vmatprep.subr.bf16.mxu0 0
        %966 = vmatpush2.bf16.msra.mxu0 0
        %967 = vmatprep.subr.bf16.mxu0 0
        %968 = vmatpush2.bf16.msra.mxu0 0
        %969 = vmatprep.subr.bf16.mxu0 0
        %970 = vmatpush2.bf16.msra.mxu0 0
        %971 = vmatprep.mubr.bf16.mxu0 0
        %972 = vmatmul.mubr.bf16.gmra.mxu0 %v886
        %v973 = vpop.f32.mrf.mxu0
        %v974 = vadd.f32 %v896, %v973
        %v975 = vpop.f32.mrf.mxu0
        %v976 = vadd.f32 %v897, %v975
        %v977 = vpop.f32.mrf.mxu0
        %v978 = vpop.f32.mrf.mxu0
        %979 = vdwg.mxu0
        %v980 = vxor.u32 %v933, 2147483648
        %v981 = vmul.f32 %v980, 1.442695
        %v982 = vpow.pop %v981
        %v983 = vadd.f32 %v982, 1.0
        %v984 = vrcp.pop %v983
        %v985 = vmul.f32 1.0, %v984
        %v986 = vxor.u32 %v935, 2147483648
        %v987 = vmul.f32 %v986, 1.442695
        %v988 = vpow.pop %v987
        %v989 = vadd.f32 %v988, 1.0
        %v990 = vrcp.pop %v989
        %v991 = vmul.f32 1.0, %v990
        %v992 = vtanh.pop %v974
        %v993 = vxor.u32 %v976, 2147483648
        %v994 = vmul.f32 %v993, 1.442695
        %v995 = vpow.pop %v994
        %v996 = vadd.f32 %v995, 1.0
        %v997 = vrcp.pop %v996
        %v998 = vmul.f32 1.0, %v997
        %v999 = vmul.f32 %v991, %v883
        %v1000 = vmul.f32 %v985, %v992
        %v1001 = vadd.f32 %v999, %v1000
        %v1002 = vtanh.pop %v1001
        %v1003 = vmul.f32 %v998, %v1002
        %v1004 = vpack.c.bf16 %v1003, %v1003
        %s1005 = smul.addr %s890, 4
        %s1006 = scalar_lea.vmem %s326, %s1005
        %1007 = vst [vmem:[%s1006] sm:$0xf] %v1004
        %s1008 = ssub.s32 4, %s20
        %s1009 = smul.u32 %s1008, 4
        %s1010 = smul.addr %s1009, 8
        %s1011 = scalar_lea.vmem %s267, %s1010 [#allocation4]
        %v1012 = vld [vmem:[%s1011] sm:$0xff]
        %v1013 = vld [vmem:[%s1011 + $0x8] sm:$0xff]
        %v1014 = vld [vmem:[%s1011 + $0x10] sm:$0xff]
        %v1015 = vld [vmem:[%s1011 + $0x18] sm:$0xff]
        %1016 = vmatprep.subr.bf16.mxu0 %v507
        %1017 = vmatpush1.bf16.msra.mxu0 %v506
        %1018 = vmatprep.subr.bf16.mxu0 %v503
        %1019 = vmatpush1.bf16.msra.mxu0 %v502
        %1020 = vmatprep.subr.bf16.mxu0 %v499
        %1021 = vmatpush1.bf16.msra.mxu0 %v498
        %1022 = vmatprep.subr.bf16.mxu0 %v495
        %1023 = vmatpush1.bf16.msra.mxu0 %v494
        %1024 = vmatprep.subr.bf16.mxu0 %v491
        %1025 = vmatpush1.bf16.msra.mxu0 %v490
        %1026 = vmatprep.subr.bf16.mxu0 %v487
        %1027 = vmatpush1.bf16.msra.mxu0 %v486
        %1028 = vmatprep.subr.bf16.mxu0 %v483
        %1029 = vmatpush1.bf16.msra.mxu0 %v482
        %1030 = vmatprep.subr.bf16.mxu0 %v479
        %1031 = vmatpush1.bf16.msra.mxu0 %v478
        %1032 = vmatprep.subr.bf16.mxu0 0
        %1033 = vmatpush2.bf16.msra.mxu0 0
        %1034 = vmatprep.subr.bf16.mxu0 0
        %1035 = vmatpush2.bf16.msra.mxu0 0
        %1036 = vmatprep.subr.bf16.mxu0 0
        %1037 = vmatpush2.bf16.msra.mxu0 0
        %1038 = vmatprep.subr.bf16.mxu0 0
        %1039 = vmatpush2.bf16.msra.mxu0 0
        %1040 = vmatprep.subr.bf16.mxu0 0
        %1041 = vmatpush2.bf16.msra.mxu0 0
        %1042 = vmatprep.subr.bf16.mxu0 0
        %1043 = vmatpush2.bf16.msra.mxu0 0
        %1044 = vmatprep.subr.bf16.mxu0 0
        %1045 = vmatpush2.bf16.msra.mxu0 0
        %1046 = vmatprep.subr.bf16.mxu0 0
        %1047 = vmatpush2.bf16.msra.mxu0 0
        %1048 = vmatprep.mubr.bf16.mxu0 0
        %1049 = vmatmul.mubr.bf16.gmra.mxu0 %v1004
        %v1050 = vpop.f32.mrf.mxu0
        %v1051 = vadd.f32 %v1012, %v1050
        %v1052 = vpop.f32.mrf.mxu0
        %v1053 = vadd.f32 %v1013, %v1052
        %v1054 = vpop.f32.mrf.mxu0
        %v1055 = vpop.f32.mrf.mxu0
        %1056 = vdwg.mxu0
        %1057 = vmatprep.subr.bf16.mxu0 %v509
        %1058 = vmatpush1.bf16.msra.mxu0 %v508
        %1059 = vmatprep.subr.bf16.mxu0 %v505
        %1060 = vmatpush1.bf16.msra.mxu0 %v504
        %1061 = vmatprep.subr.bf16.mxu0 %v501
        %1062 = vmatpush1.bf16.msra.mxu0 %v500
        %1063 = vmatprep.subr.bf16.mxu0 %v497
        %1064 = vmatpush1.bf16.msra.mxu0 %v496
        %1065 = vmatprep.subr.bf16.mxu0 %v493
        %1066 = vmatpush1.bf16.msra.mxu0 %v492
        %1067 = vmatprep.subr.bf16.mxu0 %v489
        %1068 = vmatpush1.bf16.msra.mxu0 %v488
        %1069 = vmatprep.subr.bf16.mxu0 %v485
        %1070 = vmatpush1.bf16.msra.mxu0 %v484
        %1071 = vmatprep.subr.bf16.mxu0 %v481
        %1072 = vmatpush1.bf16.msra.mxu0 %v480
        %1073 = vmatprep.subr.bf16.mxu0 0
        %1074 = vmatpush2.bf16.msra.mxu0 0
        %1075 = vmatprep.subr.bf16.mxu0 0
        %1076 = vmatpush2.bf16.msra.mxu0 0
        %1077 = vmatprep.subr.bf16.mxu0 0
        %1078 = vmatpush2.bf16.msra.mxu0 0
        %1079 = vmatprep.subr.bf16.mxu0 0
        %1080 = vmatpush2.bf16.msra.mxu0 0
        %1081 = vmatprep.subr.bf16.mxu0 0
        %1082 = vmatpush2.bf16.msra.mxu0 0
        %1083 = vmatprep.subr.bf16.mxu0 0
        %1084 = vmatpush2.bf16.msra.mxu0 0
        %1085 = vmatprep.subr.bf16.mxu0 0
        %1086 = vmatpush2.bf16.msra.mxu0 0
        %1087 = vmatprep.subr.bf16.mxu0 0
        %1088 = vmatpush2.bf16.msra.mxu0 0
        %1089 = vmatprep.mubr.bf16.mxu0 0
        %1090 = vmatmul.mubr.bf16.gmra.mxu0 %v1004
        %v1091 = vpop.f32.mrf.mxu0
        %v1092 = vadd.f32 %v1014, %v1091
        %v1093 = vpop.f32.mrf.mxu0
        %v1094 = vadd.f32 %v1015, %v1093
        %v1095 = vpop.f32.mrf.mxu0
        %v1096 = vpop.f32.mrf.mxu0
        %1097 = vdwg.mxu0
        %v1098 = vxor.u32 %v1051, 2147483648
        %v1099 = vmul.f32 %v1098, 1.442695
        %v1100 = vpow.pop %v1099
        %v1101 = vadd.f32 %v1100, 1.0
        %v1102 = vrcp.pop %v1101
        %v1103 = vmul.f32 1.0, %v1102
        %v1104 = vxor.u32 %v1053, 2147483648
        %v1105 = vmul.f32 %v1104, 1.442695
        %v1106 = vpow.pop %v1105
        %v1107 = vadd.f32 %v1106, 1.0
        %v1108 = vrcp.pop %v1107
        %v1109 = vmul.f32 1.0, %v1108
        %v1110 = vtanh.pop %v1092
        %v1111 = vxor.u32 %v1094, 2147483648
        %v1112 = vmul.f32 %v1111, 1.442695
        %v1113 = vpow.pop %v1112
        %v1114 = vadd.f32 %v1113, 1.0
        %v1115 = vrcp.pop %v1114
        %v1116 = vmul.f32 1.0, %v1115
        %v1117 = vmul.f32 %v1109, %v1001
        %v1118 = vmul.f32 %v1103, %v1110
        %v1119 = vadd.f32 %v1117, %v1118
        %v1120 = vtanh.pop %v1119
        %v1121 = vmul.f32 %v1116, %v1120
        %v1122 = vpack.c.bf16 %v1121, %v1121
        %s1123 = smul.addr %s1008, 4
        %s1124 = scalar_lea.vmem %s326, %s1123
        %1125 = vst [vmem:[%s1124] sm:$0xf] %v1122
        %s1126 = smul.u32 %s20, 4294967293
        %s1127 = sadd.s32 %s1126, 5
        %s1128 = smul.u32 %s1127, 4
        %s1129 = smul.addr %s1128, 8
        %s1130 = scalar_lea.vmem %s267, %s1129 [#allocation4]
        %v1131 = vld [vmem:[%s1130] sm:$0xff]
        %v1132 = vld [vmem:[%s1130 + $0x8] sm:$0xff]
        %v1133 = vld [vmem:[%s1130 + $0x10] sm:$0xff]
        %v1134 = vld [vmem:[%s1130 + $0x18] sm:$0xff]
        %1135 = vmatprep.subr.bf16.mxu0 %v507
        %1136 = vmatpush1.bf16.msra.mxu0 %v506
        %1137 = vmatprep.subr.bf16.mxu0 %v503
        %1138 = vmatpush1.bf16.msra.mxu0 %v502
        %1139 = vmatprep.subr.bf16.mxu0 %v499
        %1140 = vmatpush1.bf16.msra.mxu0 %v498
        %1141 = vmatprep.subr.bf16.mxu0 %v495
        %1142 = vmatpush1.bf16.msra.mxu0 %v494
        %1143 = vmatprep.subr.bf16.mxu0 %v491
        %1144 = vmatpush1.bf16.msra.mxu0 %v490
        %1145 = vmatprep.subr.bf16.mxu0 %v487
        %1146 = vmatpush1.bf16.msra.mxu0 %v486
        %1147 = vmatprep.subr.bf16.mxu0 %v483
        %1148 = vmatpush1.bf16.msra.mxu0 %v482
        %1149 = vmatprep.subr.bf16.mxu0 %v479
        %1150 = vmatpush1.bf16.msra.mxu0 %v478
        %1151 = vmatprep.subr.bf16.mxu0 0
        %1152 = vmatpush2.bf16.msra.mxu0 0
        %1153 = vmatprep.subr.bf16.mxu0 0
        %1154 = vmatpush2.bf16.msra.mxu0 0
        %1155 = vmatprep.subr.bf16.mxu0 0
        %1156 = vmatpush2.bf16.msra.mxu0 0
        %1157 = vmatprep.subr.bf16.mxu0 0
        %1158 = vmatpush2.bf16.msra.mxu0 0
        %1159 = vmatprep.subr.bf16.mxu0 0
        %1160 = vmatpush2.bf16.msra.mxu0 0
        %1161 = vmatprep.subr.bf16.mxu0 0
        %1162 = vmatpush2.bf16.msra.mxu0 0
        %1163 = vmatprep.subr.bf16.mxu0 0
        %1164 = vmatpush2.bf16.msra.mxu0 0
        %1165 = vmatprep.subr.bf16.mxu0 0
        %1166 = vmatpush2.bf16.msra.mxu0 0
        %1167 = vmatprep.mubr.bf16.mxu0 0
        %1168 = vmatmul.mubr.bf16.gmra.mxu0 %v1122
        %v1169 = vpop.f32.mrf.mxu0
        %v1170 = vadd.f32 %v1131, %v1169
        %v1171 = vpop.f32.mrf.mxu0
        %v1172 = vadd.f32 %v1132, %v1171
        %v1173 = vpop.f32.mrf.mxu0
        %v1174 = vpop.f32.mrf.mxu0
        %1175 = vdwg.mxu0
        %1176 = vmatprep.subr.bf16.mxu0 %v509
        %1177 = vmatpush1.bf16.msra.mxu0 %v508
        %1178 = vmatprep.subr.bf16.mxu0 %v505
        %1179 = vmatpush1.bf16.msra.mxu0 %v504
        %1180 = vmatprep.subr.bf16.mxu0 %v501
        %1181 = vmatpush1.bf16.msra.mxu0 %v500
        %1182 = vmatprep.subr.bf16.mxu0 %v497
        %1183 = vmatpush1.bf16.msra.mxu0 %v496
        %1184 = vmatprep.subr.bf16.mxu0 %v493
        %1185 = vmatpush1.bf16.msra.mxu0 %v492
        %1186 = vmatprep.subr.bf16.mxu0 %v489
        %1187 = vmatpush1.bf16.msra.mxu0 %v488
        %1188 = vmatprep.subr.bf16.mxu0 %v485
        %1189 = vmatpush1.bf16.msra.mxu0 %v484
        %1190 = vmatprep.subr.bf16.mxu0 %v481
        %1191 = vmatpush1.bf16.msra.mxu0 %v480
        %1192 = vmatprep.subr.bf16.mxu0 0
        %1193 = vmatpush2.bf16.msra.mxu0 0
        %1194 = vmatprep.subr.bf16.mxu0 0
        %1195 = vmatpush2.bf16.msra.mxu0 0
        %1196 = vmatprep.subr.bf16.mxu0 0
        %1197 = vmatpush2.bf16.msra.mxu0 0
        %1198 = vmatprep.subr.bf16.mxu0 0
        %1199 = vmatpush2.bf16.msra.mxu0 0
        %1200 = vmatprep.subr.bf16.mxu0 0
        %1201 = vmatpush2.bf16.msra.mxu0 0
        %1202 = vmatprep.subr.bf16.mxu0 0
        %1203 = vmatpush2.bf16.msra.mxu0 0
        %1204 = vmatprep.subr.bf16.mxu0 0
        %1205 = vmatpush2.bf16.msra.mxu0 0
        %1206 = vmatprep.subr.bf16.mxu0 0
        %1207 = vmatpush2.bf16.msra.mxu0 0
        %1208 = vmatprep.mubr.bf16.mxu0 0
        %1209 = vmatmul.mubr.bf16.gmra.mxu0 %v1122
        %v1210 = vpop.f32.mrf.mxu0
        %v1211 = vadd.f32 %v1133, %v1210
        %v1212 = vpop.f32.mrf.mxu0
        %v1213 = vadd.f32 %v1134, %v1212
        %v1214 = vpop.f32.mrf.mxu0
        %v1215 = vpop.f32.mrf.mxu0
        %1216 = vdwg.mxu0
        %v1217 = vxor.u32 %v1170, 2147483648
        %v1218 = vmul.f32 %v1217, 1.442695
        %v1219 = vpow.pop %v1218
        %v1220 = vadd.f32 %v1219, 1.0
        %v1221 = vrcp.pop %v1220
        %v1222 = vmul.f32 1.0, %v1221
        %v1223 = vxor.u32 %v1172, 2147483648
        %v1224 = vmul.f32 %v1223, 1.442695
        %v1225 = vpow.pop %v1224
        %v1226 = vadd.f32 %v1225, 1.0
        %v1227 = vrcp.pop %v1226
        %v1228 = vmul.f32 1.0, %v1227
        %v1229 = vtanh.pop %v1211
        %v1230 = vxor.u32 %v1213, 2147483648
        %v1231 = vmul.f32 %v1230, 1.442695
        %v1232 = vpow.pop %v1231
        %v1233 = vadd.f32 %v1232, 1.0
        %v1234 = vrcp.pop %v1233
        %v1235 = vmul.f32 1.0, %v1234
        %v1236 = vmul.f32 %v1228, %v1119
        %v1237 = vmul.f32 %v1222, %v1229
        %v1238 = vadd.f32 %v1236, %v1237
        %v1239 = vtanh.pop %v1238
        %v1240 = vmul.f32 %v1235, %v1239
        %v1241 = vpack.c.bf16 %v1240, %v1240
        %s1242 = smul.addr %s1127, 4
        %s1243 = scalar_lea.vmem %s326, %s1242
        %1244 = vst [vmem:[%s1243] sm:$0xf] %v1241
        %s1245 = smul.u32 %s20, 4294967291
        %s1246 = sadd.s32 %s1245, 6
        %s1247 = smul.u32 %s1246, 4
        %s1248 = smul.addr %s1247, 8
        %s1249 = scalar_lea.vmem %s267, %s1248 [#allocation4]
        %v1250 = vld [vmem:[%s1249] sm:$0xff]
        %v1251 = vld [vmem:[%s1249 + $0x8] sm:$0xff]
        %v1252 = vld [vmem:[%s1249 + $0x10] sm:$0xff]
        %v1253 = vld [vmem:[%s1249 + $0x18] sm:$0xff]
        %1254 = vmatprep.subr.bf16.mxu0 %v507
        %1255 = vmatpush1.bf16.msra.mxu0 %v506
        %1256 = vmatprep.subr.bf16.mxu0 %v503
        %1257 = vmatpush1.bf16.msra.mxu0 %v502
        %1258 = vmatprep.subr.bf16.mxu0 %v499
        %1259 = vmatpush1.bf16.msra.mxu0 %v498
        %1260 = vmatprep.subr.bf16.mxu0 %v495
        %1261 = vmatpush1.bf16.msra.mxu0 %v494
        %1262 = vmatprep.subr.bf16.mxu0 %v491
        %1263 = vmatpush1.bf16.msra.mxu0 %v490
        %1264 = vmatprep.subr.bf16.mxu0 %v487
        %1265 = vmatpush1.bf16.msra.mxu0 %v486
        %1266 = vmatprep.subr.bf16.mxu0 %v483
        %1267 = vmatpush1.bf16.msra.mxu0 %v482
        %1268 = vmatprep.subr.bf16.mxu0 %v479
        %1269 = vmatpush1.bf16.msra.mxu0 %v478
        %1270 = vmatprep.subr.bf16.mxu0 0
        %1271 = vmatpush2.bf16.msra.mxu0 0
        %1272 = vmatprep.subr.bf16.mxu0 0
        %1273 = vmatpush2.bf16.msra.mxu0 0
        %1274 = vmatprep.subr.bf16.mxu0 0
        %1275 = vmatpush2.bf16.msra.mxu0 0
        %1276 = vmatprep.subr.bf16.mxu0 0
        %1277 = vmatpush2.bf16.msra.mxu0 0
        %1278 = vmatprep.subr.bf16.mxu0 0
        %1279 = vmatpush2.bf16.msra.mxu0 0
        %1280 = vmatprep.subr.bf16.mxu0 0
        %1281 = vmatpush2.bf16.msra.mxu0 0
        %1282 = vmatprep.subr.bf16.mxu0 0
        %1283 = vmatpush2.bf16.msra.mxu0 0
        %1284 = vmatprep.subr.bf16.mxu0 0
        %1285 = vmatpush2.bf16.msra.mxu0 0
        %1286 = vmatprep.mubr.bf16.mxu0 0
        %1287 = vmatmul.mubr.bf16.gmra.mxu0 %v1241
        %v1288 = vpop.f32.mrf.mxu0
        %v1289 = vadd.f32 %v1250, %v1288
        %v1290 = vpop.f32.mrf.mxu0
        %v1291 = vadd.f32 %v1251, %v1290
        %v1292 = vpop.f32.mrf.mxu0
        %v1293 = vpop.f32.mrf.mxu0
        %1294 = vdwg.mxu0
        %1295 = vmatprep.subr.bf16.mxu0 %v509
        %1296 = vmatpush1.bf16.msra.mxu0 %v508
        %1297 = vmatprep.subr.bf16.mxu0 %v505
        %1298 = vmatpush1.bf16.msra.mxu0 %v504
        %1299 = vmatprep.subr.bf16.mxu0 %v501
        %1300 = vmatpush1.bf16.msra.mxu0 %v500
        %1301 = vmatprep.subr.bf16.mxu0 %v497
        %1302 = vmatpush1.bf16.msra.mxu0 %v496
        %1303 = vmatprep.subr.bf16.mxu0 %v493
        %1304 = vmatpush1.bf16.msra.mxu0 %v492
        %1305 = vmatprep.subr.bf16.mxu0 %v489
        %1306 = vmatpush1.bf16.msra.mxu0 %v488
        %1307 = vmatprep.subr.bf16.mxu0 %v485
        %1308 = vmatpush1.bf16.msra.mxu0 %v484
        %1309 = vmatprep.subr.bf16.mxu0 %v481
        %1310 = vmatpush1.bf16.msra.mxu0 %v480
        %1311 = vmatprep.subr.bf16.mxu0 0
        %1312 = vmatpush2.bf16.msra.mxu0 0
        %1313 = vmatprep.subr.bf16.mxu0 0
        %1314 = vmatpush2.bf16.msra.mxu0 0
        %1315 = vmatprep.subr.bf16.mxu0 0
        %1316 = vmatpush2.bf16.msra.mxu0 0
        %1317 = vmatprep.subr.bf16.mxu0 0
        %1318 = vmatpush2.bf16.msra.mxu0 0
        %1319 = vmatprep.subr.bf16.mxu0 0
        %1320 = vmatpush2.bf16.msra.mxu0 0
        %1321 = vmatprep.subr.bf16.mxu0 0
        %1322 = vmatpush2.bf16.msra.mxu0 0
        %1323 = vmatprep.subr.bf16.mxu0 0
        %1324 = vmatpush2.bf16.msra.mxu0 0
        %1325 = vmatprep.subr.bf16.mxu0 0
        %1326 = vmatpush2.bf16.msra.mxu0 0
        %1327 = vmatprep.mubr.bf16.mxu0 0
        %1328 = vmatmul.mubr.bf16.gmra.mxu0 %v1241
        %v1329 = vpop.f32.mrf.mxu0
        %v1330 = vadd.f32 %v1252, %v1329
        %v1331 = vpop.f32.mrf.mxu0
        %v1332 = vadd.f32 %v1253, %v1331
        %v1333 = vpop.f32.mrf.mxu0
        %v1334 = vpop.f32.mrf.mxu0
        %1335 = vdwg.mxu0
        %v1336 = vxor.u32 %v1289, 2147483648
        %v1337 = vmul.f32 %v1336, 1.442695
        %v1338 = vpow.pop %v1337
        %v1339 = vadd.f32 %v1338, 1.0
        %v1340 = vrcp.pop %v1339
        %v1341 = vmul.f32 1.0, %v1340
        %v1342 = vxor.u32 %v1291, 2147483648
        %v1343 = vmul.f32 %v1342, 1.442695
        %v1344 = vpow.pop %v1343
        %v1345 = vadd.f32 %v1344, 1.0
        %v1346 = vrcp.pop %v1345
        %v1347 = vmul.f32 1.0, %v1346
        %v1348 = vtanh.pop %v1330
        %v1349 = vxor.u32 %v1332, 2147483648
        %v1350 = vmul.f32 %v1349, 1.442695
        %v1351 = vpow.pop %v1350
        %v1352 = vadd.f32 %v1351, 1.0
        %v1353 = vrcp.pop %v1352
        %v1354 = vmul.f32 1.0, %v1353
        %v1355 = vmul.f32 %v1347, %v1238
        %v1356 = vmul.f32 %v1341, %v1348
        %v1357 = vadd.f32 %v1355, %v1356
        %v1358 = vtanh.pop %v1357
        %v1359 = vmul.f32 %v1354, %v1358
        %v1360 = vpack.c.bf16 %v1359, %v1359
        %s1361 = smul.addr %s1246, 4
        %s1362 = scalar_lea.vmem %s326, %s1361
        %1363 = vst [vmem:[%s1362] sm:$0xf] %v1360
        %s1364 = smul.u32 %s20, 4294967289
        %s1365 = sadd.s32 %s1364, 7
        %s1366 = smul.u32 %s1365, 4
        %s1367 = smul.addr %s1366, 8
        %s1368 = scalar_lea.vmem %s267, %s1367 [#allocation4]
        %v1369 = vld [vmem:[%s1368] sm:$0xff]
        %v1370 = vld [vmem:[%s1368 + $0x8] sm:$0xff]
        %v1371 = vld [vmem:[%s1368 + $0x10] sm:$0xff]
        %v1372 = vld [vmem:[%s1368 + $0x18] sm:$0xff]
        %1373 = vmatprep.subr.bf16.mxu0 %v507
        %1374 = vmatpush1.bf16.msra.mxu0 %v506
        %1375 = vmatprep.subr.bf16.mxu0 %v503
        %1376 = vmatpush1.bf16.msra.mxu0 %v502
        %1377 = vmatprep.subr.bf16.mxu0 %v499
        %1378 = vmatpush1.bf16.msra.mxu0 %v498
        %1379 = vmatprep.subr.bf16.mxu0 %v495
        %1380 = vmatpush1.bf16.msra.mxu0 %v494
        %1381 = vmatprep.subr.bf16.mxu0 %v491
        %1382 = vmatpush1.bf16.msra.mxu0 %v490
        %1383 = vmatprep.subr.bf16.mxu0 %v487
        %1384 = vmatpush1.bf16.msra.mxu0 %v486
        %1385 = vmatprep.subr.bf16.mxu0 %v483
        %1386 = vmatpush1.bf16.msra.mxu0 %v482
        %1387 = vmatprep.subr.bf16.mxu0 %v479
        %1388 = vmatpush1.bf16.msra.mxu0 %v478
        %1389 = vmatprep.subr.bf16.mxu0 0
        %1390 = vmatpush2.bf16.msra.mxu0 0
        %1391 = vmatprep.subr.bf16.mxu0 0
        %1392 = vmatpush2.bf16.msra.mxu0 0
        %1393 = vmatprep.subr.bf16.mxu0 0
        %1394 = vmatpush2.bf16.msra.mxu0 0
        %1395 = vmatprep.subr.bf16.mxu0 0
        %1396 = vmatpush2.bf16.msra.mxu0 0
        %1397 = vmatprep.subr.bf16.mxu0 0
        %1398 = vmatpush2.bf16.msra.mxu0 0
        %1399 = vmatprep.subr.bf16.mxu0 0
        %1400 = vmatpush2.bf16.msra.mxu0 0
        %1401 = vmatprep.subr.bf16.mxu0 0
        %1402 = vmatpush2.bf16.msra.mxu0 0
        %1403 = vmatprep.subr.bf16.mxu0 0
        %1404 = vmatpush2.bf16.msra.mxu0 0
        %1405 = vmatprep.mubr.bf16.mxu0 0
        %1406 = vmatmul.mubr.bf16.gmra.mxu0 %v1360
        %v1407 = vpop.f32.mrf.mxu0
        %v1408 = vadd.f32 %v1369, %v1407
        %v1409 = vpop.f32.mrf.mxu0
        %v1410 = vadd.f32 %v1370, %v1409
        %v1411 = vpop.f32.mrf.mxu0
        %v1412 = vpop.f32.mrf.mxu0
        %1413 = vdwg.mxu0
        %1414 = vmatprep.subr.bf16.mxu0 %v509
        %1415 = vmatpush1.bf16.msra.mxu0 %v508
        %1416 = vmatprep.subr.bf16.mxu0 %v505
        %1417 = vmatpush1.bf16.msra.mxu0 %v504
        %1418 = vmatprep.subr.bf16.mxu0 %v501
        %1419 = vmatpush1.bf16.msra.mxu0 %v500
        %1420 = vmatprep.subr.bf16.mxu0 %v497
        %1421 = vmatpush1.bf16.msra.mxu0 %v496
        %1422 = vmatprep.subr.bf16.mxu0 %v493
        %1423 = vmatpush1.bf16.msra.mxu0 %v492
        %1424 = vmatprep.subr.bf16.mxu0 %v489
        %1425 = vmatpush1.bf16.msra.mxu0 %v488
        %1426 = vmatprep.subr.bf16.mxu0 %v485
        %1427 = vmatpush1.bf16.msra.mxu0 %v484
        %1428 = vmatprep.subr.bf16.mxu0 %v481
        %1429 = vmatpush1.bf16.msra.mxu0 %v480
        %1430 = vmatprep.subr.bf16.mxu0 0
        %1431 = vmatpush2.bf16.msra.mxu0 0
        %1432 = vmatprep.subr.bf16.mxu0 0
        %1433 = vmatpush2.bf16.msra.mxu0 0
        %1434 = vmatprep.subr.bf16.mxu0 0
        %1435 = vmatpush2.bf16.msra.mxu0 0
        %1436 = vmatprep.subr.bf16.mxu0 0
        %1437 = vmatpush2.bf16.msra.mxu0 0
        %1438 = vmatprep.subr.bf16.mxu0 0
        %1439 = vmatpush2.bf16.msra.mxu0 0
        %1440 = vmatprep.subr.bf16.mxu0 0
        %1441 = vmatpush2.bf16.msra.mxu0 0
        %1442 = vmatprep.subr.bf16.mxu0 0
        %1443 = vmatpush2.bf16.msra.mxu0 0
        %1444 = vmatprep.subr.bf16.mxu0 0
        %1445 = vmatpush2.bf16.msra.mxu0 0
        %1446 = vmatprep.mubr.bf16.mxu0 0
        %1447 = vmatmul.mubr.bf16.gmra.mxu0 %v1360
        %v1448 = vpop.f32.mrf.mxu0
        %v1449 = vadd.f32 %v1371, %v1448
        %v1450 = vpop.f32.mrf.mxu0
        %v1451 = vadd.f32 %v1372, %v1450
        %v1452 = vpop.f32.mrf.mxu0
        %v1453 = vpop.f32.mrf.mxu0
        %1454 = vdwg.mxu0
        %v1455 = vxor.u32 %v1408, 2147483648
        %v1456 = vmul.f32 %v1455, 1.442695
        %v1457 = vpow.pop %v1456
        %v1458 = vadd.f32 %v1457, 1.0
        %v1459 = vrcp.pop %v1458
        %v1460 = vmul.f32 1.0, %v1459
        %v1461 = vxor.u32 %v1410, 2147483648
        %v1462 = vmul.f32 %v1461, 1.442695
        %v1463 = vpow.pop %v1462
        %v1464 = vadd.f32 %v1463, 1.0
        %v1465 = vrcp.pop %v1464
        %v1466 = vmul.f32 1.0, %v1465
        %v1467 = vtanh.pop %v1449
        %v1468 = vxor.u32 %v1451, 2147483648
        %v1469 = vmul.f32 %v1468, 1.442695
        %v1470 = vpow.pop %v1469
        %v1471 = vadd.f32 %v1470, 1.0
        %v1472 = vrcp.pop %v1471
        %v1473 = vmul.f32 1.0, %v1472
        %v1474 = vmul.f32 %v1466, %v1357
        %v1475 = vmul.f32 %v1460, %v1467
        %v1476 = vadd.f32 %v1474, %v1475
        %v1477 = vtanh.pop %v1476
        %v1478 = vmul.f32 %v1473, %v1477
        %v1479 = vpack.c.bf16 %v1478, %v1478
        %s1480 = smul.addr %s1365, 4
        %s1481 = scalar_lea.vmem %s326, %s1480
        %1482 = vst [vmem:[%s1481] sm:$0xf] %v1479
        %1483 = vst [vmem:[#allocation2] sm:$0xff] %v1478
        %1484 = vst [vmem:[#allocation3] sm:$0xff] %v1476
        %s1485 = smul.u32 %s21, 2
        %s1486 = ssub.s32 0, %s1485
        %s1487 = smul.u32 %s20, %s1486
        %s1488 = sadd.s32 %s21, %s1487
        %s1489 = smul.u32 8, %s1488
        %p1490 = scmp.lt.s32.totalorder %s20, 1
        %s1491 = scalar_select %p1490, %s20, 1
        %p1492 = scmp.lt.s32.totalorder %s1489, 7
        %s1493 = scalar_select %p1492, %s1489, 7
        %s1494 = smul.addr %s1491, 8
        %s1495 = sadd.s32 %s1493, %s1494
        %s1496 = smul.addr %s1495, 4
        %s1497 = scalar_lea.vmem %s2, %s1496
        // Predicated region
        $region60: #{layer_decoder_forward.6} parent=46 // pred_check
          %p1498 = pneg %p118
        $region61: #{layer_decoder_forward.6} parent=46 // pred_check_branch
          %1500 = sbr.rel (%p1498) target = $region63
        $region62: #{layer_decoder_forward.6} parent=46 // pred_region
          %s1501 = smul.u32 %s21, 2
          %s1502 = ssub.s32 0, %s1501
          %s1503 = smul.u32 %s20, %s1502
          %s1504 = sadd.s32 %s21, %s1503
          %s1505 = smul.u32 8, %s1504
        $region63: #{layer_decoder_forward.6} parent=46 // pred_fallthru
          _
      $region47: #{layer_decoder_forward.6} parent=5 // pred_fallthru
        _
      %p1506 = scmp.le.s32.totalorder 2, %s11
      // Predicated region
      $region64: #{layer_decoder_forward.6} parent=5 // pred_check
        %p1507 = pneg %p1506
      $region65: #{layer_decoder_forward.6} parent=5 // pred_check_branch
        %1509 = sbr.rel (%p1507) target = $region67
      $region66: #{layer_decoder_forward.6} parent=5 // pred_region
        %s1510 = ssub.s32 %s11, 2
        // Predicated region
        $region68: #{layer_decoder_forward.6} parent=66 // pred_check
          %p1511 = pneg %p124
        $region69: #{layer_decoder_forward.6} parent=66 // pred_check_branch
          %1513 = sbr.rel (%p1511) target = $region71
        $region70: #{layer_decoder_forward.6} parent=66 // pred_region
          %s1514 = smul.u32 %s23, 2
          %s1515 = ssub.s32 0, %s1514
          %s1516 = smul.u32 %s22, %s1515
          %s1517 = sadd.s32 %s23, %s1516
          %s1518 = smul.u32 8, %s1517
          %p1519 = scmp.lt.s32.totalorder %s22, 1
          %s1520 = scalar_select %p1519, %s22, 1
          %p1521 = scmp.lt.s32.totalorder %s1518, 7
          %s1522 = scalar_select %p1521, %s1518, 7
          %s1523 = smul.addr %s1520, 8
          %s1524 = sadd.s32 %s1522, %s1523
          %s1525 = smul.addr %s1524, 4
          %s1526 = scalar_lea.vmem %s2, %s1525
        $region71: #{layer_decoder_forward.6} parent=66 // pred_fallthru
          _
      $region67: #{layer_decoder_forward.6} parent=5 // pred_fallthru
        _
    $region6: #{layer_decoder_forward.6} parent=1 // loop_footer
      %s15 = sadd.s32 1, %s11
    $region7: #{layer_decoder_forward.6} parent=1 // loop_footer_branch
      %10 = sbr.rel target = $region3
    $region8: #{layer_decoder_forward.6} parent=1 // loop_exit
      _
    %1527 = vsyncpa [#allocation6], 1
    %s1528 = scalar_lea.sflag [#allocation6], 1
    %1529 = vsyncpa %s1528, 1

// kernel: layer_decoder_forward.7
$region0: #{layer_decoder_forward.7}
  #allocation0 [shape = 'u32[]', space=smem, size = 0x4, offset = 0x4, fixed_abs, tag = 'smem constant byte address 0x4 - core index']
  #allocation1 [shape = 'u32[144,128]{1,0:T(1,128)}', space=vmem, size = 0x12000, scoped, tag = 'internal scratch']
  %s0 = inlined_call_operand.vmem [shape: bf16[2,64,128], index: 0, kind: input, shape index: {}, may-alias: {0,1}]
  %s1 = inlined_call_operand.vmem [shape: bf16[2,64,128], index: 1, kind: input, shape index: {}, may-alias: {0,1}]
  %s2 = inlined_call_operand.vmem [shape: bf16[256,1024], index: 2, kind: input, shape index: {}]
  %s3 = inlined_call_operand.vmem [shape: f32[1,1024], index: 3, kind: input, shape index: {}]
  %s4 = inlined_call_operand.vmem [shape: f32[64,1024], index: 4, kind: output, shape index: {}]
  %s5 = sld [smem:[#allocation0]]
  $region26: #{layer_decoder_forward.7} parent=0
    _
  %s7 = ssub.s32 1, %s5
  %s8 = scalar_select 0, %s7, %s5
  // Predicated region
  $region2: #{layer_decoder_forward.7} parent=0 // pred_check
    _
  $region3: #{layer_decoder_forward.7} parent=0 // pred_check_branch
    %10 = sbr.rel (0) target = $region5
  $region4: #{layer_decoder_forward.7} parent=0 // pred_region
    _
  $region5: #{layer_decoder_forward.7} parent=0 // pred_fallthru
    _
  // Predicated region
  $region6: #{layer_decoder_forward.7} parent=0 // pred_check
    _
  $region7: #{layer_decoder_forward.7} parent=0 // pred_check_branch
    %12 = sbr.rel (0) target = $region9
  $region8: #{layer_decoder_forward.7} parent=0 // pred_region
    %s13 = scalar_lea.vmem %s1, 32
  $region9: #{layer_decoder_forward.7} parent=0 // pred_fallthru
    _
  // Predicated region
  $region10: #{layer_decoder_forward.7} parent=0 // pred_check
    _
  $region11: #{layer_decoder_forward.7} parent=0 // pred_check_branch
    %15 = sbr.rel (0) target = $region13
  $region12: #{layer_decoder_forward.7} parent=0 // pred_region
    _
  $region13: #{layer_decoder_forward.7} parent=0 // pred_fallthru
    _
  // Predicated region
  $region14: #{layer_decoder_forward.7} parent=0 // pred_check
    _
  $region15: #{layer_decoder_forward.7} parent=0 // pred_check_branch
    %17 = sbr.rel (0) target = $region17
  $region16: #{layer_decoder_forward.7} parent=0 // pred_region
    _
  $region17: #{layer_decoder_forward.7} parent=0 // pred_fallthru
    _
  %s18 = scalar_lea.vmem %s1, 32
  %s19 = scalar_lea.vmem %s1, 32
  %v20 = vld [vmem:[%s0] sm:$0xf]
  %v21 = vld [vmem:[%s0 + $0x4] sm:$0xf]
  %v22 = vld [vmem:[%s0 + $0x8] sm:$0xf]
  %v23 = vld [vmem:[%s0 + $0xc] sm:$0xf]
  %v24 = vld [vmem:[%s0 + $0x10] sm:$0xf]
  %v25 = vld [vmem:[%s0 + $0x14] sm:$0xf]
  %v26 = vld [vmem:[%s0 + $0x18] sm:$0xf]
  %v27 = vld [vmem:[%s0 + $0x1c] sm:$0xf]
  %v28 = vld [vmem:[%s19] sm:$0xf]
  %v29 = vld [vmem:[%s19 + $0x4] sm:$0xf]
  %v30 = vld [vmem:[%s19 + $0x8] sm:$0xf]
  %v31 = vld [vmem:[%s19 + $0xc] sm:$0xf]
  %v32 = vld [vmem:[%s19 + $0x10] sm:$0xf]
  %v33 = vld [vmem:[%s19 + $0x14] sm:$0xf]
  %v34 = vld [vmem:[%s19 + $0x18] sm:$0xf]
  %v35 = vld [vmem:[%s19 + $0x1c] sm:$0xf]
  %v44 = vunpack.c.l.b16 %v20
  %v45 = vunpack.c.l.b16 %v21
  %v46 = vunpack.c.l.b16 %v22
  %v47 = vunpack.c.l.b16 %v23
  %v48 = vunpack.c.l.b16 %v24
  %v49 = vunpack.c.l.b16 %v25
  %v50 = vunpack.c.l.b16 %v26
  %v51 = vunpack.c.l.b16 %v27
  %v52 = vpack.c.b16 %v45, %v44
  %v53 = vpack.c.b16 %v47, %v46
  %v54 = vpack.c.b16 %v49, %v48
  %v55 = vpack.c.b16 %v51, %v50
  %v68 = vunpack.c.l.b16 %v28
  %v69 = vunpack.c.l.b16 %v29
  %v70 = vunpack.c.l.b16 %v30
  %v71 = vunpack.c.l.b16 %v31
  %v72 = vunpack.c.l.b16 %v32
  %v73 = vunpack.c.l.b16 %v33
  %v74 = vunpack.c.l.b16 %v34
  %v75 = vunpack.c.l.b16 %v35
  %v76 = vpack.c.b16 %v69, %v68
  %v77 = vpack.c.b16 %v71, %v70
  %v78 = vpack.c.b16 %v73, %v72
  %v79 = vpack.c.b16 %v75, %v74
  %v84 = vld [vmem:[%s2] sm:$0xff]
  %v85 = vld [vmem:[%s2 + $0x8] sm:$0xff]
  %v86 = vld [vmem:[%s2 + $0x10] sm:$0xff]
  %v87 = vld [vmem:[%s2 + $0x18] sm:$0xff]
  %v88 = vld [vmem:[%s2 + $0x20] sm:$0xff]
  %v89 = vld [vmem:[%s2 + $0x28] sm:$0xff]
  %v90 = vld [vmem:[%s2 + $0x30] sm:$0xff]
  %v91 = vld [vmem:[%s2 + $0x38] sm:$0xff]
  %v92 = vld [vmem:[%s2 + $0x40] sm:$0xff]
  %v93 = vld [vmem:[%s2 + $0x48] sm:$0xff]
  %v94 = vld [vmem:[%s2 + $0x50] sm:$0xff]
  %v95 = vld [vmem:[%s2 + $0x58] sm:$0xff]
  %v96 = vld [vmem:[%s2 + $0x60] sm:$0xff]
  %v97 = vld [vmem:[%s2 + $0x68] sm:$0xff]
  %v98 = vld [vmem:[%s2 + $0x70] sm:$0xff]
  %v99 = vld [vmem:[%s2 + $0x78] sm:$0xff]
  %v100 = vld [vmem:[%s2 + $0x80] sm:$0xff]
  %v101 = vld [vmem:[%s2 + $0x88] sm:$0xff]
  %v102 = vld [vmem:[%s2 + $0x90] sm:$0xff]
  %v103 = vld [vmem:[%s2 + $0x98] sm:$0xff]
  %v104 = vld [vmem:[%s2 + $0xa0] sm:$0xff]
  %v105 = vld [vmem:[%s2 + $0xa8] sm:$0xff]
  %v106 = vld [vmem:[%s2 + $0xb0] sm:$0xff]
  %v107 = vld [vmem:[%s2 + $0xb8] sm:$0xff]
  %v108 = vld [vmem:[%s2 + $0xc0] sm:$0xff]
  %v109 = vld [vmem:[%s2 + $0xc8] sm:$0xff]
  %v110 = vld [vmem:[%s2 + $0xd0] sm:$0xff]
  %v111 = vld [vmem:[%s2 + $0xd8] sm:$0xff]
  %v112 = vld [vmem:[%s2 + $0xe0] sm:$0xff]
  %v113 = vld [vmem:[%s2 + $0xe8] sm:$0xff]
  %v114 = vld [vmem:[%s2 + $0xf0] sm:$0xff]
  %v115 = vld [vmem:[%s2 + $0xf8] sm:$0xff]
  %v116 = vld [vmem:[%s2 + $0x100] sm:$0xff]
  %v117 = vld [vmem:[%s2 + $0x108] sm:$0xff]
  %v118 = vld [vmem:[%s2 + $0x110] sm:$0xff]
  %v119 = vld [vmem:[%s2 + $0x118] sm:$0xff]
  %v120 = vld [vmem:[%s2 + $0x120] sm:$0xff]
  %v121 = vld [vmem:[%s2 + $0x128] sm:$0xff]
  %v122 = vld [vmem:[%s2 + $0x130] sm:$0xff]
  %v123 = vld [vmem:[%s2 + $0x138] sm:$0xff]
  %v124 = vld [vmem:[%s2 + $0x140] sm:$0xff]
  %v125 = vld [vmem:[%s2 + $0x148] sm:$0xff]
  %v126 = vld [vmem:[%s2 + $0x150] sm:$0xff]
  %v127 = vld [vmem:[%s2 + $0x158] sm:$0xff]
  %v128 = vld [vmem:[%s2 + $0x160] sm:$0xff]
  %v129 = vld [vmem:[%s2 + $0x168] sm:$0xff]
  %v130 = vld [vmem:[%s2 + $0x170] sm:$0xff]
  %v131 = vld [vmem:[%s2 + $0x178] sm:$0xff]
  %v132 = vld [vmem:[%s2 + $0x180] sm:$0xff]
  %v133 = vld [vmem:[%s2 + $0x188] sm:$0xff]
  %v134 = vld [vmem:[%s2 + $0x190] sm:$0xff]
  %v135 = vld [vmem:[%s2 + $0x198] sm:$0xff]
  %v136 = vld [vmem:[%s2 + $0x1a0] sm:$0xff]
  %v137 = vld [vmem:[%s2 + $0x1a8] sm:$0xff]
  %v138 = vld [vmem:[%s2 + $0x1b0] sm:$0xff]
  %v139 = vld [vmem:[%s2 + $0x1b8] sm:$0xff]
  %v140 = vld [vmem:[%s2 + $0x1c0] sm:$0xff]
  %v141 = vld [vmem:[%s2 + $0x1c8] sm:$0xff]
  %v142 = vld [vmem:[%s2 + $0x1d0] sm:$0xff]
  %v143 = vld [vmem:[%s2 + $0x1d8] sm:$0xff]
  %v144 = vld [vmem:[%s2 + $0x1e0] sm:$0xff]
  %v145 = vld [vmem:[%s2 + $0x1e8] sm:$0xff]
  %v146 = vld [vmem:[%s2 + $0x1f0] sm:$0xff]
  %v147 = vld [vmem:[%s2 + $0x1f8] sm:$0xff]
  %v148 = vld [vmem:[%s2 + $0x200] sm:$0xff]
  %v149 = vld [vmem:[%s2 + $0x208] sm:$0xff]
  %v150 = vld [vmem:[%s2 + $0x210] sm:$0xff]
  %v151 = vld [vmem:[%s2 + $0x218] sm:$0xff]
  %v152 = vld [vmem:[%s2 + $0x220] sm:$0xff]
  %v153 = vld [vmem:[%s2 + $0x228] sm:$0xff]
  %v154 = vld [vmem:[%s2 + $0x230] sm:$0xff]
  %v155 = vld [vmem:[%s2 + $0x238] sm:$0xff]
  %v156 = vld [vmem:[%s2 + $0x240] sm:$0xff]
  %v157 = vld [vmem:[%s2 + $0x248] sm:$0xff]
  %v158 = vld [vmem:[%s2 + $0x250] sm:$0xff]
  %v159 = vld [vmem:[%s2 + $0x258] sm:$0xff]
  %v160 = vld [vmem:[%s2 + $0x260] sm:$0xff]
  %v161 = vld [vmem:[%s2 + $0x268] sm:$0xff]
  %v162 = vld [vmem:[%s2 + $0x270] sm:$0xff]
  %v163 = vld [vmem:[%s2 + $0x278] sm:$0xff]
  %v164 = vld [vmem:[%s2 + $0x280] sm:$0xff]
  %v165 = vld [vmem:[%s2 + $0x288] sm:$0xff]
  %v166 = vld [vmem:[%s2 + $0x290] sm:$0xff]
  %v167 = vld [vmem:[%s2 + $0x298] sm:$0xff]
  %v168 = vld [vmem:[%s2 + $0x2a0] sm:$0xff]
  %v169 = vld [vmem:[%s2 + $0x2a8] sm:$0xff]
  %v170 = vld [vmem:[%s2 + $0x2b0] sm:$0xff]
  %v171 = vld [vmem:[%s2 + $0x2b8] sm:$0xff]
  %v172 = vld [vmem:[%s2 + $0x2c0] sm:$0xff]
  %v173 = vld [vmem:[%s2 + $0x2c8] sm:$0xff]
  %v174 = vld [vmem:[%s2 + $0x2d0] sm:$0xff]
  %v175 = vld [vmem:[%s2 + $0x2d8] sm:$0xff]
  %v176 = vld [vmem:[%s2 + $0x2e0] sm:$0xff]
  %v177 = vld [vmem:[%s2 + $0x2e8] sm:$0xff]
  %v178 = vld [vmem:[%s2 + $0x2f0] sm:$0xff]
  %v179 = vld [vmem:[%s2 + $0x2f8] sm:$0xff]
  %v180 = vld [vmem:[%s2 + $0x300] sm:$0xff]
  %v181 = vld [vmem:[%s2 + $0x308] sm:$0xff]
  %v182 = vld [vmem:[%s2 + $0x310] sm:$0xff]
  %v183 = vld [vmem:[%s2 + $0x318] sm:$0xff]
  %v184 = vld [vmem:[%s2 + $0x320] sm:$0xff]
  %v185 = vld [vmem:[%s2 + $0x328] sm:$0xff]
  %v186 = vld [vmem:[%s2 + $0x330] sm:$0xff]
  %v187 = vld [vmem:[%s2 + $0x338] sm:$0xff]
  %v188 = vld [vmem:[%s2 + $0x340] sm:$0xff]
  %v189 = vld [vmem:[%s2 + $0x348] sm:$0xff]
  %v190 = vld [vmem:[%s2 + $0x350] sm:$0xff]
  %v191 = vld [vmem:[%s2 + $0x358] sm:$0xff]
  %v192 = vld [vmem:[%s2 + $0x360] sm:$0xff]
  %v193 = vld [vmem:[%s2 + $0x368] sm:$0xff]
  %v194 = vld [vmem:[%s2 + $0x370] sm:$0xff]
  %v195 = vld [vmem:[%s2 + $0x378] sm:$0xff]
  %v196 = vld [vmem:[%s2 + $0x380] sm:$0xff]
  %v197 = vld [vmem:[%s2 + $0x388] sm:$0xff]
  %v198 = vld [vmem:[%s2 + $0x390] sm:$0xff]
  %v199 = vld [vmem:[%s2 + $0x398] sm:$0xff]
  %v200 = vld [vmem:[%s2 + $0x3a0] sm:$0xff]
  %v201 = vld [vmem:[%s2 + $0x3a8] sm:$0xff]
  %v202 = vld [vmem:[%s2 + $0x3b0] sm:$0xff]
  %v203 = vld [vmem:[%s2 + $0x3b8] sm:$0xff]
  %v204 = vld [vmem:[%s2 + $0x3c0] sm:$0xff]
  %v205 = vld [vmem:[%s2 + $0x3c8] sm:$0xff]
  %v206 = vld [vmem:[%s2 + $0x3d0] sm:$0xff]
  %v207 = vld [vmem:[%s2 + $0x3d8] sm:$0xff]
  %v208 = vld [vmem:[%s2 + $0x3e0] sm:$0xff]
  %v209 = vld [vmem:[%s2 + $0x3e8] sm:$0xff]
  %v210 = vld [vmem:[%s2 + $0x3f0] sm:$0xff]
  %v211 = vld [vmem:[%s2 + $0x3f8] sm:$0xff]
  %v212 = vld [vmem:[%s3] sm:$0xff]
  %v214 = vlaneseq
  %v215 = vshrl.u32 %v214, 7
  %v216 = vsub.s32 0, %v215
  %v217 = vrot.slane %v212, %v216
  %v218 = vlaneseq
  %v219 = vshrl.u32 %v218, 7
  %v220 = vsub.s32 1, %v219
  %v221 = vrot.slane %v212, %v220
  %v222 = vlaneseq
  %v223 = vshrl.u32 %v222, 7
  %v224 = vsub.s32 2, %v223
  %v225 = vrot.slane %v212, %v224
  %v226 = vlaneseq
  %v227 = vshrl.u32 %v226, 7
  %v228 = vsub.s32 3, %v227
  %v229 = vrot.slane %v212, %v228
  %v230 = vlaneseq
  %v231 = vshrl.u32 %v230, 7
  %v232 = vsub.s32 4, %v231
  %v233 = vrot.slane %v212, %v232
  %v234 = vlaneseq
  %v235 = vshrl.u32 %v234, 7
  %v236 = vsub.s32 5, %v235
  %v237 = vrot.slane %v212, %v236
  %v238 = vlaneseq
  %v239 = vshrl.u32 %v238, 7
  %v240 = vsub.s32 6, %v239
  %v241 = vrot.slane %v212, %v240
  %v242 = vlaneseq
  %v243 = vshrl.u32 %v242, 7
  %v244 = vsub.s32 7, %v243
  %v245 = vrot.slane %v212, %v244
  %v382 = vunpack.c.l.b16 %v84
  %v383 = vunpack.c.h.b16 %v84
  %v384 = vunpack.c.l.b16 %v85
  %v385 = vunpack.c.h.b16 %v85
  %v386 = vunpack.c.l.b16 %v86
  %v387 = vunpack.c.h.b16 %v86
  %v388 = vunpack.c.l.b16 %v87
  %v389 = vunpack.c.h.b16 %v87
  %v390 = vunpack.c.l.b16 %v88
  %v391 = vunpack.c.h.b16 %v88
  %v392 = vunpack.c.l.b16 %v89
  %v393 = vunpack.c.h.b16 %v89
  %v394 = vunpack.c.l.b16 %v90
  %v395 = vunpack.c.h.b16 %v90
  %v396 = vunpack.c.l.b16 %v91
  %v397 = vunpack.c.h.b16 %v91
  %v398 = vunpack.c.l.b16 %v92
  %v399 = vunpack.c.h.b16 %v92
  %v400 = vunpack.c.l.b16 %v93
  %v401 = vunpack.c.h.b16 %v93
  %v402 = vunpack.c.l.b16 %v94
  %v403 = vunpack.c.h.b16 %v94
  %v404 = vunpack.c.l.b16 %v95
  %v405 = vunpack.c.h.b16 %v95
  %v406 = vunpack.c.l.b16 %v96
  %v407 = vunpack.c.h.b16 %v96
  %v408 = vunpack.c.l.b16 %v97
  %v409 = vunpack.c.h.b16 %v97
  %v410 = vunpack.c.l.b16 %v98
  %v411 = vunpack.c.h.b16 %v98
  %v412 = vunpack.c.l.b16 %v99
  %v413 = vunpack.c.h.b16 %v99
  %v414 = vunpack.c.l.b16 %v100
  %v415 = vunpack.c.h.b16 %v100
  %v416 = vunpack.c.l.b16 %v101
  %v417 = vunpack.c.h.b16 %v101
  %v418 = vunpack.c.l.b16 %v102
  %v419 = vunpack.c.h.b16 %v102
  %v420 = vunpack.c.l.b16 %v103
  %v421 = vunpack.c.h.b16 %v103
  %v422 = vunpack.c.l.b16 %v104
  %v423 = vunpack.c.h.b16 %v104
  %v424 = vunpack.c.l.b16 %v105
  %v425 = vunpack.c.h.b16 %v105
  %v426 = vunpack.c.l.b16 %v106
  %v427 = vunpack.c.h.b16 %v106
  %v428 = vunpack.c.l.b16 %v107
  %v429 = vunpack.c.h.b16 %v107
  %v430 = vunpack.c.l.b16 %v108
  %v431 = vunpack.c.h.b16 %v108
  %v432 = vunpack.c.l.b16 %v109
  %v433 = vunpack.c.h.b16 %v109
  %v434 = vunpack.c.l.b16 %v110
  %v435 = vunpack.c.h.b16 %v110
  %v436 = vunpack.c.l.b16 %v111
  %v437 = vunpack.c.h.b16 %v111
  %v438 = vunpack.c.l.b16 %v112
  %v439 = vunpack.c.h.b16 %v112
  %v440 = vunpack.c.l.b16 %v113
  %v441 = vunpack.c.h.b16 %v113
  %v442 = vunpack.c.l.b16 %v114
  %v443 = vunpack.c.h.b16 %v114
  %v444 = vunpack.c.l.b16 %v115
  %v445 = vunpack.c.h.b16 %v115
  %v446 = vunpack.c.l.b16 %v116
  %v447 = vunpack.c.h.b16 %v116
  %v448 = vunpack.c.l.b16 %v117
  %v449 = vunpack.c.h.b16 %v117
  %v450 = vunpack.c.l.b16 %v118
  %v451 = vunpack.c.h.b16 %v118
  %v452 = vunpack.c.l.b16 %v119
  %v453 = vunpack.c.h.b16 %v119
  %v454 = vunpack.c.l.b16 %v120
  %v455 = vunpack.c.h.b16 %v120
  %v456 = vunpack.c.l.b16 %v121
  %v457 = vunpack.c.h.b16 %v121
  %v458 = vunpack.c.l.b16 %v122
  %v459 = vunpack.c.h.b16 %v122
  %v460 = vunpack.c.l.b16 %v123
  %v461 = vunpack.c.h.b16 %v123
  %v462 = vunpack.c.l.b16 %v124
  %v463 = vunpack.c.h.b16 %v124
  %v464 = vunpack.c.l.b16 %v125
  %v465 = vunpack.c.h.b16 %v125
  %v466 = vunpack.c.l.b16 %v126
  %v467 = vunpack.c.h.b16 %v126
  %v468 = vunpack.c.l.b16 %v127
  %v469 = vunpack.c.h.b16 %v127
  %v470 = vunpack.c.l.b16 %v128
  %v471 = vunpack.c.h.b16 %v128
  %v472 = vunpack.c.l.b16 %v129
  %v473 = vunpack.c.h.b16 %v129
  %v474 = vunpack.c.l.b16 %v130
  %v475 = vunpack.c.h.b16 %v130
  %v476 = vunpack.c.l.b16 %v131
  %v477 = vunpack.c.h.b16 %v131
  %v478 = vunpack.c.l.b16 %v132
  %v479 = vunpack.c.h.b16 %v132
  %v480 = vunpack.c.l.b16 %v133
  %v481 = vunpack.c.h.b16 %v133
  %v482 = vunpack.c.l.b16 %v134
  %v483 = vunpack.c.h.b16 %v134
  %v484 = vunpack.c.l.b16 %v135
  %v485 = vunpack.c.h.b16 %v135
  %v486 = vunpack.c.l.b16 %v136
  %v487 = vunpack.c.h.b16 %v136
  %v488 = vunpack.c.l.b16 %v137
  %v489 = vunpack.c.h.b16 %v137
  %v490 = vunpack.c.l.b16 %v138
  %v491 = vunpack.c.h.b16 %v138
  %v492 = vunpack.c.l.b16 %v139
  %v493 = vunpack.c.h.b16 %v139
  %v494 = vunpack.c.l.b16 %v140
  %v495 = vunpack.c.h.b16 %v140
  %v496 = vunpack.c.l.b16 %v141
  %v497 = vunpack.c.h.b16 %v141
  %v498 = vunpack.c.l.b16 %v142
  %v499 = vunpack.c.h.b16 %v142
  %v500 = vunpack.c.l.b16 %v143
  %v501 = vunpack.c.h.b16 %v143
  %v502 = vunpack.c.l.b16 %v144
  %v503 = vunpack.c.h.b16 %v144
  %v504 = vunpack.c.l.b16 %v145
  %v505 = vunpack.c.h.b16 %v145
  %v506 = vunpack.c.l.b16 %v146
  %v507 = vunpack.c.h.b16 %v146
  %v508 = vunpack.c.l.b16 %v147
  %v509 = vunpack.c.h.b16 %v147
  %v510 = vunpack.c.l.b16 %v148
  %v511 = vunpack.c.h.b16 %v148
  %v512 = vunpack.c.l.b16 %v149
  %v513 = vunpack.c.h.b16 %v149
  %v514 = vunpack.c.l.b16 %v150
  %v515 = vunpack.c.h.b16 %v150
  %v516 = vunpack.c.l.b16 %v151
  %v517 = vunpack.c.h.b16 %v151
  %v518 = vunpack.c.l.b16 %v152
  %v519 = vunpack.c.h.b16 %v152
  %v520 = vunpack.c.l.b16 %v153
  %v521 = vunpack.c.h.b16 %v153
  %v522 = vunpack.c.l.b16 %v154
  %v523 = vunpack.c.h.b16 %v154
  %v524 = vunpack.c.l.b16 %v155
  %v525 = vunpack.c.h.b16 %v155
  %v526 = vunpack.c.l.b16 %v156
  %v527 = vunpack.c.h.b16 %v156
  %v528 = vunpack.c.l.b16 %v157
  %v529 = vunpack.c.h.b16 %v157
  %v530 = vunpack.c.l.b16 %v158
  %v531 = vunpack.c.h.b16 %v158
  %v532 = vunpack.c.l.b16 %v159
  %v533 = vunpack.c.h.b16 %v159
  %v534 = vunpack.c.l.b16 %v160
  %v535 = vunpack.c.h.b16 %v160
  %v536 = vunpack.c.l.b16 %v161
  %v537 = vunpack.c.h.b16 %v161
  %v538 = vunpack.c.l.b16 %v162
  %v539 = vunpack.c.h.b16 %v162
  %v540 = vunpack.c.l.b16 %v163
  %v541 = vunpack.c.h.b16 %v163
  %v542 = vunpack.c.l.b16 %v164
  %v543 = vunpack.c.h.b16 %v164
  %v544 = vunpack.c.l.b16 %v165
  %v545 = vunpack.c.h.b16 %v165
  %v546 = vunpack.c.l.b16 %v166
  %v547 = vunpack.c.h.b16 %v166
  %v548 = vunpack.c.l.b16 %v167
  %v549 = vunpack.c.h.b16 %v167
  %v550 = vunpack.c.l.b16 %v168
  %v551 = vunpack.c.h.b16 %v168
  %v552 = vunpack.c.l.b16 %v169
  %v553 = vunpack.c.h.b16 %v169
  %v554 = vunpack.c.l.b16 %v170
  %v555 = vunpack.c.h.b16 %v170
  %v556 = vunpack.c.l.b16 %v171
  %v557 = vunpack.c.h.b16 %v171
  %v558 = vunpack.c.l.b16 %v172
  %v559 = vunpack.c.h.b16 %v172
  %v560 = vunpack.c.l.b16 %v173
  %v561 = vunpack.c.h.b16 %v173
  %v562 = vunpack.c.l.b16 %v174
  %v563 = vunpack.c.h.b16 %v174
  %v564 = vunpack.c.l.b16 %v175
  %v565 = vunpack.c.h.b16 %v175
  %v566 = vunpack.c.l.b16 %v176
  %v567 = vunpack.c.h.b16 %v176
  %v568 = vunpack.c.l.b16 %v177
  %v569 = vunpack.c.h.b16 %v177
  %v570 = vunpack.c.l.b16 %v178
  %v571 = vunpack.c.h.b16 %v178
  %v572 = vunpack.c.l.b16 %v179
  %v573 = vunpack.c.h.b16 %v179
  %v574 = vunpack.c.l.b16 %v180
  %v575 = vunpack.c.h.b16 %v180
  %v576 = vunpack.c.l.b16 %v181
  %v577 = vunpack.c.h.b16 %v181
  %v578 = vunpack.c.l.b16 %v182
  %v579 = vunpack.c.h.b16 %v182
  %v580 = vunpack.c.l.b16 %v183
  %v581 = vunpack.c.h.b16 %v183
  %v582 = vunpack.c.l.b16 %v184
  %v583 = vunpack.c.h.b16 %v184
  %v584 = vunpack.c.l.b16 %v185
  %v585 = vunpack.c.h.b16 %v185
  %v586 = vunpack.c.l.b16 %v186
  %v587 = vunpack.c.h.b16 %v186
  %v588 = vunpack.c.l.b16 %v187
  %v589 = vunpack.c.h.b16 %v187
  %v590 = vunpack.c.l.b16 %v188
  %v591 = vunpack.c.h.b16 %v188
  %v592 = vunpack.c.l.b16 %v189
  %v593 = vunpack.c.h.b16 %v189
  %v594 = vunpack.c.l.b16 %v190
  %v595 = vunpack.c.h.b16 %v190
  %v596 = vunpack.c.l.b16 %v191
  %v597 = vunpack.c.h.b16 %v191
  %v598 = vunpack.c.l.b16 %v192
  %v599 = vunpack.c.h.b16 %v192
  %v600 = vunpack.c.l.b16 %v193
  %v601 = vunpack.c.h.b16 %v193
  %v602 = vunpack.c.l.b16 %v194
  %v603 = vunpack.c.h.b16 %v194
  %v604 = vunpack.c.l.b16 %v195
  %v605 = vunpack.c.h.b16 %v195
  %v606 = vunpack.c.l.b16 %v196
  %v607 = vunpack.c.h.b16 %v196
  %v608 = vunpack.c.l.b16 %v197
  %v609 = vunpack.c.h.b16 %v197
  %v610 = vunpack.c.l.b16 %v198
  %v611 = vunpack.c.h.b16 %v198
  %v612 = vunpack.c.l.b16 %v199
  %v613 = vunpack.c.h.b16 %v199
  %v614 = vunpack.c.l.b16 %v200
  %v615 = vunpack.c.h.b16 %v200
  %v616 = vunpack.c.l.b16 %v201
  %v617 = vunpack.c.h.b16 %v201
  %v618 = vunpack.c.l.b16 %v202
  %v619 = vunpack.c.h.b16 %v202
  %v620 = vunpack.c.l.b16 %v203
  %v621 = vunpack.c.h.b16 %v203
  %v622 = vunpack.c.l.b16 %v204
  %v623 = vunpack.c.h.b16 %v204
  %v624 = vunpack.c.l.b16 %v205
  %v625 = vunpack.c.h.b16 %v205
  %v626 = vunpack.c.l.b16 %v206
  %v627 = vunpack.c.h.b16 %v206
  %v628 = vunpack.c.l.b16 %v207
  %v629 = vunpack.c.h.b16 %v207
  %v630 = vunpack.c.l.b16 %v208
  %v631 = vunpack.c.h.b16 %v208
  %v632 = vunpack.c.l.b16 %v209
  %v633 = vunpack.c.h.b16 %v209
  %v634 = vunpack.c.l.b16 %v210
  %v635 = vunpack.c.h.b16 %v210
  %v636 = vunpack.c.l.b16 %v211
  %v637 = vunpack.c.h.b16 %v211
  %v638 = vpack.c.b16 %v390, %v382
  %v639 = vpack.c.b16 %v391, %v383
  %v640 = vpack.c.b16 %v392, %v384
  %v641 = vpack.c.b16 %v393, %v385
  %v642 = vpack.c.b16 %v394, %v386
  %v643 = vpack.c.b16 %v395, %v387
  %v644 = vpack.c.b16 %v396, %v388
  %v645 = vpack.c.b16 %v397, %v389
  %v646 = vpack.c.b16 %v406, %v398
  %v647 = vpack.c.b16 %v407, %v399
  %v648 = vpack.c.b16 %v408, %v400
  %v649 = vpack.c.b16 %v409, %v401
  %v650 = vpack.c.b16 %v410, %v402
  %v651 = vpack.c.b16 %v411, %v403
  %v652 = vpack.c.b16 %v412, %v404
  %v653 = vpack.c.b16 %v413, %v405
  %v654 = vpack.c.b16 %v422, %v414
  %v655 = vpack.c.b16 %v423, %v415
  %v656 = vpack.c.b16 %v424, %v416
  %v657 = vpack.c.b16 %v425, %v417
  %v658 = vpack.c.b16 %v426, %v418
  %v659 = vpack.c.b16 %v427, %v419
  %v660 = vpack.c.b16 %v428, %v420
  %v661 = vpack.c.b16 %v429, %v421
  %v662 = vpack.c.b16 %v438, %v430
  %v663 = vpack.c.b16 %v439, %v431
  %v664 = vpack.c.b16 %v440, %v432
  %v665 = vpack.c.b16 %v441, %v433
  %v666 = vpack.c.b16 %v442, %v434
  %v667 = vpack.c.b16 %v443, %v435
  %v668 = vpack.c.b16 %v444, %v436
  %v669 = vpack.c.b16 %v445, %v437
  %v670 = vpack.c.b16 %v454, %v446
  %v671 = vpack.c.b16 %v455, %v447
  %v672 = vpack.c.b16 %v456, %v448
  %v673 = vpack.c.b16 %v457, %v449
  %v674 = vpack.c.b16 %v458, %v450
  %v675 = vpack.c.b16 %v459, %v451
  %v676 = vpack.c.b16 %v460, %v452
  %v677 = vpack.c.b16 %v461, %v453
  %v678 = vpack.c.b16 %v470, %v462
  %v679 = vpack.c.b16 %v471, %v463
  %v680 = vpack.c.b16 %v472, %v464
  %v681 = vpack.c.b16 %v473, %v465
  %v682 = vpack.c.b16 %v474, %v466
  %v683 = vpack.c.b16 %v475, %v467
  %v684 = vpack.c.b16 %v476, %v468
  %v685 = vpack.c.b16 %v477, %v469
  %v686 = vpack.c.b16 %v486, %v478
  %v687 = vpack.c.b16 %v487, %v479
  %v688 = vpack.c.b16 %v488, %v480
  %v689 = vpack.c.b16 %v489, %v481
  %v690 = vpack.c.b16 %v490, %v482
  %v691 = vpack.c.b16 %v491, %v483
  %v692 = vpack.c.b16 %v492, %v484
  %v693 = vpack.c.b16 %v493, %v485
  %v694 = vpack.c.b16 %v502, %v494
  %v695 = vpack.c.b16 %v503, %v495
  %v696 = vpack.c.b16 %v504, %v496
  %v697 = vpack.c.b16 %v505, %v497
  %v698 = vpack.c.b16 %v506, %v498
  %v699 = vpack.c.b16 %v507, %v499
  %v700 = vpack.c.b16 %v508, %v500
  %v701 = vpack.c.b16 %v509, %v501
  %v702 = vpack.c.b16 %v518, %v510
  %v703 = vpack.c.b16 %v519, %v511
  %v704 = vpack.c.b16 %v520, %v512
  %v705 = vpack.c.b16 %v521, %v513
  %v706 = vpack.c.b16 %v522, %v514
  %v707 = vpack.c.b16 %v523, %v515
  %v708 = vpack.c.b16 %v524, %v516
  %v709 = vpack.c.b16 %v525, %v517
  %v710 = vpack.c.b16 %v534, %v526
  %v711 = vpack.c.b16 %v535, %v527
  %v712 = vpack.c.b16 %v536, %v528
  %v713 = vpack.c.b16 %v537, %v529
  %v714 = vpack.c.b16 %v538, %v530
  %v715 = vpack.c.b16 %v539, %v531
  %v716 = vpack.c.b16 %v540, %v532
  %v717 = vpack.c.b16 %v541, %v533
  %v718 = vpack.c.b16 %v550, %v542
  %v719 = vpack.c.b16 %v551, %v543
  %v720 = vpack.c.b16 %v552, %v544
  %v721 = vpack.c.b16 %v553, %v545
  %v722 = vpack.c.b16 %v554, %v546
  %v723 = vpack.c.b16 %v555, %v547
  %v724 = vpack.c.b16 %v556, %v548
  %v725 = vpack.c.b16 %v557, %v549
  %v726 = vpack.c.b16 %v566, %v558
  %v727 = vpack.c.b16 %v567, %v559
  %v728 = vpack.c.b16 %v568, %v560
  %v729 = vpack.c.b16 %v569, %v561
  %v730 = vpack.c.b16 %v570, %v562
  %v731 = vpack.c.b16 %v571, %v563
  %v732 = vpack.c.b16 %v572, %v564
  %v733 = vpack.c.b16 %v573, %v565
  %v734 = vpack.c.b16 %v582, %v574
  %v735 = vpack.c.b16 %v583, %v575
  %v736 = vpack.c.b16 %v584, %v576
  %v737 = vpack.c.b16 %v585, %v577
  %v738 = vpack.c.b16 %v586, %v578
  %v739 = vpack.c.b16 %v587, %v579
  %v740 = vpack.c.b16 %v588, %v580
  %v741 = vpack.c.b16 %v589, %v581
  %v742 = vpack.c.b16 %v598, %v590
  %v743 = vpack.c.b16 %v599, %v591
  %v744 = vpack.c.b16 %v600, %v592
  %v745 = vpack.c.b16 %v601, %v593
  %v746 = vpack.c.b16 %v602, %v594
  %v747 = vpack.c.b16 %v603, %v595
  %v748 = vpack.c.b16 %v604, %v596
  %v749 = vpack.c.b16 %v605, %v597
  %v750 = vpack.c.b16 %v614, %v606
  %v751 = vpack.c.b16 %v615, %v607
  %v752 = vpack.c.b16 %v616, %v608
  %v753 = vpack.c.b16 %v617, %v609
  %v754 = vpack.c.b16 %v618, %v610
  %v755 = vpack.c.b16 %v619, %v611
  %v756 = vpack.c.b16 %v620, %v612
  %v757 = vpack.c.b16 %v621, %v613
  %v758 = vpack.c.b16 %v630, %v622
  %v759 = vpack.c.b16 %v631, %v623
  %v760 = vpack.c.b16 %v632, %v624
  %v761 = vpack.c.b16 %v633, %v625
  %v762 = vpack.c.b16 %v634, %v626
  %v763 = vpack.c.b16 %v635, %v627
  %v764 = vpack.c.b16 %v636, %v628
  %v765 = vpack.c.b16 %v637, %v629
  %894 = vmatprep.subr.bf16.mxu0 %v695
  %895 = vmatpush1.bf16.msra.mxu0 %v694
  %896 = vmatprep.subr.bf16.mxu0 %v687
  %897 = vmatpush1.bf16.msra.mxu0 %v686
  %898 = vmatprep.subr.bf16.mxu0 %v679
  %899 = vmatpush1.bf16.msra.mxu0 %v678
  %900 = vmatprep.subr.bf16.mxu0 %v671
  %901 = vmatpush1.bf16.msra.mxu0 %v670
  %902 = vmatprep.subr.bf16.mxu0 %v663
  %903 = vmatpush1.bf16.msra.mxu0 %v662
  %904 = vmatprep.subr.bf16.mxu0 %v655
  %905 = vmatpush1.bf16.msra.mxu0 %v654
  %906 = vmatprep.subr.bf16.mxu0 %v647
  %907 = vmatpush1.bf16.msra.mxu0 %v646
  %908 = vmatprep.subr.bf16.mxu0 %v639
  %909 = vmatpush1.bf16.msra.mxu0 %v638
  %910 = vmatprep.subr.bf16.mxu0 %v759
  %911 = vmatpush2.bf16.msra.mxu0 %v758
  %912 = vmatprep.subr.bf16.mxu0 %v751
  %913 = vmatpush2.bf16.msra.mxu0 %v750
  %914 = vmatprep.subr.bf16.mxu0 %v743
  %915 = vmatpush2.bf16.msra.mxu0 %v742
  %916 = vmatprep.subr.bf16.mxu0 %v735
  %917 = vmatpush2.bf16.msra.mxu0 %v734
  %918 = vmatprep.subr.bf16.mxu0 %v727
  %919 = vmatpush2.bf16.msra.mxu0 %v726
  %920 = vmatprep.subr.bf16.mxu0 %v719
  %921 = vmatpush2.bf16.msra.mxu0 %v718
  %922 = vmatprep.subr.bf16.mxu0 %v711
  %923 = vmatpush2.bf16.msra.mxu0 %v710
  %924 = vmatprep.subr.bf16.mxu0 %v703
  %925 = vmatpush2.bf16.msra.mxu0 %v702
  %926 = vmatprep.mubr.bf16.mxu0 %v76
  %927 = vmatmul.mubr.bf16.gmra.mxu0 %v52
  %v928 = vpop.f32.mrf.mxu0
  %v929 = vadd.f32 %v217, %v928
  %v930 = vpop.f32.mrf.mxu0
  %v931 = vadd.f32 %v221, %v930
  %v932 = vpop.f32.mrf.mxu0
  %v933 = vadd.f32 %v217, %v932
  %v934 = vpop.f32.mrf.mxu0
  %v935 = vadd.f32 %v221, %v934
  %936 = vmatprep.mubr.bf16.mxu0 %v77
  %937 = vmatmul.mubr.bf16.gmra.mxu0 %v53
  %v938 = vpop.f32.mrf.mxu0
  %v939 = vadd.f32 %v217, %v938
  %v940 = vpop.f32.mrf.mxu0
  %v941 = vadd.f32 %v221, %v940
  %v942 = vpop.f32.mrf.mxu0
  %v943 = vadd.f32 %v217, %v942
  %v944 = vpop.f32.mrf.mxu0
  %v945 = vadd.f32 %v221, %v944
  %946 = vmatprep.mubr.bf16.mxu0 %v78
  %947 = vmatmul.mubr.bf16.gmra.mxu0 %v54
  %v948 = vpop.f32.mrf.mxu0
  %v949 = vadd.f32 %v217, %v948
  %v950 = vpop.f32.mrf.mxu0
  %v951 = vadd.f32 %v221, %v950
  %v952 = vpop.f32.mrf.mxu0
  %v953 = vadd.f32 %v217, %v952
  %v954 = vpop.f32.mrf.mxu0
  %v955 = vadd.f32 %v221, %v954
  %956 = vmatprep.mubr.bf16.mxu0 %v79
  %957 = vmatmul.mubr.bf16.gmra.mxu0 %v55
  %v958 = vpop.f32.mrf.mxu0
  %v959 = vadd.f32 %v217, %v958
  %v960 = vpop.f32.mrf.mxu0
  %v961 = vadd.f32 %v221, %v960
  %v962 = vpop.f32.mrf.mxu0
  %v963 = vadd.f32 %v217, %v962
  %v964 = vpop.f32.mrf.mxu0
  %v965 = vadd.f32 %v221, %v964
  %966 = vdwg.mxu0
  %967 = vmatprep.subr.bf16.mxu0 %v697
  %968 = vmatpush1.bf16.msra.mxu0 %v696
  %969 = vmatprep.subr.bf16.mxu0 %v689
  %970 = vmatpush1.bf16.msra.mxu0 %v688
  %971 = vmatprep.subr.bf16.mxu0 %v681
  %972 = vmatpush1.bf16.msra.mxu0 %v680
  %973 = vmatprep.subr.bf16.mxu0 %v673
  %974 = vmatpush1.bf16.msra.mxu0 %v672
  %975 = vmatprep.subr.bf16.mxu0 %v665
  %976 = vmatpush1.bf16.msra.mxu0 %v664
  %977 = vmatprep.subr.bf16.mxu0 %v657
  %978 = vmatpush1.bf16.msra.mxu0 %v656
  %979 = vmatprep.subr.bf16.mxu0 %v649
  %980 = vmatpush1.bf16.msra.mxu0 %v648
  %981 = vmatprep.subr.bf16.mxu0 %v641
  %982 = vmatpush1.bf16.msra.mxu0 %v640
  %983 = vmatprep.subr.bf16.mxu0 %v761
  %984 = vmatpush2.bf16.msra.mxu0 %v760
  %985 = vmatprep.subr.bf16.mxu0 %v753
  %986 = vmatpush2.bf16.msra.mxu0 %v752
  %987 = vmatprep.subr.bf16.mxu0 %v745
  %988 = vmatpush2.bf16.msra.mxu0 %v744
  %989 = vmatprep.subr.bf16.mxu0 %v737
  %990 = vmatpush2.bf16.msra.mxu0 %v736
  %991 = vmatprep.subr.bf16.mxu0 %v729
  %992 = vmatpush2.bf16.msra.mxu0 %v728
  %993 = vmatprep.subr.bf16.mxu0 %v721
  %994 = vmatpush2.bf16.msra.mxu0 %v720
  %995 = vmatprep.subr.bf16.mxu0 %v713
  %996 = vmatpush2.bf16.msra.mxu0 %v712
  %997 = vmatprep.subr.bf16.mxu0 %v705
  %998 = vmatpush2.bf16.msra.mxu0 %v704
  %999 = vmatprep.mubr.bf16.mxu0 %v76
  %1000 = vmatmul.mubr.bf16.gmra.mxu0 %v52
  %v1001 = vpop.f32.mrf.mxu0
  %v1002 = vadd.f32 %v225, %v1001
  %v1003 = vpop.f32.mrf.mxu0
  %v1004 = vadd.f32 %v229, %v1003
  %v1005 = vpop.f32.mrf.mxu0
  %v1006 = vadd.f32 %v225, %v1005
  %v1007 = vpop.f32.mrf.mxu0
  %v1008 = vadd.f32 %v229, %v1007
  %1009 = vmatprep.mubr.bf16.mxu0 %v77
  %1010 = vmatmul.mubr.bf16.gmra.mxu0 %v53
  %v1011 = vpop.f32.mrf.mxu0
  %v1012 = vadd.f32 %v225, %v1011
  %v1013 = vpop.f32.mrf.mxu0
  %v1014 = vadd.f32 %v229, %v1013
  %v1015 = vpop.f32.mrf.mxu0
  %v1016 = vadd.f32 %v225, %v1015
  %v1017 = vpop.f32.mrf.mxu0
  %v1018 = vadd.f32 %v229, %v1017
  %1019 = vmatprep.mubr.bf16.mxu0 %v78
  %1020 = vmatmul.mubr.bf16.gmra.mxu0 %v54
  %v1021 = vpop.f32.mrf.mxu0
  %v1022 = vadd.f32 %v225, %v1021
  %v1023 = vpop.f32.mrf.mxu0
  %v1024 = vadd.f32 %v229, %v1023
  %v1025 = vpop.f32.mrf.mxu0
  %v1026 = vadd.f32 %v225, %v1025
  %v1027 = vpop.f32.mrf.mxu0
  %v1028 = vadd.f32 %v229, %v1027
  %1029 = vmatprep.mubr.bf16.mxu0 %v79
  %1030 = vmatmul.mubr.bf16.gmra.mxu0 %v55
  %v1031 = vpop.f32.mrf.mxu0
  %v1032 = vadd.f32 %v225, %v1031
  %v1033 = vpop.f32.mrf.mxu0
  %v1034 = vadd.f32 %v229, %v1033
  %v1035 = vpop.f32.mrf.mxu0
  %v1036 = vadd.f32 %v225, %v1035
  %v1037 = vpop.f32.mrf.mxu0
  %v1038 = vadd.f32 %v229, %v1037
  %1039 = vdwg.mxu0
  %1040 = vmatprep.subr.bf16.mxu0 %v699
  %1041 = vmatpush1.bf16.msra.mxu0 %v698
  %1042 = vmatprep.subr.bf16.mxu0 %v691
  %1043 = vmatpush1.bf16.msra.mxu0 %v690
  %1044 = vmatprep.subr.bf16.mxu0 %v683
  %1045 = vmatpush1.bf16.msra.mxu0 %v682
  %1046 = vmatprep.subr.bf16.mxu0 %v675
  %1047 = vmatpush1.bf16.msra.mxu0 %v674
  %1048 = vmatprep.subr.bf16.mxu0 %v667
  %1049 = vmatpush1.bf16.msra.mxu0 %v666
  %1050 = vmatprep.subr.bf16.mxu0 %v659
  %1051 = vmatpush1.bf16.msra.mxu0 %v658
  %1052 = vmatprep.subr.bf16.mxu0 %v651
  %1053 = vmatpush1.bf16.msra.mxu0 %v650
  %1054 = vmatprep.subr.bf16.mxu0 %v643
  %1055 = vmatpush1.bf16.msra.mxu0 %v642
  %1056 = vmatprep.subr.bf16.mxu0 %v763
  %1057 = vmatpush2.bf16.msra.mxu0 %v762
  %1058 = vmatprep.subr.bf16.mxu0 %v755
  %1059 = vmatpush2.bf16.msra.mxu0 %v754
  %1060 = vmatprep.subr.bf16.mxu0 %v747
  %1061 = vmatpush2.bf16.msra.mxu0 %v746
  %1062 = vmatprep.subr.bf16.mxu0 %v739
  %1063 = vmatpush2.bf16.msra.mxu0 %v738
  %1064 = vmatprep.subr.bf16.mxu0 %v731
  %1065 = vmatpush2.bf16.msra.mxu0 %v730
  %1066 = vmatprep.subr.bf16.mxu0 %v723
  %1067 = vmatpush2.bf16.msra.mxu0 %v722
  %1068 = vmatprep.subr.bf16.mxu0 %v715
  %1069 = vmatpush2.bf16.msra.mxu0 %v714
  %1070 = vmatprep.subr.bf16.mxu0 %v707
  %1071 = vmatpush2.bf16.msra.mxu0 %v706
  %1072 = vmatprep.mubr.bf16.mxu0 %v76
  %1073 = vmatmul.mubr.bf16.gmra.mxu0 %v52
  %v1074 = vpop.f32.mrf.mxu0
  %v1075 = vadd.f32 %v233, %v1074
  %v1076 = vpop.f32.mrf.mxu0
  %v1077 = vadd.f32 %v237, %v1076
  %v1078 = vpop.f32.mrf.mxu0
  %v1079 = vadd.f32 %v233, %v1078
  %v1080 = vpop.f32.mrf.mxu0
  %v1081 = vadd.f32 %v237, %v1080
  %1082 = vmatprep.mubr.bf16.mxu0 %v77
  %1083 = vmatmul.mubr.bf16.gmra.mxu0 %v53
  %v1084 = vpop.f32.mrf.mxu0
  %v1085 = vadd.f32 %v233, %v1084
  %v1086 = vpop.f32.mrf.mxu0
  %v1087 = vadd.f32 %v237, %v1086
  %v1088 = vpop.f32.mrf.mxu0
  %v1089 = vadd.f32 %v233, %v1088
  %v1090 = vpop.f32.mrf.mxu0
  %v1091 = vadd.f32 %v237, %v1090
  %1092 = vmatprep.mubr.bf16.mxu0 %v78
  %1093 = vmatmul.mubr.bf16.gmra.mxu0 %v54
  %v1094 = vpop.f32.mrf.mxu0
  %v1095 = vadd.f32 %v233, %v1094
  %v1096 = vpop.f32.mrf.mxu0
  %v1097 = vadd.f32 %v237, %v1096
  %v1098 = vpop.f32.mrf.mxu0
  %v1099 = vadd.f32 %v233, %v1098
  %v1100 = vpop.f32.mrf.mxu0
  %v1101 = vadd.f32 %v237, %v1100
  %1102 = vmatprep.mubr.bf16.mxu0 %v79
  %1103 = vmatmul.mubr.bf16.gmra.mxu0 %v55
  %v1104 = vpop.f32.mrf.mxu0
  %v1105 = vadd.f32 %v233, %v1104
  %v1106 = vpop.f32.mrf.mxu0
  %v1107 = vadd.f32 %v237, %v1106
  %v1108 = vpop.f32.mrf.mxu0
  %v1109 = vadd.f32 %v233, %v1108
  %v1110 = vpop.f32.mrf.mxu0
  %v1111 = vadd.f32 %v237, %v1110
  %1112 = vdwg.mxu0
  %1113 = vmatprep.subr.bf16.mxu0 %v701
  %1114 = vmatpush1.bf16.msra.mxu0 %v700
  %1115 = vmatprep.subr.bf16.mxu0 %v693
  %1116 = vmatpush1.bf16.msra.mxu0 %v692
  %1117 = vmatprep.subr.bf16.mxu0 %v685
  %1118 = vmatpush1.bf16.msra.mxu0 %v684
  %1119 = vmatprep.subr.bf16.mxu0 %v677
  %1120 = vmatpush1.bf16.msra.mxu0 %v676
  %1121 = vmatprep.subr.bf16.mxu0 %v669
  %1122 = vmatpush1.bf16.msra.mxu0 %v668
  %1123 = vmatprep.subr.bf16.mxu0 %v661
  %1124 = vmatpush1.bf16.msra.mxu0 %v660
  %1125 = vmatprep.subr.bf16.mxu0 %v653
  %1126 = vmatpush1.bf16.msra.mxu0 %v652
  %1127 = vmatprep.subr.bf16.mxu0 %v645
  %1128 = vmatpush1.bf16.msra.mxu0 %v644
  %1129 = vmatprep.subr.bf16.mxu0 %v765
  %1130 = vmatpush2.bf16.msra.mxu0 %v764
  %1131 = vmatprep.subr.bf16.mxu0 %v757
  %1132 = vmatpush2.bf16.msra.mxu0 %v756
  %1133 = vmatprep.subr.bf16.mxu0 %v749
  %1134 = vmatpush2.bf16.msra.mxu0 %v748
  %1135 = vmatprep.subr.bf16.mxu0 %v741
  %1136 = vmatpush2.bf16.msra.mxu0 %v740
  %1137 = vmatprep.subr.bf16.mxu0 %v733
  %1138 = vmatpush2.bf16.msra.mxu0 %v732
  %1139 = vmatprep.subr.bf16.mxu0 %v725
  %1140 = vmatpush2.bf16.msra.mxu0 %v724
  %1141 = vmatprep.subr.bf16.mxu0 %v717
  %1142 = vmatpush2.bf16.msra.mxu0 %v716
  %1143 = vmatprep.subr.bf16.mxu0 %v709
  %1144 = vmatpush2.bf16.msra.mxu0 %v708
  %1145 = vmatprep.mubr.bf16.mxu0 %v76
  %1146 = vmatmul.mubr.bf16.gmra.mxu0 %v52
  %v1147 = vpop.f32.mrf.mxu0
  %v1148 = vadd.f32 %v241, %v1147
  %v1149 = vpop.f32.mrf.mxu0
  %v1150 = vadd.f32 %v245, %v1149
  %v1151 = vpop.f32.mrf.mxu0
  %v1152 = vadd.f32 %v241, %v1151
  %v1153 = vpop.f32.mrf.mxu0
  %v1154 = vadd.f32 %v245, %v1153
  %1155 = vmatprep.mubr.bf16.mxu0 %v77
  %1156 = vmatmul.mubr.bf16.gmra.mxu0 %v53
  %v1157 = vpop.f32.mrf.mxu0
  %v1158 = vadd.f32 %v241, %v1157
  %v1159 = vpop.f32.mrf.mxu0
  %v1160 = vadd.f32 %v245, %v1159
  %v1161 = vpop.f32.mrf.mxu0
  %v1162 = vadd.f32 %v241, %v1161
  %v1163 = vpop.f32.mrf.mxu0
  %v1164 = vadd.f32 %v245, %v1163
  %1165 = vmatprep.mubr.bf16.mxu0 %v78
  %1166 = vmatmul.mubr.bf16.gmra.mxu0 %v54
  %v1167 = vpop.f32.mrf.mxu0
  %v1168 = vadd.f32 %v241, %v1167
  %v1169 = vpop.f32.mrf.mxu0
  %v1170 = vadd.f32 %v245, %v1169
  %v1171 = vpop.f32.mrf.mxu0
  %v1172 = vadd.f32 %v241, %v1171
  %v1173 = vpop.f32.mrf.mxu0
  %v1174 = vadd.f32 %v245, %v1173
  %1175 = vmatprep.mubr.bf16.mxu0 %v79
  %1176 = vmatmul.mubr.bf16.gmra.mxu0 %v55
  %v1177 = vpop.f32.mrf.mxu0
  %v1178 = vadd.f32 %v241, %v1177
  %v1179 = vpop.f32.mrf.mxu0
  %v1180 = vadd.f32 %v245, %v1179
  %v1181 = vpop.f32.mrf.mxu0
  %v1182 = vadd.f32 %v241, %v1181
  %v1183 = vpop.f32.mrf.mxu0
  %v1184 = vadd.f32 %v245, %v1183
  %1185 = vdwg.mxu0
  %1186 = vst [vmem:[%s4] sm:$0xff] %v929
  %1187 = vst [vmem:[%s4 + $0x8] sm:$0xff] %v931
  %1188 = vst [vmem:[%s4 + $0x10] sm:$0xff] %v1002
  %1189 = vst [vmem:[%s4 + $0x18] sm:$0xff] %v1004
  %1190 = vst [vmem:[%s4 + $0x20] sm:$0xff] %v1075
  %1191 = vst [vmem:[%s4 + $0x28] sm:$0xff] %v1077
  %1192 = vst [vmem:[%s4 + $0x30] sm:$0xff] %v1148
  %1193 = vst [vmem:[%s4 + $0x38] sm:$0xff] %v1150
  %1194 = vst [vmem:[%s4 + $0x40] sm:$0xff] %v933
  %1195 = vst [vmem:[%s4 + $0x48] sm:$0xff] %v935
  %1196 = vst [vmem:[%s4 + $0x50] sm:$0xff] %v1006
  %1197 = vst [vmem:[%s4 + $0x58] sm:$0xff] %v1008
  %1198 = vst [vmem:[%s4 + $0x60] sm:$0xff] %v1079
  %1199 = vst [vmem:[%s4 + $0x68] sm:$0xff] %v1081
  %1200 = vst [vmem:[%s4 + $0x70] sm:$0xff] %v1152
  %1201 = vst [vmem:[%s4 + $0x78] sm:$0xff] %v1154
  %1202 = vst [vmem:[%s4 + $0x80] sm:$0xff] %v939
  %1203 = vst [vmem:[%s4 + $0x88] sm:$0xff] %v941
  %1204 = vst [vmem:[%s4 + $0x90] sm:$0xff] %v1012
  %1205 = vst [vmem:[%s4 + $0x98] sm:$0xff] %v1014
  %1206 = vst [vmem:[%s4 + $0xa0] sm:$0xff] %v1085
  %1207 = vst [vmem:[%s4 + $0xa8] sm:$0xff] %v1087
  %1208 = vst [vmem:[%s4 + $0xb0] sm:$0xff] %v1158
  %1209 = vst [vmem:[%s4 + $0xb8] sm:$0xff] %v1160
  %1210 = vst [vmem:[%s4 + $0xc0] sm:$0xff] %v943
  %1211 = vst [vmem:[%s4 + $0xc8] sm:$0xff] %v945
  %1212 = vst [vmem:[%s4 + $0xd0] sm:$0xff] %v1016
  %1213 = vst [vmem:[%s4 + $0xd8] sm:$0xff] %v1018
  %1214 = vst [vmem:[%s4 + $0xe0] sm:$0xff] %v1089
  %1215 = vst [vmem:[%s4 + $0xe8] sm:$0xff] %v1091
  %1216 = vst [vmem:[%s4 + $0xf0] sm:$0xff] %v1162
  %1217 = vst [vmem:[%s4 + $0xf8] sm:$0xff] %v1164
  %1218 = vst [vmem:[%s4 + $0x100] sm:$0xff] %v949
  %1219 = vst [vmem:[%s4 + $0x108] sm:$0xff] %v951
  %1220 = vst [vmem:[%s4 + $0x110] sm:$0xff] %v1022
  %1221 = vst [vmem:[%s4 + $0x118] sm:$0xff] %v1024
  %1222 = vst [vmem:[%s4 + $0x120] sm:$0xff] %v1095
  %1223 = vst [vmem:[%s4 + $0x128] sm:$0xff] %v1097
  %1224 = vst [vmem:[%s4 + $0x130] sm:$0xff] %v1168
  %1225 = vst [vmem:[%s4 + $0x138] sm:$0xff] %v1170
  %1226 = vst [vmem:[%s4 + $0x140] sm:$0xff] %v953
  %1227 = vst [vmem:[%s4 + $0x148] sm:$0xff] %v955
  %1228 = vst [vmem:[%s4 + $0x150] sm:$0xff] %v1026
  %1229 = vst [vmem:[%s4 + $0x158] sm:$0xff] %v1028
  %1230 = vst [vmem:[%s4 + $0x160] sm:$0xff] %v1099
  %1231 = vst [vmem:[%s4 + $0x168] sm:$0xff] %v1101
  %1232 = vst [vmem:[%s4 + $0x170] sm:$0xff] %v1172
  %1233 = vst [vmem:[%s4 + $0x178] sm:$0xff] %v1174
  %1234 = vst [vmem:[%s4 + $0x180] sm:$0xff] %v959
  %1235 = vst [vmem:[%s4 + $0x188] sm:$0xff] %v961
  %1236 = vst [vmem:[%s4 + $0x190] sm:$0xff] %v1032
  %1237 = vst [vmem:[%s4 + $0x198] sm:$0xff] %v1034
  %1238 = vst [vmem:[%s4 + $0x1a0] sm:$0xff] %v1105
  %1239 = vst [vmem:[%s4 + $0x1a8] sm:$0xff] %v1107
  %1240 = vst [vmem:[%s4 + $0x1b0] sm:$0xff] %v1178
  %1241 = vst [vmem:[%s4 + $0x1b8] sm:$0xff] %v1180
  %1242 = vst [vmem:[%s4 + $0x1c0] sm:$0xff] %v963
  %1243 = vst [vmem:[%s4 + $0x1c8] sm:$0xff] %v965
  %1244 = vst [vmem:[%s4 + $0x1d0] sm:$0xff] %v1036
  %1245 = vst [vmem:[%s4 + $0x1d8] sm:$0xff] %v1038
  %1246 = vst [vmem:[%s4 + $0x1e0] sm:$0xff] %v1109
  %1247 = vst [vmem:[%s4 + $0x1e8] sm:$0xff] %v1111
  %1248 = vst [vmem:[%s4 + $0x1f0] sm:$0xff] %v1182
  %1249 = vst [vmem:[%s4 + $0x1f8] sm:$0xff] %v1184
  // Predicated region
  $region18: #{layer_decoder_forward.7} parent=0 // pred_check
    _
  $region19: #{layer_decoder_forward.7} parent=0 // pred_check_branch
    %1251 = sbr.rel (0) target = $region21
  $region20: #{layer_decoder_forward.7} parent=0 // pred_region
    _
  $region21: #{layer_decoder_forward.7} parent=0 // pred_fallthru
    _
  // Predicated region
  $region22: #{layer_decoder_forward.7} parent=0 // pred_check
    _
  $region23: #{layer_decoder_forward.7} parent=0 // pred_check_branch
    %1253 = sbr.rel (0) target = $region25
  $region24: #{layer_decoder_forward.7} parent=0 // pred_region
    _
  $region25: #{layer_decoder_forward.7} parent=0 // pred_fallthru
    _

// kernel: layer_decoder_forward.8
$region0: #{layer_decoder_forward.8}
  #allocation0 [shape = 'u32[]', space=smem, size = 0x4, offset = 0x4, fixed_abs, tag = 'smem constant byte address 0x4 - core index']
  #allocation1 [shape = 'u32[144,128]{1,0:T(1,128)}', space=vmem, size = 0x12000, scoped, tag = 'internal scratch']
  #allocation2 [shape = 'f32[8,128]{1,0:T(8,128)}', space=vmem, size = 0x1000, scoped, tag = 'scratch operand']
  #allocation3 [shape = 'f32[8,128]{1,0:T(8,128)}', space=vmem, size = 0x1000, scoped, tag = 'scratch operand']
  %s0 = inlined_call_operand.vmem [shape: f32[8,8,1024], index: 0, kind: input, shape index: {}]
  %s1 = inlined_call_operand.vmem [shape: bf16[2,128,512], index: 1, kind: input, shape index: {}]
  %s2 = inlined_call_operand.vmem [shape: bf16[2,8,8,128], index: 2, kind: output, shape index: {}]
  %s3 = sld [smem:[#allocation0]]
  $region68: #{layer_decoder_forward.8} parent=0
    _
  %s5 = ssub.s32 1, %s3
  %s6 = scalar_select 0, %s5, %s3
  $region1: #{layer_decoder_forward.8} parent=0
    #allocation4 [shape = 'u8[262144]{0}', space=vmem, size = 0x40000, scoped, tag = 'input window, operand 0']
    loop: start=0, step=1, limit=4
    $region2: #{layer_decoder_forward.8} parent=1 // loop_pre_header
      _
    $region3: #{layer_decoder_forward.8} parent=1 // loop_header
      %s8 = sphi 0, %s12
      %p9 = scmp.ge.s32.totalorder %s8, 4
      %s15 = sphi 0, %s27
      %s16 = sphi 0, %s23
      %s17 = sphi 0, %s15
      %s18 = sphi 0, %s16
      %s19 = sphi 0, %s17
      %s20 = sphi 0, %s18
      %s40 = sphi 0, %s42
      %s43 = sphi 0, %s40
      %s44 = sphi 0, %s43
      %s60 = sphi 0, %s44
      %s66 = sphi 0, %s68
      %s69 = sphi 0, %s66
      %s70 = sphi 0, %s69
      %s86 = sphi 0, %s70
      %s102 = sphi 0, %s104
      %s105 = sphi 0, %s102
      %s106 = sphi 0, %s105
      %s122 = sphi 0, %s106
    $region4: #{layer_decoder_forward.8} parent=1 // loop_header_branch
      %11 = sbr.rel (%p9) target = $region8
    $region5: #{layer_decoder_forward.8} parent=1 // loop_body
      %s13 = ssub.s32 %s8, 1
      %s14 = ssub.s32 %s8, 2
      %s21 = sadd.s32 1, %s16
      %p22 = scmp.ge.s32.totalorder %s21, 1
      %s23 = scalar_select %p22, 0, %s21
      %s24 = sadd.s32 1, %s15
      %s25 = scalar_select %p22, %s24, %s15
      %p26 = scmp.ge.s32.totalorder %s25, 2
      %s27 = scalar_select %p26, 0, %s25
      %s28 = smul.u32 %s16, 2
      %s29 = ssub.s32 0, %s28
      %s30 = smul.u32 %s15, %s29
      %s31 = sadd.s32 %s16, %s30
      %s32 = smul.u32 %s23, 2
      %s33 = ssub.s32 0, %s32
      %s34 = smul.u32 %s27, %s33
      %s35 = sadd.s32 %s23, %s34
      %s36 = ssub.s32 %s31, %s35
      %s37 = ssub.s32 %s15, %s27
      %s38 = sor.u32 %s36, %s37
      %p39 = scmp.eq.s32.totalorder %s38, 0
      %s41 = sadd.s32 %s40, 1
      %s42 = scalar_select %p39, %s40, %s41
      %p45 = pneg %p39
      %p46 = scmp.eq.s32.totalorder %s8, 1
      %p47 = por %p45, %p46
      %p48 = scmp.ne.s32.totalorder %s40, %s43
      %p49 = scmp.eq.s32.totalorder %s8, 0
      %p50 = por %p48, %p49
      %p51 = scmp.ne.s32.totalorder %s40, %s43
      %p52 = scmp.eq.s32.totalorder %s13, 1
      %p53 = por %p51, %p52
      %p54 = scmp.ne.s32.totalorder %s43, %s44
      %p55 = scmp.eq.s32.totalorder %s13, 0
      %p56 = por %p54, %p55
      %p57 = scmp.ne.s32.totalorder %s43, %s44
      %p58 = scmp.eq.s32.totalorder %s14, 1
      %p59 = por %p57, %p58
      %p61 = scmp.ne.s32.totalorder %s44, %s60
      %p62 = scmp.eq.s32.totalorder %s14, 0
      %p63 = por %p61, %p62
      %s64 = ssub.s32 %s15, %s27
      %p65 = scmp.eq.s32.totalorder %s64, 0
      %s67 = sadd.s32 %s66, 1
      %s68 = scalar_select %p65, %s66, %s67
      %p71 = pneg %p65
      %p72 = scmp.eq.s32.totalorder %s8, 1
      %p73 = por %p71, %p72
      %p74 = scmp.ne.s32.totalorder %s66, %s69
      %p75 = scmp.eq.s32.totalorder %s8, 0
      %p76 = por %p74, %p75
      %p77 = scmp.ne.s32.totalorder %s66, %s69
      %p78 = scmp.eq.s32.totalorder %s13, 1
      %p79 = por %p77, %p78
      %p80 = scmp.ne.s32.totalorder %s69, %s70
      %p81 = scmp.eq.s32.totalorder %s13, 0
      %p82 = por %p80, %p81
      %p83 = scmp.ne.s32.totalorder %s69, %s70
      %p84 = scmp.eq.s32.totalorder %s14, 1
      %p85 = por %p83, %p84
      %p87 = scmp.ne.s32.totalorder %s70, %s86
      %p88 = scmp.eq.s32.totalorder %s14, 0
      %p89 = por %p87, %p88
      %s90 = smul.u32 %s16, 2
      %s91 = ssub.s32 0, %s90
      %s92 = smul.u32 %s15, %s91
      %s93 = sadd.s32 %s16, %s92
      %s94 = smul.u32 %s23, 2
      %s95 = ssub.s32 0, %s94
      %s96 = smul.u32 %s27, %s95
      %s97 = sadd.s32 %s23, %s96
      %s98 = ssub.s32 %s15, %s27
      %s99 = ssub.s32 %s93, %s97
      %s100 = sor.u32 %s98, %s99
      %p101 = scmp.eq.s32.totalorder %s100, 0
      %s103 = sadd.s32 %s102, 1
      %s104 = scalar_select %p101, %s102, %s103
      %p107 = pneg %p101
      %p108 = scmp.eq.s32.totalorder %s8, 1
      %p109 = por %p107, %p108
      %p110 = scmp.ne.s32.totalorder %s102, %s105
      %p111 = scmp.eq.s32.totalorder %s8, 0
      %p112 = por %p110, %p111
      %p113 = scmp.ne.s32.totalorder %s102, %s105
      %p114 = scmp.eq.s32.totalorder %s13, 1
      %p115 = por %p113, %p114
      %p116 = scmp.ne.s32.totalorder %s105, %s106
      %p117 = scmp.eq.s32.totalorder %s13, 0
      %p118 = por %p116, %p117
      %p119 = scmp.ne.s32.totalorder %s105, %s106
      %p120 = scmp.eq.s32.totalorder %s14, 1
      %p121 = por %p119, %p120
      %p123 = scmp.ne.s32.totalorder %s106, %s122
      %p124 = scmp.eq.s32.totalorder %s14, 0
      %p125 = por %p123, %p124
      %p126 = scmp.le.s32.totalorder 1, %s8
      %p127 = scmp.lt.s32.totalorder %s8, 3
      %p128 = pnand %p126, %p127
      %p129 = pneg %p128
      // Predicated region
      $region9: #{layer_decoder_forward.8} parent=5 // pred_check
        _
      $region10: #{layer_decoder_forward.8} parent=5 // pred_check_branch
        %131 = sbr.rel (%p128) target = $region12
      $region11: #{layer_decoder_forward.8} parent=5 // pred_region
        %s132 = ssub.s32 %s8, 1
      $region12: #{layer_decoder_forward.8} parent=5 // pred_fallthru
        _
      %p133 = scmp.lt.s32.totalorder %s8, 2
      // Predicated region
      $region13: #{layer_decoder_forward.8} parent=5 // pred_check
        %p134 = pneg %p133
      $region14: #{layer_decoder_forward.8} parent=5 // pred_check_branch
        %136 = sbr.rel (%p134) target = $region16
      $region15: #{layer_decoder_forward.8} parent=5 // pred_region
        // Predicated region
        $region17: #{layer_decoder_forward.8} parent=15 // pred_check
          %p137 = pneg %p50
        $region18: #{layer_decoder_forward.8} parent=15 // pred_check_branch
          %139 = sbr.rel (%p137) target = $region20
        $region19: #{layer_decoder_forward.8} parent=15 // pred_region
          %s140 = sand.u32 %s40, 1
          %s141 = sand.u32 %s40, 1
          %s142 = smul.addr %s141, 256
          %s143 = scalar_lea.vmem [#allocation4], %s142
          %s144 = smul.u32 %s16, 2
          %s145 = ssub.s32 0, %s144
          %s146 = smul.u32 %s15, %s145
          %s147 = sadd.s32 %s16, %s146
          %s148 = smul.u32 8, %s147
          %s149 = smul.u32 4, %s15
          %s150 = smul.addr %s148, 8
          %s151 = sadd.s32 %s149, %s150
          %s152 = smul.addr %s151, 8
          %s153 = scalar_lea.vmem %s0, %s152
          // Predicated region
          $region21: #{layer_decoder_forward.8} parent=19 // pred_check
            _
          $region22: #{layer_decoder_forward.8} parent=19 // pred_check_branch
            %155 = sbr.rel (0) target = $region24
          $region23: #{layer_decoder_forward.8} parent=19 // pred_region
            // Predicated region
            $region25: #{layer_decoder_forward.8} parent=23 // pred_check
              _
            $region26: #{layer_decoder_forward.8} parent=23 // pred_check_branch
              %157 = sbr.rel (0) target = $region28
            $region27: #{layer_decoder_forward.8} parent=23 // pred_region
              loop: start=0, step=1, limit=1
              $region29: #{layer_decoder_forward.8} parent=27 // loop_pre_header
                _
              $region30: #{layer_decoder_forward.8} parent=27 // loop_header
                %s159 = sphi 0, %s163
                %p160 = scmp.ge.s32.totalorder %s159, 1
                %s164 = sphi %s153, %s153
                %s165 = sphi %s143, %s143
              $region31: #{layer_decoder_forward.8} parent=27 // loop_header_branch
                %162 = sbr.rel (%p160) target = $region35
              $region32: #{layer_decoder_forward.8} parent=27 // loop_body
                %v166 = vld [vmem:[%s164] sm:$0xff]
                %167 = vst [vmem:[%s165] sm:$0xff] %v166
                %v168 = vld [vmem:[%s164 + $0x8] sm:$0xff]
                %169 = vst [vmem:[%s165 + $0x8] sm:$0xff] %v168
                %v170 = vld [vmem:[%s164 + $0x10] sm:$0xff]
                %171 = vst [vmem:[%s165 + $0x10] sm:$0xff] %v170
                %v172 = vld [vmem:[%s164 + $0x18] sm:$0xff]
                %173 = vst [vmem:[%s165 + $0x18] sm:$0xff] %v172
                %v174 = vld [vmem:[%s164 + $0x40] sm:$0xff]
                %175 = vst [vmem:[%s165 + $0x20] sm:$0xff] %v174
                %v176 = vld [vmem:[%s164 + $0x48] sm:$0xff]
                %177 = vst [vmem:[%s165 + $0x28] sm:$0xff] %v176
                %v178 = vld [vmem:[%s164 + $0x50] sm:$0xff]
                %179 = vst [vmem:[%s165 + $0x30] sm:$0xff] %v178
                %v180 = vld [vmem:[%s164 + $0x58] sm:$0xff]
                %181 = vst [vmem:[%s165 + $0x38] sm:$0xff] %v180
                %v182 = vld [vmem:[%s164 + $0x80] sm:$0xff]
                %183 = vst [vmem:[%s165 + $0x40] sm:$0xff] %v182
                %v184 = vld [vmem:[%s164 + $0x88] sm:$0xff]
                %185 = vst [vmem:[%s165 + $0x48] sm:$0xff] %v184
                %v186 = vld [vmem:[%s164 + $0x90] sm:$0xff]
                %187 = vst [vmem:[%s165 + $0x50] sm:$0xff] %v186
                %v188 = vld [vmem:[%s164 + $0x98] sm:$0xff]
                %189 = vst [vmem:[%s165 + $0x58] sm:$0xff] %v188
                %v190 = vld [vmem:[%s164 + $0xc0] sm:$0xff]
                %191 = vst [vmem:[%s165 + $0x60] sm:$0xff] %v190
                %v192 = vld [vmem:[%s164 + $0xc8] sm:$0xff]
                %193 = vst [vmem:[%s165 + $0x68] sm:$0xff] %v192
                %v194 = vld [vmem:[%s164 + $0xd0] sm:$0xff]
                %195 = vst [vmem:[%s165 + $0x70] sm:$0xff] %v194
                %v196 = vld [vmem:[%s164 + $0xd8] sm:$0xff]
                %197 = vst [vmem:[%s165 + $0x78] sm:$0xff] %v196
                %v198 = vld [vmem:[%s164 + $0x100] sm:$0xff]
                %199 = vst [vmem:[%s165 + $0x80] sm:$0xff] %v198
                %v200 = vld [vmem:[%s164 + $0x108] sm:$0xff]
                %201 = vst [vmem:[%s165 + $0x88] sm:$0xff] %v200
                %v202 = vld [vmem:[%s164 + $0x110] sm:$0xff]
                %203 = vst [vmem:[%s165 + $0x90] sm:$0xff] %v202
                %v204 = vld [vmem:[%s164 + $0x118] sm:$0xff]
                %205 = vst [vmem:[%s165 + $0x98] sm:$0xff] %v204
                %v206 = vld [vmem:[%s164 + $0x140] sm:$0xff]
                %207 = vst [vmem:[%s165 + $0xa0] sm:$0xff] %v206
                %v208 = vld [vmem:[%s164 + $0x148] sm:$0xff]
                %209 = vst [vmem:[%s165 + $0xa8] sm:$0xff] %v208
                %v210 = vld [vmem:[%s164 + $0x150] sm:$0xff]
                %211 = vst [vmem:[%s165 + $0xb0] sm:$0xff] %v210
                %v212 = vld [vmem:[%s164 + $0x158] sm:$0xff]
                %213 = vst [vmem:[%s165 + $0xb8] sm:$0xff] %v212
                %v214 = vld [vmem:[%s164 + $0x180] sm:$0xff]
                %215 = vst [vmem:[%s165 + $0xc0] sm:$0xff] %v214
                %v216 = vld [vmem:[%s164 + $0x188] sm:$0xff]
                %217 = vst [vmem:[%s165 + $0xc8] sm:$0xff] %v216
                %v218 = vld [vmem:[%s164 + $0x190] sm:$0xff]
                %219 = vst [vmem:[%s165 + $0xd0] sm:$0xff] %v218
                %v220 = vld [vmem:[%s164 + $0x198] sm:$0xff]
                %221 = vst [vmem:[%s165 + $0xd8] sm:$0xff] %v220
                %v222 = vld [vmem:[%s164 + $0x1c0] sm:$0xff]
                %223 = vst [vmem:[%s165 + $0xe0] sm:$0xff] %v222
                %v224 = vld [vmem:[%s164 + $0x1c8] sm:$0xff]
                %225 = vst [vmem:[%s165 + $0xe8] sm:$0xff] %v224
                %v226 = vld [vmem:[%s164 + $0x1d0] sm:$0xff]
                %227 = vst [vmem:[%s165 + $0xf0] sm:$0xff] %v226
                %v228 = vld [vmem:[%s164 + $0x1d8] sm:$0xff]
                %229 = vst [vmem:[%s165 + $0xf8] sm:$0xff] %v228
              $region33: #{layer_decoder_forward.8} parent=27 // loop_footer
                %s163 = sadd.s32 1, %s159
              $region34: #{layer_decoder_forward.8} parent=27 // loop_footer_branch
                %158 = sbr.rel target = $region30
              $region35: #{layer_decoder_forward.8} parent=27 // loop_exit
                _
            $region28: #{layer_decoder_forward.8} parent=23 // pred_fallthru
              _
            // Predicated region
            $region36: #{layer_decoder_forward.8} parent=23 // pred_check
              _
            $region37: #{layer_decoder_forward.8} parent=23 // pred_check_branch
              %231 = sbr.rel target = $region39
            $region38: #{layer_decoder_forward.8} parent=23 // pred_region
              _
            $region39: #{layer_decoder_forward.8} parent=23 // pred_fallthru
              _
          $region24: #{layer_decoder_forward.8} parent=19 // pred_fallthru
            _
          %232 = vnop
        $region20: #{layer_decoder_forward.8} parent=15 // pred_fallthru
          _
        // Predicated region
        $region40: #{layer_decoder_forward.8} parent=15 // pred_check
          %p233 = pneg %p76
        $region41: #{layer_decoder_forward.8} parent=15 // pred_check_branch
          %235 = sbr.rel (%p233) target = $region43
        $region42: #{layer_decoder_forward.8} parent=15 // pred_region
          %p236 = scmp.lt.s32.totalorder %s15, 1
          %s237 = scalar_select %p236, %s15, 1
          %s238 = smul.addr %s237, 64
          %s239 = smul.addr %s238, 4
          %s240 = scalar_lea.vmem %s1, %s239
        $region43: #{layer_decoder_forward.8} parent=15 // pred_fallthru
          _
      $region16: #{layer_decoder_forward.8} parent=5 // pred_fallthru
        _
      %p241 = scmp.le.s32.totalorder 1, %s8
      %p242 = scmp.lt.s32.totalorder %s8, 3
      %p243 = pnand %p241, %p242
      %p244 = pneg %p243
      // Predicated region
      $region44: #{layer_decoder_forward.8} parent=5 // pred_check
        _
      $region45: #{layer_decoder_forward.8} parent=5 // pred_check_branch
        %246 = sbr.rel (%p243) target = $region47
      $region46: #{layer_decoder_forward.8} parent=5 // pred_region
        %s247 = ssub.s32 %s8, 1
        %s248 = sand.u32 %s43, 1
        %s249 = sand.u32 %s43, 1
        %s250 = smul.addr %s249, 256
        %s251 = scalar_lea.vmem [#allocation4], %s250
        // Predicated region
        $region48: #{layer_decoder_forward.8} parent=46 // pred_check
          %p252 = pneg %p56
        $region49: #{layer_decoder_forward.8} parent=46 // pred_check_branch
          %254 = sbr.rel (%p252) target = $region51
        $region50: #{layer_decoder_forward.8} parent=46 // pred_region
          _
        $region51: #{layer_decoder_forward.8} parent=46 // pred_fallthru
          _
        %s255 = sand.u32 %s43, 1
        %s256 = sand.u32 %s43, 1
        %s257 = smul.addr %s256, 256
        %s258 = scalar_lea.vmem [#allocation4], %s257
        %p259 = pneg %p56
        %p260 = pneg %p53
        %p261 = scmp.lt.s32.totalorder %s17, 1
        %s262 = scalar_select %p261, %s17, 1
        %s263 = smul.addr %s262, 64
        %s264 = smul.addr %s263, 4
        %s265 = scalar_lea.vmem %s1, %s264
        %p266 = pneg %p82
        %p267 = pneg %p79
        %p268 = pneg %p118
        %p269 = pneg %p115
        %s270 = smul.u32 %s18, 2
        %s271 = ssub.s32 0, %s270
        %s272 = smul.u32 %s17, %s271
        %s273 = sadd.s32 %s18, %s272
        %s274 = smul.u32 8, %s273
        %p275 = scmp.lt.s32.totalorder %s17, 1
        %s276 = scalar_select %p275, %s17, 1
        %p277 = scmp.lt.s32.totalorder %s274, 7
        %s278 = scalar_select %p277, %s274, 7
        %s279 = smul.addr %s276, 8
        %s280 = sadd.s32 %s278, %s279
        %s281 = smul.addr %s280, 4
        %s282 = scalar_lea.vmem %s2, %s281
        %s283 = smul.u32 %s18, 2
        %s284 = ssub.s32 0, %s283
        %s285 = smul.u32 %s17, %s284
        %s286 = sadd.s32 %s18, %s285
        %s287 = smul.u32 8, %s286
        %s288 = smul.u32 4, %s17
        %p289 = scmp.lt.s32.totalorder %s17, 1
        %s290 = scalar_select %p289, %s17, 1
        %s291 = smul.addr %s290, 64
        %s292 = smul.addr %s291, 4
        %s293 = scalar_lea.vmem %s1, %s292
        %s294 = smul.u32 %s18, 2
        %s295 = ssub.s32 0, %s294
        %s296 = smul.u32 %s17, %s295
        %s297 = sadd.s32 %s18, %s296
        %s298 = smul.u32 8, %s297
        %p299 = scmp.lt.s32.totalorder %s17, 1
        %s300 = scalar_select %p299, %s17, 1
        %p301 = scmp.lt.s32.totalorder %s298, 7
        %s302 = scalar_select %p301, %s298, 7
        %s303 = smul.addr %s300, 8
        %s304 = sadd.s32 %s302, %s303
        %s305 = smul.addr %s304, 4
        %s306 = scalar_lea.vmem %s2, %s305
        %s307 = smul.u32 %s18, 2
        %s308 = ssub.s32 0, %s307
        %s309 = smul.u32 %s17, %s308
        %s310 = sadd.s32 %s18, %s309
        %s311 = smul.u32 8, %s310
        %p313 = scmp.eq.s32.totalorder %s18, 0
        // Predicated region
        $region52: #{layer_decoder_forward.8} parent=46 // pred_check
          %p314 = pneg %p313
        $region53: #{layer_decoder_forward.8} parent=46 // pred_check_branch
          %316 = sbr.rel (%p314) target = $region55
        $region54: #{layer_decoder_forward.8} parent=46 // pred_region
          %317 = vst [vmem:[#allocation2] sm:$0xff] 0.0
          %318 = vst [vmem:[#allocation3] sm:$0xff] 0.0
        $region55: #{layer_decoder_forward.8} parent=46 // pred_fallthru
          _
        %v319 = vld [vmem:[%s293] sm:$0xff]
        %v320 = vld [vmem:[%s293 + $0x8] sm:$0xff]
        %v321 = vld [vmem:[%s293 + $0x10] sm:$0xff]
        %v322 = vld [vmem:[%s293 + $0x18] sm:$0xff]
        %v323 = vld [vmem:[%s293 + $0x20] sm:$0xff]
        %v324 = vld [vmem:[%s293 + $0x28] sm:$0xff]
        %v325 = vld [vmem:[%s293 + $0x30] sm:$0xff]
        %v326 = vld [vmem:[%s293 + $0x38] sm:$0xff]
        %v327 = vld [vmem:[%s293 + $0x40] sm:$0xff]
        %v328 = vld [vmem:[%s293 + $0x48] sm:$0xff]
        %v329 = vld [vmem:[%s293 + $0x50] sm:$0xff]
        %v330 = vld [vmem:[%s293 + $0x58] sm:$0xff]
        %v331 = vld [vmem:[%s293 + $0x60] sm:$0xff]
        %v332 = vld [vmem:[%s293 + $0x68] sm:$0xff]
        %v333 = vld [vmem:[%s293 + $0x70] sm:$0xff]
        %v334 = vld [vmem:[%s293 + $0x78] sm:$0xff]
        %v335 = vld [vmem:[%s293 + $0x80] sm:$0xff]
        %v336 = vld [vmem:[%s293 + $0x88] sm:$0xff]
        %v337 = vld [vmem:[%s293 + $0x90] sm:$0xff]
        %v338 = vld [vmem:[%s293 + $0x98] sm:$0xff]
        %v339 = vld [vmem:[%s293 + $0xa0] sm:$0xff]
        %v340 = vld [vmem:[%s293 + $0xa8] sm:$0xff]
        %v341 = vld [vmem:[%s293 + $0xb0] sm:$0xff]
        %v342 = vld [vmem:[%s293 + $0xb8] sm:$0xff]
        %v343 = vld [vmem:[%s293 + $0xc0] sm:$0xff]
        %v344 = vld [vmem:[%s293 + $0xc8] sm:$0xff]
        %v345 = vld [vmem:[%s293 + $0xd0] sm:$0xff]
        %v346 = vld [vmem:[%s293 + $0xd8] sm:$0xff]
        %v347 = vld [vmem:[%s293 + $0xe0] sm:$0xff]
        %v348 = vld [vmem:[%s293 + $0xe8] sm:$0xff]
        %v349 = vld [vmem:[%s293 + $0xf0] sm:$0xff]
        %v350 = vld [vmem:[%s293 + $0xf8] sm:$0xff]
        %v351 = vld [vmem:[#allocation2] sm:$0xff]
        %v352 = vld [vmem:[#allocation3] sm:$0xff]
        %s353 = smul.u32 %s17, 7
        %v354 = vpack.c.bf16 %v351, %v351
        %s355 = smul.u32 %s353, 4
        %s356 = smul.addr %s355, 8
        %s357 = scalar_lea.vmem %s251, %s356 [#allocation4]
        %v358 = vld [vmem:[%s357] sm:$0xff]
        %v359 = vld [vmem:[%s357 + $0x8] sm:$0xff]
        %v360 = vld [vmem:[%s357 + $0x10] sm:$0xff]
        %v361 = vld [vmem:[%s357 + $0x18] sm:$0xff]
        %v394 = vunpack.c.l.b16 %v319
        %v395 = vunpack.c.h.b16 %v319
        %v396 = vunpack.c.l.b16 %v320
        %v397 = vunpack.c.h.b16 %v320
        %v398 = vunpack.c.l.b16 %v321
        %v399 = vunpack.c.h.b16 %v321
        %v400 = vunpack.c.l.b16 %v322
        %v401 = vunpack.c.h.b16 %v322
        %v402 = vunpack.c.l.b16 %v323
        %v403 = vunpack.c.h.b16 %v323
        %v404 = vunpack.c.l.b16 %v324
        %v405 = vunpack.c.h.b16 %v324
        %v406 = vunpack.c.l.b16 %v325
        %v407 = vunpack.c.h.b16 %v325
        %v408 = vunpack.c.l.b16 %v326
        %v409 = vunpack.c.h.b16 %v326
        %v410 = vunpack.c.l.b16 %v327
        %v411 = vunpack.c.h.b16 %v327
        %v412 = vunpack.c.l.b16 %v328
        %v413 = vunpack.c.h.b16 %v328
        %v414 = vunpack.c.l.b16 %v329
        %v415 = vunpack.c.h.b16 %v329
        %v416 = vunpack.c.l.b16 %v330
        %v417 = vunpack.c.h.b16 %v330
        %v418 = vunpack.c.l.b16 %v331
        %v419 = vunpack.c.h.b16 %v331
        %v420 = vunpack.c.l.b16 %v332
        %v421 = vunpack.c.h.b16 %v332
        %v422 = vunpack.c.l.b16 %v333
        %v423 = vunpack.c.h.b16 %v333
        %v424 = vunpack.c.l.b16 %v334
        %v425 = vunpack.c.h.b16 %v334
        %v426 = vunpack.c.l.b16 %v335
        %v427 = vunpack.c.h.b16 %v335
        %v428 = vunpack.c.l.b16 %v336
        %v429 = vunpack.c.h.b16 %v336
        %v430 = vunpack.c.l.b16 %v337
        %v431 = vunpack.c.h.b16 %v337
        %v432 = vunpack.c.l.b16 %v338
        %v433 = vunpack.c.h.b16 %v338
        %v434 = vunpack.c.l.b16 %v339
        %v435 = vunpack.c.h.b16 %v339
        %v436 = vunpack.c.l.b16 %v340
        %v437 = vunpack.c.h.b16 %v340
        %v438 = vunpack.c.l.b16 %v341
        %v439 = vunpack.c.h.b16 %v341
        %v440 = vunpack.c.l.b16 %v342
        %v441 = vunpack.c.h.b16 %v342
        %v442 = vunpack.c.l.b16 %v343
        %v443 = vunpack.c.h.b16 %v343
        %v444 = vunpack.c.l.b16 %v344
        %v445 = vunpack.c.h.b16 %v344
        %v446 = vunpack.c.l.b16 %v345
        %v447 = vunpack.c.h.b16 %v345
        %v448 = vunpack.c.l.b16 %v346
        %v449 = vunpack.c.h.b16 %v346
        %v450 = vunpack.c.l.b16 %v347
        %v451 = vunpack.c.h.b16 %v347
        %v452 = vunpack.c.l.b16 %v348
        %v453 = vunpack.c.h.b16 %v348
        %v454 = vunpack.c.l.b16 %v349
        %v455 = vunpack.c.h.b16 %v349
        %v456 = vunpack.c.l.b16 %v350
        %v457 = vunpack.c.h.b16 %v350
        %v458 = vpack.c.b16 %v398, %v394
        %v459 = vpack.c.b16 %v399, %v395
        %v460 = vpack.c.b16 %v400, %v396
        %v461 = vpack.c.b16 %v401, %v397
        %v462 = vpack.c.b16 %v406, %v402
        %v463 = vpack.c.b16 %v407, %v403
        %v464 = vpack.c.b16 %v408, %v404
        %v465 = vpack.c.b16 %v409, %v405
        %v466 = vpack.c.b16 %v414, %v410
        %v467 = vpack.c.b16 %v415, %v411
        %v468 = vpack.c.b16 %v416, %v412
        %v469 = vpack.c.b16 %v417, %v413
        %v470 = vpack.c.b16 %v422, %v418
        %v471 = vpack.c.b16 %v423, %v419
        %v472 = vpack.c.b16 %v424, %v420
        %v473 = vpack.c.b16 %v425, %v421
        %v474 = vpack.c.b16 %v430, %v426
        %v475 = vpack.c.b16 %v431, %v427
        %v476 = vpack.c.b16 %v432, %v428
        %v477 = vpack.c.b16 %v433, %v429
        %v478 = vpack.c.b16 %v438, %v434
        %v479 = vpack.c.b16 %v439, %v435
        %v480 = vpack.c.b16 %v440, %v436
        %v481 = vpack.c.b16 %v441, %v437
        %v482 = vpack.c.b16 %v446, %v442
        %v483 = vpack.c.b16 %v447, %v443
        %v484 = vpack.c.b16 %v448, %v444
        %v485 = vpack.c.b16 %v449, %v445
        %v486 = vpack.c.b16 %v454, %v450
        %v487 = vpack.c.b16 %v455, %v451
        %v488 = vpack.c.b16 %v456, %v452
        %v489 = vpack.c.b16 %v457, %v453
        %522 = vmatprep.subr.bf16.mxu0 %v487
        %523 = vmatpush1.bf16.msra.mxu0 %v486
        %524 = vmatprep.subr.bf16.mxu0 %v483
        %525 = vmatpush1.bf16.msra.mxu0 %v482
        %526 = vmatprep.subr.bf16.mxu0 %v479
        %527 = vmatpush1.bf16.msra.mxu0 %v478
        %528 = vmatprep.subr.bf16.mxu0 %v475
        %529 = vmatpush1.bf16.msra.mxu0 %v474
        %530 = vmatprep.subr.bf16.mxu0 %v471
        %531 = vmatpush1.bf16.msra.mxu0 %v470
        %532 = vmatprep.subr.bf16.mxu0 %v467
        %533 = vmatpush1.bf16.msra.mxu0 %v466
        %534 = vmatprep.subr.bf16.mxu0 %v463
        %535 = vmatpush1.bf16.msra.mxu0 %v462
        %536 = vmatprep.subr.bf16.mxu0 %v459
        %537 = vmatpush1.bf16.msra.mxu0 %v458
        %538 = vmatprep.subr.bf16.mxu0 0
        %539 = vmatpush2.bf16.msra.mxu0 0
        %540 = vmatprep.subr.bf16.mxu0 0
        %541 = vmatpush2.bf16.msra.mxu0 0
        %542 = vmatprep.subr.bf16.mxu0 0
        %543 = vmatpush2.bf16.msra.mxu0 0
        %544 = vmatprep.subr.bf16.mxu0 0
        %545 = vmatpush2.bf16.msra.mxu0 0
        %546 = vmatprep.subr.bf16.mxu0 0
        %547 = vmatpush2.bf16.msra.mxu0 0
        %548 = vmatprep.subr.bf16.mxu0 0
        %549 = vmatpush2.bf16.msra.mxu0 0
        %550 = vmatprep.subr.bf16.mxu0 0
        %551 = vmatpush2.bf16.msra.mxu0 0
        %552 = vmatprep.subr.bf16.mxu0 0
        %553 = vmatpush2.bf16.msra.mxu0 0
        %554 = vmatprep.mubr.bf16.mxu0 0
        %555 = vmatmul.mubr.bf16.gmra.mxu0 %v354
        %v556 = vpop.f32.mrf.mxu0
        %v557 = vadd.f32 %v358, %v556
        %v558 = vpop.f32.mrf.mxu0
        %v559 = vadd.f32 %v359, %v558
        %v560 = vpop.f32.mrf.mxu0
        %v561 = vpop.f32.mrf.mxu0
        %562 = vdwg.mxu0
        %563 = vmatprep.subr.bf16.mxu0 %v489
        %564 = vmatpush1.bf16.msra.mxu0 %v488
        %565 = vmatprep.subr.bf16.mxu0 %v485
        %566 = vmatpush1.bf16.msra.mxu0 %v484
        %567 = vmatprep.subr.bf16.mxu0 %v481
        %568 = vmatpush1.bf16.msra.mxu0 %v480
        %569 = vmatprep.subr.bf16.mxu0 %v477
        %570 = vmatpush1.bf16.msra.mxu0 %v476
        %571 = vmatprep.subr.bf16.mxu0 %v473
        %572 = vmatpush1.bf16.msra.mxu0 %v472
        %573 = vmatprep.subr.bf16.mxu0 %v469
        %574 = vmatpush1.bf16.msra.mxu0 %v468
        %575 = vmatprep.subr.bf16.mxu0 %v465
        %576 = vmatpush1.bf16.msra.mxu0 %v464
        %577 = vmatprep.subr.bf16.mxu0 %v461
        %578 = vmatpush1.bf16.msra.mxu0 %v460
        %579 = vmatprep.subr.bf16.mxu0 0
        %580 = vmatpush2.bf16.msra.mxu0 0
        %581 = vmatprep.subr.bf16.mxu0 0
        %582 = vmatpush2.bf16.msra.mxu0 0
        %583 = vmatprep.subr.bf16.mxu0 0
        %584 = vmatpush2.bf16.msra.mxu0 0
        %585 = vmatprep.subr.bf16.mxu0 0
        %586 = vmatpush2.bf16.msra.mxu0 0
        %587 = vmatprep.subr.bf16.mxu0 0
        %588 = vmatpush2.bf16.msra.mxu0 0
        %589 = vmatprep.subr.bf16.mxu0 0
        %590 = vmatpush2.bf16.msra.mxu0 0
        %591 = vmatprep.subr.bf16.mxu0 0
        %592 = vmatpush2.bf16.msra.mxu0 0
        %593 = vmatprep.subr.bf16.mxu0 0
        %594 = vmatpush2.bf16.msra.mxu0 0
        %595 = vmatprep.mubr.bf16.mxu0 0
        %596 = vmatmul.mubr.bf16.gmra.mxu0 %v354
        %v597 = vpop.f32.mrf.mxu0
        %v598 = vadd.f32 %v360, %v597
        %v599 = vpop.f32.mrf.mxu0
        %v600 = vadd.f32 %v361, %v599
        %v601 = vpop.f32.mrf.mxu0
        %v602 = vpop.f32.mrf.mxu0
        %603 = vdwg.mxu0
        %v604 = vxor.u32 %v557, 2147483648
        %v605 = vmul.f32 %v604, 1.442695
        %v606 = vpow.pop %v605
        %v607 = vadd.f32 %v606, 1.0
        %v608 = vrcp.pop %v607
        %v609 = vmul.f32 1.0, %v608
        %v610 = vxor.u32 %v559, 2147483648
        %v611 = vmul.f32 %v610, 1.442695
        %v612 = vpow.pop %v611
        %v613 = vadd.f32 %v612, 1.0
        %v614 = vrcp.pop %v613
        %v615 = vmul.f32 1.0, %v614
        %v616 = vtanh.pop %v598
        %v617 = vxor.u32 %v600, 2147483648
        %v618 = vmul.f32 %v617, 1.442695
        %v619 = vpow.pop %v618
        %v620 = vadd.f32 %v619, 1.0
        %v621 = vrcp.pop %v620
        %v622 = vmul.f32 1.0, %v621
        %v623 = vmul.f32 %v615, %v352
        %v624 = vmul.f32 %v609, %v616
        %v625 = vadd.f32 %v623, %v624
        %v626 = vtanh.pop %v625
        %v627 = vmul.f32 %v622, %v626
        %v628 = vpack.c.bf16 %v627, %v627
        %s629 = smul.addr %s353, 4
        %s630 = scalar_lea.vmem %s306, %s629
        %631 = vst [vmem:[%s630] sm:$0xf] %v628
        %s632 = smul.u32 %s17, 5
        %s633 = sadd.s32 %s632, 1
        %s634 = smul.u32 %s633, 4
        %s635 = smul.addr %s634, 8
        %s636 = scalar_lea.vmem %s251, %s635 [#allocation4]
        %v637 = vld [vmem:[%s636] sm:$0xff]
        %v638 = vld [vmem:[%s636 + $0x8] sm:$0xff]
        %v639 = vld [vmem:[%s636 + $0x10] sm:$0xff]
        %v640 = vld [vmem:[%s636 + $0x18] sm:$0xff]
        %641 = vmatprep.subr.bf16.mxu0 %v487
        %642 = vmatpush1.bf16.msra.mxu0 %v486
        %643 = vmatprep.subr.bf16.mxu0 %v483
        %644 = vmatpush1.bf16.msra.mxu0 %v482
        %645 = vmatprep.subr.bf16.mxu0 %v479
        %646 = vmatpush1.bf16.msra.mxu0 %v478
        %647 = vmatprep.subr.bf16.mxu0 %v475
        %648 = vmatpush1.bf16.msra.mxu0 %v474
        %649 = vmatprep.subr.bf16.mxu0 %v471
        %650 = vmatpush1.bf16.msra.mxu0 %v470
        %651 = vmatprep.subr.bf16.mxu0 %v467
        %652 = vmatpush1.bf16.msra.mxu0 %v466
        %653 = vmatprep.subr.bf16.mxu0 %v463
        %654 = vmatpush1.bf16.msra.mxu0 %v462
        %655 = vmatprep.subr.bf16.mxu0 %v459
        %656 = vmatpush1.bf16.msra.mxu0 %v458
        %657 = vmatprep.subr.bf16.mxu0 0
        %658 = vmatpush2.bf16.msra.mxu0 0
        %659 = vmatprep.subr.bf16.mxu0 0
        %660 = vmatpush2.bf16.msra.mxu0 0
        %661 = vmatprep.subr.bf16.mxu0 0
        %662 = vmatpush2.bf16.msra.mxu0 0
        %663 = vmatprep.subr.bf16.mxu0 0
        %664 = vmatpush2.bf16.msra.mxu0 0
        %665 = vmatprep.subr.bf16.mxu0 0
        %666 = vmatpush2.bf16.msra.mxu0 0
        %667 = vmatprep.subr.bf16.mxu0 0
        %668 = vmatpush2.bf16.msra.mxu0 0
        %669 = vmatprep.subr.bf16.mxu0 0
        %670 = vmatpush2.bf16.msra.mxu0 0
        %671 = vmatprep.subr.bf16.mxu0 0
        %672 = vmatpush2.bf16.msra.mxu0 0
        %673 = vmatprep.mubr.bf16.mxu0 0
        %674 = vmatmul.mubr.bf16.gmra.mxu0 %v628
        %v675 = vpop.f32.mrf.mxu0
        %v676 = vadd.f32 %v637, %v675
        %v677 = vpop.f32.mrf.mxu0
        %v678 = vadd.f32 %v638, %v677
        %v679 = vpop.f32.mrf.mxu0
        %v680 = vpop.f32.mrf.mxu0
        %681 = vdwg.mxu0
        %682 = vmatprep.subr.bf16.mxu0 %v489
        %683 = vmatpush1.bf16.msra.mxu0 %v488
        %684 = vmatprep.subr.bf16.mxu0 %v485
        %685 = vmatpush1.bf16.msra.mxu0 %v484
        %686 = vmatprep.subr.bf16.mxu0 %v481
        %687 = vmatpush1.bf16.msra.mxu0 %v480
        %688 = vmatprep.subr.bf16.mxu0 %v477
        %689 = vmatpush1.bf16.msra.mxu0 %v476
        %690 = vmatprep.subr.bf16.mxu0 %v473
        %691 = vmatpush1.bf16.msra.mxu0 %v472
        %692 = vmatprep.subr.bf16.mxu0 %v469
        %693 = vmatpush1.bf16.msra.mxu0 %v468
        %694 = vmatprep.subr.bf16.mxu0 %v465
        %695 = vmatpush1.bf16.msra.mxu0 %v464
        %696 = vmatprep.subr.bf16.mxu0 %v461
        %697 = vmatpush1.bf16.msra.mxu0 %v460
        %698 = vmatprep.subr.bf16.mxu0 0
        %699 = vmatpush2.bf16.msra.mxu0 0
        %700 = vmatprep.subr.bf16.mxu0 0
        %701 = vmatpush2.bf16.msra.mxu0 0
        %702 = vmatprep.subr.bf16.mxu0 0
        %703 = vmatpush2.bf16.msra.mxu0 0
        %704 = vmatprep.subr.bf16.mxu0 0
        %705 = vmatpush2.bf16.msra.mxu0 0
        %706 = vmatprep.subr.bf16.mxu0 0
        %707 = vmatpush2.bf16.msra.mxu0 0
        %708 = vmatprep.subr.bf16.mxu0 0
        %709 = vmatpush2.bf16.msra.mxu0 0
        %710 = vmatprep.subr.bf16.mxu0 0
        %711 = vmatpush2.bf16.msra.mxu0 0
        %712 = vmatprep.subr.bf16.mxu0 0
        %713 = vmatpush2.bf16.msra.mxu0 0
        %714 = vmatprep.mubr.bf16.mxu0 0
        %715 = vmatmul.mubr.bf16.gmra.mxu0 %v628
        %v716 = vpop.f32.mrf.mxu0
        %v717 = vadd.f32 %v639, %v716
        %v718 = vpop.f32.mrf.mxu0
        %v719 = vadd.f32 %v640, %v718
        %v720 = vpop.f32.mrf.mxu0
        %v721 = vpop.f32.mrf.mxu0
        %722 = vdwg.mxu0
        %v723 = vxor.u32 %v676, 2147483648
        %v724 = vmul.f32 %v723, 1.442695
        %v725 = vpow.pop %v724
        %v726 = vadd.f32 %v725, 1.0
        %v727 = vrcp.pop %v726
        %v728 = vmul.f32 1.0, %v727
        %v729 = vxor.u32 %v678, 2147483648
        %v730 = vmul.f32 %v729, 1.442695
        %v731 = vpow.pop %v730
        %v732 = vadd.f32 %v731, 1.0
        %v733 = vrcp.pop %v732
        %v734 = vmul.f32 1.0, %v733
        %v735 = vtanh.pop %v717
        %v736 = vxor.u32 %v719, 2147483648
        %v737 = vmul.f32 %v736, 1.442695
        %v738 = vpow.pop %v737
        %v739 = vadd.f32 %v738, 1.0
        %v740 = vrcp.pop %v739
        %v741 = vmul.f32 1.0, %v740
        %v742 = vmul.f32 %v734, %v625
        %v743 = vmul.f32 %v728, %v735
        %v744 = vadd.f32 %v742, %v743
        %v745 = vtanh.pop %v744
        %v746 = vmul.f32 %v741, %v745
        %v747 = vpack.c.bf16 %v746, %v746
        %s748 = smul.addr %s633, 4
        %s749 = scalar_lea.vmem %s306, %s748
        %750 = vst [vmem:[%s749] sm:$0xf] %v747
        %s751 = smul.u32 %s17, 3
        %s752 = sadd.s32 %s751, 2
        %s753 = smul.u32 %s752, 4
        %s754 = smul.addr %s753, 8
        %s755 = scalar_lea.vmem %s251, %s754 [#allocation4]
        %v756 = vld [vmem:[%s755] sm:$0xff]
        %v757 = vld [vmem:[%s755 + $0x8] sm:$0xff]
        %v758 = vld [vmem:[%s755 + $0x10] sm:$0xff]
        %v759 = vld [vmem:[%s755 + $0x18] sm:$0xff]
        %760 = vmatprep.subr.bf16.mxu0 %v487
        %761 = vmatpush1.bf16.msra.mxu0 %v486
        %762 = vmatprep.subr.bf16.mxu0 %v483
        %763 = vmatpush1.bf16.msra.mxu0 %v482
        %764 = vmatprep.subr.bf16.mxu0 %v479
        %765 = vmatpush1.bf16.msra.mxu0 %v478
        %766 = vmatprep.subr.bf16.mxu0 %v475
        %767 = vmatpush1.bf16.msra.mxu0 %v474
        %768 = vmatprep.subr.bf16.mxu0 %v471
        %769 = vmatpush1.bf16.msra.mxu0 %v470
        %770 = vmatprep.subr.bf16.mxu0 %v467
        %771 = vmatpush1.bf16.msra.mxu0 %v466
        %772 = vmatprep.subr.bf16.mxu0 %v463
        %773 = vmatpush1.bf16.msra.mxu0 %v462
        %774 = vmatprep.subr.bf16.mxu0 %v459
        %775 = vmatpush1.bf16.msra.mxu0 %v458
        %776 = vmatprep.subr.bf16.mxu0 0
        %777 = vmatpush2.bf16.msra.mxu0 0
        %778 = vmatprep.subr.bf16.mxu0 0
        %779 = vmatpush2.bf16.msra.mxu0 0
        %780 = vmatprep.subr.bf16.mxu0 0
        %781 = vmatpush2.bf16.msra.mxu0 0
        %782 = vmatprep.subr.bf16.mxu0 0
        %783 = vmatpush2.bf16.msra.mxu0 0
        %784 = vmatprep.subr.bf16.mxu0 0
        %785 = vmatpush2.bf16.msra.mxu0 0
        %786 = vmatprep.subr.bf16.mxu0 0
        %787 = vmatpush2.bf16.msra.mxu0 0
        %788 = vmatprep.subr.bf16.mxu0 0
        %789 = vmatpush2.bf16.msra.mxu0 0
        %790 = vmatprep.subr.bf16.mxu0 0
        %791 = vmatpush2.bf16.msra.mxu0 0
        %792 = vmatprep.mubr.bf16.mxu0 0
        %793 = vmatmul.mubr.bf16.gmra.mxu0 %v747
        %v794 = vpop.f32.mrf.mxu0
        %v795 = vadd.f32 %v756, %v794
        %v796 = vpop.f32.mrf.mxu0
        %v797 = vadd.f32 %v757, %v796
        %v798 = vpop.f32.mrf.mxu0
        %v799 = vpop.f32.mrf.mxu0
        %800 = vdwg.mxu0
        %801 = vmatprep.subr.bf16.mxu0 %v489
        %802 = vmatpush1.bf16.msra.mxu0 %v488
        %803 = vmatprep.subr.bf16.mxu0 %v485
        %804 = vmatpush1.bf16.msra.mxu0 %v484
        %805 = vmatprep.subr.bf16.mxu0 %v481
        %806 = vmatpush1.bf16.msra.mxu0 %v480
        %807 = vmatprep.subr.bf16.mxu0 %v477
        %808 = vmatpush1.bf16.msra.mxu0 %v476
        %809 = vmatprep.subr.bf16.mxu0 %v473
        %810 = vmatpush1.bf16.msra.mxu0 %v472
        %811 = vmatprep.subr.bf16.mxu0 %v469
        %812 = vmatpush1.bf16.msra.mxu0 %v468
        %813 = vmatprep.subr.bf16.mxu0 %v465
        %814 = vmatpush1.bf16.msra.mxu0 %v464
        %815 = vmatprep.subr.bf16.mxu0 %v461
        %816 = vmatpush1.bf16.msra.mxu0 %v460
        %817 = vmatprep.subr.bf16.mxu0 0
        %818 = vmatpush2.bf16.msra.mxu0 0
        %819 = vmatprep.subr.bf16.mxu0 0
        %820 = vmatpush2.bf16.msra.mxu0 0
        %821 = vmatprep.subr.bf16.mxu0 0
        %822 = vmatpush2.bf16.msra.mxu0 0
        %823 = vmatprep.subr.bf16.mxu0 0
        %824 = vmatpush2.bf16.msra.mxu0 0
        %825 = vmatprep.subr.bf16.mxu0 0
        %826 = vmatpush2.bf16.msra.mxu0 0
        %827 = vmatprep.subr.bf16.mxu0 0
        %828 = vmatpush2.bf16.msra.mxu0 0
        %829 = vmatprep.subr.bf16.mxu0 0
        %830 = vmatpush2.bf16.msra.mxu0 0
        %831 = vmatprep.subr.bf16.mxu0 0
        %832 = vmatpush2.bf16.msra.mxu0 0
        %833 = vmatprep.mubr.bf16.mxu0 0
        %834 = vmatmul.mubr.bf16.gmra.mxu0 %v747
        %v835 = vpop.f32.mrf.mxu0
        %v836 = vadd.f32 %v758, %v835
        %v837 = vpop.f32.mrf.mxu0
        %v838 = vadd.f32 %v759, %v837
        %v839 = vpop.f32.mrf.mxu0
        %v840 = vpop.f32.mrf.mxu0
        %841 = vdwg.mxu0
        %v842 = vxor.u32 %v795, 2147483648
        %v843 = vmul.f32 %v842, 1.442695
        %v844 = vpow.pop %v843
        %v845 = vadd.f32 %v844, 1.0
        %v846 = vrcp.pop %v845
        %v847 = vmul.f32 1.0, %v846
        %v848 = vxor.u32 %v797, 2147483648
        %v849 = vmul.f32 %v848, 1.442695
        %v850 = vpow.pop %v849
        %v851 = vadd.f32 %v850, 1.0
        %v852 = vrcp.pop %v851
        %v853 = vmul.f32 1.0, %v852
        %v854 = vtanh.pop %v836
        %v855 = vxor.u32 %v838, 2147483648
        %v856 = vmul.f32 %v855, 1.442695
        %v857 = vpow.pop %v856
        %v858 = vadd.f32 %v857, 1.0
        %v859 = vrcp.pop %v858
        %v860 = vmul.f32 1.0, %v859
        %v861 = vmul.f32 %v853, %v744
        %v862 = vmul.f32 %v847, %v854
        %v863 = vadd.f32 %v861, %v862
        %v864 = vtanh.pop %v863
        %v865 = vmul.f32 %v860, %v864
        %v866 = vpack.c.bf16 %v865, %v865
        %s867 = smul.addr %s752, 4
        %s868 = scalar_lea.vmem %s306, %s867
        %869 = vst [vmem:[%s868] sm:$0xf] %v866
        %s870 = sadd.s32 %s17, 3
        %s871 = smul.u32 %s870, 4
        %s872 = smul.addr %s871, 8
        %s873 = scalar_lea.vmem %s251, %s872 [#allocation4]
        %v874 = vld [vmem:[%s873] sm:$0xff]
        %v875 = vld [vmem:[%s873 + $0x8] sm:$0xff]
        %v876 = vld [vmem:[%s873 + $0x10] sm:$0xff]
        %v877 = vld [vmem:[%s873 + $0x18] sm:$0xff]
        %878 = vmatprep.subr.bf16.mxu0 %v487
        %879 = vmatpush1.bf16.msra.mxu0 %v486
        %880 = vmatprep.subr.bf16.mxu0 %v483
        %881 = vmatpush1.bf16.msra.mxu0 %v482
        %882 = vmatprep.subr.bf16.mxu0 %v479
        %883 = vmatpush1.bf16.msra.mxu0 %v478
        %884 = vmatprep.subr.bf16.mxu0 %v475
        %885 = vmatpush1.bf16.msra.mxu0 %v474
        %886 = vmatprep.subr.bf16.mxu0 %v471
        %887 = vmatpush1.bf16.msra.mxu0 %v470
        %888 = vmatprep.subr.bf16.mxu0 %v467
        %889 = vmatpush1.bf16.msra.mxu0 %v466
        %890 = vmatprep.subr.bf16.mxu0 %v463
        %891 = vmatpush1.bf16.msra.mxu0 %v462
        %892 = vmatprep.subr.bf16.mxu0 %v459
        %893 = vmatpush1.bf16.msra.mxu0 %v458
        %894 = vmatprep.subr.bf16.mxu0 0
        %895 = vmatpush2.bf16.msra.mxu0 0
        %896 = vmatprep.subr.bf16.mxu0 0
        %897 = vmatpush2.bf16.msra.mxu0 0
        %898 = vmatprep.subr.bf16.mxu0 0
        %899 = vmatpush2.bf16.msra.mxu0 0
        %900 = vmatprep.subr.bf16.mxu0 0
        %901 = vmatpush2.bf16.msra.mxu0 0
        %902 = vmatprep.subr.bf16.mxu0 0
        %903 = vmatpush2.bf16.msra.mxu0 0
        %904 = vmatprep.subr.bf16.mxu0 0
        %905 = vmatpush2.bf16.msra.mxu0 0
        %906 = vmatprep.subr.bf16.mxu0 0
        %907 = vmatpush2.bf16.msra.mxu0 0
        %908 = vmatprep.subr.bf16.mxu0 0
        %909 = vmatpush2.bf16.msra.mxu0 0
        %910 = vmatprep.mubr.bf16.mxu0 0
        %911 = vmatmul.mubr.bf16.gmra.mxu0 %v866
        %v912 = vpop.f32.mrf.mxu0
        %v913 = vadd.f32 %v874, %v912
        %v914 = vpop.f32.mrf.mxu0
        %v915 = vadd.f32 %v875, %v914
        %v916 = vpop.f32.mrf.mxu0
        %v917 = vpop.f32.mrf.mxu0
        %918 = vdwg.mxu0
        %919 = vmatprep.subr.bf16.mxu0 %v489
        %920 = vmatpush1.bf16.msra.mxu0 %v488
        %921 = vmatprep.subr.bf16.mxu0 %v485
        %922 = vmatpush1.bf16.msra.mxu0 %v484
        %923 = vmatprep.subr.bf16.mxu0 %v481
        %924 = vmatpush1.bf16.msra.mxu0 %v480
        %925 = vmatprep.subr.bf16.mxu0 %v477
        %926 = vmatpush1.bf16.msra.mxu0 %v476
        %927 = vmatprep.subr.bf16.mxu0 %v473
        %928 = vmatpush1.bf16.msra.mxu0 %v472
        %929 = vmatprep.subr.bf16.mxu0 %v469
        %930 = vmatpush1.bf16.msra.mxu0 %v468
        %931 = vmatprep.subr.bf16.mxu0 %v465
        %932 = vmatpush1.bf16.msra.mxu0 %v464
        %933 = vmatprep.subr.bf16.mxu0 %v461
        %934 = vmatpush1.bf16.msra.mxu0 %v460
        %935 = vmatprep.subr.bf16.mxu0 0
        %936 = vmatpush2.bf16.msra.mxu0 0
        %937 = vmatprep.subr.bf16.mxu0 0
        %938 = vmatpush2.bf16.msra.mxu0 0
        %939 = vmatprep.subr.bf16.mxu0 0
        %940 = vmatpush2.bf16.msra.mxu0 0
        %941 = vmatprep.subr.bf16.mxu0 0
        %942 = vmatpush2.bf16.msra.mxu0 0
        %943 = vmatprep.subr.bf16.mxu0 0
        %944 = vmatpush2.bf16.msra.mxu0 0
        %945 = vmatprep.subr.bf16.mxu0 0
        %946 = vmatpush2.bf16.msra.mxu0 0
        %947 = vmatprep.subr.bf16.mxu0 0
        %948 = vmatpush2.bf16.msra.mxu0 0
        %949 = vmatprep.subr.bf16.mxu0 0
        %950 = vmatpush2.bf16.msra.mxu0 0
        %951 = vmatprep.mubr.bf16.mxu0 0
        %952 = vmatmul.mubr.bf16.gmra.mxu0 %v866
        %v953 = vpop.f32.mrf.mxu0
        %v954 = vadd.f32 %v876, %v953
        %v955 = vpop.f32.mrf.mxu0
        %v956 = vadd.f32 %v877, %v955
        %v957 = vpop.f32.mrf.mxu0
        %v958 = vpop.f32.mrf.mxu0
        %959 = vdwg.mxu0
        %v960 = vxor.u32 %v913, 2147483648
        %v961 = vmul.f32 %v960, 1.442695
        %v962 = vpow.pop %v961
        %v963 = vadd.f32 %v962, 1.0
        %v964 = vrcp.pop %v963
        %v965 = vmul.f32 1.0, %v964
        %v966 = vxor.u32 %v915, 2147483648
        %v967 = vmul.f32 %v966, 1.442695
        %v968 = vpow.pop %v967
        %v969 = vadd.f32 %v968, 1.0
        %v970 = vrcp.pop %v969
        %v971 = vmul.f32 1.0, %v970
        %v972 = vtanh.pop %v954
        %v973 = vxor.u32 %v956, 2147483648
        %v974 = vmul.f32 %v973, 1.442695
        %v975 = vpow.pop %v974
        %v976 = vadd.f32 %v975, 1.0
        %v977 = vrcp.pop %v976
        %v978 = vmul.f32 1.0, %v977
        %v979 = vmul.f32 %v971, %v863
        %v980 = vmul.f32 %v965, %v972
        %v981 = vadd.f32 %v979, %v980
        %v982 = vtanh.pop %v981
        %v983 = vmul.f32 %v978, %v982
        %v984 = vpack.c.bf16 %v983, %v983
        %s985 = smul.addr %s870, 4
        %s986 = scalar_lea.vmem %s306, %s985
        %987 = vst [vmem:[%s986] sm:$0xf] %v984
        %s988 = ssub.s32 4, %s17
        %s989 = smul.u32 %s988, 4
        %s990 = smul.addr %s989, 8
        %s991 = scalar_lea.vmem %s251, %s990 [#allocation4]
        %v992 = vld [vmem:[%s991] sm:$0xff]
        %v993 = vld [vmem:[%s991 + $0x8] sm:$0xff]
        %v994 = vld [vmem:[%s991 + $0x10] sm:$0xff]
        %v995 = vld [vmem:[%s991 + $0x18] sm:$0xff]
        %996 = vmatprep.subr.bf16.mxu0 %v487
        %997 = vmatpush1.bf16.msra.mxu0 %v486
        %998 = vmatprep.subr.bf16.mxu0 %v483
        %999 = vmatpush1.bf16.msra.mxu0 %v482
        %1000 = vmatprep.subr.bf16.mxu0 %v479
        %1001 = vmatpush1.bf16.msra.mxu0 %v478
        %1002 = vmatprep.subr.bf16.mxu0 %v475
        %1003 = vmatpush1.bf16.msra.mxu0 %v474
        %1004 = vmatprep.subr.bf16.mxu0 %v471
        %1005 = vmatpush1.bf16.msra.mxu0 %v470
        %1006 = vmatprep.subr.bf16.mxu0 %v467
        %1007 = vmatpush1.bf16.msra.mxu0 %v466
        %1008 = vmatprep.subr.bf16.mxu0 %v463
        %1009 = vmatpush1.bf16.msra.mxu0 %v462
        %1010 = vmatprep.subr.bf16.mxu0 %v459
        %1011 = vmatpush1.bf16.msra.mxu0 %v458
        %1012 = vmatprep.subr.bf16.mxu0 0
        %1013 = vmatpush2.bf16.msra.mxu0 0
        %1014 = vmatprep.subr.bf16.mxu0 0
        %1015 = vmatpush2.bf16.msra.mxu0 0
        %1016 = vmatprep.subr.bf16.mxu0 0
        %1017 = vmatpush2.bf16.msra.mxu0 0
        %1018 = vmatprep.subr.bf16.mxu0 0
        %1019 = vmatpush2.bf16.msra.mxu0 0
        %1020 = vmatprep.subr.bf16.mxu0 0
        %1021 = vmatpush2.bf16.msra.mxu0 0
        %1022 = vmatprep.subr.bf16.mxu0 0
        %1023 = vmatpush2.bf16.msra.mxu0 0
        %1024 = vmatprep.subr.bf16.mxu0 0
        %1025 = vmatpush2.bf16.msra.mxu0 0
        %1026 = vmatprep.subr.bf16.mxu0 0
        %1027 = vmatpush2.bf16.msra.mxu0 0
        %1028 = vmatprep.mubr.bf16.mxu0 0
        %1029 = vmatmul.mubr.bf16.gmra.mxu0 %v984
        %v1030 = vpop.f32.mrf.mxu0
        %v1031 = vadd.f32 %v992, %v1030
        %v1032 = vpop.f32.mrf.mxu0
        %v1033 = vadd.f32 %v993, %v1032
        %v1034 = vpop.f32.mrf.mxu0
        %v1035 = vpop.f32.mrf.mxu0
        %1036 = vdwg.mxu0
        %1037 = vmatprep.subr.bf16.mxu0 %v489
        %1038 = vmatpush1.bf16.msra.mxu0 %v488
        %1039 = vmatprep.subr.bf16.mxu0 %v485
        %1040 = vmatpush1.bf16.msra.mxu0 %v484
        %1041 = vmatprep.subr.bf16.mxu0 %v481
        %1042 = vmatpush1.bf16.msra.mxu0 %v480
        %1043 = vmatprep.subr.bf16.mxu0 %v477
        %1044 = vmatpush1.bf16.msra.mxu0 %v476
        %1045 = vmatprep.subr.bf16.mxu0 %v473
        %1046 = vmatpush1.bf16.msra.mxu0 %v472
        %1047 = vmatprep.subr.bf16.mxu0 %v469
        %1048 = vmatpush1.bf16.msra.mxu0 %v468
        %1049 = vmatprep.subr.bf16.mxu0 %v465
        %1050 = vmatpush1.bf16.msra.mxu0 %v464
        %1051 = vmatprep.subr.bf16.mxu0 %v461
        %1052 = vmatpush1.bf16.msra.mxu0 %v460
        %1053 = vmatprep.subr.bf16.mxu0 0
        %1054 = vmatpush2.bf16.msra.mxu0 0
        %1055 = vmatprep.subr.bf16.mxu0 0
        %1056 = vmatpush2.bf16.msra.mxu0 0
        %1057 = vmatprep.subr.bf16.mxu0 0
        %1058 = vmatpush2.bf16.msra.mxu0 0
        %1059 = vmatprep.subr.bf16.mxu0 0
        %1060 = vmatpush2.bf16.msra.mxu0 0
        %1061 = vmatprep.subr.bf16.mxu0 0
        %1062 = vmatpush2.bf16.msra.mxu0 0
        %1063 = vmatprep.subr.bf16.mxu0 0
        %1064 = vmatpush2.bf16.msra.mxu0 0
        %1065 = vmatprep.subr.bf16.mxu0 0
        %1066 = vmatpush2.bf16.msra.mxu0 0
        %1067 = vmatprep.subr.bf16.mxu0 0
        %1068 = vmatpush2.bf16.msra.mxu0 0
        %1069 = vmatprep.mubr.bf16.mxu0 0
        %1070 = vmatmul.mubr.bf16.gmra.mxu0 %v984
        %v1071 = vpop.f32.mrf.mxu0
        %v1072 = vadd.f32 %v994, %v1071
        %v1073 = vpop.f32.mrf.mxu0
        %v1074 = vadd.f32 %v995, %v1073
        %v1075 = vpop.f32.mrf.mxu0
        %v1076 = vpop.f32.mrf.mxu0
        %1077 = vdwg.mxu0
        %v1078 = vxor.u32 %v1031, 2147483648
        %v1079 = vmul.f32 %v1078, 1.442695
        %v1080 = vpow.pop %v1079
        %v1081 = vadd.f32 %v1080, 1.0
        %v1082 = vrcp.pop %v1081
        %v1083 = vmul.f32 1.0, %v1082
        %v1084 = vxor.u32 %v1033, 2147483648
        %v1085 = vmul.f32 %v1084, 1.442695
        %v1086 = vpow.pop %v1085
        %v1087 = vadd.f32 %v1086, 1.0
        %v1088 = vrcp.pop %v1087
        %v1089 = vmul.f32 1.0, %v1088
        %v1090 = vtanh.pop %v1072
        %v1091 = vxor.u32 %v1074, 2147483648
        %v1092 = vmul.f32 %v1091, 1.442695
        %v1093 = vpow.pop %v1092
        %v1094 = vadd.f32 %v1093, 1.0
        %v1095 = vrcp.pop %v1094
        %v1096 = vmul.f32 1.0, %v1095
        %v1097 = vmul.f32 %v1089, %v981
        %v1098 = vmul.f32 %v1083, %v1090
        %v1099 = vadd.f32 %v1097, %v1098
        %v1100 = vtanh.pop %v1099
        %v1101 = vmul.f32 %v1096, %v1100
        %v1102 = vpack.c.bf16 %v1101, %v1101
        %s1103 = smul.addr %s988, 4
        %s1104 = scalar_lea.vmem %s306, %s1103
        %1105 = vst [vmem:[%s1104] sm:$0xf] %v1102
        %s1106 = smul.u32 %s17, 4294967293
        %s1107 = sadd.s32 %s1106, 5
        %s1108 = smul.u32 %s1107, 4
        %s1109 = smul.addr %s1108, 8
        %s1110 = scalar_lea.vmem %s251, %s1109 [#allocation4]
        %v1111 = vld [vmem:[%s1110] sm:$0xff]
        %v1112 = vld [vmem:[%s1110 + $0x8] sm:$0xff]
        %v1113 = vld [vmem:[%s1110 + $0x10] sm:$0xff]
        %v1114 = vld [vmem:[%s1110 + $0x18] sm:$0xff]
        %1115 = vmatprep.subr.bf16.mxu0 %v487
        %1116 = vmatpush1.bf16.msra.mxu0 %v486
        %1117 = vmatprep.subr.bf16.mxu0 %v483
        %1118 = vmatpush1.bf16.msra.mxu0 %v482
        %1119 = vmatprep.subr.bf16.mxu0 %v479
        %1120 = vmatpush1.bf16.msra.mxu0 %v478
        %1121 = vmatprep.subr.bf16.mxu0 %v475
        %1122 = vmatpush1.bf16.msra.mxu0 %v474
        %1123 = vmatprep.subr.bf16.mxu0 %v471
        %1124 = vmatpush1.bf16.msra.mxu0 %v470
        %1125 = vmatprep.subr.bf16.mxu0 %v467
        %1126 = vmatpush1.bf16.msra.mxu0 %v466
        %1127 = vmatprep.subr.bf16.mxu0 %v463
        %1128 = vmatpush1.bf16.msra.mxu0 %v462
        %1129 = vmatprep.subr.bf16.mxu0 %v459
        %1130 = vmatpush1.bf16.msra.mxu0 %v458
        %1131 = vmatprep.subr.bf16.mxu0 0
        %1132 = vmatpush2.bf16.msra.mxu0 0
        %1133 = vmatprep.subr.bf16.mxu0 0
        %1134 = vmatpush2.bf16.msra.mxu0 0
        %1135 = vmatprep.subr.bf16.mxu0 0
        %1136 = vmatpush2.bf16.msra.mxu0 0
        %1137 = vmatprep.subr.bf16.mxu0 0
        %1138 = vmatpush2.bf16.msra.mxu0 0
        %1139 = vmatprep.subr.bf16.mxu0 0
        %1140 = vmatpush2.bf16.msra.mxu0 0
        %1141 = vmatprep.subr.bf16.mxu0 0
        %1142 = vmatpush2.bf16.msra.mxu0 0
        %1143 = vmatprep.subr.bf16.mxu0 0
        %1144 = vmatpush2.bf16.msra.mxu0 0
        %1145 = vmatprep.subr.bf16.mxu0 0
        %1146 = vmatpush2.bf16.msra.mxu0 0
        %1147 = vmatprep.mubr.bf16.mxu0 0
        %1148 = vmatmul.mubr.bf16.gmra.mxu0 %v1102
        %v1149 = vpop.f32.mrf.mxu0
        %v1150 = vadd.f32 %v1111, %v1149
        %v1151 = vpop.f32.mrf.mxu0
        %v1152 = vadd.f32 %v1112, %v1151
        %v1153 = vpop.f32.mrf.mxu0
        %v1154 = vpop.f32.mrf.mxu0
        %1155 = vdwg.mxu0
        %1156 = vmatprep.subr.bf16.mxu0 %v489
        %1157 = vmatpush1.bf16.msra.mxu0 %v488
        %1158 = vmatprep.subr.bf16.mxu0 %v485
        %1159 = vmatpush1.bf16.msra.mxu0 %v484
        %1160 = vmatprep.subr.bf16.mxu0 %v481
        %1161 = vmatpush1.bf16.msra.mxu0 %v480
        %1162 = vmatprep.subr.bf16.mxu0 %v477
        %1163 = vmatpush1.bf16.msra.mxu0 %v476
        %1164 = vmatprep.subr.bf16.mxu0 %v473
        %1165 = vmatpush1.bf16.msra.mxu0 %v472
        %1166 = vmatprep.subr.bf16.mxu0 %v469
        %1167 = vmatpush1.bf16.msra.mxu0 %v468
        %1168 = vmatprep.subr.bf16.mxu0 %v465
        %1169 = vmatpush1.bf16.msra.mxu0 %v464
        %1170 = vmatprep.subr.bf16.mxu0 %v461
        %1171 = vmatpush1.bf16.msra.mxu0 %v460
        %1172 = vmatprep.subr.bf16.mxu0 0
        %1173 = vmatpush2.bf16.msra.mxu0 0
        %1174 = vmatprep.subr.bf16.mxu0 0
        %1175 = vmatpush2.bf16.msra.mxu0 0
        %1176 = vmatprep.subr.bf16.mxu0 0
        %1177 = vmatpush2.bf16.msra.mxu0 0
        %1178 = vmatprep.subr.bf16.mxu0 0
        %1179 = vmatpush2.bf16.msra.mxu0 0
        %1180 = vmatprep.subr.bf16.mxu0 0
        %1181 = vmatpush2.bf16.msra.mxu0 0
        %1182 = vmatprep.subr.bf16.mxu0 0
        %1183 = vmatpush2.bf16.msra.mxu0 0
        %1184 = vmatprep.subr.bf16.mxu0 0
        %1185 = vmatpush2.bf16.msra.mxu0 0
        %1186 = vmatprep.subr.bf16.mxu0 0
        %1187 = vmatpush2.bf16.msra.mxu0 0
        %1188 = vmatprep.mubr.bf16.mxu0 0
        %1189 = vmatmul.mubr.bf16.gmra.mxu0 %v1102
        %v1190 = vpop.f32.mrf.mxu0
        %v1191 = vadd.f32 %v1113, %v1190
        %v1192 = vpop.f32.mrf.mxu0
        %v1193 = vadd.f32 %v1114, %v1192
        %v1194 = vpop.f32.mrf.mxu0
        %v1195 = vpop.f32.mrf.mxu0
        %1196 = vdwg.mxu0
        %v1197 = vxor.u32 %v1150, 2147483648
        %v1198 = vmul.f32 %v1197, 1.442695
        %v1199 = vpow.pop %v1198
        %v1200 = vadd.f32 %v1199, 1.0
        %v1201 = vrcp.pop %v1200
        %v1202 = vmul.f32 1.0, %v1201
        %v1203 = vxor.u32 %v1152, 2147483648
        %v1204 = vmul.f32 %v1203, 1.442695
        %v1205 = vpow.pop %v1204
        %v1206 = vadd.f32 %v1205, 1.0
        %v1207 = vrcp.pop %v1206
        %v1208 = vmul.f32 1.0, %v1207
        %v1209 = vtanh.pop %v1191
        %v1210 = vxor.u32 %v1193, 2147483648
        %v1211 = vmul.f32 %v1210, 1.442695
        %v1212 = vpow.pop %v1211
        %v1213 = vadd.f32 %v1212, 1.0
        %v1214 = vrcp.pop %v1213
        %v1215 = vmul.f32 1.0, %v1214
        %v1216 = vmul.f32 %v1208, %v1099
        %v1217 = vmul.f32 %v1202, %v1209
        %v1218 = vadd.f32 %v1216, %v1217
        %v1219 = vtanh.pop %v1218
        %v1220 = vmul.f32 %v1215, %v1219
        %v1221 = vpack.c.bf16 %v1220, %v1220
        %s1222 = smul.addr %s1107, 4
        %s1223 = scalar_lea.vmem %s306, %s1222
        %1224 = vst [vmem:[%s1223] sm:$0xf] %v1221
        %s1225 = smul.u32 %s17, 4294967291
        %s1226 = sadd.s32 %s1225, 6
        %s1227 = smul.u32 %s1226, 4
        %s1228 = smul.addr %s1227, 8
        %s1229 = scalar_lea.vmem %s251, %s1228 [#allocation4]
        %v1230 = vld [vmem:[%s1229] sm:$0xff]
        %v1231 = vld [vmem:[%s1229 + $0x8] sm:$0xff]
        %v1232 = vld [vmem:[%s1229 + $0x10] sm:$0xff]
        %v1233 = vld [vmem:[%s1229 + $0x18] sm:$0xff]
        %1234 = vmatprep.subr.bf16.mxu0 %v487
        %1235 = vmatpush1.bf16.msra.mxu0 %v486
        %1236 = vmatprep.subr.bf16.mxu0 %v483
        %1237 = vmatpush1.bf16.msra.mxu0 %v482
        %1238 = vmatprep.subr.bf16.mxu0 %v479
        %1239 = vmatpush1.bf16.msra.mxu0 %v478
        %1240 = vmatprep.subr.bf16.mxu0 %v475
        %1241 = vmatpush1.bf16.msra.mxu0 %v474
        %1242 = vmatprep.subr.bf16.mxu0 %v471
        %1243 = vmatpush1.bf16.msra.mxu0 %v470
        %1244 = vmatprep.subr.bf16.mxu0 %v467
        %1245 = vmatpush1.bf16.msra.mxu0 %v466
        %1246 = vmatprep.subr.bf16.mxu0 %v463
        %1247 = vmatpush1.bf16.msra.mxu0 %v462
        %1248 = vmatprep.subr.bf16.mxu0 %v459
        %1249 = vmatpush1.bf16.msra.mxu0 %v458
        %1250 = vmatprep.subr.bf16.mxu0 0
        %1251 = vmatpush2.bf16.msra.mxu0 0
        %1252 = vmatprep.subr.bf16.mxu0 0
        %1253 = vmatpush2.bf16.msra.mxu0 0
        %1254 = vmatprep.subr.bf16.mxu0 0
        %1255 = vmatpush2.bf16.msra.mxu0 0
        %1256 = vmatprep.subr.bf16.mxu0 0
        %1257 = vmatpush2.bf16.msra.mxu0 0
        %1258 = vmatprep.subr.bf16.mxu0 0
        %1259 = vmatpush2.bf16.msra.mxu0 0
        %1260 = vmatprep.subr.bf16.mxu0 0
        %1261 = vmatpush2.bf16.msra.mxu0 0
        %1262 = vmatprep.subr.bf16.mxu0 0
        %1263 = vmatpush2.bf16.msra.mxu0 0
        %1264 = vmatprep.subr.bf16.mxu0 0
        %1265 = vmatpush2.bf16.msra.mxu0 0
        %1266 = vmatprep.mubr.bf16.mxu0 0
        %1267 = vmatmul.mubr.bf16.gmra.mxu0 %v1221
        %v1268 = vpop.f32.mrf.mxu0
        %v1269 = vadd.f32 %v1230, %v1268
        %v1270 = vpop.f32.mrf.mxu0
        %v1271 = vadd.f32 %v1231, %v1270
        %v1272 = vpop.f32.mrf.mxu0
        %v1273 = vpop.f32.mrf.mxu0
        %1274 = vdwg.mxu0
        %1275 = vmatprep.subr.bf16.mxu0 %v489
        %1276 = vmatpush1.bf16.msra.mxu0 %v488
        %1277 = vmatprep.subr.bf16.mxu0 %v485
        %1278 = vmatpush1.bf16.msra.mxu0 %v484
        %1279 = vmatprep.subr.bf16.mxu0 %v481
        %1280 = vmatpush1.bf16.msra.mxu0 %v480
        %1281 = vmatprep.subr.bf16.mxu0 %v477
        %1282 = vmatpush1.bf16.msra.mxu0 %v476
        %1283 = vmatprep.subr.bf16.mxu0 %v473
        %1284 = vmatpush1.bf16.msra.mxu0 %v472
        %1285 = vmatprep.subr.bf16.mxu0 %v469
        %1286 = vmatpush1.bf16.msra.mxu0 %v468
        %1287 = vmatprep.subr.bf16.mxu0 %v465
        %1288 = vmatpush1.bf16.msra.mxu0 %v464
        %1289 = vmatprep.subr.bf16.mxu0 %v461
        %1290 = vmatpush1.bf16.msra.mxu0 %v460
        %1291 = vmatprep.subr.bf16.mxu0 0
        %1292 = vmatpush2.bf16.msra.mxu0 0
        %1293 = vmatprep.subr.bf16.mxu0 0
        %1294 = vmatpush2.bf16.msra.mxu0 0
        %1295 = vmatprep.subr.bf16.mxu0 0
        %1296 = vmatpush2.bf16.msra.mxu0 0
        %1297 = vmatprep.subr.bf16.mxu0 0
        %1298 = vmatpush2.bf16.msra.mxu0 0
        %1299 = vmatprep.subr.bf16.mxu0 0
        %1300 = vmatpush2.bf16.msra.mxu0 0
        %1301 = vmatprep.subr.bf16.mxu0 0
        %1302 = vmatpush2.bf16.msra.mxu0 0
        %1303 = vmatprep.subr.bf16.mxu0 0
        %1304 = vmatpush2.bf16.msra.mxu0 0
        %1305 = vmatprep.subr.bf16.mxu0 0
        %1306 = vmatpush2.bf16.msra.mxu0 0
        %1307 = vmatprep.mubr.bf16.mxu0 0
        %1308 = vmatmul.mubr.bf16.gmra.mxu0 %v1221
        %v1309 = vpop.f32.mrf.mxu0
        %v1310 = vadd.f32 %v1232, %v1309
        %v1311 = vpop.f32.mrf.mxu0
        %v1312 = vadd.f32 %v1233, %v1311
        %v1313 = vpop.f32.mrf.mxu0
        %v1314 = vpop.f32.mrf.mxu0
        %1315 = vdwg.mxu0
        %v1316 = vxor.u32 %v1269, 2147483648
        %v1317 = vmul.f32 %v1316, 1.442695
        %v1318 = vpow.pop %v1317
        %v1319 = vadd.f32 %v1318, 1.0
        %v1320 = vrcp.pop %v1319
        %v1321 = vmul.f32 1.0, %v1320
        %v1322 = vxor.u32 %v1271, 2147483648
        %v1323 = vmul.f32 %v1322, 1.442695
        %v1324 = vpow.pop %v1323
        %v1325 = vadd.f32 %v1324, 1.0
        %v1326 = vrcp.pop %v1325
        %v1327 = vmul.f32 1.0, %v1326
        %v1328 = vtanh.pop %v1310
        %v1329 = vxor.u32 %v1312, 2147483648
        %v1330 = vmul.f32 %v1329, 1.442695
        %v1331 = vpow.pop %v1330
        %v1332 = vadd.f32 %v1331, 1.0
        %v1333 = vrcp.pop %v1332
        %v1334 = vmul.f32 1.0, %v1333
        %v1335 = vmul.f32 %v1327, %v1218
        %v1336 = vmul.f32 %v1321, %v1328
        %v1337 = vadd.f32 %v1335, %v1336
        %v1338 = vtanh.pop %v1337
        %v1339 = vmul.f32 %v1334, %v1338
        %v1340 = vpack.c.bf16 %v1339, %v1339
        %s1341 = smul.addr %s1226, 4
        %s1342 = scalar_lea.vmem %s306, %s1341
        %1343 = vst [vmem:[%s1342] sm:$0xf] %v1340
        %s1344 = smul.u32 %s17, 4294967289
        %s1345 = sadd.s32 %s1344, 7
        %s1346 = smul.u32 %s1345, 4
        %s1347 = smul.addr %s1346, 8
        %s1348 = scalar_lea.vmem %s251, %s1347 [#allocation4]
        %v1349 = vld [vmem:[%s1348] sm:$0xff]
        %v1350 = vld [vmem:[%s1348 + $0x8] sm:$0xff]
        %v1351 = vld [vmem:[%s1348 + $0x10] sm:$0xff]
        %v1352 = vld [vmem:[%s1348 + $0x18] sm:$0xff]
        %1353 = vmatprep.subr.bf16.mxu0 %v487
        %1354 = vmatpush1.bf16.msra.mxu0 %v486
        %1355 = vmatprep.subr.bf16.mxu0 %v483
        %1356 = vmatpush1.bf16.msra.mxu0 %v482
        %1357 = vmatprep.subr.bf16.mxu0 %v479
        %1358 = vmatpush1.bf16.msra.mxu0 %v478
        %1359 = vmatprep.subr.bf16.mxu0 %v475
        %1360 = vmatpush1.bf16.msra.mxu0 %v474
        %1361 = vmatprep.subr.bf16.mxu0 %v471
        %1362 = vmatpush1.bf16.msra.mxu0 %v470
        %1363 = vmatprep.subr.bf16.mxu0 %v467
        %1364 = vmatpush1.bf16.msra.mxu0 %v466
        %1365 = vmatprep.subr.bf16.mxu0 %v463
        %1366 = vmatpush1.bf16.msra.mxu0 %v462
        %1367 = vmatprep.subr.bf16.mxu0 %v459
        %1368 = vmatpush1.bf16.msra.mxu0 %v458
        %1369 = vmatprep.subr.bf16.mxu0 0
        %1370 = vmatpush2.bf16.msra.mxu0 0
        %1371 = vmatprep.subr.bf16.mxu0 0
        %1372 = vmatpush2.bf16.msra.mxu0 0
        %1373 = vmatprep.subr.bf16.mxu0 0
        %1374 = vmatpush2.bf16.msra.mxu0 0
        %1375 = vmatprep.subr.bf16.mxu0 0
        %1376 = vmatpush2.bf16.msra.mxu0 0
        %1377 = vmatprep.subr.bf16.mxu0 0
        %1378 = vmatpush2.bf16.msra.mxu0 0
        %1379 = vmatprep.subr.bf16.mxu0 0
        %1380 = vmatpush2.bf16.msra.mxu0 0
        %1381 = vmatprep.subr.bf16.mxu0 0
        %1382 = vmatpush2.bf16.msra.mxu0 0
        %1383 = vmatprep.subr.bf16.mxu0 0
        %1384 = vmatpush2.bf16.msra.mxu0 0
        %1385 = vmatprep.mubr.bf16.mxu0 0
        %1386 = vmatmul.mubr.bf16.gmra.mxu0 %v1340
        %v1387 = vpop.f32.mrf.mxu0
        %v1388 = vadd.f32 %v1349, %v1387
        %v1389 = vpop.f32.mrf.mxu0
        %v1390 = vadd.f32 %v1350, %v1389
        %v1391 = vpop.f32.mrf.mxu0
        %v1392 = vpop.f32.mrf.mxu0
        %1393 = vdwg.mxu0
        %1394 = vmatprep.subr.bf16.mxu0 %v489
        %1395 = vmatpush1.bf16.msra.mxu0 %v488
        %1396 = vmatprep.subr.bf16.mxu0 %v485
        %1397 = vmatpush1.bf16.msra.mxu0 %v484
        %1398 = vmatprep.subr.bf16.mxu0 %v481
        %1399 = vmatpush1.bf16.msra.mxu0 %v480
        %1400 = vmatprep.subr.bf16.mxu0 %v477
        %1401 = vmatpush1.bf16.msra.mxu0 %v476
        %1402 = vmatprep.subr.bf16.mxu0 %v473
        %1403 = vmatpush1.bf16.msra.mxu0 %v472
        %1404 = vmatprep.subr.bf16.mxu0 %v469
        %1405 = vmatpush1.bf16.msra.mxu0 %v468
        %1406 = vmatprep.subr.bf16.mxu0 %v465
        %1407 = vmatpush1.bf16.msra.mxu0 %v464
        %1408 = vmatprep.subr.bf16.mxu0 %v461
        %1409 = vmatpush1.bf16.msra.mxu0 %v460
        %1410 = vmatprep.subr.bf16.mxu0 0
        %1411 = vmatpush2.bf16.msra.mxu0 0
        %1412 = vmatprep.subr.bf16.mxu0 0
        %1413 = vmatpush2.bf16.msra.mxu0 0
        %1414 = vmatprep.subr.bf16.mxu0 0
        %1415 = vmatpush2.bf16.msra.mxu0 0
        %1416 = vmatprep.subr.bf16.mxu0 0
        %1417 = vmatpush2.bf16.msra.mxu0 0
        %1418 = vmatprep.subr.bf16.mxu0 0
        %1419 = vmatpush2.bf16.msra.mxu0 0
        %1420 = vmatprep.subr.bf16.mxu0 0
        %1421 = vmatpush2.bf16.msra.mxu0 0
        %1422 = vmatprep.subr.bf16.mxu0 0
        %1423 = vmatpush2.bf16.msra.mxu0 0
        %1424 = vmatprep.subr.bf16.mxu0 0
        %1425 = vmatpush2.bf16.msra.mxu0 0
        %1426 = vmatprep.mubr.bf16.mxu0 0
        %1427 = vmatmul.mubr.bf16.gmra.mxu0 %v1340
        %v1428 = vpop.f32.mrf.mxu0
        %v1429 = vadd.f32 %v1351, %v1428
        %v1430 = vpop.f32.mrf.mxu0
        %v1431 = vadd.f32 %v1352, %v1430
        %v1432 = vpop.f32.mrf.mxu0
        %v1433 = vpop.f32.mrf.mxu0
        %1434 = vdwg.mxu0
        %v1435 = vxor.u32 %v1388, 2147483648
        %v1436 = vmul.f32 %v1435, 1.442695
        %v1437 = vpow.pop %v1436
        %v1438 = vadd.f32 %v1437, 1.0
        %v1439 = vrcp.pop %v1438
        %v1440 = vmul.f32 1.0, %v1439
        %v1441 = vxor.u32 %v1390, 2147483648
        %v1442 = vmul.f32 %v1441, 1.442695
        %v1443 = vpow.pop %v1442
        %v1444 = vadd.f32 %v1443, 1.0
        %v1445 = vrcp.pop %v1444
        %v1446 = vmul.f32 1.0, %v1445
        %v1447 = vtanh.pop %v1429
        %v1448 = vxor.u32 %v1431, 2147483648
        %v1449 = vmul.f32 %v1448, 1.442695
        %v1450 = vpow.pop %v1449
        %v1451 = vadd.f32 %v1450, 1.0
        %v1452 = vrcp.pop %v1451
        %v1453 = vmul.f32 1.0, %v1452
        %v1454 = vmul.f32 %v1446, %v1337
        %v1455 = vmul.f32 %v1440, %v1447
        %v1456 = vadd.f32 %v1454, %v1455
        %v1457 = vtanh.pop %v1456
        %v1458 = vmul.f32 %v1453, %v1457
        %v1459 = vpack.c.bf16 %v1458, %v1458
        %s1460 = smul.addr %s1345, 4
        %s1461 = scalar_lea.vmem %s306, %s1460
        %1462 = vst [vmem:[%s1461] sm:$0xf] %v1459
        %1463 = vst [vmem:[#allocation2] sm:$0xff] %v1458
        %1464 = vst [vmem:[#allocation3] sm:$0xff] %v1456
        %s1465 = smul.u32 %s18, 2
        %s1466 = ssub.s32 0, %s1465
        %s1467 = smul.u32 %s17, %s1466
        %s1468 = sadd.s32 %s18, %s1467
        %s1469 = smul.u32 8, %s1468
        %p1470 = scmp.lt.s32.totalorder %s17, 1
        %s1471 = scalar_select %p1470, %s17, 1
        %p1472 = scmp.lt.s32.totalorder %s1469, 7
        %s1473 = scalar_select %p1472, %s1469, 7
        %s1474 = smul.addr %s1471, 8
        %s1475 = sadd.s32 %s1473, %s1474
        %s1476 = smul.addr %s1475, 4
        %s1477 = scalar_lea.vmem %s2, %s1476
        // Predicated region
        $region56: #{layer_decoder_forward.8} parent=46 // pred_check
          %p1478 = pneg %p115
        $region57: #{layer_decoder_forward.8} parent=46 // pred_check_branch
          %1480 = sbr.rel (%p1478) target = $region59
        $region58: #{layer_decoder_forward.8} parent=46 // pred_region
          %s1481 = smul.u32 %s18, 2
          %s1482 = ssub.s32 0, %s1481
          %s1483 = smul.u32 %s17, %s1482
          %s1484 = sadd.s32 %s18, %s1483
          %s1485 = smul.u32 8, %s1484
        $region59: #{layer_decoder_forward.8} parent=46 // pred_fallthru
          _
      $region47: #{layer_decoder_forward.8} parent=5 // pred_fallthru
        _
      %p1486 = scmp.le.s32.totalorder 2, %s8
      // Predicated region
      $region60: #{layer_decoder_forward.8} parent=5 // pred_check
        %p1487 = pneg %p1486
      $region61: #{layer_decoder_forward.8} parent=5 // pred_check_branch
        %1489 = sbr.rel (%p1487) target = $region63
      $region62: #{layer_decoder_forward.8} parent=5 // pred_region
        %s1490 = ssub.s32 %s8, 2
        // Predicated region
        $region64: #{layer_decoder_forward.8} parent=62 // pred_check
          %p1491 = pneg %p121
        $region65: #{layer_decoder_forward.8} parent=62 // pred_check_branch
          %1493 = sbr.rel (%p1491) target = $region67
        $region66: #{layer_decoder_forward.8} parent=62 // pred_region
          %s1494 = smul.u32 %s20, 2
          %s1495 = ssub.s32 0, %s1494
          %s1496 = smul.u32 %s19, %s1495
          %s1497 = sadd.s32 %s20, %s1496
          %s1498 = smul.u32 8, %s1497
          %p1499 = scmp.lt.s32.totalorder %s19, 1
          %s1500 = scalar_select %p1499, %s19, 1
          %p1501 = scmp.lt.s32.totalorder %s1498, 7
          %s1502 = scalar_select %p1501, %s1498, 7
          %s1503 = smul.addr %s1500, 8
          %s1504 = sadd.s32 %s1502, %s1503
          %s1505 = smul.addr %s1504, 4
          %s1506 = scalar_lea.vmem %s2, %s1505
        $region67: #{layer_decoder_forward.8} parent=62 // pred_fallthru
          _
      $region63: #{layer_decoder_forward.8} parent=5 // pred_fallthru
        _
    $region6: #{layer_decoder_forward.8} parent=1 // loop_footer
      %s12 = sadd.s32 1, %s8
    $region7: #{layer_decoder_forward.8} parent=1 // loop_footer_branch
      %7 = sbr.rel target = $region3
    $region8: #{layer_decoder_forward.8} parent=1 // loop_exit
      _

// kernel: layer_decoder_forward.9
$region0: #{layer_decoder_forward.9}
  #allocation0 [shape = 'u32[]', space=smem, size = 0x4, offset = 0x4, fixed_abs, tag = 'smem constant byte address 0x4 - core index']
  #allocation1 [shape = 'u32[144,128]{1,0:T(1,128)}', space=vmem, size = 0x12000, scoped, tag = 'internal scratch']
  %s0 = inlined_call_operand.vmem [shape: bf16[2,64,128], index: 0, kind: input, shape index: {}, may-alias: {0,1}]
  %s1 = inlined_call_operand.vmem [shape: bf16[2,64,128], index: 1, kind: input, shape index: {}, may-alias: {0,1}]
  %s2 = inlined_call_operand.vmem [shape: f32[1,256], index: 2, kind: input, shape index: {}]
  %s3 = inlined_call_operand.vmem [shape: f32[1,256], index: 3, kind: input, shape index: {}]
  %s4 = inlined_call_operand.vmem [shape: bf16[256,384], index: 4, kind: input, shape index: {}]
  %s5 = inlined_call_operand.vmem [shape: f32[1,384], index: 5, kind: input, shape index: {}]
  %s6 = inlined_call_operand.vmem [shape: f32[64,384], index: 6, kind: output, shape index: {}]
  %s7 = sld [smem:[#allocation0]]
  $region34: #{layer_decoder_forward.9} parent=0
    _
  %s9 = ssub.s32 1, %s7
  %s10 = scalar_select 0, %s9, %s7
  // Predicated region
  $region2: #{layer_decoder_forward.9} parent=0 // pred_check
    _
  $region3: #{layer_decoder_forward.9} parent=0 // pred_check_branch
    %12 = sbr.rel (0) target = $region5
  $region4: #{layer_decoder_forward.9} parent=0 // pred_region
    _
  $region5: #{layer_decoder_forward.9} parent=0 // pred_fallthru
    _
  // Predicated region
  $region6: #{layer_decoder_forward.9} parent=0 // pred_check
    _
  $region7: #{layer_decoder_forward.9} parent=0 // pred_check_branch
    %14 = sbr.rel (0) target = $region9
  $region8: #{layer_decoder_forward.9} parent=0 // pred_region
    %s15 = scalar_lea.vmem %s1, 32
  $region9: #{layer_decoder_forward.9} parent=0 // pred_fallthru
    _
  // Predicated region
  $region10: #{layer_decoder_forward.9} parent=0 // pred_check
    _
  $region11: #{layer_decoder_forward.9} parent=0 // pred_check_branch
    %17 = sbr.rel (0) target = $region13
  $region12: #{layer_decoder_forward.9} parent=0 // pred_region
    _
  $region13: #{layer_decoder_forward.9} parent=0 // pred_fallthru
    _
  // Predicated region
  $region14: #{layer_decoder_forward.9} parent=0 // pred_check
    _
  $region15: #{layer_decoder_forward.9} parent=0 // pred_check_branch
    %19 = sbr.rel (0) target = $region17
  $region16: #{layer_decoder_forward.9} parent=0 // pred_region
    _
  $region17: #{layer_decoder_forward.9} parent=0 // pred_fallthru
    _
  // Predicated region
  $region18: #{layer_decoder_forward.9} parent=0 // pred_check
    _
  $region19: #{layer_decoder_forward.9} parent=0 // pred_check_branch
    %21 = sbr.rel (0) target = $region21
  $region20: #{layer_decoder_forward.9} parent=0 // pred_region
    _
  $region21: #{layer_decoder_forward.9} parent=0 // pred_fallthru
    _
  // Predicated region
  $region22: #{layer_decoder_forward.9} parent=0 // pred_check
    _
  $region23: #{layer_decoder_forward.9} parent=0 // pred_check_branch
    %23 = sbr.rel (0) target = $region25
  $region24: #{layer_decoder_forward.9} parent=0 // pred_region
    _
  $region25: #{layer_decoder_forward.9} parent=0 // pred_fallthru
    _
  %s24 = scalar_lea.vmem %s1, 32
  %s25 = scalar_lea.vmem %s1, 32
  %v27 = vld [vmem:[%s0] sm:$0xf]
  %v28 = vld [vmem:[%s0 + $0x4] sm:$0xf]
  %v29 = vld [vmem:[%s0 + $0x8] sm:$0xf]
  %v30 = vld [vmem:[%s0 + $0xc] sm:$0xf]
  %v31 = vld [vmem:[%s0 + $0x10] sm:$0xf]
  %v32 = vld [vmem:[%s0 + $0x14] sm:$0xf]
  %v33 = vld [vmem:[%s0 + $0x18] sm:$0xf]
  %v34 = vld [vmem:[%s0 + $0x1c] sm:$0xf]
  %v35 = vunpack.c.l.bf16 %v27
  %v36 = vunpack.c.l.bf16 %v28
  %v37 = vunpack.c.l.bf16 %v29
  %v38 = vunpack.c.l.bf16 %v30
  %v39 = vunpack.c.l.bf16 %v31
  %v40 = vunpack.c.l.bf16 %v32
  %v41 = vunpack.c.l.bf16 %v33
  %v42 = vunpack.c.l.bf16 %v34
  %v43 = vld [vmem:[%s25] sm:$0xf]
  %v44 = vld [vmem:[%s25 + $0x4] sm:$0xf]
  %v45 = vld [vmem:[%s25 + $0x8] sm:$0xf]
  %v46 = vld [vmem:[%s25 + $0xc] sm:$0xf]
  %v47 = vld [vmem:[%s25 + $0x10] sm:$0xf]
  %v48 = vld [vmem:[%s25 + $0x14] sm:$0xf]
  %v49 = vld [vmem:[%s25 + $0x18] sm:$0xf]
  %v50 = vld [vmem:[%s25 + $0x1c] sm:$0xf]
  %v51 = vunpack.c.l.bf16 %v43
  %v52 = vunpack.c.l.bf16 %v44
  %v53 = vunpack.c.l.bf16 %v45
  %v54 = vunpack.c.l.bf16 %v46
  %v55 = vunpack.c.l.bf16 %v47
  %v56 = vunpack.c.l.bf16 %v48
  %v57 = vunpack.c.l.bf16 %v49
  %v58 = vunpack.c.l.bf16 %v50
  %59 = vadd.xlane.f32.xlu0 %v35
  %v60 = vpop.xlane.xlu0 %59
  %61 = vadd.xlane.f32.xlu0 %v36
  %v62 = vpop.xlane.xlu0 %61
  %63 = vadd.xlane.f32.xlu0 %v37
  %v64 = vpop.xlane.xlu0 %63
  %65 = vadd.xlane.f32.xlu0 %v38
  %v66 = vpop.xlane.xlu0 %65
  %67 = vadd.xlane.f32.xlu0 %v39
  %v68 = vpop.xlane.xlu0 %67
  %69 = vadd.xlane.f32.xlu0 %v40
  %v70 = vpop.xlane.xlu0 %69
  %71 = vadd.xlane.f32.xlu0 %v41
  %v72 = vpop.xlane.xlu0 %71
  %73 = vadd.xlane.f32.xlu0 %v42
  %v74 = vpop.xlane.xlu0 %73
  %75 = vadd.xlane.f32.xlu0 %v51
  %v76 = vpop.xlane.xlu0 %75
  %77 = vadd.xlane.f32.xlu0 %v52
  %v78 = vpop.xlane.xlu0 %77
  %79 = vadd.xlane.f32.xlu0 %v53
  %v80 = vpop.xlane.xlu0 %79
  %81 = vadd.xlane.f32.xlu0 %v54
  %v82 = vpop.xlane.xlu0 %81
  %83 = vadd.xlane.f32.xlu0 %v55
  %v84 = vpop.xlane.xlu0 %83
  %85 = vadd.xlane.f32.xlu0 %v56
  %v86 = vpop.xlane.xlu0 %85
  %87 = vadd.xlane.f32.xlu0 %v57
  %v88 = vpop.xlane.xlu0 %87
  %89 = vadd.xlane.f32.xlu0 %v58
  %v90 = vpop.xlane.xlu0 %89
  %v91 = vadd.f32 %v60, %v76
  %v92 = vadd.f32 %v62, %v78
  %v93 = vadd.f32 %v64, %v80
  %v94 = vadd.f32 %v66, %v82
  %v95 = vadd.f32 %v68, %v84
  %v96 = vadd.f32 %v70, %v86
  %v97 = vadd.f32 %v72, %v88
  %v98 = vadd.f32 %v74, %v90
  %v99 = vrcp.pop 256.0
  %v100 = vmul.f32 %v91, %v99
  %v101 = vmul.f32 %v92, %v99
  %v102 = vmul.f32 %v93, %v99
  %v103 = vmul.f32 %v94, %v99
  %v104 = vmul.f32 %v95, %v99
  %v105 = vmul.f32 %v96, %v99
  %v106 = vmul.f32 %v97, %v99
  %v107 = vmul.f32 %v98, %v99
  %v108 = vsub.f32 %v35, %v100
  %v109 = vsub.f32 %v36, %v101
  %v110 = vsub.f32 %v37, %v102
  %v111 = vsub.f32 %v38, %v103
  %v112 = vsub.f32 %v39, %v104
  %v113 = vsub.f32 %v40, %v105
  %v114 = vsub.f32 %v41, %v106
  %v115 = vsub.f32 %v42, %v107
  %v116 = vsub.f32 %v51, %v100
  %v117 = vsub.f32 %v52, %v101
  %v118 = vsub.f32 %v53, %v102
  %v119 = vsub.f32 %v54, %v103
  %v120 = vsub.f32 %v55, %v104
  %v121 = vsub.f32 %v56, %v105
  %v122 = vsub.f32 %v57, %v106
  %v123 = vsub.f32 %v58, %v107
  %v124 = vmul.f32 %v108, %v108
  %v125 = vmul.f32 %v109, %v109
  %v126 = vmul.f32 %v110, %v110
  %v127 = vmul.f32 %v111, %v111
  %v128 = vmul.f32 %v112, %v112
  %v129 = vmul.f32 %v113, %v113
  %v130 = vmul.f32 %v114, %v114
  %v131 = vmul.f32 %v115, %v115
  %132 = vadd.xlane.f32.xlu0 %v124
  %v133 = vpop.xlane.xlu0 %132
  %134 = vadd.xlane.f32.xlu0 %v125
  %v135 = vpop.xlane.xlu0 %134
  %136 = vadd.xlane.f32.xlu0 %v126
  %v137 = vpop.xlane.xlu0 %136
  %138 = vadd.xlane.f32.xlu0 %v127
  %v139 = vpop.xlane.xlu0 %138
  %140 = vadd.xlane.f32.xlu0 %v128
  %v141 = vpop.xlane.xlu0 %140
  %142 = vadd.xlane.f32.xlu0 %v129
  %v143 = vpop.xlane.xlu0 %142
  %144 = vadd.xlane.f32.xlu0 %v130
  %v145 = vpop.xlane.xlu0 %144
  %146 = vadd.xlane.f32.xlu0 %v131
  %v147 = vpop.xlane.xlu0 %146
  %v148 = vmul.f32 %v116, %v116
  %v149 = vmul.f32 %v117, %v117
  %v150 = vmul.f32 %v118, %v118
  %v151 = vmul.f32 %v119, %v119
  %v152 = vmul.f32 %v120, %v120
  %v153 = vmul.f32 %v121, %v121
  %v154 = vmul.f32 %v122, %v122
  %v155 = vmul.f32 %v123, %v123
  %156 = vadd.xlane.f32.xlu0 %v148
  %v157 = vpop.xlane.xlu0 %156
  %158 = vadd.xlane.f32.xlu0 %v149
  %v159 = vpop.xlane.xlu0 %158
  %160 = vadd.xlane.f32.xlu0 %v150
  %v161 = vpop.xlane.xlu0 %160
  %162 = vadd.xlane.f32.xlu0 %v151
  %v163 = vpop.xlane.xlu0 %162
  %164 = vadd.xlane.f32.xlu0 %v152
  %v165 = vpop.xlane.xlu0 %164
  %166 = vadd.xlane.f32.xlu0 %v153
  %v167 = vpop.xlane.xlu0 %166
  %168 = vadd.xlane.f32.xlu0 %v154
  %v169 = vpop.xlane.xlu0 %168
  %170 = vadd.xlane.f32.xlu0 %v155
  %v171 = vpop.xlane.xlu0 %170
  %v172 = vadd.f32 %v133, %v157
  %v173 = vadd.f32 %v135, %v159
  %v174 = vadd.f32 %v137, %v161
  %v175 = vadd.f32 %v139, %v163
  %v176 = vadd.f32 %v141, %v165
  %v177 = vadd.f32 %v143, %v167
  %v178 = vadd.f32 %v145, %v169
  %v179 = vadd.f32 %v147, %v171
  %v180 = vmul.f32 %v172, %v99
  %v181 = vmul.f32 %v173, %v99
  %v182 = vmul.f32 %v174, %v99
  %v183 = vmul.f32 %v175, %v99
  %v184 = vmul.f32 %v176, %v99
  %v185 = vmul.f32 %v177, %v99
  %v186 = vmul.f32 %v178, %v99
  %v187 = vmul.f32 %v179, %v99
  %v188 = vadd.f32 %v180, 1e-05
  %v189 = vadd.f32 %v181, 1e-05
  %v190 = vadd.f32 %v182, 1e-05
  %v191 = vadd.f32 %v183, 1e-05
  %v192 = vadd.f32 %v184, 1e-05
  %v193 = vadd.f32 %v185, 1e-05
  %v194 = vadd.f32 %v186, 1e-05
  %v195 = vadd.f32 %v187, 1e-05
  %v196 = vrsqrt.pop %v188
  %v197 = vrsqrt.pop %v189
  %v198 = vrsqrt.pop %v190
  %v199 = vrsqrt.pop %v191
  %v200 = vrsqrt.pop %v192
  %v201 = vrsqrt.pop %v193
  %v202 = vrsqrt.pop %v194
  %v203 = vrsqrt.pop %v195
  %v204 = vmul.f32 %v108, %v196
  %v205 = vmul.f32 %v109, %v197
  %v206 = vmul.f32 %v110, %v198
  %v207 = vmul.f32 %v111, %v199
  %v208 = vmul.f32 %v112, %v200
  %v209 = vmul.f32 %v113, %v201
  %v210 = vmul.f32 %v114, %v202
  %v211 = vmul.f32 %v115, %v203
  %v212 = vld [vmem:[%s2] sm:$0x1]
  %v214 = vlaneseq
  %v215 = vshrl.u32 %v214, 7
  %v216 = vsub.s32 0, %v215
  %v217 = vrot.slane %v212, %v216
  %v219 = vmul.f32 %v204, %v217
  %v220 = vmul.f32 %v205, %v217
  %v221 = vmul.f32 %v206, %v217
  %v222 = vmul.f32 %v207, %v217
  %v223 = vmul.f32 %v208, %v217
  %v224 = vmul.f32 %v209, %v217
  %v225 = vmul.f32 %v210, %v217
  %v226 = vmul.f32 %v211, %v217
  %v227 = vld [vmem:[%s3] sm:$0x1]
  %v229 = vlaneseq
  %v230 = vshrl.u32 %v229, 7
  %v231 = vsub.s32 0, %v230
  %v232 = vrot.slane %v227, %v231
  %v234 = vadd.f32 %v219, %v232
  %v235 = vadd.f32 %v220, %v232
  %v236 = vadd.f32 %v221, %v232
  %v237 = vadd.f32 %v222, %v232
  %v238 = vadd.f32 %v223, %v232
  %v239 = vadd.f32 %v224, %v232
  %v240 = vadd.f32 %v225, %v232
  %v241 = vadd.f32 %v226, %v232
  %v242 = vmul.f32 %v116, %v196
  %v243 = vmul.f32 %v117, %v197
  %v244 = vmul.f32 %v118, %v198
  %v245 = vmul.f32 %v119, %v199
  %v246 = vmul.f32 %v120, %v200
  %v247 = vmul.f32 %v121, %v201
  %v248 = vmul.f32 %v122, %v202
  %v249 = vmul.f32 %v123, %v203
  %v250 = vld [vmem:[%s2 + $0x1] sm:$0x1]
  %v252 = vlaneseq
  %v253 = vshrl.u32 %v252, 7
  %v254 = vsub.s32 0, %v253
  %v255 = vrot.slane %v250, %v254
  %v257 = vmul.f32 %v242, %v255
  %v258 = vmul.f32 %v243, %v255
  %v259 = vmul.f32 %v244, %v255
  %v260 = vmul.f32 %v245, %v255
  %v261 = vmul.f32 %v246, %v255
  %v262 = vmul.f32 %v247, %v255
  %v263 = vmul.f32 %v248, %v255
  %v264 = vmul.f32 %v249, %v255
  %v265 = vld [vmem:[%s3 + $0x1] sm:$0x1]
  %v267 = vlaneseq
  %v268 = vshrl.u32 %v267, 7
  %v269 = vsub.s32 0, %v268
  %v270 = vrot.slane %v265, %v269
  %v272 = vadd.f32 %v257, %v270
  %v273 = vadd.f32 %v258, %v270
  %v274 = vadd.f32 %v259, %v270
  %v275 = vadd.f32 %v260, %v270
  %v276 = vadd.f32 %v261, %v270
  %v277 = vadd.f32 %v262, %v270
  %v278 = vadd.f32 %v263, %v270
  %v279 = vadd.f32 %v264, %v270
  %v280 = vmul.f32 %v234, 0.5
  %v281 = vmul.f32 %v235, 0.5
  %v282 = vmul.f32 %v236, 0.5
  %v283 = vmul.f32 %v237, 0.5
  %v284 = vmul.f32 %v238, 0.5
  %v285 = vmul.f32 %v239, 0.5
  %v286 = vmul.f32 %v240, 0.5
  %v287 = vmul.f32 %v241, 0.5
  %v288 = vmul.f32 %v234, 0.70710677
  %v289 = vmul.f32 %v235, 0.70710677
  %v290 = vmul.f32 %v236, 0.70710677
  %v291 = vmul.f32 %v237, 0.70710677
  %v292 = vmul.f32 %v238, 0.70710677
  %v293 = vmul.f32 %v239, 0.70710677
  %v294 = vmul.f32 %v240, 0.70710677
  %v295 = vmul.f32 %v241, 0.70710677
  %v296 = verf.f32.pop %v288
  %v297 = verf.f32.pop %v289
  %v298 = verf.f32.pop %v290
  %v299 = verf.f32.pop %v291
  %v300 = verf.f32.pop %v292
  %v301 = verf.f32.pop %v293
  %v302 = verf.f32.pop %v294
  %v303 = verf.f32.pop %v295
  %v304 = vadd.f32 %v296, 1.0
  %v305 = vadd.f32 %v297, 1.0
  %v306 = vadd.f32 %v298, 1.0
  %v307 = vadd.f32 %v299, 1.0
  %v308 = vadd.f32 %v300, 1.0
  %v309 = vadd.f32 %v301, 1.0
  %v310 = vadd.f32 %v302, 1.0
  %v311 = vadd.f32 %v303, 1.0
  %v312 = vmul.f32 %v280, %v304
  %v313 = vmul.f32 %v281, %v305
  %v314 = vmul.f32 %v282, %v306
  %v315 = vmul.f32 %v283, %v307
  %v316 = vmul.f32 %v284, %v308
  %v317 = vmul.f32 %v285, %v309
  %v318 = vmul.f32 %v286, %v310
  %v319 = vmul.f32 %v287, %v311
  %v320 = vmul.f32 %v272, 0.5
  %v321 = vmul.f32 %v273, 0.5
  %v322 = vmul.f32 %v274, 0.5
  %v323 = vmul.f32 %v275, 0.5
  %v324 = vmul.f32 %v276, 0.5
  %v325 = vmul.f32 %v277, 0.5
  %v326 = vmul.f32 %v278, 0.5
  %v327 = vmul.f32 %v279, 0.5
  %v328 = vmul.f32 %v272, 0.70710677
  %v329 = vmul.f32 %v273, 0.70710677
  %v330 = vmul.f32 %v274, 0.70710677
  %v331 = vmul.f32 %v275, 0.70710677
  %v332 = vmul.f32 %v276, 0.70710677
  %v333 = vmul.f32 %v277, 0.70710677
  %v334 = vmul.f32 %v278, 0.70710677
  %v335 = vmul.f32 %v279, 0.70710677
  %v336 = verf.f32.pop %v328
  %v337 = verf.f32.pop %v329
  %v338 = verf.f32.pop %v330
  %v339 = verf.f32.pop %v331
  %v340 = verf.f32.pop %v332
  %v341 = verf.f32.pop %v333
  %v342 = verf.f32.pop %v334
  %v343 = verf.f32.pop %v335
  %v344 = vadd.f32 %v336, 1.0
  %v345 = vadd.f32 %v337, 1.0
  %v346 = vadd.f32 %v338, 1.0
  %v347 = vadd.f32 %v339, 1.0
  %v348 = vadd.f32 %v340, 1.0
  %v349 = vadd.f32 %v341, 1.0
  %v350 = vadd.f32 %v342, 1.0
  %v351 = vadd.f32 %v343, 1.0
  %v352 = vmul.f32 %v320, %v344
  %v353 = vmul.f32 %v321, %v345
  %v354 = vmul.f32 %v322, %v346
  %v355 = vmul.f32 %v323, %v347
  %v356 = vmul.f32 %v324, %v348
  %v357 = vmul.f32 %v325, %v349
  %v358 = vmul.f32 %v326, %v350
  %v359 = vmul.f32 %v327, %v351
  %v360 = vpack.c.bf16 %v313, %v312
  %v361 = vpack.c.bf16 %v353, %v352
  %v362 = vpack.c.bf16 %v315, %v314
  %v363 = vpack.c.bf16 %v355, %v354
  %v364 = vpack.c.bf16 %v317, %v316
  %v365 = vpack.c.bf16 %v357, %v356
  %v366 = vpack.c.bf16 %v319, %v318
  %v367 = vpack.c.bf16 %v359, %v358
  %v368 = vld [vmem:[%s4] sm:$0xff]
  %v369 = vld [vmem:[%s4 + $0x8] sm:$0xf]
  %v370 = vld [vmem:[%s4 + $0xc] sm:$0xff]
  %v371 = vld [vmem:[%s4 + $0x14] sm:$0xf]
  %v372 = vld [vmem:[%s4 + $0x18] sm:$0xff]
  %v373 = vld [vmem:[%s4 + $0x20] sm:$0xf]
  %v374 = vld [vmem:[%s4 + $0x24] sm:$0xff]
  %v375 = vld [vmem:[%s4 + $0x2c] sm:$0xf]
  %v376 = vld [vmem:[%s4 + $0x30] sm:$0xff]
  %v377 = vld [vmem:[%s4 + $0x38] sm:$0xf]
  %v378 = vld [vmem:[%s4 + $0x3c] sm:$0xff]
  %v379 = vld [vmem:[%s4 + $0x44] sm:$0xf]
  %v380 = vld [vmem:[%s4 + $0x48] sm:$0xff]
  %v381 = vld [vmem:[%s4 + $0x50] sm:$0xf]
  %v382 = vld [vmem:[%s4 + $0x54] sm:$0xff]
  %v383 = vld [vmem:[%s4 + $0x5c] sm:$0xf]
  %v384 = vld [vmem:[%s4 + $0x60] sm:$0xff]
  %v385 = vld [vmem:[%s4 + $0x68] sm:$0xf]
  %v386 = vld [vmem:[%s4 + $0x6c] sm:$0xff]
  %v387 = vld [vmem:[%s4 + $0x74] sm:$0xf]
  %v388 = vld [vmem:[%s4 + $0x78] sm:$0xff]
  %v389 = vld [vmem:[%s4 + $0x80] sm:$0xf]
  %v390 = vld [vmem:[%s4 + $0x84] sm:$0xff]
  %v391 = vld [vmem:[%s4 + $0x8c] sm:$0xf]
  %v392 = vld [vmem:[%s4 + $0x90] sm:$0xff]
  %v393 = vld [vmem:[%s4 + $0x98] sm:$0xf]
  %v394 = vld [vmem:[%s4 + $0x9c] sm:$0xff]
  %v395 = vld [vmem:[%s4 + $0xa4] sm:$0xf]
  %v396 = vld [vmem:[%s4 + $0xa8] sm:$0xff]
  %v397 = vld [vmem:[%s4 + $0xb0] sm:$0xf]
  %v398 = vld [vmem:[%s4 + $0xb4] sm:$0xff]
  %v399 = vld [vmem:[%s4 + $0xbc] sm:$0xf]
  %v400 = vld [vmem:[%s4 + $0xc0] sm:$0xff]
  %v401 = vld [vmem:[%s4 + $0xc8] sm:$0xf]
  %v402 = vld [vmem:[%s4 + $0xcc] sm:$0xff]
  %v403 = vld [vmem:[%s4 + $0xd4] sm:$0xf]
  %v404 = vld [vmem:[%s4 + $0xd8] sm:$0xff]
  %v405 = vld [vmem:[%s4 + $0xe0] sm:$0xf]
  %v406 = vld [vmem:[%s4 + $0xe4] sm:$0xff]
  %v407 = vld [vmem:[%s4 + $0xec] sm:$0xf]
  %v408 = vld [vmem:[%s4 + $0xf0] sm:$0xff]
  %v409 = vld [vmem:[%s4 + $0xf8] sm:$0xf]
  %v410 = vld [vmem:[%s4 + $0xfc] sm:$0xff]
  %v411 = vld [vmem:[%s4 + $0x104] sm:$0xf]
  %v412 = vld [vmem:[%s4 + $0x108] sm:$0xff]
  %v413 = vld [vmem:[%s4 + $0x110] sm:$0xf]
  %v414 = vld [vmem:[%s4 + $0x114] sm:$0xff]
  %v415 = vld [vmem:[%s4 + $0x11c] sm:$0xf]
  %v416 = vld [vmem:[%s4 + $0x120] sm:$0xff]
  %v417 = vld [vmem:[%s4 + $0x128] sm:$0xf]
  %v418 = vld [vmem:[%s4 + $0x12c] sm:$0xff]
  %v419 = vld [vmem:[%s4 + $0x134] sm:$0xf]
  %v420 = vld [vmem:[%s4 + $0x138] sm:$0xff]
  %v421 = vld [vmem:[%s4 + $0x140] sm:$0xf]
  %v422 = vld [vmem:[%s4 + $0x144] sm:$0xff]
  %v423 = vld [vmem:[%s4 + $0x14c] sm:$0xf]
  %v424 = vld [vmem:[%s4 + $0x150] sm:$0xff]
  %v425 = vld [vmem:[%s4 + $0x158] sm:$0xf]
  %v426 = vld [vmem:[%s4 + $0x15c] sm:$0xff]
  %v427 = vld [vmem:[%s4 + $0x164] sm:$0xf]
  %v428 = vld [vmem:[%s4 + $0x168] sm:$0xff]
  %v429 = vld [vmem:[%s4 + $0x170] sm:$0xf]
  %v430 = vld [vmem:[%s4 + $0x174] sm:$0xff]
  %v431 = vld [vmem:[%s4 + $0x17c] sm:$0xf]
  %v432 = vld [vmem:[%s5] sm:$0x7]
  %v434 = vlaneseq
  %v435 = vshrl.u32 %v434, 7
  %v436 = vsub.s32 0, %v435
  %v437 = vrot.slane %v432, %v436
  %v438 = vlaneseq
  %v439 = vshrl.u32 %v438, 7
  %v440 = vsub.s32 1, %v439
  %v441 = vrot.slane %v432, %v440
  %v442 = vlaneseq
  %v443 = vshrl.u32 %v442, 7
  %v444 = vsub.s32 2, %v443
  %v445 = vrot.slane %v432, %v444
  %v513 = vunpack.c.l.b16 %v368
  %v514 = vunpack.c.h.b16 %v368
  %v515 = vunpack.c.l.b16 %v369
  %v516 = vunpack.c.l.b16 %v370
  %v517 = vunpack.c.h.b16 %v370
  %v518 = vunpack.c.l.b16 %v371
  %v519 = vunpack.c.l.b16 %v372
  %v520 = vunpack.c.h.b16 %v372
  %v521 = vunpack.c.l.b16 %v373
  %v522 = vunpack.c.l.b16 %v374
  %v523 = vunpack.c.h.b16 %v374
  %v524 = vunpack.c.l.b16 %v375
  %v525 = vunpack.c.l.b16 %v376
  %v526 = vunpack.c.h.b16 %v376
  %v527 = vunpack.c.l.b16 %v377
  %v528 = vunpack.c.l.b16 %v378
  %v529 = vunpack.c.h.b16 %v378
  %v530 = vunpack.c.l.b16 %v379
  %v531 = vunpack.c.l.b16 %v380
  %v532 = vunpack.c.h.b16 %v380
  %v533 = vunpack.c.l.b16 %v381
  %v534 = vunpack.c.l.b16 %v382
  %v535 = vunpack.c.h.b16 %v382
  %v536 = vunpack.c.l.b16 %v383
  %v537 = vunpack.c.l.b16 %v384
  %v538 = vunpack.c.h.b16 %v384
  %v539 = vunpack.c.l.b16 %v385
  %v540 = vunpack.c.l.b16 %v386
  %v541 = vunpack.c.h.b16 %v386
  %v542 = vunpack.c.l.b16 %v387
  %v543 = vunpack.c.l.b16 %v388
  %v544 = vunpack.c.h.b16 %v388
  %v545 = vunpack.c.l.b16 %v389
  %v546 = vunpack.c.l.b16 %v390
  %v547 = vunpack.c.h.b16 %v390
  %v548 = vunpack.c.l.b16 %v391
  %v549 = vunpack.c.l.b16 %v392
  %v550 = vunpack.c.h.b16 %v392
  %v551 = vunpack.c.l.b16 %v393
  %v552 = vunpack.c.l.b16 %v394
  %v553 = vunpack.c.h.b16 %v394
  %v554 = vunpack.c.l.b16 %v395
  %v555 = vunpack.c.l.b16 %v396
  %v556 = vunpack.c.h.b16 %v396
  %v557 = vunpack.c.l.b16 %v397
  %v558 = vunpack.c.l.b16 %v398
  %v559 = vunpack.c.h.b16 %v398
  %v560 = vunpack.c.l.b16 %v399
  %v561 = vunpack.c.l.b16 %v400
  %v562 = vunpack.c.h.b16 %v400
  %v563 = vunpack.c.l.b16 %v401
  %v564 = vunpack.c.l.b16 %v402
  %v565 = vunpack.c.h.b16 %v402
  %v566 = vunpack.c.l.b16 %v403
  %v567 = vunpack.c.l.b16 %v404
  %v568 = vunpack.c.h.b16 %v404
  %v569 = vunpack.c.l.b16 %v405
  %v570 = vunpack.c.l.b16 %v406
  %v571 = vunpack.c.h.b16 %v406
  %v572 = vunpack.c.l.b16 %v407
  %v573 = vunpack.c.l.b16 %v408
  %v574 = vunpack.c.h.b16 %v408
  %v575 = vunpack.c.l.b16 %v409
  %v576 = vunpack.c.l.b16 %v410
  %v577 = vunpack.c.h.b16 %v410
  %v578 = vunpack.c.l.b16 %v411
  %v579 = vunpack.c.l.b16 %v412
  %v580 = vunpack.c.h.b16 %v412
  %v581 = vunpack.c.l.b16 %v413
  %v582 = vunpack.c.l.b16 %v414
  %v583 = vunpack.c.h.b16 %v414
  %v584 = vunpack.c.l.b16 %v415
  %v585 = vunpack.c.l.b16 %v416
  %v586 = vunpack.c.h.b16 %v416
  %v587 = vunpack.c.l.b16 %v417
  %v588 = vunpack.c.l.b16 %v418
  %v589 = vunpack.c.h.b16 %v418
  %v590 = vunpack.c.l.b16 %v419
  %v591 = vunpack.c.l.b16 %v420
  %v592 = vunpack.c.h.b16 %v420
  %v593 = vunpack.c.l.b16 %v421
  %v594 = vunpack.c.l.b16 %v422
  %v595 = vunpack.c.h.b16 %v422
  %v596 = vunpack.c.l.b16 %v423
  %v597 = vunpack.c.l.b16 %v424
  %v598 = vunpack.c.h.b16 %v424
  %v599 = vunpack.c.l.b16 %v425
  %v600 = vunpack.c.l.b16 %v426
  %v601 = vunpack.c.h.b16 %v426
  %v602 = vunpack.c.l.b16 %v427
  %v603 = vunpack.c.l.b16 %v428
  %v604 = vunpack.c.h.b16 %v428
  %v605 = vunpack.c.l.b16 %v429
  %v606 = vunpack.c.l.b16 %v430
  %v607 = vunpack.c.h.b16 %v430
  %v608 = vunpack.c.l.b16 %v431
  %v609 = vpack.c.b16 %v516, %v513
  %v610 = vpack.c.b16 %v517, %v514
  %v611 = vpack.c.b16 %v518, %v515
  %v612 = vpack.c.b16 %v522, %v519
  %v613 = vpack.c.b16 %v523, %v520
  %v614 = vpack.c.b16 %v524, %v521
  %v615 = vpack.c.b16 %v528, %v525
  %v616 = vpack.c.b16 %v529, %v526
  %v617 = vpack.c.b16 %v530, %v527
  %v618 = vpack.c.b16 %v534, %v531
  %v619 = vpack.c.b16 %v535, %v532
  %v620 = vpack.c.b16 %v536, %v533
  %v621 = vpack.c.b16 %v540, %v537
  %v622 = vpack.c.b16 %v541, %v538
  %v623 = vpack.c.b16 %v542, %v539
  %v624 = vpack.c.b16 %v546, %v543
  %v625 = vpack.c.b16 %v547, %v544
  %v626 = vpack.c.b16 %v548, %v545
  %v627 = vpack.c.b16 %v552, %v549
  %v628 = vpack.c.b16 %v553, %v550
  %v629 = vpack.c.b16 %v554, %v551
  %v630 = vpack.c.b16 %v558, %v555
  %v631 = vpack.c.b16 %v559, %v556
  %v632 = vpack.c.b16 %v560, %v557
  %v633 = vpack.c.b16 %v564, %v561
  %v634 = vpack.c.b16 %v565, %v562
  %v635 = vpack.c.b16 %v566, %v563
  %v636 = vpack.c.b16 %v570, %v567
  %v637 = vpack.c.b16 %v571, %v568
  %v638 = vpack.c.b16 %v572, %v569
  %v639 = vpack.c.b16 %v576, %v573
  %v640 = vpack.c.b16 %v577, %v574
  %v641 = vpack.c.b16 %v578, %v575
  %v642 = vpack.c.b16 %v582, %v579
  %v643 = vpack.c.b16 %v583, %v580
  %v644 = vpack.c.b16 %v584, %v581
  %v645 = vpack.c.b16 %v588, %v585
  %v646 = vpack.c.b16 %v589, %v586
  %v647 = vpack.c.b16 %v590, %v587
  %v648 = vpack.c.b16 %v594, %v591
  %v649 = vpack.c.b16 %v595, %v592
  %v650 = vpack.c.b16 %v596, %v593
  %v651 = vpack.c.b16 %v600, %v597
  %v652 = vpack.c.b16 %v601, %v598
  %v653 = vpack.c.b16 %v602, %v599
  %v654 = vpack.c.b16 %v606, %v603
  %v655 = vpack.c.b16 %v607, %v604
  %v656 = vpack.c.b16 %v608, %v605
  %705 = vmatprep.subr.bf16.mxu0 %v631
  %706 = vmatpush1.bf16.msra.mxu0 %v630
  %707 = vmatprep.subr.bf16.mxu0 %v628
  %708 = vmatpush1.bf16.msra.mxu0 %v627
  %709 = vmatprep.subr.bf16.mxu0 %v625
  %710 = vmatpush1.bf16.msra.mxu0 %v624
  %711 = vmatprep.subr.bf16.mxu0 %v622
  %712 = vmatpush1.bf16.msra.mxu0 %v621
  %713 = vmatprep.subr.bf16.mxu0 %v619
  %714 = vmatpush1.bf16.msra.mxu0 %v618
  %715 = vmatprep.subr.bf16.mxu0 %v616
  %716 = vmatpush1.bf16.msra.mxu0 %v615
  %717 = vmatprep.subr.bf16.mxu0 %v613
  %718 = vmatpush1.bf16.msra.mxu0 %v612
  %719 = vmatprep.subr.bf16.mxu0 %v610
  %720 = vmatpush1.bf16.msra.mxu0 %v609
  %721 = vmatprep.subr.bf16.mxu0 %v655
  %722 = vmatpush2.bf16.msra.mxu0 %v654
  %723 = vmatprep.subr.bf16.mxu0 %v652
  %724 = vmatpush2.bf16.msra.mxu0 %v651
  %725 = vmatprep.subr.bf16.mxu0 %v649
  %726 = vmatpush2.bf16.msra.mxu0 %v648
  %727 = vmatprep.subr.bf16.mxu0 %v646
  %728 = vmatpush2.bf16.msra.mxu0 %v645
  %729 = vmatprep.subr.bf16.mxu0 %v643
  %730 = vmatpush2.bf16.msra.mxu0 %v642
  %731 = vmatprep.subr.bf16.mxu0 %v640
  %732 = vmatpush2.bf16.msra.mxu0 %v639
  %733 = vmatprep.subr.bf16.mxu0 %v637
  %734 = vmatpush2.bf16.msra.mxu0 %v636
  %735 = vmatprep.subr.bf16.mxu0 %v634
  %736 = vmatpush2.bf16.msra.mxu0 %v633
  %737 = vmatprep.mubr.bf16.mxu0 %v361
  %738 = vmatmul.mubr.bf16.gmra.mxu0 %v360
  %v739 = vpop.f32.mrf.mxu0
  %v740 = vadd.f32 %v437, %v739
  %v741 = vpop.f32.mrf.mxu0
  %v742 = vadd.f32 %v441, %v741
  %v743 = vpop.f32.mrf.mxu0
  %v744 = vadd.f32 %v437, %v743
  %v745 = vpop.f32.mrf.mxu0
  %v746 = vadd.f32 %v441, %v745
  %747 = vmatprep.mubr.bf16.mxu0 %v363
  %748 = vmatmul.mubr.bf16.gmra.mxu0 %v362
  %v749 = vpop.f32.mrf.mxu0
  %v750 = vadd.f32 %v437, %v749
  %v751 = vpop.f32.mrf.mxu0
  %v752 = vadd.f32 %v441, %v751
  %v753 = vpop.f32.mrf.mxu0
  %v754 = vadd.f32 %v437, %v753
  %v755 = vpop.f32.mrf.mxu0
  %v756 = vadd.f32 %v441, %v755
  %757 = vmatprep.mubr.bf16.mxu0 %v365
  %758 = vmatmul.mubr.bf16.gmra.mxu0 %v364
  %v759 = vpop.f32.mrf.mxu0
  %v760 = vadd.f32 %v437, %v759
  %v761 = vpop.f32.mrf.mxu0
  %v762 = vadd.f32 %v441, %v761
  %v763 = vpop.f32.mrf.mxu0
  %v764 = vadd.f32 %v437, %v763
  %v765 = vpop.f32.mrf.mxu0
  %v766 = vadd.f32 %v441, %v765
  %767 = vmatprep.mubr.bf16.mxu0 %v367
  %768 = vmatmul.mubr.bf16.gmra.mxu0 %v366
  %v769 = vpop.f32.mrf.mxu0
  %v770 = vadd.f32 %v437, %v769
  %v771 = vpop.f32.mrf.mxu0
  %v772 = vadd.f32 %v441, %v771
  %v773 = vpop.f32.mrf.mxu0
  %v774 = vadd.f32 %v437, %v773
  %v775 = vpop.f32.mrf.mxu0
  %v776 = vadd.f32 %v441, %v775
  %777 = vdwg.mxu0
  %778 = vmatprep.subr.bf16.mxu0 0
  %779 = vmatpush1.bf16.msra.mxu0 %v632
  %780 = vmatprep.subr.bf16.mxu0 0
  %781 = vmatpush1.bf16.msra.mxu0 %v629
  %782 = vmatprep.subr.bf16.mxu0 0
  %783 = vmatpush1.bf16.msra.mxu0 %v626
  %784 = vmatprep.subr.bf16.mxu0 0
  %785 = vmatpush1.bf16.msra.mxu0 %v623
  %786 = vmatprep.subr.bf16.mxu0 0
  %787 = vmatpush1.bf16.msra.mxu0 %v620
  %788 = vmatprep.subr.bf16.mxu0 0
  %789 = vmatpush1.bf16.msra.mxu0 %v617
  %790 = vmatprep.subr.bf16.mxu0 0
  %791 = vmatpush1.bf16.msra.mxu0 %v614
  %792 = vmatprep.subr.bf16.mxu0 0
  %793 = vmatpush1.bf16.msra.mxu0 %v611
  %794 = vmatprep.subr.bf16.mxu0 0
  %795 = vmatpush2.bf16.msra.mxu0 %v656
  %796 = vmatprep.subr.bf16.mxu0 0
  %797 = vmatpush2.bf16.msra.mxu0 %v653
  %798 = vmatprep.subr.bf16.mxu0 0
  %799 = vmatpush2.bf16.msra.mxu0 %v650
  %800 = vmatprep.subr.bf16.mxu0 0
  %801 = vmatpush2.bf16.msra.mxu0 %v647
  %802 = vmatprep.subr.bf16.mxu0 0
  %803 = vmatpush2.bf16.msra.mxu0 %v644
  %804 = vmatprep.subr.bf16.mxu0 0
  %805 = vmatpush2.bf16.msra.mxu0 %v641
  %806 = vmatprep.subr.bf16.mxu0 0
  %807 = vmatpush2.bf16.msra.mxu0 %v638
  %808 = vmatprep.subr.bf16.mxu0 0
  %809 = vmatpush2.bf16.msra.mxu0 %v635
  %810 = vmatprep.mubr.bf16.mxu0 %v361
  %811 = vmatmul.mubr.bf16.gmra.mxu0 %v360
  %v812 = vpop.f32.mrf.mxu0
  %v813 = vadd.f32 %v445, %v812
  %v814 = vpop.f32.mrf.mxu0
  %v815 = vpop.f32.mrf.mxu0
  %v816 = vadd.f32 %v445, %v815
  %v817 = vpop.f32.mrf.mxu0
  %818 = vmatprep.mubr.bf16.mxu0 %v363
  %819 = vmatmul.mubr.bf16.gmra.mxu0 %v362
  %v820 = vpop.f32.mrf.mxu0
  %v821 = vadd.f32 %v445, %v820
  %v822 = vpop.f32.mrf.mxu0
  %v823 = vpop.f32.mrf.mxu0
  %v824 = vadd.f32 %v445, %v823
  %v825 = vpop.f32.mrf.mxu0
  %826 = vmatprep.mubr.bf16.mxu0 %v365
  %827 = vmatmul.mubr.bf16.gmra.mxu0 %v364
  %v828 = vpop.f32.mrf.mxu0
  %v829 = vadd.f32 %v445, %v828
  %v830 = vpop.f32.mrf.mxu0
  %v831 = vpop.f32.mrf.mxu0
  %v832 = vadd.f32 %v445, %v831
  %v833 = vpop.f32.mrf.mxu0
  %834 = vmatprep.mubr.bf16.mxu0 %v367
  %835 = vmatmul.mubr.bf16.gmra.mxu0 %v366
  %v836 = vpop.f32.mrf.mxu0
  %v837 = vadd.f32 %v445, %v836
  %v838 = vpop.f32.mrf.mxu0
  %v839 = vpop.f32.mrf.mxu0
  %v840 = vadd.f32 %v445, %v839
  %v841 = vpop.f32.mrf.mxu0
  %842 = vdwg.mxu0
  %843 = vst [vmem:[%s6] sm:$0xff] %v740
  %844 = vst [vmem:[%s6 + $0x8] sm:$0xff] %v742
  %845 = vst [vmem:[%s6 + $0x10] sm:$0xff] %v813
  %846 = vst [vmem:[%s6 + $0x18] sm:$0xff] %v744
  %847 = vst [vmem:[%s6 + $0x20] sm:$0xff] %v746
  %848 = vst [vmem:[%s6 + $0x28] sm:$0xff] %v816
  %849 = vst [vmem:[%s6 + $0x30] sm:$0xff] %v750
  %850 = vst [vmem:[%s6 + $0x38] sm:$0xff] %v752
  %851 = vst [vmem:[%s6 + $0x40] sm:$0xff] %v821
  %852 = vst [vmem:[%s6 + $0x48] sm:$0xff] %v754
  %853 = vst [vmem:[%s6 + $0x50] sm:$0xff] %v756
  %854 = vst [vmem:[%s6 + $0x58] sm:$0xff] %v824
  %855 = vst [vmem:[%s6 + $0x60] sm:$0xff] %v760
  %856 = vst [vmem:[%s6 + $0x68] sm:$0xff] %v762
  %857 = vst [vmem:[%s6 + $0x70] sm:$0xff] %v829
  %858 = vst [vmem:[%s6 + $0x78] sm:$0xff] %v764
  %859 = vst [vmem:[%s6 + $0x80] sm:$0xff] %v766
  %860 = vst [vmem:[%s6 + $0x88] sm:$0xff] %v832
  %861 = vst [vmem:[%s6 + $0x90] sm:$0xff] %v770
  %862 = vst [vmem:[%s6 + $0x98] sm:$0xff] %v772
  %863 = vst [vmem:[%s6 + $0xa0] sm:$0xff] %v837
  %864 = vst [vmem:[%s6 + $0xa8] sm:$0xff] %v774
  %865 = vst [vmem:[%s6 + $0xb0] sm:$0xff] %v776
  %866 = vst [vmem:[%s6 + $0xb8] sm:$0xff] %v840
  // Predicated region
  $region26: #{layer_decoder_forward.9} parent=0 // pred_check
    _
  $region27: #{layer_decoder_forward.9} parent=0 // pred_check_branch
    %868 = sbr.rel (0) target = $region29
  $region28: #{layer_decoder_forward.9} parent=0 // pred_region
    _
  $region29: #{layer_decoder_forward.9} parent=0 // pred_fallthru
    _
  // Predicated region
  $region30: #{layer_decoder_forward.9} parent=0 // pred_check
    _
  $region31: #{layer_decoder_forward.9} parent=0 // pred_check_branch
    %870 = sbr.rel (0) target = $region33
  $region32: #{layer_decoder_forward.9} parent=0 // pred_region
    _
  $region33: #{layer_decoder_forward.9} parent=0 // pred_fallthru
    _

</llo_original>
